<compile_context>
chip_gen: v7x
topology: tpu7x:2x2x1
jax: 0.10.0
libtpu: 0.0.40
codegen_flags: <defaults>
</compile_context>

<pallas_src>
import jax
import jax.numpy as jnp
from jax.experimental import pallas as pl
from jax.experimental.pallas import tpu as pltpu

NEG_SLOPE = 0.01  # PyTorch F.leaky_relu default negative_slope
D_IN = 512
D_HID = 1024
D_OUT = 512


def _round_up(n, m):
    return ((n + m - 1) // m) * m


def _leaky_relu_bf16(x):
    # leaky_relu in the f32 accumulator, then cast once to bf16 for the next MXU op.
    return jnp.where(x > 0, x, NEG_SLOPE * x).astype(jnp.bfloat16)


def _device_tuning():
    """Pick VMEM limit / batch tile per TPU generation (conservative if unknown)."""
    kind = ""
    try:
        kind = jax.devices()[0].device_kind.lower()
    except Exception:
        pass
    if "v5" in kind or "v6" in kind:
        # 128 MiB physical VMEM parts: give the pipeline more headroom.
        return {"vmem_limit": 96 << 20, "batch_tile": 512}
    # v7x (64 MiB physical VMEM) and unknown devices: stay conservative.
    return {"vmem_limit": 48 << 20, "batch_tile": 512}


# ---------------------------------------------------------------------------
# Kernels
# ---------------------------------------------------------------------------

def _fused_kernel(x_ref,
                  w15, b15, w2, b2, w3, b3, w4, b4,
                  w6, b6, w7, b7, w8, b8,
                  noise_ref, out_ref):
    """Both branches + reparameterization on one batch tile; weights VMEM-resident."""
    x = x_ref[...].astype(jnp.bfloat16)

    # Layers 1 and 5 fused into one (tb,512)@(512,2048) MXU op; slice at lane-128 multiples.
    y = _leaky_relu_bf16(
        jnp.dot(x, w15[...], preferred_element_type=jnp.float32) + b15[...])
    h = y[:, :D_HID]      # mu-branch hidden
    s = y[:, D_HID:]      # std-branch hidden

    # --- mu branch ---
    h = _leaky_relu_bf16(jnp.dot(h, w2[...], preferred_element_type=jnp.float32) + b2[...])
    h = _leaky_relu_bf16(jnp.dot(h, w3[...], preferred_element_type=jnp.float32) + b3[...])
    mu = jnp.dot(h, w4[...], preferred_element_type=jnp.float32) + b4[...]

    # --- std branch ---
    s = _leaky_relu_bf16(jnp.dot(s, w6[...], preferred_element_type=jnp.float32) + b6[...])
    s = _leaky_relu_bf16(jnp.dot(s, w7[...], preferred_element_type=jnp.float32) + b7[...])
    std = jnp.dot(s, w8[...], preferred_element_type=jnp.float32) + b8[...]

    # Reparameterization: mu + exp(std) * N(0, 1)
    out_ref[...] = mu + jnp.exp(std) * noise_ref[...]


def _branch_kernel(x_ref, wa, ba, wb, bb, wc, bc, wd, bd, out_ref):
    """One branch (mu or std, selected by the leading grid axis) on one batch tile."""
    h = x_ref[...].astype(jnp.bfloat16)
    h = _leaky_relu_bf16(jnp.dot(h, wa[...], preferred_element_type=jnp.float32) + ba[...])
    h = _leaky_relu_bf16(jnp.dot(h, wb[...], preferred_element_type=jnp.float32) + bb[...])
    h = _leaky_relu_bf16(jnp.dot(h, wc[...], preferred_element_type=jnp.float32) + bc[...])
    out_ref[...] = jnp.dot(h, wd[...], preferred_element_type=jnp.float32) + bd[...]


# ---------------------------------------------------------------------------
# Parameter preparation
# ---------------------------------------------------------------------------

def prepare_params(params):
    """Build both kernel-ready weight layouts (bf16 weights, f32 biases).

    params: list of 8 (W_t, b) pairs, W_t = torch W transposed to (in, out), b = (1, out).
    Returns {"fused": [...14 arrays...], "split": [...8 stacked arrays...]}.
    """
    (w1, b1), (w2, b2), (w3, b3), (w4, b4), \
        (w5, b5), (w6, b6), (w7, b7), (w8, b8) = params

    # Fused layout: layer1 || layer5 concatenated -> one (512, 2048) matmul.
    fused = [jnp.concatenate([w1, w5], axis=1).astype(jnp.bfloat16),
             jnp.concatenate([b1, b5], axis=1).astype(jnp.float32)]
    for w, b in ((w2, b2), (w3, b3), (w4, b4), (w6, b6), (w7, b7), (w8, b8)):
        fused.append(w.astype(jnp.bfloat16))
        fused.append(b.astype(jnp.float32))

    # Split layout: per-layer (mu, std) weights stacked on a leading branch axis.
    split = []
    for (wm, bm), (ws, bs) in (((w1, b1), (w5, b5)),
                               ((w2, b2), (w6, b6)),
                               ((w3, b3), (w7, b7)),
                               ((w4, b4), (w8, b8))):
        split.append(jnp.stack([wm, ws], axis=0).astype(jnp.bfloat16))   # (2, in, out)
        split.append(jnp.stack([bm, bs], axis=0).astype(jnp.float32))    # (2, 1, out)

    return {"fused": fused, "split": split}


# ---------------------------------------------------------------------------
# pallas_call wrappers
# ---------------------------------------------------------------------------

def _resident_spec(shape, single_buffer):
    """Spec for a weight/bias whose block index is constant across the (1-D) grid."""
    if single_buffer:
        # Fetched once and never changes -> single-buffer to halve its VMEM footprint.
        return pl.BlockSpec(shape, lambda i: (0, 0), pipeline_mode=pl.Buffered(1))
    return pl.BlockSpec(shape, lambda i: (0, 0))


def _fused_call(x, params_flat, noise, tb, vmem_limit, single_buffer_weights):
    Bp = x.shape[0]
    grid = (Bp // tb,)

    in_specs = [pl.BlockSpec((tb, D_IN), lambda i: (i, 0))]
    for t in params_flat:                       # all fused params are 2-D
        in_specs.append(_resident_spec(t.shape, single_buffer_weights))
    in_specs.append(pl.BlockSpec((tb, D_OUT), lambda i: (i, 0)))   # noise
    out_specs = pl.BlockSpec((tb, D_OUT), lambda i: (i, 0))

    macs_per_row = 2 * (D_IN * D_HID + 2 * D_HID * D_HID + D_HID * D_OUT)  # both branches
    weight_bytes = sum(int(t.size) * t.dtype.itemsize for t in params_flat)
    cost = pl.CostEstimate(
        flops=2 * Bp * macs_per_row,
        transcendentals=Bp * D_OUT,
        bytes_accessed=weight_bytes + 4 * (x.size + noise.size + Bp * D_OUT),
    )

    return pl.pallas_call(
        _fused_kernel,
        out_shape=jax.ShapeDtypeStruct((Bp, D_OUT), jnp.float32),
        grid=grid,
        in_specs=in_specs,
        out_specs=out_specs,
        compiler_params=pltpu.CompilerParams(
            dimension_semantics=("parallel",),
            vmem_limit_bytes=vmem_limit,
        ),
        cost_estimate=cost,
    )(x, *params_flat, noise)


def _split_call(x, params_split, tb, vmem_limit):
    Bp = x.shape[0]
    grid = (2, Bp // tb)   # branch axis outermost / parallel -> one branch per TensorCore

    in_specs = [pl.BlockSpec((tb, D_IN), lambda br, i: (i, 0))]
    for t in params_split:  # (2, in, out) weights / (2, 1, out) biases, branch dim squeezed
        in_specs.append(
            pl.BlockSpec((None,) + t.shape[1:], lambda br, i: (br, 0, 0)))
    out_specs = pl.BlockSpec((None, tb, D_OUT), lambda br, i: (br, i, 0))

    macs_per_row = 2 * (D_IN * D_HID + 2 * D_HID * D_HID + D_HID * D_OUT)
    weight_bytes = sum(int(t.size) * t.dtype.itemsize for t in params_split)
    cost = pl.CostEstimate(
        flops=2 * Bp * macs_per_row,
        transcendentals=0,
        bytes_accessed=weight_bytes + 4 * (2 * x.size + 2 * Bp * D_OUT),
    )

    return pl.pallas_call(
        _branch_kernel,
        out_shape=jax.ShapeDtypeStruct((2, Bp, D_OUT), jnp.float32),
        grid=grid,
        in_specs=in_specs,
        out_specs=out_specs,
        compiler_params=pltpu.CompilerParams(
            dimension_semantics=("parallel", "parallel"),
            vmem_limit_bytes=vmem_limit,
        ),
        cost_estimate=cost,
    )(x, *params_split)


def model_forward(x, prep, noise, *, batch_tile=None, split_branches=None):
    """Forward pass of Model. x, noise: (B, 512) f32; prep: output of prepare_params."""
    B, d_in = x.shape
    assert d_in == D_IN

    tuning = _device_tuning()
    if batch_tile is None:
        batch_tile = tuning["batch_tile"]
    vmem_limit = tuning["vmem_limit"]

    # Pad the batch to a sublane-aligned tile multiple (handles arbitrary B).
    tb = min(batch_tile, _round_up(B, 8))
    Bp = _round_up(B, tb)
    x_p = jnp.pad(x, ((0, Bp - B), (0, 0))) if Bp != B else x

    if split_branches is None:
        # Branch split only pays in the small-batch, weight-HBM-bound regime
        # (each TensorCore of a 2-core chip then streams half of the 12.6 MiB weights).
        split_branches = Bp <= 1024

    if split_branches:
        branches = _split_call(x_p, prep["split"], tb, vmem_limit)
        mu = branches[0, :B]
        log_std = branches[1, :B]
        return mu + jnp.exp(log_std) * noise          # trivial follow-on XLA op

    noise_p = jnp.pad(noise, ((0, Bp - B), (0, 0))) if Bp != B else noise
    try:
        out = _fused_call(x_p, prep["fused"], noise_p, tb, vmem_limit, True)
    except Exception:
        # pl.Buffered(1) rejected by this jax/libtpu -> fall back to default buffering.
        out = _fused_call(x_p, prep["fused"], noise_p, tb, vmem_limit, False)
    return out[:B]


# ---------------------------------------------------------------------------
# Reference / setup
# ---------------------------------------------------------------------------

def init_params(key):
    """Deterministic synthetic weights matching torch.nn.Linear init/shapes.

    torch Linear(in, out) has W of shape (out, in); we store W.T (in, out)
    and bias as (1, out) for lane-dense broadcasting in the kernel.
    """
    dims = [(512, 1024), (1024, 1024), (1024, 1024), (1024, 512),
            (512, 1024), (1024, 1024), (1024, 1024), (1024, 512)]
    params = []
    for d_in, d_out in dims:
        kw, kb, key = jax.random.split(key, 3)
        scale = 1.0 / jnp.sqrt(d_in)
        w_t = jax.random.uniform(kw, (d_in, d_out), jnp.float32, -scale, scale)
        b = jax.random.uniform(kb, (1, d_out), jnp.float32, -scale, scale)
        params.append((w_t, b))
    return params


def reference_forward(x, params, noise):
    """Pure-JAX reference mirroring the kernel's bf16-weight / f32-accumulate math."""
    def branch(h, layer_params):
        for i, (w_t, b) in enumerate(layer_params):
            h = jnp.dot(h.astype(jnp.bfloat16), w_t.astype(jnp.bfloat16),
                        preferred_element_type=jnp.float32) + b.astype(jnp.float32)
            if i < 3:
                h = jnp.where(h > 0, h, NEG_SLOPE * h)
        return h

    mu = branch(x, params[:4])
    std = branch(x, params[4:])
    return mu + jnp.exp(std) * noise


if __name__ == "__main__":
    key = jax.random.PRNGKey(0)
    k_params, k_x, k_noise = jax.random.split(key, 3)

    params = init_params(k_params)
    prep = prepare_params(params)

    # 1) Small batch: exercises the branch-split (dual-TensorCore) path.
    B1 = 8
    x1 = jax.random.normal(k_x, (B1, 512), jnp.float32)
    n1 = jax.random.normal(k_noise, (B1, 512), jnp.float32)   # torch.randn equivalent
    out1 = jax.block_until_ready(model_forward(x1, prep, n1))
    ref1 = reference_forward(x1, params, n1)
    assert out1.shape == (B1, 512)
    assert jnp.allclose(out1, ref1, atol=1e-2, rtol=1e-2), "split-path mismatch vs reference"

    # 2) Non-tile-multiple batch: exercises the fused path with batch padding.
    B2 = 40
    x2 = jax.random.normal(jax.random.fold_in(k_x, 1), (B2, 512), jnp.float32)
    n2 = jax.random.normal(jax.random.fold_in(k_noise, 1), (B2, 512), jnp.float32)
    out2 = jax.block_until_ready(
        model_forward(x2, prep, n2, batch_tile=16, split_branches=False))
    ref2 = reference_forward(x2, params, n2)
    assert out2.shape == (B2, 512)
    assert jnp.allclose(out2, ref2, atol=1e-2, rtol=1e-2), "fused-path mismatch vs reference"

    print("KERNEL_OK")
</pallas_src>

<mosaic_0001>
module attributes {stable_mosaic.version = 11 : i64} {
  func.func @_branch_kernel(%arg0: i32, %arg1: i32, %arg2: memref<8x512xf32, #tpu.memory_space<vmem>>, %arg3: memref<1x512x1024xbf16, #tpu.memory_space<vmem>>, %arg4: memref<1x1x1024xf32, #tpu.memory_space<vmem>>, %arg5: memref<1x1024x1024xbf16, #tpu.memory_space<vmem>>, %arg6: memref<1x1x1024xf32, #tpu.memory_space<vmem>>, %arg7: memref<1x1024x1024xbf16, #tpu.memory_space<vmem>>, %arg8: memref<1x1x1024xf32, #tpu.memory_space<vmem>>, %arg9: memref<1x1024x512xbf16, #tpu.memory_space<vmem>>, %arg10: memref<1x1x512xf32, #tpu.memory_space<vmem>>, %arg11: memref<1x8x512xf32, #tpu.memory_space<vmem>>) attributes {dimension_semantics = [#tpu.dimension_semantics<parallel>, #tpu.dimension_semantics<parallel>], iteration_bounds = array<i64: 2, 1>, scalar_prefetch = 0 : i64, scratch_operands = 0 : i64, tpu.core_type = #tpu.core_type<tc>, window_params = [{transform_indices = @transform_0, window_bounds = array<i64: 8, 512>}, {transform_indices = @transform_1, window_bounds = array<i64: 1, 512, 1024>}, {transform_indices = @transform_2, window_bounds = array<i64: 1, 1, 1024>}, {transform_indices = @transform_3, window_bounds = array<i64: 1, 1024, 1024>}, {transform_indices = @transform_4, window_bounds = array<i64: 1, 1, 1024>}, {transform_indices = @transform_5, window_bounds = array<i64: 1, 1024, 1024>}, {transform_indices = @transform_6, window_bounds = array<i64: 1, 1, 1024>}, {transform_indices = @transform_7, window_bounds = array<i64: 1, 1024, 512>}, {transform_indices = @transform_8, window_bounds = array<i64: 1, 1, 512>}, {transform_indices = @transform_9, window_bounds = array<i64: 1, 8, 512>}]} {
    %c0 = arith.constant 0 : index
    %c0_0 = arith.constant 0 : index
    %0 = vector.load %arg2[%c0, %c0_0] : memref<8x512xf32, #tpu.memory_space<vmem>>, vector<8x512xf32>
    %1 = arith.truncf %0 : vector<8x512xf32> to vector<8x512xbf16>
    %c0_1 = arith.constant 0 : index
    %c0_2 = arith.constant 0 : index
    %c0_3 = arith.constant 0 : index
    %2 = vector.load %arg3[%c0_1, %c0_2, %c0_3] : memref<1x512x1024xbf16, #tpu.memory_space<vmem>>, vector<1x512x1024xbf16>
    %3 = vector.shape_cast %2 : vector<1x512x1024xbf16> to vector<512x1024xbf16>
    %cst = arith.constant dense<0.000000e+00> : vector<8x1024xf32>
    %4 = tpu.matmul %1, %3, %cst {dimension_numbers = #tpu.dot_dimension_numbers<[1], [0], [0], [1], [0, 0, 1, 1], [], []>} : vector<8x512xbf16>, vector<512x1024xbf16>, vector<8x1024xf32> -> vector<8x1024xf32>
    %c0_4 = arith.constant 0 : index
    %c0_5 = arith.constant 0 : index
    %c0_6 = arith.constant 0 : index
    %5 = vector.load %arg4[%c0_4, %c0_5, %c0_6] : memref<1x1x1024xf32, #tpu.memory_space<vmem>>, vector<1x1x1024xf32>
    %6 = vector.shape_cast %5 : vector<1x1x1024xf32> to vector<1x1024xf32>
    %7 = vector.broadcast %6 : vector<1x1024xf32> to vector<8x1024xf32>
    %8 = arith.addf %4, %7 : vector<8x1024xf32>
    %cst_7 = arith.constant 0.000000e+00 : f32
    %9 = vector.broadcast %cst_7 : f32 to vector<8x1024xf32>
    %10 = arith.cmpf ogt, %8, %9 : vector<8x1024xf32>
    %cst_8 = arith.constant 0.00999999977 : f32
    %11 = vector.broadcast %cst_8 : f32 to vector<8x1024xf32>
    %12 = arith.mulf %11, %8 : vector<8x1024xf32>
    %13 = arith.select %10, %8, %12 : vector<8x1024xi1>, vector<8x1024xf32>
    %14 = arith.truncf %13 : vector<8x1024xf32> to vector<8x1024xbf16>
    %c0_9 = arith.constant 0 : index
    %c0_10 = arith.constant 0 : index
    %c0_11 = arith.constant 0 : index
    %15 = vector.load %arg5[%c0_9, %c0_10, %c0_11] : memref<1x1024x1024xbf16, #tpu.memory_space<vmem>>, vector<1x1024x1024xbf16>
    %16 = vector.shape_cast %15 : vector<1x1024x1024xbf16> to vector<1024x1024xbf16>
    %cst_12 = arith.constant dense<0.000000e+00> : vector<8x1024xf32>
    %17 = tpu.matmul %14, %16, %cst_12 {dimension_numbers = #tpu.dot_dimension_numbers<[1], [0], [0], [1], [0, 0, 1, 1], [], []>} : vector<8x1024xbf16>, vector<1024x1024xbf16>, vector<8x1024xf32> -> vector<8x1024xf32>
    %c0_13 = arith.constant 0 : index
    %c0_14 = arith.constant 0 : index
    %c0_15 = arith.constant 0 : index
    %18 = vector.load %arg6[%c0_13, %c0_14, %c0_15] : memref<1x1x1024xf32, #tpu.memory_space<vmem>>, vector<1x1x1024xf32>
    %19 = vector.shape_cast %18 : vector<1x1x1024xf32> to vector<1x1024xf32>
    %20 = vector.broadcast %19 : vector<1x1024xf32> to vector<8x1024xf32>
    %21 = arith.addf %17, %20 : vector<8x1024xf32>
    %cst_16 = arith.constant 0.000000e+00 : f32
    %22 = vector.broadcast %cst_16 : f32 to vector<8x1024xf32>
    %23 = arith.cmpf ogt, %21, %22 : vector<8x1024xf32>
    %cst_17 = arith.constant 0.00999999977 : f32
    %24 = vector.broadcast %cst_17 : f32 to vector<8x1024xf32>
    %25 = arith.mulf %24, %21 : vector<8x1024xf32>
    %26 = arith.select %23, %21, %25 : vector<8x1024xi1>, vector<8x1024xf32>
    %27 = arith.truncf %26 : vector<8x1024xf32> to vector<8x1024xbf16>
    %c0_18 = arith.constant 0 : index
    %c0_19 = arith.constant 0 : index
    %c0_20 = arith.constant 0 : index
    %28 = vector.load %arg7[%c0_18, %c0_19, %c0_20] : memref<1x1024x1024xbf16, #tpu.memory_space<vmem>>, vector<1x1024x1024xbf16>
    %29 = vector.shape_cast %28 : vector<1x1024x1024xbf16> to vector<1024x1024xbf16>
    %cst_21 = arith.constant dense<0.000000e+00> : vector<8x1024xf32>
    %30 = tpu.matmul %27, %29, %cst_21 {dimension_numbers = #tpu.dot_dimension_numbers<[1], [0], [0], [1], [0, 0, 1, 1], [], []>} : vector<8x1024xbf16>, vector<1024x1024xbf16>, vector<8x1024xf32> -> vector<8x1024xf32>
    %c0_22 = arith.constant 0 : index
    %c0_23 = arith.constant 0 : index
    %c0_24 = arith.constant 0 : index
    %31 = vector.load %arg8[%c0_22, %c0_23, %c0_24] : memref<1x1x1024xf32, #tpu.memory_space<vmem>>, vector<1x1x1024xf32>
    %32 = vector.shape_cast %31 : vector<1x1x1024xf32> to vector<1x1024xf32>
    %33 = vector.broadcast %32 : vector<1x1024xf32> to vector<8x1024xf32>
    %34 = arith.addf %30, %33 : vector<8x1024xf32>
    %cst_25 = arith.constant 0.000000e+00 : f32
    %35 = vector.broadcast %cst_25 : f32 to vector<8x1024xf32>
    %36 = arith.cmpf ogt, %34, %35 : vector<8x1024xf32>
    %cst_26 = arith.constant 0.00999999977 : f32
    %37 = vector.broadcast %cst_26 : f32 to vector<8x1024xf32>
    %38 = arith.mulf %37, %34 : vector<8x1024xf32>
    %39 = arith.select %36, %34, %38 : vector<8x1024xi1>, vector<8x1024xf32>
    %40 = arith.truncf %39 : vector<8x1024xf32> to vector<8x1024xbf16>
    %c0_27 = arith.constant 0 : index
    %c0_28 = arith.constant 0 : index
    %c0_29 = arith.constant 0 : index
    %41 = vector.load %arg9[%c0_27, %c0_28, %c0_29] : memref<1x1024x512xbf16, #tpu.memory_space<vmem>>, vector<1x1024x512xbf16>
    %42 = vector.shape_cast %41 : vector<1x1024x512xbf16> to vector<1024x512xbf16>
    %cst_30 = arith.constant dense<0.000000e+00> : vector<8x512xf32>
    %43 = tpu.matmul %40, %42, %cst_30 {dimension_numbers = #tpu.dot_dimension_numbers<[1], [0], [0], [1], [0, 0, 1, 1], [], []>} : vector<8x1024xbf16>, vector<1024x512xbf16>, vector<8x512xf32> -> vector<8x512xf32>
    %c0_31 = arith.constant 0 : index
    %c0_32 = arith.constant 0 : index
    %c0_33 = arith.constant 0 : index
    %44 = vector.load %arg10[%c0_31, %c0_32, %c0_33] : memref<1x1x512xf32, #tpu.memory_space<vmem>>, vector<1x1x512xf32>
    %45 = vector.shape_cast %44 : vector<1x1x512xf32> to vector<1x512xf32>
    %46 = vector.broadcast %45 : vector<1x512xf32> to vector<8x512xf32>
    %47 = arith.addf %43, %46 : vector<8x512xf32>
    %c0_34 = arith.constant 0 : index
    %c0_35 = arith.constant 0 : index
    %c0_36 = arith.constant 0 : index
    %48 = vector.load %arg11[%c0_34, %c0_35, %c0_36] : memref<1x8x512xf32, #tpu.memory_space<vmem>>, vector<1x8x512xf32>
    %49 = vector.shape_cast %48 : vector<1x8x512xf32> to vector<8x512xf32>
    %50 = vector.shape_cast %47 : vector<8x512xf32> to vector<1x8x512xf32>
    tpu.vector_store %arg11[%c0_34, %c0_35, %c0_36], %50 {strides = array<i32>} : memref<1x8x512xf32, #tpu.memory_space<vmem>>, vector<1x8x512xf32>,
    return
  }
  func.func @transform_0(%arg0: i32, %arg1: i32) -> (i32, i32) {
    %c0_i32 = arith.constant 0 : i32
    %c0_i32_0 = arith.constant 0 : i32
    return %arg1, %c0_i32 : i32, i32
  }
  func.func @transform_1(%arg0: i32, %arg1: i32) -> (i32, i32, i32) {
    %c0_i32 = arith.constant 0 : i32
    %c0_i32_0 = arith.constant 0 : i32
    %c0_i32_1 = arith.constant 0 : i32
    return %arg0, %c0_i32, %c0_i32_0 : i32, i32, i32
  }
  func.func @transform_2(%arg0: i32, %arg1: i32) -> (i32, i32, i32) {
    %c0_i32 = arith.constant 0 : i32
    %c0_i32_0 = arith.constant 0 : i32
    %c0_i32_1 = arith.constant 0 : i32
    return %arg0, %c0_i32, %c0_i32_0 : i32, i32, i32
  }
  func.func @transform_3(%arg0: i32, %arg1: i32) -> (i32, i32, i32) {
    %c0_i32 = arith.constant 0 : i32
    %c0_i32_0 = arith.constant 0 : i32
    %c0_i32_1 = arith.constant 0 : i32
    return %arg0, %c0_i32, %c0_i32_0 : i32, i32, i32
  }
  func.func @transform_4(%arg0: i32, %arg1: i32) -> (i32, i32, i32) {
    %c0_i32 = arith.constant 0 : i32
    %c0_i32_0 = arith.constant 0 : i32
    %c0_i32_1 = arith.constant 0 : i32
    return %arg0, %c0_i32, %c0_i32_0 : i32, i32, i32
  }
  func.func @transform_5(%arg0: i32, %arg1: i32) -> (i32, i32, i32) {
    %c0_i32 = arith.constant 0 : i32
    %c0_i32_0 = arith.constant 0 : i32
    %c0_i32_1 = arith.constant 0 : i32
    return %arg0, %c0_i32, %c0_i32_0 : i32, i32, i32
  }
  func.func @transform_6(%arg0: i32, %arg1: i32) -> (i32, i32, i32) {
    %c0_i32 = arith.constant 0 : i32
    %c0_i32_0 = arith.constant 0 : i32
    %c0_i32_1 = arith.constant 0 : i32
    return %arg0, %c0_i32, %c0_i32_0 : i32, i32, i32
  }
  func.func @transform_7(%arg0: i32, %arg1: i32) -> (i32, i32, i32) {
    %c0_i32 = arith.constant 0 : i32
    %c0_i32_0 = arith.constant 0 : i32
    %c0_i32_1 = arith.constant 0 : i32
    return %arg0, %c0_i32, %c0_i32_0 : i32, i32, i32
  }
  func.func @transform_8(%arg0: i32, %arg1: i32) -> (i32, i32, i32) {
    %c0_i32 = arith.constant 0 : i32
    %c0_i32_0 = arith.constant 0 : i32
    %c0_i32_1 = arith.constant 0 : i32
    return %arg0, %c0_i32, %c0_i32_0 : i32, i32, i32
  }
  func.func @transform_9(%arg0: i32, %arg1: i32) -> (i32, i32, i32) {
    %c0_i32 = arith.constant 0 : i32
    %c0_i32_0 = arith.constant 0 : i32
    return %arg0, %arg1, %c0_i32 : i32, i32, i32
  }
}

</mosaic_0001>

<llo_original>
// kernel: tpu_custom_call.1
$region0: #{tpu_custom_call.1}
  #allocation0 [shape = 'u32[]', space=smem, size = 0x4, offset = 0x4, fixed_abs, tag = 'smem constant byte address 0x4 - core index']
  #allocation1 [shape = 'u32[144,128]{1,0:T(1,128)}', space=vmem, size = 0x12000, scoped, tag = 'internal scratch']
  %s0 = inlined_call_operand.hbm [shape: f32[8,512], index: 0, kind: input, shape index: {}]
  %s1 = inlined_call_operand.hbm [shape: bf16[2,512,1024], index: 1, kind: input, shape index: {}]
  %s2 = inlined_call_operand.hbm [shape: f32[2,1,1024], index: 2, kind: input, shape index: {}]
  %s3 = inlined_call_operand.hbm [shape: bf16[2,1024,1024], index: 3, kind: input, shape index: {}]
  %s4 = inlined_call_operand.hbm [shape: f32[2,1,1024], index: 4, kind: input, shape index: {}]
  %s5 = inlined_call_operand.hbm [shape: bf16[2,1024,1024], index: 5, kind: input, shape index: {}]
  %s6 = inlined_call_operand.hbm [shape: f32[2,1,1024], index: 6, kind: input, shape index: {}]
  %s7 = inlined_call_operand.hbm [shape: bf16[2,1024,512], index: 7, kind: input, shape index: {}]
  %s8 = inlined_call_operand.hbm [shape: f32[2,1,512], index: 8, kind: input, shape index: {}]
  %s9 = inlined_call_operand.hbm [shape: f32[2,8,512], index: 9, kind: output, shape index: {}]
  %s10 = sld [smem:[#allocation0]]
  $region105: #{tpu_custom_call.1} parent=0
    _
  %s12 = ssub.s32 1, %s10
  %s13 = scalar_select 0, %s12, %s10
  $region1: #{tpu_custom_call.1} parent=0
    #allocation2 [shape = 'u8[16384]{0}', space=vmem, size = 0x4000, scoped, tag = 'input window, operand 0, single buffered']
    #allocation3 [shape = 's32[2]{0}', space=sflag, size = 0x8, scoped, tag = 'scoped memory for tpu_custom_call.1']
    #allocation4 [shape = 's32[2]{0}', space=sflag, size = 0x8, scoped, tag = 'scoped memory for tpu_custom_call.1']
    #allocation5 [shape = 'u8[2097152]{0}', space=vmem, size = 0x200000, scoped, tag = 'input window, operand 1']
    #allocation6 [shape = 's32[2]{0}', space=sflag, size = 0x8, scoped, tag = 'scoped memory for tpu_custom_call.1']
    #allocation7 [shape = 'u8[8192]{0}', space=vmem, size = 0x2000, scoped, tag = 'input window, operand 2']
    #allocation8 [shape = 'u8[4194304]{0}', space=vmem, size = 0x400000, scoped, tag = 'input window, operand 3']
    #allocation9 [shape = 's32[2]{0}', space=sflag, size = 0x8, scoped, tag = 'scoped memory for tpu_custom_call.1']
    #allocation10 [shape = 'u8[8192]{0}', space=vmem, size = 0x2000, scoped, tag = 'input window, operand 4']
    #allocation11 [shape = 'u8[4194304]{0}', space=vmem, size = 0x400000, scoped, tag = 'input window, operand 5']
    #allocation12 [shape = 's32[2]{0}', space=sflag, size = 0x8, scoped, tag = 'scoped memory for tpu_custom_call.1']
    #allocation13 [shape = 'u8[8192]{0}', space=vmem, size = 0x2000, scoped, tag = 'input window, operand 6']
    #allocation14 [shape = 'u8[2097152]{0}', space=vmem, size = 0x200000, scoped, tag = 'input window, operand 7']
    #allocation15 [shape = 's32[2]{0}', space=sflag, size = 0x8, scoped, tag = 'scoped memory for tpu_custom_call.1']
    #allocation16 [shape = 'u8[4096]{0}', space=vmem, size = 0x1000, scoped, tag = 'input window, operand 8']
    #allocation17 [shape = 'u8[32768]{0}', space=vmem, size = 0x8000, scoped, tag = 'output window, operand 0']
    %14 = vsyncpa [#allocation3], 0
    %15 = vsyncpa [#allocation6], 0
    %s16 = scalar_lea.sflag [#allocation6], 1
    %17 = vsyncpa %s16, 0
    %18 = vsyncpa [#allocation9], 0
    %s19 = scalar_lea.sflag [#allocation9], 1
    %20 = vsyncpa %s19, 0
    %21 = vsyncpa [#allocation12], 0
    %s22 = scalar_lea.sflag [#allocation12], 1
    %23 = vsyncpa %s22, 0
    %24 = vsyncpa [#allocation15], 0
    %s25 = scalar_lea.sflag [#allocation15], 1
    %26 = vsyncpa %s25, 0
    %27 = vsyncpa [#allocation4], 0
    %s28 = scalar_lea.sflag [#allocation4], 1
    %29 = vsyncpa %s28, 0
    loop: start=0, step=1, limit=4
    $region2: #{tpu_custom_call.1} parent=1 // loop_pre_header
      _
    $region3: #{tpu_custom_call.1} parent=1 // loop_header
      %s31 = sphi 0, %s35
      %p32 = scmp.ge.s32.totalorder %s31, 4
      %s38 = sphi 0, %s50
      %s39 = sphi 0, %s46
      %s40 = sphi 0, %s38
      %s41 = sphi 0, %s39
      %s42 = sphi 0, %s40
      %s43 = sphi 0, %s41
      %s53 = sphi 0, %s55
      %s56 = sphi 0, %s53
      %s57 = sphi 0, %s56
      %s73 = sphi 0, %s57
      %s79 = sphi 0, %s81
      %s82 = sphi 0, %s79
      %s83 = sphi 0, %s82
      %s99 = sphi 0, %s83
      %s105 = sphi 0, %s107
      %s108 = sphi 0, %s105
      %s109 = sphi 0, %s108
      %s125 = sphi 0, %s109
      %s131 = sphi 0, %s133
      %s134 = sphi 0, %s131
      %s135 = sphi 0, %s134
      %s151 = sphi 0, %s135
      %s157 = sphi 0, %s159
      %s160 = sphi 0, %s157
      %s161 = sphi 0, %s160
      %s177 = sphi 0, %s161
      %s183 = sphi 0, %s185
      %s186 = sphi 0, %s183
      %s187 = sphi 0, %s186
      %s203 = sphi 0, %s187
      %s209 = sphi 0, %s211
      %s212 = sphi 0, %s209
      %s213 = sphi 0, %s212
      %s229 = sphi 0, %s213
      %s235 = sphi 0, %s237
      %s238 = sphi 0, %s235
      %s239 = sphi 0, %s238
      %s255 = sphi 0, %s239
      %s261 = sphi 0, %s263
      %s264 = sphi 0, %s261
      %s265 = sphi 0, %s264
      %s281 = sphi 0, %s265
      %s289 = sphi 0, %s291
      %s292 = sphi 0, %s289
      %s293 = sphi 0, %s292
      %s309 = sphi 0, %s293
    $region4: #{tpu_custom_call.1} parent=1 // loop_header_branch
      %34 = sbr.rel (%p32) target = $region8
    $region5: #{tpu_custom_call.1} parent=1 // loop_body
      %s36 = ssub.s32 %s31, 1
      %s37 = ssub.s32 %s31, 2
      %s44 = sadd.s32 1, %s39
      %p45 = scmp.ge.s32.totalorder %s44, 1
      %s46 = scalar_select %p45, 0, %s44
      %s47 = sadd.s32 1, %s38
      %s48 = scalar_select %p45, %s47, %s38
      %p49 = scmp.ge.s32.totalorder %s48, 2
      %s50 = scalar_select %p49, 0, %s48
      %s51 = ssub.s32 %s39, %s46
      %p52 = scmp.eq.s32.totalorder %s51, 0
      %s54 = sadd.s32 %s53, 1
      %s55 = scalar_select %p52, %s53, %s54
      %p58 = pneg %p52
      %p59 = scmp.eq.s32.totalorder %s31, 1
      %p60 = por %p58, %p59
      %p61 = scmp.ne.s32.totalorder %s53, %s56
      %p62 = scmp.eq.s32.totalorder %s31, 0
      %p63 = por %p61, %p62
      %p64 = scmp.ne.s32.totalorder %s53, %s56
      %p65 = scmp.eq.s32.totalorder %s36, 1
      %p66 = por %p64, %p65
      %p67 = scmp.ne.s32.totalorder %s56, %s57
      %p68 = scmp.eq.s32.totalorder %s36, 0
      %p69 = por %p67, %p68
      %p70 = scmp.ne.s32.totalorder %s56, %s57
      %p71 = scmp.eq.s32.totalorder %s37, 1
      %p72 = por %p70, %p71
      %p74 = scmp.ne.s32.totalorder %s57, %s73
      %p75 = scmp.eq.s32.totalorder %s37, 0
      %p76 = por %p74, %p75
      %s77 = ssub.s32 %s38, %s50
      %p78 = scmp.eq.s32.totalorder %s77, 0
      %s80 = sadd.s32 %s79, 1
      %s81 = scalar_select %p78, %s79, %s80
      %p84 = pneg %p78
      %p85 = scmp.eq.s32.totalorder %s31, 1
      %p86 = por %p84, %p85
      %p87 = scmp.ne.s32.totalorder %s79, %s82
      %p88 = scmp.eq.s32.totalorder %s31, 0
      %p89 = por %p87, %p88
      %p90 = scmp.ne.s32.totalorder %s79, %s82
      %p91 = scmp.eq.s32.totalorder %s36, 1
      %p92 = por %p90, %p91
      %p93 = scmp.ne.s32.totalorder %s82, %s83
      %p94 = scmp.eq.s32.totalorder %s36, 0
      %p95 = por %p93, %p94
      %p96 = scmp.ne.s32.totalorder %s82, %s83
      %p97 = scmp.eq.s32.totalorder %s37, 1
      %p98 = por %p96, %p97
      %p100 = scmp.ne.s32.totalorder %s83, %s99
      %p101 = scmp.eq.s32.totalorder %s37, 0
      %p102 = por %p100, %p101
      %s103 = ssub.s32 %s38, %s50
      %p104 = scmp.eq.s32.totalorder %s103, 0
      %s106 = sadd.s32 %s105, 1
      %s107 = scalar_select %p104, %s105, %s106
      %p110 = pneg %p104
      %p111 = scmp.eq.s32.totalorder %s31, 1
      %p112 = por %p110, %p111
      %p113 = scmp.ne.s32.totalorder %s105, %s108
      %p114 = scmp.eq.s32.totalorder %s31, 0
      %p115 = por %p113, %p114
      %p116 = scmp.ne.s32.totalorder %s105, %s108
      %p117 = scmp.eq.s32.totalorder %s36, 1
      %p118 = por %p116, %p117
      %p119 = scmp.ne.s32.totalorder %s108, %s109
      %p120 = scmp.eq.s32.totalorder %s36, 0
      %p121 = por %p119, %p120
      %p122 = scmp.ne.s32.totalorder %s108, %s109
      %p123 = scmp.eq.s32.totalorder %s37, 1
      %p124 = por %p122, %p123
      %p126 = scmp.ne.s32.totalorder %s109, %s125
      %p127 = scmp.eq.s32.totalorder %s37, 0
      %p128 = por %p126, %p127
      %s129 = ssub.s32 %s38, %s50
      %p130 = scmp.eq.s32.totalorder %s129, 0
      %s132 = sadd.s32 %s131, 1
      %s133 = scalar_select %p130, %s131, %s132
      %p136 = pneg %p130
      %p137 = scmp.eq.s32.totalorder %s31, 1
      %p138 = por %p136, %p137
      %p139 = scmp.ne.s32.totalorder %s131, %s134
      %p140 = scmp.eq.s32.totalorder %s31, 0
      %p141 = por %p139, %p140
      %p142 = scmp.ne.s32.totalorder %s131, %s134
      %p143 = scmp.eq.s32.totalorder %s36, 1
      %p144 = por %p142, %p143
      %p145 = scmp.ne.s32.totalorder %s134, %s135
      %p146 = scmp.eq.s32.totalorder %s36, 0
      %p147 = por %p145, %p146
      %p148 = scmp.ne.s32.totalorder %s134, %s135
      %p149 = scmp.eq.s32.totalorder %s37, 1
      %p150 = por %p148, %p149
      %p152 = scmp.ne.s32.totalorder %s135, %s151
      %p153 = scmp.eq.s32.totalorder %s37, 0
      %p154 = por %p152, %p153
      %s155 = ssub.s32 %s38, %s50
      %p156 = scmp.eq.s32.totalorder %s155, 0
      %s158 = sadd.s32 %s157, 1
      %s159 = scalar_select %p156, %s157, %s158
      %p162 = pneg %p156
      %p163 = scmp.eq.s32.totalorder %s31, 1
      %p164 = por %p162, %p163
      %p165 = scmp.ne.s32.totalorder %s157, %s160
      %p166 = scmp.eq.s32.totalorder %s31, 0
      %p167 = por %p165, %p166
      %p168 = scmp.ne.s32.totalorder %s157, %s160
      %p169 = scmp.eq.s32.totalorder %s36, 1
      %p170 = por %p168, %p169
      %p171 = scmp.ne.s32.totalorder %s160, %s161
      %p172 = scmp.eq.s32.totalorder %s36, 0
      %p173 = por %p171, %p172
      %p174 = scmp.ne.s32.totalorder %s160, %s161
      %p175 = scmp.eq.s32.totalorder %s37, 1
      %p176 = por %p174, %p175
      %p178 = scmp.ne.s32.totalorder %s161, %s177
      %p179 = scmp.eq.s32.totalorder %s37, 0
      %p180 = por %p178, %p179
      %s181 = ssub.s32 %s38, %s50
      %p182 = scmp.eq.s32.totalorder %s181, 0
      %s184 = sadd.s32 %s183, 1
      %s185 = scalar_select %p182, %s183, %s184
      %p188 = pneg %p182
      %p189 = scmp.eq.s32.totalorder %s31, 1
      %p190 = por %p188, %p189
      %p191 = scmp.ne.s32.totalorder %s183, %s186
      %p192 = scmp.eq.s32.totalorder %s31, 0
      %p193 = por %p191, %p192
      %p194 = scmp.ne.s32.totalorder %s183, %s186
      %p195 = scmp.eq.s32.totalorder %s36, 1
      %p196 = por %p194, %p195
      %p197 = scmp.ne.s32.totalorder %s186, %s187
      %p198 = scmp.eq.s32.totalorder %s36, 0
      %p199 = por %p197, %p198
      %p200 = scmp.ne.s32.totalorder %s186, %s187
      %p201 = scmp.eq.s32.totalorder %s37, 1
      %p202 = por %p200, %p201
      %p204 = scmp.ne.s32.totalorder %s187, %s203
      %p205 = scmp.eq.s32.totalorder %s37, 0
      %p206 = por %p204, %p205
      %s207 = ssub.s32 %s38, %s50
      %p208 = scmp.eq.s32.totalorder %s207, 0
      %s210 = sadd.s32 %s209, 1
      %s211 = scalar_select %p208, %s209, %s210
      %p214 = pneg %p208
      %p215 = scmp.eq.s32.totalorder %s31, 1
      %p216 = por %p214, %p215
      %p217 = scmp.ne.s32.totalorder %s209, %s212
      %p218 = scmp.eq.s32.totalorder %s31, 0
      %p219 = por %p217, %p218
      %p220 = scmp.ne.s32.totalorder %s209, %s212
      %p221 = scmp.eq.s32.totalorder %s36, 1
      %p222 = por %p220, %p221
      %p223 = scmp.ne.s32.totalorder %s212, %s213
      %p224 = scmp.eq.s32.totalorder %s36, 0
      %p225 = por %p223, %p224
      %p226 = scmp.ne.s32.totalorder %s212, %s213
      %p227 = scmp.eq.s32.totalorder %s37, 1
      %p228 = por %p226, %p227
      %p230 = scmp.ne.s32.totalorder %s213, %s229
      %p231 = scmp.eq.s32.totalorder %s37, 0
      %p232 = por %p230, %p231
      %s233 = ssub.s32 %s38, %s50
      %p234 = scmp.eq.s32.totalorder %s233, 0
      %s236 = sadd.s32 %s235, 1
      %s237 = scalar_select %p234, %s235, %s236
      %p240 = pneg %p234
      %p241 = scmp.eq.s32.totalorder %s31, 1
      %p242 = por %p240, %p241
      %p243 = scmp.ne.s32.totalorder %s235, %s238
      %p244 = scmp.eq.s32.totalorder %s31, 0
      %p245 = por %p243, %p244
      %p246 = scmp.ne.s32.totalorder %s235, %s238
      %p247 = scmp.eq.s32.totalorder %s36, 1
      %p248 = por %p246, %p247
      %p249 = scmp.ne.s32.totalorder %s238, %s239
      %p250 = scmp.eq.s32.totalorder %s36, 0
      %p251 = por %p249, %p250
      %p252 = scmp.ne.s32.totalorder %s238, %s239
      %p253 = scmp.eq.s32.totalorder %s37, 1
      %p254 = por %p252, %p253
      %p256 = scmp.ne.s32.totalorder %s239, %s255
      %p257 = scmp.eq.s32.totalorder %s37, 0
      %p258 = por %p256, %p257
      %s259 = ssub.s32 %s38, %s50
      %p260 = scmp.eq.s32.totalorder %s259, 0
      %s262 = sadd.s32 %s261, 1
      %s263 = scalar_select %p260, %s261, %s262
      %p266 = pneg %p260
      %p267 = scmp.eq.s32.totalorder %s31, 1
      %p268 = por %p266, %p267
      %p269 = scmp.ne.s32.totalorder %s261, %s264
      %p270 = scmp.eq.s32.totalorder %s31, 0
      %p271 = por %p269, %p270
      %p272 = scmp.ne.s32.totalorder %s261, %s264
      %p273 = scmp.eq.s32.totalorder %s36, 1
      %p274 = por %p272, %p273
      %p275 = scmp.ne.s32.totalorder %s264, %s265
      %p276 = scmp.eq.s32.totalorder %s36, 0
      %p277 = por %p275, %p276
      %p278 = scmp.ne.s32.totalorder %s264, %s265
      %p279 = scmp.eq.s32.totalorder %s37, 1
      %p280 = por %p278, %p279
      %p282 = scmp.ne.s32.totalorder %s265, %s281
      %p283 = scmp.eq.s32.totalorder %s37, 0
      %p284 = por %p282, %p283
      %s285 = ssub.s32 %s38, %s50
      %s286 = ssub.s32 %s39, %s46
      %s287 = sor.u32 %s285, %s286
      %p288 = scmp.eq.s32.totalorder %s287, 0
      %s290 = sadd.s32 %s289, 1
      %s291 = scalar_select %p288, %s289, %s290
      %p294 = pneg %p288
      %p295 = scmp.eq.s32.totalorder %s31, 1
      %p296 = por %p294, %p295
      %p297 = scmp.ne.s32.totalorder %s289, %s292
      %p298 = scmp.eq.s32.totalorder %s31, 0
      %p299 = por %p297, %p298
      %p300 = scmp.ne.s32.totalorder %s289, %s292
      %p301 = scmp.eq.s32.totalorder %s36, 1
      %p302 = por %p300, %p301
      %p303 = scmp.ne.s32.totalorder %s292, %s293
      %p304 = scmp.eq.s32.totalorder %s36, 0
      %p305 = por %p303, %p304
      %p306 = scmp.ne.s32.totalorder %s292, %s293
      %p307 = scmp.eq.s32.totalorder %s37, 1
      %p308 = por %p306, %p307
      %p310 = scmp.ne.s32.totalorder %s293, %s309
      %p311 = scmp.eq.s32.totalorder %s37, 0
      %p312 = por %p310, %p311
      %p313 = scmp.le.s32.totalorder 1, %s31
      %p314 = scmp.lt.s32.totalorder %s31, 3
      %p315 = pnand %p313, %p314
      %p316 = pneg %p315
      // Predicated region
      $region9: #{tpu_custom_call.1} parent=5 // pred_check
        _
      $region10: #{tpu_custom_call.1} parent=5 // pred_check_branch
        %318 = sbr.rel (%p315) target = $region12
      $region11: #{tpu_custom_call.1} parent=5 // pred_region
        %s319 = ssub.s32 %s31, 1
        // Predicated region
        $region13: #{tpu_custom_call.1} parent=11 // pred_check
          %p320 = pneg %p69
        $region14: #{tpu_custom_call.1} parent=11 // pred_check_branch
          %322 = sbr.rel (%p320) target = $region16
        $region15: #{tpu_custom_call.1} parent=11 // pred_region
          %s324 = ssub.s32 512, 512
          %325 = vsyncadd [#allocation3], %s324
          %s326 = smul.addr %s41, 4
          %s327 = smul.addr %s326, 128
          %s328 = scalar_lea.hbm %s0, %s327
          %s330 = sshll.u32 [#allocation2], 4
          %s331 = int_to_ptr.vmem [resolvable:$true] %s330
          %333 = dma.hbm_to_vmem [thread:$0]  %s328, 512, %s331, [#allocation3]
        $region16: #{tpu_custom_call.1} parent=11 // pred_fallthru
          _
      $region12: #{tpu_custom_call.1} parent=5 // pred_fallthru
        _
      %p334 = scmp.lt.s32.totalorder %s31, 2
      // Predicated region
      $region17: #{tpu_custom_call.1} parent=5 // pred_check
        %p335 = pneg %p334
      $region18: #{tpu_custom_call.1} parent=5 // pred_check_branch
        %337 = sbr.rel (%p335) target = $region20
      $region19: #{tpu_custom_call.1} parent=5 // pred_region
        // Predicated region
        $region21: #{tpu_custom_call.1} parent=19 // pred_check
          %p338 = pneg %p89
        $region22: #{tpu_custom_call.1} parent=19 // pred_check_branch
          %340 = sbr.rel (%p338) target = $region24
        $region23: #{tpu_custom_call.1} parent=19 // pred_region
          %s341 = sand.u32 %s31, 1
          %s342 = scalar_lea.sflag [#allocation6], %s341
          %s343 = sand.u32 %s79, 1
          %s344 = smul.addr %s343, 2048
          %s345 = scalar_lea.vmem [#allocation5], %s344
          %s347 = ssub.s32 32768, 32768
          %348 = vsyncadd %s342, %s347
          %s349 = smul.addr %s38, 512
          %s350 = smul.addr %s349, 64
          %s351 = scalar_lea.hbm %s1, %s350
          %s352 = sshll.u32 %s345, 4
          %s353 = int_to_ptr.vmem [resolvable:$true] %s352
          %358 = dma.hbm_to_vmem [thread:$0]  %s351, 32768, %s353, %s342, 512, 512, 32
        $region24: #{tpu_custom_call.1} parent=19 // pred_fallthru
          _
        // Predicated region
        $region25: #{tpu_custom_call.1} parent=19 // pred_check
          %p359 = pneg %p115
        $region26: #{tpu_custom_call.1} parent=19 // pred_check_branch
          %361 = sbr.rel (%p359) target = $region28
        $region27: #{tpu_custom_call.1} parent=19 // pred_region
          %s362 = sand.u32 %s31, 1
          %s363 = scalar_lea.sflag [#allocation6], %s362
          %s364 = sand.u32 %s105, 1
          %s365 = smul.addr %s364, 8
          %s366 = scalar_lea.vmem [#allocation7], %s365
          %s368 = ssub.s32 128, 128
          %369 = vsyncadd %s363, %s368
          %s370 = smul.addr %s38, 8
          %s371 = smul.addr %s370, 16
          %s372 = scalar_lea.hbm %s2, %s371
          %s374 = sshll.u32 %s366, 4
          %s375 = int_to_ptr.vmem [resolvable:$true] %s374
          %377 = dma.hbm_to_vmem [thread:$0]  %s372, 128, %s375, %s363
        $region28: #{tpu_custom_call.1} parent=19 // pred_fallthru
          _
        // Predicated region
        $region29: #{tpu_custom_call.1} parent=19 // pred_check
          %p378 = pneg %p141
        $region30: #{tpu_custom_call.1} parent=19 // pred_check_branch
          %380 = sbr.rel (%p378) target = $region32
        $region31: #{tpu_custom_call.1} parent=19 // pred_region
          %s381 = sand.u32 %s31, 1
          %s382 = scalar_lea.sflag [#allocation9], %s381
          %s383 = sand.u32 %s131, 1
          %s384 = smul.addr %s383, 4096
          %s385 = scalar_lea.vmem [#allocation8], %s384
          %s387 = ssub.s32 65536, 65536
          %388 = vsyncadd %s382, %s387
          %s389 = smul.addr %s38, 1024
          %s390 = smul.addr %s389, 64
          %s391 = scalar_lea.hbm %s3, %s390
          %s392 = sshll.u32 %s385, 4
          %s393 = int_to_ptr.vmem [resolvable:$true] %s392
          %398 = dma.hbm_to_vmem [thread:$0]  %s391, 65536, %s393, %s382, 512, 512, 32
        $region32: #{tpu_custom_call.1} parent=19 // pred_fallthru
          _
        // Predicated region
        $region33: #{tpu_custom_call.1} parent=19 // pred_check
          %p399 = pneg %p167
        $region34: #{tpu_custom_call.1} parent=19 // pred_check_branch
          %401 = sbr.rel (%p399) target = $region36
        $region35: #{tpu_custom_call.1} parent=19 // pred_region
          %s402 = sand.u32 %s31, 1
          %s403 = scalar_lea.sflag [#allocation9], %s402
          %s404 = sand.u32 %s157, 1
          %s405 = smul.addr %s404, 8
          %s406 = scalar_lea.vmem [#allocation10], %s405
          %s408 = ssub.s32 128, 128
          %409 = vsyncadd %s403, %s408
          %s410 = smul.addr %s38, 8
          %s411 = smul.addr %s410, 16
          %s412 = scalar_lea.hbm %s4, %s411
          %s414 = sshll.u32 %s406, 4
          %s415 = int_to_ptr.vmem [resolvable:$true] %s414
          %417 = dma.hbm_to_vmem [thread:$0]  %s412, 128, %s415, %s403
        $region36: #{tpu_custom_call.1} parent=19 // pred_fallthru
          _
        // Predicated region
        $region37: #{tpu_custom_call.1} parent=19 // pred_check
          %p418 = pneg %p193
        $region38: #{tpu_custom_call.1} parent=19 // pred_check_branch
          %420 = sbr.rel (%p418) target = $region40
        $region39: #{tpu_custom_call.1} parent=19 // pred_region
          %s421 = sand.u32 %s31, 1
          %s422 = scalar_lea.sflag [#allocation12], %s421
          %s423 = sand.u32 %s183, 1
          %s424 = smul.addr %s423, 4096
          %s425 = scalar_lea.vmem [#allocation11], %s424
          %s427 = ssub.s32 65536, 65536
          %428 = vsyncadd %s422, %s427
          %s429 = smul.addr %s38, 1024
          %s430 = smul.addr %s429, 64
          %s431 = scalar_lea.hbm %s5, %s430
          %s432 = sshll.u32 %s425, 4
          %s433 = int_to_ptr.vmem [resolvable:$true] %s432
          %438 = dma.hbm_to_vmem [thread:$0]  %s431, 65536, %s433, %s422, 512, 512, 32
        $region40: #{tpu_custom_call.1} parent=19 // pred_fallthru
          _
        // Predicated region
        $region41: #{tpu_custom_call.1} parent=19 // pred_check
          %p439 = pneg %p219
        $region42: #{tpu_custom_call.1} parent=19 // pred_check_branch
          %441 = sbr.rel (%p439) target = $region44
        $region43: #{tpu_custom_call.1} parent=19 // pred_region
          %s442 = sand.u32 %s31, 1
          %s443 = scalar_lea.sflag [#allocation12], %s442
          %s444 = sand.u32 %s209, 1
          %s445 = smul.addr %s444, 8
          %s446 = scalar_lea.vmem [#allocation13], %s445
          %s448 = ssub.s32 128, 128
          %449 = vsyncadd %s443, %s448
          %s450 = smul.addr %s38, 8
          %s451 = smul.addr %s450, 16
          %s452 = scalar_lea.hbm %s6, %s451
          %s454 = sshll.u32 %s446, 4
          %s455 = int_to_ptr.vmem [resolvable:$true] %s454
          %457 = dma.hbm_to_vmem [thread:$0]  %s452, 128, %s455, %s443
        $region44: #{tpu_custom_call.1} parent=19 // pred_fallthru
          _
        // Predicated region
        $region45: #{tpu_custom_call.1} parent=19 // pred_check
          %p458 = pneg %p245
        $region46: #{tpu_custom_call.1} parent=19 // pred_check_branch
          %460 = sbr.rel (%p458) target = $region48
        $region47: #{tpu_custom_call.1} parent=19 // pred_region
          %s461 = sand.u32 %s31, 1
          %s462 = scalar_lea.sflag [#allocation15], %s461
          %s463 = sand.u32 %s235, 1
          %s464 = smul.addr %s463, 2048
          %s465 = scalar_lea.vmem [#allocation14], %s464
          %s467 = ssub.s32 32768, 32768
          %468 = vsyncadd %s462, %s467
          %s469 = smul.addr %s38, 512
          %s470 = smul.addr %s469, 64
          %s471 = scalar_lea.hbm %s7, %s470
          %s472 = sshll.u32 %s465, 4
          %s473 = int_to_ptr.vmem [resolvable:$true] %s472
          %478 = dma.hbm_to_vmem [thread:$0]  %s471, 32768, %s473, %s462, 256, 256, 16
        $region48: #{tpu_custom_call.1} parent=19 // pred_fallthru
          _
        // Predicated region
        $region49: #{tpu_custom_call.1} parent=19 // pred_check
          %p479 = pneg %p271
        $region50: #{tpu_custom_call.1} parent=19 // pred_check_branch
          %481 = sbr.rel (%p479) target = $region52
        $region51: #{tpu_custom_call.1} parent=19 // pred_region
          %s482 = sand.u32 %s31, 1
          %s483 = scalar_lea.sflag [#allocation15], %s482
          %s484 = sand.u32 %s261, 1
          %s485 = smul.addr %s484, 4
          %s486 = scalar_lea.vmem [#allocation16], %s485
          %s488 = ssub.s32 64, 64
          %489 = vsyncadd %s483, %s488
          %s490 = smul.addr %s38, 4
          %s491 = smul.addr %s490, 16
          %s492 = scalar_lea.hbm %s8, %s491
          %s494 = sshll.u32 %s486, 4
          %s495 = int_to_ptr.vmem [resolvable:$true] %s494
          %497 = dma.hbm_to_vmem [thread:$0]  %s492, 64, %s495, %s483
        $region52: #{tpu_custom_call.1} parent=19 // pred_fallthru
          _
      $region20: #{tpu_custom_call.1} parent=5 // pred_fallthru
        _
      %p498 = scmp.le.s32.totalorder 1, %s31
      %p499 = scmp.lt.s32.totalorder %s31, 3
      %p500 = pnand %p498, %p499
      %p501 = pneg %p500
      // Predicated region
      $region53: #{tpu_custom_call.1} parent=5 // pred_check
        _
      $region54: #{tpu_custom_call.1} parent=5 // pred_check_branch
        %503 = sbr.rel (%p500) target = $region56
      $region55: #{tpu_custom_call.1} parent=5 // pred_region
        %s504 = ssub.s32 %s31, 1
        // Predicated region
        $region57: #{tpu_custom_call.1} parent=55 // pred_check
          %p505 = pneg %p69
        $region58: #{tpu_custom_call.1} parent=55 // pred_check_branch
          %507 = sbr.rel (%p505) target = $region60
        $region59: #{tpu_custom_call.1} parent=55 // pred_region
          %508 = dma.done [#allocation3], 512
        $region60: #{tpu_custom_call.1} parent=55 // pred_fallthru
          _
        %s509 = sand.u32 %s36, 1
        %s510 = scalar_lea.sflag [#allocation6], %s509
        %s511 = sand.u32 %s82, 1
        %s512 = smul.addr %s511, 2048
        %s513 = scalar_lea.vmem [#allocation5], %s512
        // Predicated region
        $region61: #{tpu_custom_call.1} parent=55 // pred_check
          %p514 = pneg %p95
        $region62: #{tpu_custom_call.1} parent=55 // pred_check_branch
          %516 = sbr.rel (%p514) target = $region64
        $region63: #{tpu_custom_call.1} parent=55 // pred_region
          %517 = dma.done %s510, 32768
        $region64: #{tpu_custom_call.1} parent=55 // pred_fallthru
          _
        %s518 = sand.u32 %s36, 1
        %s519 = scalar_lea.sflag [#allocation6], %s518
        %s520 = sand.u32 %s108, 1
        %s521 = smul.addr %s520, 8
        %s522 = scalar_lea.vmem [#allocation7], %s521
        // Predicated region
        $region65: #{tpu_custom_call.1} parent=55 // pred_check
          %p523 = pneg %p121
        $region66: #{tpu_custom_call.1} parent=55 // pred_check_branch
          %525 = sbr.rel (%p523) target = $region68
        $region67: #{tpu_custom_call.1} parent=55 // pred_region
          %526 = dma.done %s519, 128
        $region68: #{tpu_custom_call.1} parent=55 // pred_fallthru
          _
        %s527 = sand.u32 %s36, 1
        %s528 = scalar_lea.sflag [#allocation9], %s527
        %s529 = sand.u32 %s134, 1
        %s530 = smul.addr %s529, 4096
        %s531 = scalar_lea.vmem [#allocation8], %s530
        // Predicated region
        $region69: #{tpu_custom_call.1} parent=55 // pred_check
          %p532 = pneg %p147
        $region70: #{tpu_custom_call.1} parent=55 // pred_check_branch
          %534 = sbr.rel (%p532) target = $region72
        $region71: #{tpu_custom_call.1} parent=55 // pred_region
          %535 = dma.done %s528, 65536
        $region72: #{tpu_custom_call.1} parent=55 // pred_fallthru
          _
        %s536 = sand.u32 %s36, 1
        %s537 = scalar_lea.sflag [#allocation9], %s536
        %s538 = sand.u32 %s160, 1
        %s539 = smul.addr %s538, 8
        %s540 = scalar_lea.vmem [#allocation10], %s539
        // Predicated region
        $region73: #{tpu_custom_call.1} parent=55 // pred_check
          %p541 = pneg %p173
        $region74: #{tpu_custom_call.1} parent=55 // pred_check_branch
          %543 = sbr.rel (%p541) target = $region76
        $region75: #{tpu_custom_call.1} parent=55 // pred_region
          %544 = dma.done %s537, 128
        $region76: #{tpu_custom_call.1} parent=55 // pred_fallthru
          _
        %s545 = sand.u32 %s36, 1
        %s546 = scalar_lea.sflag [#allocation12], %s545
        %s547 = sand.u32 %s186, 1
        %s548 = smul.addr %s547, 4096
        %s549 = scalar_lea.vmem [#allocation11], %s548
        // Predicated region
        $region77: #{tpu_custom_call.1} parent=55 // pred_check
          %p550 = pneg %p199
        $region78: #{tpu_custom_call.1} parent=55 // pred_check_branch
          %552 = sbr.rel (%p550) target = $region80
        $region79: #{tpu_custom_call.1} parent=55 // pred_region
          %553 = dma.done %s546, 65536
        $region80: #{tpu_custom_call.1} parent=55 // pred_fallthru
          _
        %s554 = sand.u32 %s36, 1
        %s555 = scalar_lea.sflag [#allocation12], %s554
        %s556 = sand.u32 %s212, 1
        %s557 = smul.addr %s556, 8
        %s558 = scalar_lea.vmem [#allocation13], %s557
        // Predicated region
        $region81: #{tpu_custom_call.1} parent=55 // pred_check
          %p559 = pneg %p225
        $region82: #{tpu_custom_call.1} parent=55 // pred_check_branch
          %561 = sbr.rel (%p559) target = $region84
        $region83: #{tpu_custom_call.1} parent=55 // pred_region
          %562 = dma.done %s555, 128
        $region84: #{tpu_custom_call.1} parent=55 // pred_fallthru
          _
        %s563 = sand.u32 %s36, 1
        %s564 = scalar_lea.sflag [#allocation15], %s563
        %s565 = sand.u32 %s238, 1
        %s566 = smul.addr %s565, 2048
        %s567 = scalar_lea.vmem [#allocation14], %s566
        // Predicated region
        $region85: #{tpu_custom_call.1} parent=55 // pred_check
          %p568 = pneg %p251
        $region86: #{tpu_custom_call.1} parent=55 // pred_check_branch
          %570 = sbr.rel (%p568) target = $region88
        $region87: #{tpu_custom_call.1} parent=55 // pred_region
          %571 = dma.done %s564, 32768
        $region88: #{tpu_custom_call.1} parent=55 // pred_fallthru
          _
        %s572 = sand.u32 %s36, 1
        %s573 = scalar_lea.sflag [#allocation15], %s572
        %s574 = sand.u32 %s264, 1
        %s575 = smul.addr %s574, 4
        %s576 = scalar_lea.vmem [#allocation16], %s575
        // Predicated region
        $region89: #{tpu_custom_call.1} parent=55 // pred_check
          %p577 = pneg %p277
        $region90: #{tpu_custom_call.1} parent=55 // pred_check_branch
          %579 = sbr.rel (%p577) target = $region92
        $region91: #{tpu_custom_call.1} parent=55 // pred_region
          %580 = dma.done %s573, 64
        $region92: #{tpu_custom_call.1} parent=55 // pred_fallthru
          _
        %p581 = pneg %p69
        %p582 = pneg %p66
        %s583 = sand.u32 %s36, 1
        %s584 = scalar_lea.sflag [#allocation6], %s583
        %s585 = sand.u32 %s82, 1
        %s586 = smul.addr %s585, 2048
        %s587 = scalar_lea.vmem [#allocation5], %s586
        %p588 = pneg %p95
        %p589 = pneg %p92
        %s590 = sand.u32 %s36, 1
        %s591 = scalar_lea.sflag [#allocation6], %s590
        %s592 = sand.u32 %s108, 1
        %s593 = smul.addr %s592, 8
        %s594 = scalar_lea.vmem [#allocation7], %s593
        %p595 = pneg %p121
        %p596 = pneg %p118
        %s597 = sand.u32 %s36, 1
        %s598 = scalar_lea.sflag [#allocation9], %s597
        %s599 = sand.u32 %s134, 1
        %s600 = smul.addr %s599, 4096
        %s601 = scalar_lea.vmem [#allocation8], %s600
        %p602 = pneg %p147
        %p603 = pneg %p144
        %s604 = sand.u32 %s36, 1
        %s605 = scalar_lea.sflag [#allocation9], %s604
        %s606 = sand.u32 %s160, 1
        %s607 = smul.addr %s606, 8
        %s608 = scalar_lea.vmem [#allocation10], %s607
        %p609 = pneg %p173
        %p610 = pneg %p170
        %s611 = sand.u32 %s36, 1
        %s612 = scalar_lea.sflag [#allocation12], %s611
        %s613 = sand.u32 %s186, 1
        %s614 = smul.addr %s613, 4096
        %s615 = scalar_lea.vmem [#allocation11], %s614
        %p616 = pneg %p199
        %p617 = pneg %p196
        %s618 = sand.u32 %s36, 1
        %s619 = scalar_lea.sflag [#allocation12], %s618
        %s620 = sand.u32 %s212, 1
        %s621 = smul.addr %s620, 8
        %s622 = scalar_lea.vmem [#allocation13], %s621
        %p623 = pneg %p225
        %p624 = pneg %p222
        %s625 = sand.u32 %s36, 1
        %s626 = scalar_lea.sflag [#allocation15], %s625
        %s627 = sand.u32 %s238, 1
        %s628 = smul.addr %s627, 2048
        %s629 = scalar_lea.vmem [#allocation14], %s628
        %p630 = pneg %p251
        %p631 = pneg %p248
        %s632 = sand.u32 %s36, 1
        %s633 = scalar_lea.sflag [#allocation15], %s632
        %s634 = sand.u32 %s264, 1
        %s635 = smul.addr %s634, 4
        %s636 = scalar_lea.vmem [#allocation16], %s635
        %p637 = pneg %p277
        %p638 = pneg %p274
        %p639 = pneg %p305
        %p640 = pneg %p302
        %s641 = sand.u32 %s292, 1
        %s642 = scalar_lea.sflag [#allocation4], %s641
        %s643 = sand.u32 %s292, 1
        %s644 = smul.addr %s643, 32
        %s645 = scalar_lea.vmem [#allocation17], %s644
        %v646 = vld [vmem:[#allocation2] sm:$0xff]
        %v647 = vld [vmem:[#allocation2 + $0x8] sm:$0xff]
        %v648 = vld [vmem:[#allocation2 + $0x10] sm:$0xff]
        %v649 = vld [vmem:[#allocation2 + $0x18] sm:$0xff]
        %v650 = vpack.c.bf16 %v646, %v646
        %v651 = vpack.c.bf16 %v647, %v647
        %v652 = vpack.c.bf16 %v648, %v648
        %v653 = vpack.c.bf16 %v649, %v649
        %v654 = vld [vmem:[%s513] sm:$0xff]
        %v655 = vld [vmem:[%s513 + $0x8] sm:$0xff]
        %v656 = vld [vmem:[%s513 + $0x10] sm:$0xff]
        %v657 = vld [vmem:[%s513 + $0x18] sm:$0xff]
        %v658 = vld [vmem:[%s513 + $0x20] sm:$0xff]
        %v659 = vld [vmem:[%s513 + $0x28] sm:$0xff]
        %v660 = vld [vmem:[%s513 + $0x30] sm:$0xff]
        %v661 = vld [vmem:[%s513 + $0x38] sm:$0xff]
        %v662 = vld [vmem:[%s513 + $0x40] sm:$0xff]
        %v663 = vld [vmem:[%s513 + $0x48] sm:$0xff]
        %v664 = vld [vmem:[%s513 + $0x50] sm:$0xff]
        %v665 = vld [vmem:[%s513 + $0x58] sm:$0xff]
        %v666 = vld [vmem:[%s513 + $0x60] sm:$0xff]
        %v667 = vld [vmem:[%s513 + $0x68] sm:$0xff]
        %v668 = vld [vmem:[%s513 + $0x70] sm:$0xff]
        %v669 = vld [vmem:[%s513 + $0x78] sm:$0xff]
        %v670 = vld [vmem:[%s513 + $0x80] sm:$0xff]
        %v671 = vld [vmem:[%s513 + $0x88] sm:$0xff]
        %v672 = vld [vmem:[%s513 + $0x90] sm:$0xff]
        %v673 = vld [vmem:[%s513 + $0x98] sm:$0xff]
        %v674 = vld [vmem:[%s513 + $0xa0] sm:$0xff]
        %v675 = vld [vmem:[%s513 + $0xa8] sm:$0xff]
        %v676 = vld [vmem:[%s513 + $0xb0] sm:$0xff]
        %v677 = vld [vmem:[%s513 + $0xb8] sm:$0xff]
        %v678 = vld [vmem:[%s513 + $0xc0] sm:$0xff]
        %v679 = vld [vmem:[%s513 + $0xc8] sm:$0xff]
        %v680 = vld [vmem:[%s513 + $0xd0] sm:$0xff]
        %v681 = vld [vmem:[%s513 + $0xd8] sm:$0xff]
        %v682 = vld [vmem:[%s513 + $0xe0] sm:$0xff]
        %v683 = vld [vmem:[%s513 + $0xe8] sm:$0xff]
        %v684 = vld [vmem:[%s513 + $0xf0] sm:$0xff]
        %v685 = vld [vmem:[%s513 + $0xf8] sm:$0xff]
        %v686 = vld [vmem:[%s513 + $0x100] sm:$0xff]
        %v687 = vld [vmem:[%s513 + $0x108] sm:$0xff]
        %v688 = vld [vmem:[%s513 + $0x110] sm:$0xff]
        %v689 = vld [vmem:[%s513 + $0x118] sm:$0xff]
        %v690 = vld [vmem:[%s513 + $0x120] sm:$0xff]
        %v691 = vld [vmem:[%s513 + $0x128] sm:$0xff]
        %v692 = vld [vmem:[%s513 + $0x130] sm:$0xff]
        %v693 = vld [vmem:[%s513 + $0x138] sm:$0xff]
        %v694 = vld [vmem:[%s513 + $0x140] sm:$0xff]
        %v695 = vld [vmem:[%s513 + $0x148] sm:$0xff]
        %v696 = vld [vmem:[%s513 + $0x150] sm:$0xff]
        %v697 = vld [vmem:[%s513 + $0x158] sm:$0xff]
        %v698 = vld [vmem:[%s513 + $0x160] sm:$0xff]
        %v699 = vld [vmem:[%s513 + $0x168] sm:$0xff]
        %v700 = vld [vmem:[%s513 + $0x170] sm:$0xff]
        %v701 = vld [vmem:[%s513 + $0x178] sm:$0xff]
        %v702 = vld [vmem:[%s513 + $0x180] sm:$0xff]
        %v703 = vld [vmem:[%s513 + $0x188] sm:$0xff]
        %v704 = vld [vmem:[%s513 + $0x190] sm:$0xff]
        %v705 = vld [vmem:[%s513 + $0x198] sm:$0xff]
        %v706 = vld [vmem:[%s513 + $0x1a0] sm:$0xff]
        %v707 = vld [vmem:[%s513 + $0x1a8] sm:$0xff]
        %v708 = vld [vmem:[%s513 + $0x1b0] sm:$0xff]
        %v709 = vld [vmem:[%s513 + $0x1b8] sm:$0xff]
        %v710 = vld [vmem:[%s513 + $0x1c0] sm:$0xff]
        %v711 = vld [vmem:[%s513 + $0x1c8] sm:$0xff]
        %v712 = vld [vmem:[%s513 + $0x1d0] sm:$0xff]
        %v713 = vld [vmem:[%s513 + $0x1d8] sm:$0xff]
        %v714 = vld [vmem:[%s513 + $0x1e0] sm:$0xff]
        %v715 = vld [vmem:[%s513 + $0x1e8] sm:$0xff]
        %v716 = vld [vmem:[%s513 + $0x1f0] sm:$0xff]
        %v717 = vld [vmem:[%s513 + $0x1f8] sm:$0xff]
        %v718 = vld [vmem:[%s513 + $0x200] sm:$0xff]
        %v719 = vld [vmem:[%s513 + $0x208] sm:$0xff]
        %v720 = vld [vmem:[%s513 + $0x210] sm:$0xff]
        %v721 = vld [vmem:[%s513 + $0x218] sm:$0xff]
        %v722 = vld [vmem:[%s513 + $0x220] sm:$0xff]
        %v723 = vld [vmem:[%s513 + $0x228] sm:$0xff]
        %v724 = vld [vmem:[%s513 + $0x230] sm:$0xff]
        %v725 = vld [vmem:[%s513 + $0x238] sm:$0xff]
        %v726 = vld [vmem:[%s513 + $0x240] sm:$0xff]
        %v727 = vld [vmem:[%s513 + $0x248] sm:$0xff]
        %v728 = vld [vmem:[%s513 + $0x250] sm:$0xff]
        %v729 = vld [vmem:[%s513 + $0x258] sm:$0xff]
        %v730 = vld [vmem:[%s513 + $0x260] sm:$0xff]
        %v731 = vld [vmem:[%s513 + $0x268] sm:$0xff]
        %v732 = vld [vmem:[%s513 + $0x270] sm:$0xff]
        %v733 = vld [vmem:[%s513 + $0x278] sm:$0xff]
        %v734 = vld [vmem:[%s513 + $0x280] sm:$0xff]
        %v735 = vld [vmem:[%s513 + $0x288] sm:$0xff]
        %v736 = vld [vmem:[%s513 + $0x290] sm:$0xff]
        %v737 = vld [vmem:[%s513 + $0x298] sm:$0xff]
        %v738 = vld [vmem:[%s513 + $0x2a0] sm:$0xff]
        %v739 = vld [vmem:[%s513 + $0x2a8] sm:$0xff]
        %v740 = vld [vmem:[%s513 + $0x2b0] sm:$0xff]
        %v741 = vld [vmem:[%s513 + $0x2b8] sm:$0xff]
        %v742 = vld [vmem:[%s513 + $0x2c0] sm:$0xff]
        %v743 = vld [vmem:[%s513 + $0x2c8] sm:$0xff]
        %v744 = vld [vmem:[%s513 + $0x2d0] sm:$0xff]
        %v745 = vld [vmem:[%s513 + $0x2d8] sm:$0xff]
        %v746 = vld [vmem:[%s513 + $0x2e0] sm:$0xff]
        %v747 = vld [vmem:[%s513 + $0x2e8] sm:$0xff]
        %v748 = vld [vmem:[%s513 + $0x2f0] sm:$0xff]
        %v749 = vld [vmem:[%s513 + $0x2f8] sm:$0xff]
        %v750 = vld [vmem:[%s513 + $0x300] sm:$0xff]
        %v751 = vld [vmem:[%s513 + $0x308] sm:$0xff]
        %v752 = vld [vmem:[%s513 + $0x310] sm:$0xff]
        %v753 = vld [vmem:[%s513 + $0x318] sm:$0xff]
        %v754 = vld [vmem:[%s513 + $0x320] sm:$0xff]
        %v755 = vld [vmem:[%s513 + $0x328] sm:$0xff]
        %v756 = vld [vmem:[%s513 + $0x330] sm:$0xff]
        %v757 = vld [vmem:[%s513 + $0x338] sm:$0xff]
        %v758 = vld [vmem:[%s513 + $0x340] sm:$0xff]
        %v759 = vld [vmem:[%s513 + $0x348] sm:$0xff]
        %v760 = vld [vmem:[%s513 + $0x350] sm:$0xff]
        %v761 = vld [vmem:[%s513 + $0x358] sm:$0xff]
        %v762 = vld [vmem:[%s513 + $0x360] sm:$0xff]
        %v763 = vld [vmem:[%s513 + $0x368] sm:$0xff]
        %v764 = vld [vmem:[%s513 + $0x370] sm:$0xff]
        %v765 = vld [vmem:[%s513 + $0x378] sm:$0xff]
        %v766 = vld [vmem:[%s513 + $0x380] sm:$0xff]
        %v767 = vld [vmem:[%s513 + $0x388] sm:$0xff]
        %v768 = vld [vmem:[%s513 + $0x390] sm:$0xff]
        %v769 = vld [vmem:[%s513 + $0x398] sm:$0xff]
        %v770 = vld [vmem:[%s513 + $0x3a0] sm:$0xff]
        %v771 = vld [vmem:[%s513 + $0x3a8] sm:$0xff]
        %v772 = vld [vmem:[%s513 + $0x3b0] sm:$0xff]
        %v773 = vld [vmem:[%s513 + $0x3b8] sm:$0xff]
        %v774 = vld [vmem:[%s513 + $0x3c0] sm:$0xff]
        %v775 = vld [vmem:[%s513 + $0x3c8] sm:$0xff]
        %v776 = vld [vmem:[%s513 + $0x3d0] sm:$0xff]
        %v777 = vld [vmem:[%s513 + $0x3d8] sm:$0xff]
        %v778 = vld [vmem:[%s513 + $0x3e0] sm:$0xff]
        %v779 = vld [vmem:[%s513 + $0x3e8] sm:$0xff]
        %v780 = vld [vmem:[%s513 + $0x3f0] sm:$0xff]
        %v781 = vld [vmem:[%s513 + $0x3f8] sm:$0xff]
        %v782 = vld [vmem:[%s513 + $0x400] sm:$0xff]
        %v783 = vld [vmem:[%s513 + $0x408] sm:$0xff]
        %v784 = vld [vmem:[%s513 + $0x410] sm:$0xff]
        %v785 = vld [vmem:[%s513 + $0x418] sm:$0xff]
        %v786 = vld [vmem:[%s513 + $0x420] sm:$0xff]
        %v787 = vld [vmem:[%s513 + $0x428] sm:$0xff]
        %v788 = vld [vmem:[%s513 + $0x430] sm:$0xff]
        %v789 = vld [vmem:[%s513 + $0x438] sm:$0xff]
        %v790 = vld [vmem:[%s513 + $0x440] sm:$0xff]
        %v791 = vld [vmem:[%s513 + $0x448] sm:$0xff]
        %v792 = vld [vmem:[%s513 + $0x450] sm:$0xff]
        %v793 = vld [vmem:[%s513 + $0x458] sm:$0xff]
        %v794 = vld [vmem:[%s513 + $0x460] sm:$0xff]
        %v795 = vld [vmem:[%s513 + $0x468] sm:$0xff]
        %v796 = vld [vmem:[%s513 + $0x470] sm:$0xff]
        %v797 = vld [vmem:[%s513 + $0x478] sm:$0xff]
        %v798 = vld [vmem:[%s513 + $0x480] sm:$0xff]
        %v799 = vld [vmem:[%s513 + $0x488] sm:$0xff]
        %v800 = vld [vmem:[%s513 + $0x490] sm:$0xff]
        %v801 = vld [vmem:[%s513 + $0x498] sm:$0xff]
        %v802 = vld [vmem:[%s513 + $0x4a0] sm:$0xff]
        %v803 = vld [vmem:[%s513 + $0x4a8] sm:$0xff]
        %v804 = vld [vmem:[%s513 + $0x4b0] sm:$0xff]
        %v805 = vld [vmem:[%s513 + $0x4b8] sm:$0xff]
        %v806 = vld [vmem:[%s513 + $0x4c0] sm:$0xff]
        %v807 = vld [vmem:[%s513 + $0x4c8] sm:$0xff]
        %v808 = vld [vmem:[%s513 + $0x4d0] sm:$0xff]
        %v809 = vld [vmem:[%s513 + $0x4d8] sm:$0xff]
        %v810 = vld [vmem:[%s513 + $0x4e0] sm:$0xff]
        %v811 = vld [vmem:[%s513 + $0x4e8] sm:$0xff]
        %v812 = vld [vmem:[%s513 + $0x4f0] sm:$0xff]
        %v813 = vld [vmem:[%s513 + $0x4f8] sm:$0xff]
        %v814 = vld [vmem:[%s513 + $0x500] sm:$0xff]
        %v815 = vld [vmem:[%s513 + $0x508] sm:$0xff]
        %v816 = vld [vmem:[%s513 + $0x510] sm:$0xff]
        %v817 = vld [vmem:[%s513 + $0x518] sm:$0xff]
        %v818 = vld [vmem:[%s513 + $0x520] sm:$0xff]
        %v819 = vld [vmem:[%s513 + $0x528] sm:$0xff]
        %v820 = vld [vmem:[%s513 + $0x530] sm:$0xff]
        %v821 = vld [vmem:[%s513 + $0x538] sm:$0xff]
        %v822 = vld [vmem:[%s513 + $0x540] sm:$0xff]
        %v823 = vld [vmem:[%s513 + $0x548] sm:$0xff]
        %v824 = vld [vmem:[%s513 + $0x550] sm:$0xff]
        %v825 = vld [vmem:[%s513 + $0x558] sm:$0xff]
        %v826 = vld [vmem:[%s513 + $0x560] sm:$0xff]
        %v827 = vld [vmem:[%s513 + $0x568] sm:$0xff]
        %v828 = vld [vmem:[%s513 + $0x570] sm:$0xff]
        %v829 = vld [vmem:[%s513 + $0x578] sm:$0xff]
        %v830 = vld [vmem:[%s513 + $0x580] sm:$0xff]
        %v831 = vld [vmem:[%s513 + $0x588] sm:$0xff]
        %v832 = vld [vmem:[%s513 + $0x590] sm:$0xff]
        %v833 = vld [vmem:[%s513 + $0x598] sm:$0xff]
        %v834 = vld [vmem:[%s513 + $0x5a0] sm:$0xff]
        %v835 = vld [vmem:[%s513 + $0x5a8] sm:$0xff]
        %v836 = vld [vmem:[%s513 + $0x5b0] sm:$0xff]
        %v837 = vld [vmem:[%s513 + $0x5b8] sm:$0xff]
        %v838 = vld [vmem:[%s513 + $0x5c0] sm:$0xff]
        %v839 = vld [vmem:[%s513 + $0x5c8] sm:$0xff]
        %v840 = vld [vmem:[%s513 + $0x5d0] sm:$0xff]
        %v841 = vld [vmem:[%s513 + $0x5d8] sm:$0xff]
        %v842 = vld [vmem:[%s513 + $0x5e0] sm:$0xff]
        %v843 = vld [vmem:[%s513 + $0x5e8] sm:$0xff]
        %v844 = vld [vmem:[%s513 + $0x5f0] sm:$0xff]
        %v845 = vld [vmem:[%s513 + $0x5f8] sm:$0xff]
        %v846 = vld [vmem:[%s513 + $0x600] sm:$0xff]
        %v847 = vld [vmem:[%s513 + $0x608] sm:$0xff]
        %v848 = vld [vmem:[%s513 + $0x610] sm:$0xff]
        %v849 = vld [vmem:[%s513 + $0x618] sm:$0xff]
        %v850 = vld [vmem:[%s513 + $0x620] sm:$0xff]
        %v851 = vld [vmem:[%s513 + $0x628] sm:$0xff]
        %v852 = vld [vmem:[%s513 + $0x630] sm:$0xff]
        %v853 = vld [vmem:[%s513 + $0x638] sm:$0xff]
        %v854 = vld [vmem:[%s513 + $0x640] sm:$0xff]
        %v855 = vld [vmem:[%s513 + $0x648] sm:$0xff]
        %v856 = vld [vmem:[%s513 + $0x650] sm:$0xff]
        %v857 = vld [vmem:[%s513 + $0x658] sm:$0xff]
        %v858 = vld [vmem:[%s513 + $0x660] sm:$0xff]
        %v859 = vld [vmem:[%s513 + $0x668] sm:$0xff]
        %v860 = vld [vmem:[%s513 + $0x670] sm:$0xff]
        %v861 = vld [vmem:[%s513 + $0x678] sm:$0xff]
        %v862 = vld [vmem:[%s513 + $0x680] sm:$0xff]
        %v863 = vld [vmem:[%s513 + $0x688] sm:$0xff]
        %v864 = vld [vmem:[%s513 + $0x690] sm:$0xff]
        %v865 = vld [vmem:[%s513 + $0x698] sm:$0xff]
        %v866 = vld [vmem:[%s513 + $0x6a0] sm:$0xff]
        %v867 = vld [vmem:[%s513 + $0x6a8] sm:$0xff]
        %v868 = vld [vmem:[%s513 + $0x6b0] sm:$0xff]
        %v869 = vld [vmem:[%s513 + $0x6b8] sm:$0xff]
        %v870 = vld [vmem:[%s513 + $0x6c0] sm:$0xff]
        %v871 = vld [vmem:[%s513 + $0x6c8] sm:$0xff]
        %v872 = vld [vmem:[%s513 + $0x6d0] sm:$0xff]
        %v873 = vld [vmem:[%s513 + $0x6d8] sm:$0xff]
        %v874 = vld [vmem:[%s513 + $0x6e0] sm:$0xff]
        %v875 = vld [vmem:[%s513 + $0x6e8] sm:$0xff]
        %v876 = vld [vmem:[%s513 + $0x6f0] sm:$0xff]
        %v877 = vld [vmem:[%s513 + $0x6f8] sm:$0xff]
        %v878 = vld [vmem:[%s513 + $0x700] sm:$0xff]
        %v879 = vld [vmem:[%s513 + $0x708] sm:$0xff]
        %v880 = vld [vmem:[%s513 + $0x710] sm:$0xff]
        %v881 = vld [vmem:[%s513 + $0x718] sm:$0xff]
        %v882 = vld [vmem:[%s513 + $0x720] sm:$0xff]
        %v883 = vld [vmem:[%s513 + $0x728] sm:$0xff]
        %v884 = vld [vmem:[%s513 + $0x730] sm:$0xff]
        %v885 = vld [vmem:[%s513 + $0x738] sm:$0xff]
        %v886 = vld [vmem:[%s513 + $0x740] sm:$0xff]
        %v887 = vld [vmem:[%s513 + $0x748] sm:$0xff]
        %v888 = vld [vmem:[%s513 + $0x750] sm:$0xff]
        %v889 = vld [vmem:[%s513 + $0x758] sm:$0xff]
        %v890 = vld [vmem:[%s513 + $0x760] sm:$0xff]
        %v891 = vld [vmem:[%s513 + $0x768] sm:$0xff]
        %v892 = vld [vmem:[%s513 + $0x770] sm:$0xff]
        %v893 = vld [vmem:[%s513 + $0x778] sm:$0xff]
        %v894 = vld [vmem:[%s513 + $0x780] sm:$0xff]
        %v895 = vld [vmem:[%s513 + $0x788] sm:$0xff]
        %v896 = vld [vmem:[%s513 + $0x790] sm:$0xff]
        %v897 = vld [vmem:[%s513 + $0x798] sm:$0xff]
        %v898 = vld [vmem:[%s513 + $0x7a0] sm:$0xff]
        %v899 = vld [vmem:[%s513 + $0x7a8] sm:$0xff]
        %v900 = vld [vmem:[%s513 + $0x7b0] sm:$0xff]
        %v901 = vld [vmem:[%s513 + $0x7b8] sm:$0xff]
        %v902 = vld [vmem:[%s513 + $0x7c0] sm:$0xff]
        %v903 = vld [vmem:[%s513 + $0x7c8] sm:$0xff]
        %v904 = vld [vmem:[%s513 + $0x7d0] sm:$0xff]
        %v905 = vld [vmem:[%s513 + $0x7d8] sm:$0xff]
        %v906 = vld [vmem:[%s513 + $0x7e0] sm:$0xff]
        %v907 = vld [vmem:[%s513 + $0x7e8] sm:$0xff]
        %v908 = vld [vmem:[%s513 + $0x7f0] sm:$0xff]
        %v909 = vld [vmem:[%s513 + $0x7f8] sm:$0xff]
        %v910 = vld [vmem:[%s522] sm:$0xff]
        %v912 = vlaneseq
        %v913 = vshrl.u32 %v912, 7
        %v914 = vsub.s32 0, %v913
        %v915 = vrot.slane %v910, %v914
        %v916 = vlaneseq
        %v917 = vshrl.u32 %v916, 7
        %v918 = vsub.s32 1, %v917
        %v919 = vrot.slane %v910, %v918
        %v920 = vlaneseq
        %v921 = vshrl.u32 %v920, 7
        %v922 = vsub.s32 2, %v921
        %v923 = vrot.slane %v910, %v922
        %v924 = vlaneseq
        %v925 = vshrl.u32 %v924, 7
        %v926 = vsub.s32 3, %v925
        %v927 = vrot.slane %v910, %v926
        %v928 = vlaneseq
        %v929 = vshrl.u32 %v928, 7
        %v930 = vsub.s32 4, %v929
        %v931 = vrot.slane %v910, %v930
        %v932 = vlaneseq
        %v933 = vshrl.u32 %v932, 7
        %v934 = vsub.s32 5, %v933
        %v935 = vrot.slane %v910, %v934
        %v936 = vlaneseq
        %v937 = vshrl.u32 %v936, 7
        %v938 = vsub.s32 6, %v937
        %v939 = vrot.slane %v910, %v938
        %v940 = vlaneseq
        %v941 = vshrl.u32 %v940, 7
        %v942 = vsub.s32 7, %v941
        %v943 = vrot.slane %v910, %v942
        %v1208 = vunpack.c.l.b16 %v654
        %v1209 = vunpack.c.h.b16 %v654
        %v1210 = vunpack.c.l.b16 %v655
        %v1211 = vunpack.c.h.b16 %v655
        %v1212 = vunpack.c.l.b16 %v656
        %v1213 = vunpack.c.h.b16 %v656
        %v1214 = vunpack.c.l.b16 %v657
        %v1215 = vunpack.c.h.b16 %v657
        %v1216 = vunpack.c.l.b16 %v658
        %v1217 = vunpack.c.h.b16 %v658
        %v1218 = vunpack.c.l.b16 %v659
        %v1219 = vunpack.c.h.b16 %v659
        %v1220 = vunpack.c.l.b16 %v660
        %v1221 = vunpack.c.h.b16 %v660
        %v1222 = vunpack.c.l.b16 %v661
        %v1223 = vunpack.c.h.b16 %v661
        %v1224 = vunpack.c.l.b16 %v662
        %v1225 = vunpack.c.h.b16 %v662
        %v1226 = vunpack.c.l.b16 %v663
        %v1227 = vunpack.c.h.b16 %v663
        %v1228 = vunpack.c.l.b16 %v664
        %v1229 = vunpack.c.h.b16 %v664
        %v1230 = vunpack.c.l.b16 %v665
        %v1231 = vunpack.c.h.b16 %v665
        %v1232 = vunpack.c.l.b16 %v666
        %v1233 = vunpack.c.h.b16 %v666
        %v1234 = vunpack.c.l.b16 %v667
        %v1235 = vunpack.c.h.b16 %v667
        %v1236 = vunpack.c.l.b16 %v668
        %v1237 = vunpack.c.h.b16 %v668
        %v1238 = vunpack.c.l.b16 %v669
        %v1239 = vunpack.c.h.b16 %v669
        %v1240 = vunpack.c.l.b16 %v670
        %v1241 = vunpack.c.h.b16 %v670
        %v1242 = vunpack.c.l.b16 %v671
        %v1243 = vunpack.c.h.b16 %v671
        %v1244 = vunpack.c.l.b16 %v672
        %v1245 = vunpack.c.h.b16 %v672
        %v1246 = vunpack.c.l.b16 %v673
        %v1247 = vunpack.c.h.b16 %v673
        %v1248 = vunpack.c.l.b16 %v674
        %v1249 = vunpack.c.h.b16 %v674
        %v1250 = vunpack.c.l.b16 %v675
        %v1251 = vunpack.c.h.b16 %v675
        %v1252 = vunpack.c.l.b16 %v676
        %v1253 = vunpack.c.h.b16 %v676
        %v1254 = vunpack.c.l.b16 %v677
        %v1255 = vunpack.c.h.b16 %v677
        %v1256 = vunpack.c.l.b16 %v678
        %v1257 = vunpack.c.h.b16 %v678
        %v1258 = vunpack.c.l.b16 %v679
        %v1259 = vunpack.c.h.b16 %v679
        %v1260 = vunpack.c.l.b16 %v680
        %v1261 = vunpack.c.h.b16 %v680
        %v1262 = vunpack.c.l.b16 %v681
        %v1263 = vunpack.c.h.b16 %v681
        %v1264 = vunpack.c.l.b16 %v682
        %v1265 = vunpack.c.h.b16 %v682
        %v1266 = vunpack.c.l.b16 %v683
        %v1267 = vunpack.c.h.b16 %v683
        %v1268 = vunpack.c.l.b16 %v684
        %v1269 = vunpack.c.h.b16 %v684
        %v1270 = vunpack.c.l.b16 %v685
        %v1271 = vunpack.c.h.b16 %v685
        %v1272 = vunpack.c.l.b16 %v686
        %v1273 = vunpack.c.h.b16 %v686
        %v1274 = vunpack.c.l.b16 %v687
        %v1275 = vunpack.c.h.b16 %v687
        %v1276 = vunpack.c.l.b16 %v688
        %v1277 = vunpack.c.h.b16 %v688
        %v1278 = vunpack.c.l.b16 %v689
        %v1279 = vunpack.c.h.b16 %v689
        %v1280 = vunpack.c.l.b16 %v690
        %v1281 = vunpack.c.h.b16 %v690
        %v1282 = vunpack.c.l.b16 %v691
        %v1283 = vunpack.c.h.b16 %v691
        %v1284 = vunpack.c.l.b16 %v692
        %v1285 = vunpack.c.h.b16 %v692
        %v1286 = vunpack.c.l.b16 %v693
        %v1287 = vunpack.c.h.b16 %v693
        %v1288 = vunpack.c.l.b16 %v694
        %v1289 = vunpack.c.h.b16 %v694
        %v1290 = vunpack.c.l.b16 %v695
        %v1291 = vunpack.c.h.b16 %v695
        %v1292 = vunpack.c.l.b16 %v696
        %v1293 = vunpack.c.h.b16 %v696
        %v1294 = vunpack.c.l.b16 %v697
        %v1295 = vunpack.c.h.b16 %v697
        %v1296 = vunpack.c.l.b16 %v698
        %v1297 = vunpack.c.h.b16 %v698
        %v1298 = vunpack.c.l.b16 %v699
        %v1299 = vunpack.c.h.b16 %v699
        %v1300 = vunpack.c.l.b16 %v700
        %v1301 = vunpack.c.h.b16 %v700
        %v1302 = vunpack.c.l.b16 %v701
        %v1303 = vunpack.c.h.b16 %v701
        %v1304 = vunpack.c.l.b16 %v702
        %v1305 = vunpack.c.h.b16 %v702
        %v1306 = vunpack.c.l.b16 %v703
        %v1307 = vunpack.c.h.b16 %v703
        %v1308 = vunpack.c.l.b16 %v704
        %v1309 = vunpack.c.h.b16 %v704
        %v1310 = vunpack.c.l.b16 %v705
        %v1311 = vunpack.c.h.b16 %v705
        %v1312 = vunpack.c.l.b16 %v706
        %v1313 = vunpack.c.h.b16 %v706
        %v1314 = vunpack.c.l.b16 %v707
        %v1315 = vunpack.c.h.b16 %v707
        %v1316 = vunpack.c.l.b16 %v708
        %v1317 = vunpack.c.h.b16 %v708
        %v1318 = vunpack.c.l.b16 %v709
        %v1319 = vunpack.c.h.b16 %v709
        %v1320 = vunpack.c.l.b16 %v710
        %v1321 = vunpack.c.h.b16 %v710
        %v1322 = vunpack.c.l.b16 %v711
        %v1323 = vunpack.c.h.b16 %v711
        %v1324 = vunpack.c.l.b16 %v712
        %v1325 = vunpack.c.h.b16 %v712
        %v1326 = vunpack.c.l.b16 %v713
        %v1327 = vunpack.c.h.b16 %v713
        %v1328 = vunpack.c.l.b16 %v714
        %v1329 = vunpack.c.h.b16 %v714
        %v1330 = vunpack.c.l.b16 %v715
        %v1331 = vunpack.c.h.b16 %v715
        %v1332 = vunpack.c.l.b16 %v716
        %v1333 = vunpack.c.h.b16 %v716
        %v1334 = vunpack.c.l.b16 %v717
        %v1335 = vunpack.c.h.b16 %v717
        %v1336 = vunpack.c.l.b16 %v718
        %v1337 = vunpack.c.h.b16 %v718
        %v1338 = vunpack.c.l.b16 %v719
        %v1339 = vunpack.c.h.b16 %v719
        %v1340 = vunpack.c.l.b16 %v720
        %v1341 = vunpack.c.h.b16 %v720
        %v1342 = vunpack.c.l.b16 %v721
        %v1343 = vunpack.c.h.b16 %v721
        %v1344 = vunpack.c.l.b16 %v722
        %v1345 = vunpack.c.h.b16 %v722
        %v1346 = vunpack.c.l.b16 %v723
        %v1347 = vunpack.c.h.b16 %v723
        %v1348 = vunpack.c.l.b16 %v724
        %v1349 = vunpack.c.h.b16 %v724
        %v1350 = vunpack.c.l.b16 %v725
        %v1351 = vunpack.c.h.b16 %v725
        %v1352 = vunpack.c.l.b16 %v726
        %v1353 = vunpack.c.h.b16 %v726
        %v1354 = vunpack.c.l.b16 %v727
        %v1355 = vunpack.c.h.b16 %v727
        %v1356 = vunpack.c.l.b16 %v728
        %v1357 = vunpack.c.h.b16 %v728
        %v1358 = vunpack.c.l.b16 %v729
        %v1359 = vunpack.c.h.b16 %v729
        %v1360 = vunpack.c.l.b16 %v730
        %v1361 = vunpack.c.h.b16 %v730
        %v1362 = vunpack.c.l.b16 %v731
        %v1363 = vunpack.c.h.b16 %v731
        %v1364 = vunpack.c.l.b16 %v732
        %v1365 = vunpack.c.h.b16 %v732
        %v1366 = vunpack.c.l.b16 %v733
        %v1367 = vunpack.c.h.b16 %v733
        %v1368 = vunpack.c.l.b16 %v734
        %v1369 = vunpack.c.h.b16 %v734
        %v1370 = vunpack.c.l.b16 %v735
        %v1371 = vunpack.c.h.b16 %v735
        %v1372 = vunpack.c.l.b16 %v736
        %v1373 = vunpack.c.h.b16 %v736
        %v1374 = vunpack.c.l.b16 %v737
        %v1375 = vunpack.c.h.b16 %v737
        %v1376 = vunpack.c.l.b16 %v738
        %v1377 = vunpack.c.h.b16 %v738
        %v1378 = vunpack.c.l.b16 %v739
        %v1379 = vunpack.c.h.b16 %v739
        %v1380 = vunpack.c.l.b16 %v740
        %v1381 = vunpack.c.h.b16 %v740
        %v1382 = vunpack.c.l.b16 %v741
        %v1383 = vunpack.c.h.b16 %v741
        %v1384 = vunpack.c.l.b16 %v742
        %v1385 = vunpack.c.h.b16 %v742
        %v1386 = vunpack.c.l.b16 %v743
        %v1387 = vunpack.c.h.b16 %v743
        %v1388 = vunpack.c.l.b16 %v744
        %v1389 = vunpack.c.h.b16 %v744
        %v1390 = vunpack.c.l.b16 %v745
        %v1391 = vunpack.c.h.b16 %v745
        %v1392 = vunpack.c.l.b16 %v746
        %v1393 = vunpack.c.h.b16 %v746
        %v1394 = vunpack.c.l.b16 %v747
        %v1395 = vunpack.c.h.b16 %v747
        %v1396 = vunpack.c.l.b16 %v748
        %v1397 = vunpack.c.h.b16 %v748
        %v1398 = vunpack.c.l.b16 %v749
        %v1399 = vunpack.c.h.b16 %v749
        %v1400 = vunpack.c.l.b16 %v750
        %v1401 = vunpack.c.h.b16 %v750
        %v1402 = vunpack.c.l.b16 %v751
        %v1403 = vunpack.c.h.b16 %v751
        %v1404 = vunpack.c.l.b16 %v752
        %v1405 = vunpack.c.h.b16 %v752
        %v1406 = vunpack.c.l.b16 %v753
        %v1407 = vunpack.c.h.b16 %v753
        %v1408 = vunpack.c.l.b16 %v754
        %v1409 = vunpack.c.h.b16 %v754
        %v1410 = vunpack.c.l.b16 %v755
        %v1411 = vunpack.c.h.b16 %v755
        %v1412 = vunpack.c.l.b16 %v756
        %v1413 = vunpack.c.h.b16 %v756
        %v1414 = vunpack.c.l.b16 %v757
        %v1415 = vunpack.c.h.b16 %v757
        %v1416 = vunpack.c.l.b16 %v758
        %v1417 = vunpack.c.h.b16 %v758
        %v1418 = vunpack.c.l.b16 %v759
        %v1419 = vunpack.c.h.b16 %v759
        %v1420 = vunpack.c.l.b16 %v760
        %v1421 = vunpack.c.h.b16 %v760
        %v1422 = vunpack.c.l.b16 %v761
        %v1423 = vunpack.c.h.b16 %v761
        %v1424 = vunpack.c.l.b16 %v762
        %v1425 = vunpack.c.h.b16 %v762
        %v1426 = vunpack.c.l.b16 %v763
        %v1427 = vunpack.c.h.b16 %v763
        %v1428 = vunpack.c.l.b16 %v764
        %v1429 = vunpack.c.h.b16 %v764
        %v1430 = vunpack.c.l.b16 %v765
        %v1431 = vunpack.c.h.b16 %v765
        %v1432 = vunpack.c.l.b16 %v766
        %v1433 = vunpack.c.h.b16 %v766
        %v1434 = vunpack.c.l.b16 %v767
        %v1435 = vunpack.c.h.b16 %v767
        %v1436 = vunpack.c.l.b16 %v768
        %v1437 = vunpack.c.h.b16 %v768
        %v1438 = vunpack.c.l.b16 %v769
        %v1439 = vunpack.c.h.b16 %v769
        %v1440 = vunpack.c.l.b16 %v770
        %v1441 = vunpack.c.h.b16 %v770
        %v1442 = vunpack.c.l.b16 %v771
        %v1443 = vunpack.c.h.b16 %v771
        %v1444 = vunpack.c.l.b16 %v772
        %v1445 = vunpack.c.h.b16 %v772
        %v1446 = vunpack.c.l.b16 %v773
        %v1447 = vunpack.c.h.b16 %v773
        %v1448 = vunpack.c.l.b16 %v774
        %v1449 = vunpack.c.h.b16 %v774
        %v1450 = vunpack.c.l.b16 %v775
        %v1451 = vunpack.c.h.b16 %v775
        %v1452 = vunpack.c.l.b16 %v776
        %v1453 = vunpack.c.h.b16 %v776
        %v1454 = vunpack.c.l.b16 %v777
        %v1455 = vunpack.c.h.b16 %v777
        %v1456 = vunpack.c.l.b16 %v778
        %v1457 = vunpack.c.h.b16 %v778
        %v1458 = vunpack.c.l.b16 %v779
        %v1459 = vunpack.c.h.b16 %v779
        %v1460 = vunpack.c.l.b16 %v780
        %v1461 = vunpack.c.h.b16 %v780
        %v1462 = vunpack.c.l.b16 %v781
        %v1463 = vunpack.c.h.b16 %v781
        %v1464 = vunpack.c.l.b16 %v782
        %v1465 = vunpack.c.h.b16 %v782
        %v1466 = vunpack.c.l.b16 %v783
        %v1467 = vunpack.c.h.b16 %v783
        %v1468 = vunpack.c.l.b16 %v784
        %v1469 = vunpack.c.h.b16 %v784
        %v1470 = vunpack.c.l.b16 %v785
        %v1471 = vunpack.c.h.b16 %v785
        %v1472 = vunpack.c.l.b16 %v786
        %v1473 = vunpack.c.h.b16 %v786
        %v1474 = vunpack.c.l.b16 %v787
        %v1475 = vunpack.c.h.b16 %v787
        %v1476 = vunpack.c.l.b16 %v788
        %v1477 = vunpack.c.h.b16 %v788
        %v1478 = vunpack.c.l.b16 %v789
        %v1479 = vunpack.c.h.b16 %v789
        %v1480 = vunpack.c.l.b16 %v790
        %v1481 = vunpack.c.h.b16 %v790
        %v1482 = vunpack.c.l.b16 %v791
        %v1483 = vunpack.c.h.b16 %v791
        %v1484 = vunpack.c.l.b16 %v792
        %v1485 = vunpack.c.h.b16 %v792
        %v1486 = vunpack.c.l.b16 %v793
        %v1487 = vunpack.c.h.b16 %v793
        %v1488 = vunpack.c.l.b16 %v794
        %v1489 = vunpack.c.h.b16 %v794
        %v1490 = vunpack.c.l.b16 %v795
        %v1491 = vunpack.c.h.b16 %v795
        %v1492 = vunpack.c.l.b16 %v796
        %v1493 = vunpack.c.h.b16 %v796
        %v1494 = vunpack.c.l.b16 %v797
        %v1495 = vunpack.c.h.b16 %v797
        %v1496 = vunpack.c.l.b16 %v798
        %v1497 = vunpack.c.h.b16 %v798
        %v1498 = vunpack.c.l.b16 %v799
        %v1499 = vunpack.c.h.b16 %v799
        %v1500 = vunpack.c.l.b16 %v800
        %v1501 = vunpack.c.h.b16 %v800
        %v1502 = vunpack.c.l.b16 %v801
        %v1503 = vunpack.c.h.b16 %v801
        %v1504 = vunpack.c.l.b16 %v802
        %v1505 = vunpack.c.h.b16 %v802
        %v1506 = vunpack.c.l.b16 %v803
        %v1507 = vunpack.c.h.b16 %v803
        %v1508 = vunpack.c.l.b16 %v804
        %v1509 = vunpack.c.h.b16 %v804
        %v1510 = vunpack.c.l.b16 %v805
        %v1511 = vunpack.c.h.b16 %v805
        %v1512 = vunpack.c.l.b16 %v806
        %v1513 = vunpack.c.h.b16 %v806
        %v1514 = vunpack.c.l.b16 %v807
        %v1515 = vunpack.c.h.b16 %v807
        %v1516 = vunpack.c.l.b16 %v808
        %v1517 = vunpack.c.h.b16 %v808
        %v1518 = vunpack.c.l.b16 %v809
        %v1519 = vunpack.c.h.b16 %v809
        %v1520 = vunpack.c.l.b16 %v810
        %v1521 = vunpack.c.h.b16 %v810
        %v1522 = vunpack.c.l.b16 %v811
        %v1523 = vunpack.c.h.b16 %v811
        %v1524 = vunpack.c.l.b16 %v812
        %v1525 = vunpack.c.h.b16 %v812
        %v1526 = vunpack.c.l.b16 %v813
        %v1527 = vunpack.c.h.b16 %v813
        %v1528 = vunpack.c.l.b16 %v814
        %v1529 = vunpack.c.h.b16 %v814
        %v1530 = vunpack.c.l.b16 %v815
        %v1531 = vunpack.c.h.b16 %v815
        %v1532 = vunpack.c.l.b16 %v816
        %v1533 = vunpack.c.h.b16 %v816
        %v1534 = vunpack.c.l.b16 %v817
        %v1535 = vunpack.c.h.b16 %v817
        %v1536 = vunpack.c.l.b16 %v818
        %v1537 = vunpack.c.h.b16 %v818
        %v1538 = vunpack.c.l.b16 %v819
        %v1539 = vunpack.c.h.b16 %v819
        %v1540 = vunpack.c.l.b16 %v820
        %v1541 = vunpack.c.h.b16 %v820
        %v1542 = vunpack.c.l.b16 %v821
        %v1543 = vunpack.c.h.b16 %v821
        %v1544 = vunpack.c.l.b16 %v822
        %v1545 = vunpack.c.h.b16 %v822
        %v1546 = vunpack.c.l.b16 %v823
        %v1547 = vunpack.c.h.b16 %v823
        %v1548 = vunpack.c.l.b16 %v824
        %v1549 = vunpack.c.h.b16 %v824
        %v1550 = vunpack.c.l.b16 %v825
        %v1551 = vunpack.c.h.b16 %v825
        %v1552 = vunpack.c.l.b16 %v826
        %v1553 = vunpack.c.h.b16 %v826
        %v1554 = vunpack.c.l.b16 %v827
        %v1555 = vunpack.c.h.b16 %v827
        %v1556 = vunpack.c.l.b16 %v828
        %v1557 = vunpack.c.h.b16 %v828
        %v1558 = vunpack.c.l.b16 %v829
        %v1559 = vunpack.c.h.b16 %v829
        %v1560 = vunpack.c.l.b16 %v830
        %v1561 = vunpack.c.h.b16 %v830
        %v1562 = vunpack.c.l.b16 %v831
        %v1563 = vunpack.c.h.b16 %v831
        %v1564 = vunpack.c.l.b16 %v832
        %v1565 = vunpack.c.h.b16 %v832
        %v1566 = vunpack.c.l.b16 %v833
        %v1567 = vunpack.c.h.b16 %v833
        %v1568 = vunpack.c.l.b16 %v834
        %v1569 = vunpack.c.h.b16 %v834
        %v1570 = vunpack.c.l.b16 %v835
        %v1571 = vunpack.c.h.b16 %v835
        %v1572 = vunpack.c.l.b16 %v836
        %v1573 = vunpack.c.h.b16 %v836
        %v1574 = vunpack.c.l.b16 %v837
        %v1575 = vunpack.c.h.b16 %v837
        %v1576 = vunpack.c.l.b16 %v838
        %v1577 = vunpack.c.h.b16 %v838
        %v1578 = vunpack.c.l.b16 %v839
        %v1579 = vunpack.c.h.b16 %v839
        %v1580 = vunpack.c.l.b16 %v840
        %v1581 = vunpack.c.h.b16 %v840
        %v1582 = vunpack.c.l.b16 %v841
        %v1583 = vunpack.c.h.b16 %v841
        %v1584 = vunpack.c.l.b16 %v842
        %v1585 = vunpack.c.h.b16 %v842
        %v1586 = vunpack.c.l.b16 %v843
        %v1587 = vunpack.c.h.b16 %v843
        %v1588 = vunpack.c.l.b16 %v844
        %v1589 = vunpack.c.h.b16 %v844
        %v1590 = vunpack.c.l.b16 %v845
        %v1591 = vunpack.c.h.b16 %v845
        %v1592 = vunpack.c.l.b16 %v846
        %v1593 = vunpack.c.h.b16 %v846
        %v1594 = vunpack.c.l.b16 %v847
        %v1595 = vunpack.c.h.b16 %v847
        %v1596 = vunpack.c.l.b16 %v848
        %v1597 = vunpack.c.h.b16 %v848
        %v1598 = vunpack.c.l.b16 %v849
        %v1599 = vunpack.c.h.b16 %v849
        %v1600 = vunpack.c.l.b16 %v850
        %v1601 = vunpack.c.h.b16 %v850
        %v1602 = vunpack.c.l.b16 %v851
        %v1603 = vunpack.c.h.b16 %v851
        %v1604 = vunpack.c.l.b16 %v852
        %v1605 = vunpack.c.h.b16 %v852
        %v1606 = vunpack.c.l.b16 %v853
        %v1607 = vunpack.c.h.b16 %v853
        %v1608 = vunpack.c.l.b16 %v854
        %v1609 = vunpack.c.h.b16 %v854
        %v1610 = vunpack.c.l.b16 %v855
        %v1611 = vunpack.c.h.b16 %v855
        %v1612 = vunpack.c.l.b16 %v856
        %v1613 = vunpack.c.h.b16 %v856
        %v1614 = vunpack.c.l.b16 %v857
        %v1615 = vunpack.c.h.b16 %v857
        %v1616 = vunpack.c.l.b16 %v858
        %v1617 = vunpack.c.h.b16 %v858
        %v1618 = vunpack.c.l.b16 %v859
        %v1619 = vunpack.c.h.b16 %v859
        %v1620 = vunpack.c.l.b16 %v860
        %v1621 = vunpack.c.h.b16 %v860
        %v1622 = vunpack.c.l.b16 %v861
        %v1623 = vunpack.c.h.b16 %v861
        %v1624 = vunpack.c.l.b16 %v862
        %v1625 = vunpack.c.h.b16 %v862
        %v1626 = vunpack.c.l.b16 %v863
        %v1627 = vunpack.c.h.b16 %v863
        %v1628 = vunpack.c.l.b16 %v864
        %v1629 = vunpack.c.h.b16 %v864
        %v1630 = vunpack.c.l.b16 %v865
        %v1631 = vunpack.c.h.b16 %v865
        %v1632 = vunpack.c.l.b16 %v866
        %v1633 = vunpack.c.h.b16 %v866
        %v1634 = vunpack.c.l.b16 %v867
        %v1635 = vunpack.c.h.b16 %v867
        %v1636 = vunpack.c.l.b16 %v868
        %v1637 = vunpack.c.h.b16 %v868
        %v1638 = vunpack.c.l.b16 %v869
        %v1639 = vunpack.c.h.b16 %v869
        %v1640 = vunpack.c.l.b16 %v870
        %v1641 = vunpack.c.h.b16 %v870
        %v1642 = vunpack.c.l.b16 %v871
        %v1643 = vunpack.c.h.b16 %v871
        %v1644 = vunpack.c.l.b16 %v872
        %v1645 = vunpack.c.h.b16 %v872
        %v1646 = vunpack.c.l.b16 %v873
        %v1647 = vunpack.c.h.b16 %v873
        %v1648 = vunpack.c.l.b16 %v874
        %v1649 = vunpack.c.h.b16 %v874
        %v1650 = vunpack.c.l.b16 %v875
        %v1651 = vunpack.c.h.b16 %v875
        %v1652 = vunpack.c.l.b16 %v876
        %v1653 = vunpack.c.h.b16 %v876
        %v1654 = vunpack.c.l.b16 %v877
        %v1655 = vunpack.c.h.b16 %v877
        %v1656 = vunpack.c.l.b16 %v878
        %v1657 = vunpack.c.h.b16 %v878
        %v1658 = vunpack.c.l.b16 %v879
        %v1659 = vunpack.c.h.b16 %v879
        %v1660 = vunpack.c.l.b16 %v880
        %v1661 = vunpack.c.h.b16 %v880
        %v1662 = vunpack.c.l.b16 %v881
        %v1663 = vunpack.c.h.b16 %v881
        %v1664 = vunpack.c.l.b16 %v882
        %v1665 = vunpack.c.h.b16 %v882
        %v1666 = vunpack.c.l.b16 %v883
        %v1667 = vunpack.c.h.b16 %v883
        %v1668 = vunpack.c.l.b16 %v884
        %v1669 = vunpack.c.h.b16 %v884
        %v1670 = vunpack.c.l.b16 %v885
        %v1671 = vunpack.c.h.b16 %v885
        %v1672 = vunpack.c.l.b16 %v886
        %v1673 = vunpack.c.h.b16 %v886
        %v1674 = vunpack.c.l.b16 %v887
        %v1675 = vunpack.c.h.b16 %v887
        %v1676 = vunpack.c.l.b16 %v888
        %v1677 = vunpack.c.h.b16 %v888
        %v1678 = vunpack.c.l.b16 %v889
        %v1679 = vunpack.c.h.b16 %v889
        %v1680 = vunpack.c.l.b16 %v890
        %v1681 = vunpack.c.h.b16 %v890
        %v1682 = vunpack.c.l.b16 %v891
        %v1683 = vunpack.c.h.b16 %v891
        %v1684 = vunpack.c.l.b16 %v892
        %v1685 = vunpack.c.h.b16 %v892
        %v1686 = vunpack.c.l.b16 %v893
        %v1687 = vunpack.c.h.b16 %v893
        %v1688 = vunpack.c.l.b16 %v894
        %v1689 = vunpack.c.h.b16 %v894
        %v1690 = vunpack.c.l.b16 %v895
        %v1691 = vunpack.c.h.b16 %v895
        %v1692 = vunpack.c.l.b16 %v896
        %v1693 = vunpack.c.h.b16 %v896
        %v1694 = vunpack.c.l.b16 %v897
        %v1695 = vunpack.c.h.b16 %v897
        %v1696 = vunpack.c.l.b16 %v898
        %v1697 = vunpack.c.h.b16 %v898
        %v1698 = vunpack.c.l.b16 %v899
        %v1699 = vunpack.c.h.b16 %v899
        %v1700 = vunpack.c.l.b16 %v900
        %v1701 = vunpack.c.h.b16 %v900
        %v1702 = vunpack.c.l.b16 %v901
        %v1703 = vunpack.c.h.b16 %v901
        %v1704 = vunpack.c.l.b16 %v902
        %v1705 = vunpack.c.h.b16 %v902
        %v1706 = vunpack.c.l.b16 %v903
        %v1707 = vunpack.c.h.b16 %v903
        %v1708 = vunpack.c.l.b16 %v904
        %v1709 = vunpack.c.h.b16 %v904
        %v1710 = vunpack.c.l.b16 %v905
        %v1711 = vunpack.c.h.b16 %v905
        %v1712 = vunpack.c.l.b16 %v906
        %v1713 = vunpack.c.h.b16 %v906
        %v1714 = vunpack.c.l.b16 %v907
        %v1715 = vunpack.c.h.b16 %v907
        %v1716 = vunpack.c.l.b16 %v908
        %v1717 = vunpack.c.h.b16 %v908
        %v1718 = vunpack.c.l.b16 %v909
        %v1719 = vunpack.c.h.b16 %v909
        %v1720 = vpack.c.b16 %v1216, %v1208
        %v1721 = vpack.c.b16 %v1217, %v1209
        %v1722 = vpack.c.b16 %v1218, %v1210
        %v1723 = vpack.c.b16 %v1219, %v1211
        %v1724 = vpack.c.b16 %v1220, %v1212
        %v1725 = vpack.c.b16 %v1221, %v1213
        %v1726 = vpack.c.b16 %v1222, %v1214
        %v1727 = vpack.c.b16 %v1223, %v1215
        %v1728 = vpack.c.b16 %v1232, %v1224
        %v1729 = vpack.c.b16 %v1233, %v1225
        %v1730 = vpack.c.b16 %v1234, %v1226
        %v1731 = vpack.c.b16 %v1235, %v1227
        %v1732 = vpack.c.b16 %v1236, %v1228
        %v1733 = vpack.c.b16 %v1237, %v1229
        %v1734 = vpack.c.b16 %v1238, %v1230
        %v1735 = vpack.c.b16 %v1239, %v1231
        %v1736 = vpack.c.b16 %v1248, %v1240
        %v1737 = vpack.c.b16 %v1249, %v1241
        %v1738 = vpack.c.b16 %v1250, %v1242
        %v1739 = vpack.c.b16 %v1251, %v1243
        %v1740 = vpack.c.b16 %v1252, %v1244
        %v1741 = vpack.c.b16 %v1253, %v1245
        %v1742 = vpack.c.b16 %v1254, %v1246
        %v1743 = vpack.c.b16 %v1255, %v1247
        %v1744 = vpack.c.b16 %v1264, %v1256
        %v1745 = vpack.c.b16 %v1265, %v1257
        %v1746 = vpack.c.b16 %v1266, %v1258
        %v1747 = vpack.c.b16 %v1267, %v1259
        %v1748 = vpack.c.b16 %v1268, %v1260
        %v1749 = vpack.c.b16 %v1269, %v1261
        %v1750 = vpack.c.b16 %v1270, %v1262
        %v1751 = vpack.c.b16 %v1271, %v1263
        %v1752 = vpack.c.b16 %v1280, %v1272
        %v1753 = vpack.c.b16 %v1281, %v1273
        %v1754 = vpack.c.b16 %v1282, %v1274
        %v1755 = vpack.c.b16 %v1283, %v1275
        %v1756 = vpack.c.b16 %v1284, %v1276
        %v1757 = vpack.c.b16 %v1285, %v1277
        %v1758 = vpack.c.b16 %v1286, %v1278
        %v1759 = vpack.c.b16 %v1287, %v1279
        %v1760 = vpack.c.b16 %v1296, %v1288
        %v1761 = vpack.c.b16 %v1297, %v1289
        %v1762 = vpack.c.b16 %v1298, %v1290
        %v1763 = vpack.c.b16 %v1299, %v1291
        %v1764 = vpack.c.b16 %v1300, %v1292
        %v1765 = vpack.c.b16 %v1301, %v1293
        %v1766 = vpack.c.b16 %v1302, %v1294
        %v1767 = vpack.c.b16 %v1303, %v1295
        %v1768 = vpack.c.b16 %v1312, %v1304
        %v1769 = vpack.c.b16 %v1313, %v1305
        %v1770 = vpack.c.b16 %v1314, %v1306
        %v1771 = vpack.c.b16 %v1315, %v1307
        %v1772 = vpack.c.b16 %v1316, %v1308
        %v1773 = vpack.c.b16 %v1317, %v1309
        %v1774 = vpack.c.b16 %v1318, %v1310
        %v1775 = vpack.c.b16 %v1319, %v1311
        %v1776 = vpack.c.b16 %v1328, %v1320
        %v1777 = vpack.c.b16 %v1329, %v1321
        %v1778 = vpack.c.b16 %v1330, %v1322
        %v1779 = vpack.c.b16 %v1331, %v1323
        %v1780 = vpack.c.b16 %v1332, %v1324
        %v1781 = vpack.c.b16 %v1333, %v1325
        %v1782 = vpack.c.b16 %v1334, %v1326
        %v1783 = vpack.c.b16 %v1335, %v1327
        %v1784 = vpack.c.b16 %v1344, %v1336
        %v1785 = vpack.c.b16 %v1345, %v1337
        %v1786 = vpack.c.b16 %v1346, %v1338
        %v1787 = vpack.c.b16 %v1347, %v1339
        %v1788 = vpack.c.b16 %v1348, %v1340
        %v1789 = vpack.c.b16 %v1349, %v1341
        %v1790 = vpack.c.b16 %v1350, %v1342
        %v1791 = vpack.c.b16 %v1351, %v1343
        %v1792 = vpack.c.b16 %v1360, %v1352
        %v1793 = vpack.c.b16 %v1361, %v1353
        %v1794 = vpack.c.b16 %v1362, %v1354
        %v1795 = vpack.c.b16 %v1363, %v1355
        %v1796 = vpack.c.b16 %v1364, %v1356
        %v1797 = vpack.c.b16 %v1365, %v1357
        %v1798 = vpack.c.b16 %v1366, %v1358
        %v1799 = vpack.c.b16 %v1367, %v1359
        %v1800 = vpack.c.b16 %v1376, %v1368
        %v1801 = vpack.c.b16 %v1377, %v1369
        %v1802 = vpack.c.b16 %v1378, %v1370
        %v1803 = vpack.c.b16 %v1379, %v1371
        %v1804 = vpack.c.b16 %v1380, %v1372
        %v1805 = vpack.c.b16 %v1381, %v1373
        %v1806 = vpack.c.b16 %v1382, %v1374
        %v1807 = vpack.c.b16 %v1383, %v1375
        %v1808 = vpack.c.b16 %v1392, %v1384
        %v1809 = vpack.c.b16 %v1393, %v1385
        %v1810 = vpack.c.b16 %v1394, %v1386
        %v1811 = vpack.c.b16 %v1395, %v1387
        %v1812 = vpack.c.b16 %v1396, %v1388
        %v1813 = vpack.c.b16 %v1397, %v1389
        %v1814 = vpack.c.b16 %v1398, %v1390
        %v1815 = vpack.c.b16 %v1399, %v1391
        %v1816 = vpack.c.b16 %v1408, %v1400
        %v1817 = vpack.c.b16 %v1409, %v1401
        %v1818 = vpack.c.b16 %v1410, %v1402
        %v1819 = vpack.c.b16 %v1411, %v1403
        %v1820 = vpack.c.b16 %v1412, %v1404
        %v1821 = vpack.c.b16 %v1413, %v1405
        %v1822 = vpack.c.b16 %v1414, %v1406
        %v1823 = vpack.c.b16 %v1415, %v1407
        %v1824 = vpack.c.b16 %v1424, %v1416
        %v1825 = vpack.c.b16 %v1425, %v1417
        %v1826 = vpack.c.b16 %v1426, %v1418
        %v1827 = vpack.c.b16 %v1427, %v1419
        %v1828 = vpack.c.b16 %v1428, %v1420
        %v1829 = vpack.c.b16 %v1429, %v1421
        %v1830 = vpack.c.b16 %v1430, %v1422
        %v1831 = vpack.c.b16 %v1431, %v1423
        %v1832 = vpack.c.b16 %v1440, %v1432
        %v1833 = vpack.c.b16 %v1441, %v1433
        %v1834 = vpack.c.b16 %v1442, %v1434
        %v1835 = vpack.c.b16 %v1443, %v1435
        %v1836 = vpack.c.b16 %v1444, %v1436
        %v1837 = vpack.c.b16 %v1445, %v1437
        %v1838 = vpack.c.b16 %v1446, %v1438
        %v1839 = vpack.c.b16 %v1447, %v1439
        %v1840 = vpack.c.b16 %v1456, %v1448
        %v1841 = vpack.c.b16 %v1457, %v1449
        %v1842 = vpack.c.b16 %v1458, %v1450
        %v1843 = vpack.c.b16 %v1459, %v1451
        %v1844 = vpack.c.b16 %v1460, %v1452
        %v1845 = vpack.c.b16 %v1461, %v1453
        %v1846 = vpack.c.b16 %v1462, %v1454
        %v1847 = vpack.c.b16 %v1463, %v1455
        %v1848 = vpack.c.b16 %v1472, %v1464
        %v1849 = vpack.c.b16 %v1473, %v1465
        %v1850 = vpack.c.b16 %v1474, %v1466
        %v1851 = vpack.c.b16 %v1475, %v1467
        %v1852 = vpack.c.b16 %v1476, %v1468
        %v1853 = vpack.c.b16 %v1477, %v1469
        %v1854 = vpack.c.b16 %v1478, %v1470
        %v1855 = vpack.c.b16 %v1479, %v1471
        %v1856 = vpack.c.b16 %v1488, %v1480
        %v1857 = vpack.c.b16 %v1489, %v1481
        %v1858 = vpack.c.b16 %v1490, %v1482
        %v1859 = vpack.c.b16 %v1491, %v1483
        %v1860 = vpack.c.b16 %v1492, %v1484
        %v1861 = vpack.c.b16 %v1493, %v1485
        %v1862 = vpack.c.b16 %v1494, %v1486
        %v1863 = vpack.c.b16 %v1495, %v1487
        %v1864 = vpack.c.b16 %v1504, %v1496
        %v1865 = vpack.c.b16 %v1505, %v1497
        %v1866 = vpack.c.b16 %v1506, %v1498
        %v1867 = vpack.c.b16 %v1507, %v1499
        %v1868 = vpack.c.b16 %v1508, %v1500
        %v1869 = vpack.c.b16 %v1509, %v1501
        %v1870 = vpack.c.b16 %v1510, %v1502
        %v1871 = vpack.c.b16 %v1511, %v1503
        %v1872 = vpack.c.b16 %v1520, %v1512
        %v1873 = vpack.c.b16 %v1521, %v1513
        %v1874 = vpack.c.b16 %v1522, %v1514
        %v1875 = vpack.c.b16 %v1523, %v1515
        %v1876 = vpack.c.b16 %v1524, %v1516
        %v1877 = vpack.c.b16 %v1525, %v1517
        %v1878 = vpack.c.b16 %v1526, %v1518
        %v1879 = vpack.c.b16 %v1527, %v1519
        %v1880 = vpack.c.b16 %v1536, %v1528
        %v1881 = vpack.c.b16 %v1537, %v1529
        %v1882 = vpack.c.b16 %v1538, %v1530
        %v1883 = vpack.c.b16 %v1539, %v1531
        %v1884 = vpack.c.b16 %v1540, %v1532
        %v1885 = vpack.c.b16 %v1541, %v1533
        %v1886 = vpack.c.b16 %v1542, %v1534
        %v1887 = vpack.c.b16 %v1543, %v1535
        %v1888 = vpack.c.b16 %v1552, %v1544
        %v1889 = vpack.c.b16 %v1553, %v1545
        %v1890 = vpack.c.b16 %v1554, %v1546
        %v1891 = vpack.c.b16 %v1555, %v1547
        %v1892 = vpack.c.b16 %v1556, %v1548
        %v1893 = vpack.c.b16 %v1557, %v1549
        %v1894 = vpack.c.b16 %v1558, %v1550
        %v1895 = vpack.c.b16 %v1559, %v1551
        %v1896 = vpack.c.b16 %v1568, %v1560
        %v1897 = vpack.c.b16 %v1569, %v1561
        %v1898 = vpack.c.b16 %v1570, %v1562
        %v1899 = vpack.c.b16 %v1571, %v1563
        %v1900 = vpack.c.b16 %v1572, %v1564
        %v1901 = vpack.c.b16 %v1573, %v1565
        %v1902 = vpack.c.b16 %v1574, %v1566
        %v1903 = vpack.c.b16 %v1575, %v1567
        %v1904 = vpack.c.b16 %v1584, %v1576
        %v1905 = vpack.c.b16 %v1585, %v1577
        %v1906 = vpack.c.b16 %v1586, %v1578
        %v1907 = vpack.c.b16 %v1587, %v1579
        %v1908 = vpack.c.b16 %v1588, %v1580
        %v1909 = vpack.c.b16 %v1589, %v1581
        %v1910 = vpack.c.b16 %v1590, %v1582
        %v1911 = vpack.c.b16 %v1591, %v1583
        %v1912 = vpack.c.b16 %v1600, %v1592
        %v1913 = vpack.c.b16 %v1601, %v1593
        %v1914 = vpack.c.b16 %v1602, %v1594
        %v1915 = vpack.c.b16 %v1603, %v1595
        %v1916 = vpack.c.b16 %v1604, %v1596
        %v1917 = vpack.c.b16 %v1605, %v1597
        %v1918 = vpack.c.b16 %v1606, %v1598
        %v1919 = vpack.c.b16 %v1607, %v1599
        %v1920 = vpack.c.b16 %v1616, %v1608
        %v1921 = vpack.c.b16 %v1617, %v1609
        %v1922 = vpack.c.b16 %v1618, %v1610
        %v1923 = vpack.c.b16 %v1619, %v1611
        %v1924 = vpack.c.b16 %v1620, %v1612
        %v1925 = vpack.c.b16 %v1621, %v1613
        %v1926 = vpack.c.b16 %v1622, %v1614
        %v1927 = vpack.c.b16 %v1623, %v1615
        %v1928 = vpack.c.b16 %v1632, %v1624
        %v1929 = vpack.c.b16 %v1633, %v1625
        %v1930 = vpack.c.b16 %v1634, %v1626
        %v1931 = vpack.c.b16 %v1635, %v1627
        %v1932 = vpack.c.b16 %v1636, %v1628
        %v1933 = vpack.c.b16 %v1637, %v1629
        %v1934 = vpack.c.b16 %v1638, %v1630
        %v1935 = vpack.c.b16 %v1639, %v1631
        %v1936 = vpack.c.b16 %v1648, %v1640
        %v1937 = vpack.c.b16 %v1649, %v1641
        %v1938 = vpack.c.b16 %v1650, %v1642
        %v1939 = vpack.c.b16 %v1651, %v1643
        %v1940 = vpack.c.b16 %v1652, %v1644
        %v1941 = vpack.c.b16 %v1653, %v1645
        %v1942 = vpack.c.b16 %v1654, %v1646
        %v1943 = vpack.c.b16 %v1655, %v1647
        %v1944 = vpack.c.b16 %v1664, %v1656
        %v1945 = vpack.c.b16 %v1665, %v1657
        %v1946 = vpack.c.b16 %v1666, %v1658
        %v1947 = vpack.c.b16 %v1667, %v1659
        %v1948 = vpack.c.b16 %v1668, %v1660
        %v1949 = vpack.c.b16 %v1669, %v1661
        %v1950 = vpack.c.b16 %v1670, %v1662
        %v1951 = vpack.c.b16 %v1671, %v1663
        %v1952 = vpack.c.b16 %v1680, %v1672
        %v1953 = vpack.c.b16 %v1681, %v1673
        %v1954 = vpack.c.b16 %v1682, %v1674
        %v1955 = vpack.c.b16 %v1683, %v1675
        %v1956 = vpack.c.b16 %v1684, %v1676
        %v1957 = vpack.c.b16 %v1685, %v1677
        %v1958 = vpack.c.b16 %v1686, %v1678
        %v1959 = vpack.c.b16 %v1687, %v1679
        %v1960 = vpack.c.b16 %v1696, %v1688
        %v1961 = vpack.c.b16 %v1697, %v1689
        %v1962 = vpack.c.b16 %v1698, %v1690
        %v1963 = vpack.c.b16 %v1699, %v1691
        %v1964 = vpack.c.b16 %v1700, %v1692
        %v1965 = vpack.c.b16 %v1701, %v1693
        %v1966 = vpack.c.b16 %v1702, %v1694
        %v1967 = vpack.c.b16 %v1703, %v1695
        %v1968 = vpack.c.b16 %v1712, %v1704
        %v1969 = vpack.c.b16 %v1713, %v1705
        %v1970 = vpack.c.b16 %v1714, %v1706
        %v1971 = vpack.c.b16 %v1715, %v1707
        %v1972 = vpack.c.b16 %v1716, %v1708
        %v1973 = vpack.c.b16 %v1717, %v1709
        %v1974 = vpack.c.b16 %v1718, %v1710
        %v1975 = vpack.c.b16 %v1719, %v1711
        %2232 = vmatprep.subr.bf16.mxu0 %v1721
        %2233 = vmatpush1.bf16.msra.mxu0 %v1720
        %2234 = vmatprep.subr.bf16.mxu0 %v1729
        %2235 = vmatpush1.bf16.msra.mxu0 %v1728
        %2236 = vmatprep.subr.bf16.mxu0 %v1737
        %2237 = vmatpush1.bf16.msra.mxu0 %v1736
        %2238 = vmatprep.subr.bf16.mxu0 %v1745
        %2239 = vmatpush1.bf16.msra.mxu0 %v1744
        %2240 = vmatprep.subr.bf16.mxu0 %v1753
        %2241 = vmatpush1.bf16.msra.mxu0 %v1752
        %2242 = vmatprep.subr.bf16.mxu0 %v1761
        %2243 = vmatpush1.bf16.msra.mxu0 %v1760
        %2244 = vmatprep.subr.bf16.mxu0 %v1769
        %2245 = vmatpush1.bf16.msra.mxu0 %v1768
        %2246 = vmatprep.subr.bf16.mxu0 %v1777
        %2247 = vmatpush1.bf16.msra.mxu0 %v1776
        %2248 = vmatprep.subr.bf16.mxu0 %v1785
        %2249 = vmatpush1.bf16.msra.mxu0 %v1784
        %2250 = vmatprep.subr.bf16.mxu0 %v1793
        %2251 = vmatpush1.bf16.msra.mxu0 %v1792
        %2252 = vmatprep.subr.bf16.mxu0 %v1801
        %2253 = vmatpush1.bf16.msra.mxu0 %v1800
        %2254 = vmatprep.subr.bf16.mxu0 %v1809
        %2255 = vmatpush1.bf16.msra.mxu0 %v1808
        %2256 = vmatprep.subr.bf16.mxu0 %v1817
        %2257 = vmatpush1.bf16.msra.mxu0 %v1816
        %2258 = vmatprep.subr.bf16.mxu0 %v1825
        %2259 = vmatpush1.bf16.msra.mxu0 %v1824
        %2260 = vmatprep.subr.bf16.mxu0 %v1833
        %2261 = vmatpush1.bf16.msra.mxu0 %v1832
        %2262 = vmatprep.subr.bf16.mxu0 %v1841
        %2263 = vmatpush1.bf16.msra.mxu0 %v1840
        %2264 = vmatprep.mubr.bf16.mxu0 %v651
        %2265 = vmatmul.mubr.bf16.gmra.mrb[0].mxu0 %v650
        %v2266 = vpop.f32.mrb[0].mxu0
        %v2267 = vadd.f32 %v915, %v2266
        %v2268 = vpop.f32.mrb[0].mxu0
        %v2269 = vadd.f32 %v919, %v2268
        %v2270 = vpop.f32.mrb[0].mxu0
        %v2271 = vpop.f32.mrb[0].mxu0
        %2272 = vdwg.mxu0
        %2273 = vmatprep.subr.bf16.mxu0 %v1849
        %2274 = vmatpush1.bf16.msra.mxu0 %v1848
        %2275 = vmatprep.subr.bf16.mxu0 %v1857
        %2276 = vmatpush1.bf16.msra.mxu0 %v1856
        %2277 = vmatprep.subr.bf16.mxu0 %v1865
        %2278 = vmatpush1.bf16.msra.mxu0 %v1864
        %2279 = vmatprep.subr.bf16.mxu0 %v1873
        %2280 = vmatpush1.bf16.msra.mxu0 %v1872
        %2281 = vmatprep.subr.bf16.mxu0 %v1881
        %2282 = vmatpush1.bf16.msra.mxu0 %v1880
        %2283 = vmatprep.subr.bf16.mxu0 %v1889
        %2284 = vmatpush1.bf16.msra.mxu0 %v1888
        %2285 = vmatprep.subr.bf16.mxu0 %v1897
        %2286 = vmatpush1.bf16.msra.mxu0 %v1896
        %2287 = vmatprep.subr.bf16.mxu0 %v1905
        %2288 = vmatpush1.bf16.msra.mxu0 %v1904
        %2289 = vmatprep.subr.bf16.mxu0 %v1913
        %2290 = vmatpush1.bf16.msra.mxu0 %v1912
        %2291 = vmatprep.subr.bf16.mxu0 %v1921
        %2292 = vmatpush1.bf16.msra.mxu0 %v1920
        %2293 = vmatprep.subr.bf16.mxu0 %v1929
        %2294 = vmatpush1.bf16.msra.mxu0 %v1928
        %2295 = vmatprep.subr.bf16.mxu0 %v1937
        %2296 = vmatpush1.bf16.msra.mxu0 %v1936
        %2297 = vmatprep.subr.bf16.mxu0 %v1945
        %2298 = vmatpush1.bf16.msra.mxu0 %v1944
        %2299 = vmatprep.subr.bf16.mxu0 %v1953
        %2300 = vmatpush1.bf16.msra.mxu0 %v1952
        %2301 = vmatprep.subr.bf16.mxu0 %v1961
        %2302 = vmatpush1.bf16.msra.mxu0 %v1960
        %2303 = vmatprep.subr.bf16.mxu0 %v1969
        %2304 = vmatpush1.bf16.msra.mxu0 %v1968
        %2305 = vmatprep.mubr.bf16.mxu0 %v653
        %2306 = vmatmul.mubr.bf16.gmra.mrb[0].mxu0 %v652
        %v2307 = vpop.f32.mrb[0].mxu0
        %v2308 = vadd.f32 %v2267, %v2307
        %v2309 = vpop.f32.mrb[0].mxu0
        %v2310 = vadd.f32 %v2269, %v2309
        %v2311 = vpop.f32.mrb[0].mxu0
        %v2312 = vpop.f32.mrb[0].mxu0
        %2313 = vdwg.mxu0
        %2314 = vmatprep.subr.bf16.mxu0 %v1723
        %2315 = vmatpush1.bf16.msra.mxu0 %v1722
        %2316 = vmatprep.subr.bf16.mxu0 %v1731
        %2317 = vmatpush1.bf16.msra.mxu0 %v1730
        %2318 = vmatprep.subr.bf16.mxu0 %v1739
        %2319 = vmatpush1.bf16.msra.mxu0 %v1738
        %2320 = vmatprep.subr.bf16.mxu0 %v1747
        %2321 = vmatpush1.bf16.msra.mxu0 %v1746
        %2322 = vmatprep.subr.bf16.mxu0 %v1755
        %2323 = vmatpush1.bf16.msra.mxu0 %v1754
        %2324 = vmatprep.subr.bf16.mxu0 %v1763
        %2325 = vmatpush1.bf16.msra.mxu0 %v1762
        %2326 = vmatprep.subr.bf16.mxu0 %v1771
        %2327 = vmatpush1.bf16.msra.mxu0 %v1770
        %2328 = vmatprep.subr.bf16.mxu0 %v1779
        %2329 = vmatpush1.bf16.msra.mxu0 %v1778
        %2330 = vmatprep.subr.bf16.mxu0 %v1787
        %2331 = vmatpush1.bf16.msra.mxu0 %v1786
        %2332 = vmatprep.subr.bf16.mxu0 %v1795
        %2333 = vmatpush1.bf16.msra.mxu0 %v1794
        %2334 = vmatprep.subr.bf16.mxu0 %v1803
        %2335 = vmatpush1.bf16.msra.mxu0 %v1802
        %2336 = vmatprep.subr.bf16.mxu0 %v1811
        %2337 = vmatpush1.bf16.msra.mxu0 %v1810
        %2338 = vmatprep.subr.bf16.mxu0 %v1819
        %2339 = vmatpush1.bf16.msra.mxu0 %v1818
        %2340 = vmatprep.subr.bf16.mxu0 %v1827
        %2341 = vmatpush1.bf16.msra.mxu0 %v1826
        %2342 = vmatprep.subr.bf16.mxu0 %v1835
        %2343 = vmatpush1.bf16.msra.mxu0 %v1834
        %2344 = vmatprep.subr.bf16.mxu0 %v1843
        %2345 = vmatpush1.bf16.msra.mxu0 %v1842
        %2346 = vmatprep.mubr.bf16.mxu0 %v651
        %2347 = vmatmul.mubr.bf16.gmra.mrb[0].mxu0 %v650
        %v2348 = vpop.f32.mrb[0].mxu0
        %v2349 = vadd.f32 %v923, %v2348
        %v2350 = vpop.f32.mrb[0].mxu0
        %v2351 = vadd.f32 %v927, %v2350
        %v2352 = vpop.f32.mrb[0].mxu0
        %v2353 = vpop.f32.mrb[0].mxu0
        %2354 = vdwg.mxu0
        %2355 = vmatprep.subr.bf16.mxu0 %v1851
        %2356 = vmatpush1.bf16.msra.mxu0 %v1850
        %2357 = vmatprep.subr.bf16.mxu0 %v1859
        %2358 = vmatpush1.bf16.msra.mxu0 %v1858
        %2359 = vmatprep.subr.bf16.mxu0 %v1867
        %2360 = vmatpush1.bf16.msra.mxu0 %v1866
        %2361 = vmatprep.subr.bf16.mxu0 %v1875
        %2362 = vmatpush1.bf16.msra.mxu0 %v1874
        %2363 = vmatprep.subr.bf16.mxu0 %v1883
        %2364 = vmatpush1.bf16.msra.mxu0 %v1882
        %2365 = vmatprep.subr.bf16.mxu0 %v1891
        %2366 = vmatpush1.bf16.msra.mxu0 %v1890
        %2367 = vmatprep.subr.bf16.mxu0 %v1899
        %2368 = vmatpush1.bf16.msra.mxu0 %v1898
        %2369 = vmatprep.subr.bf16.mxu0 %v1907
        %2370 = vmatpush1.bf16.msra.mxu0 %v1906
        %2371 = vmatprep.subr.bf16.mxu0 %v1915
        %2372 = vmatpush1.bf16.msra.mxu0 %v1914
        %2373 = vmatprep.subr.bf16.mxu0 %v1923
        %2374 = vmatpush1.bf16.msra.mxu0 %v1922
        %2375 = vmatprep.subr.bf16.mxu0 %v1931
        %2376 = vmatpush1.bf16.msra.mxu0 %v1930
        %2377 = vmatprep.subr.bf16.mxu0 %v1939
        %2378 = vmatpush1.bf16.msra.mxu0 %v1938
        %2379 = vmatprep.subr.bf16.mxu0 %v1947
        %2380 = vmatpush1.bf16.msra.mxu0 %v1946
        %2381 = vmatprep.subr.bf16.mxu0 %v1955
        %2382 = vmatpush1.bf16.msra.mxu0 %v1954
        %2383 = vmatprep.subr.bf16.mxu0 %v1963
        %2384 = vmatpush1.bf16.msra.mxu0 %v1962
        %2385 = vmatprep.subr.bf16.mxu0 %v1971
        %2386 = vmatpush1.bf16.msra.mxu0 %v1970
        %2387 = vmatprep.mubr.bf16.mxu0 %v653
        %2388 = vmatmul.mubr.bf16.gmra.mrb[0].mxu0 %v652
        %v2389 = vpop.f32.mrb[0].mxu0
        %v2390 = vadd.f32 %v2349, %v2389
        %v2391 = vpop.f32.mrb[0].mxu0
        %v2392 = vadd.f32 %v2351, %v2391
        %v2393 = vpop.f32.mrb[0].mxu0
        %v2394 = vpop.f32.mrb[0].mxu0
        %2395 = vdwg.mxu0
        %2396 = vmatprep.subr.bf16.mxu0 %v1725
        %2397 = vmatpush1.bf16.msra.mxu0 %v1724
        %2398 = vmatprep.subr.bf16.mxu0 %v1733
        %2399 = vmatpush1.bf16.msra.mxu0 %v1732
        %2400 = vmatprep.subr.bf16.mxu0 %v1741
        %2401 = vmatpush1.bf16.msra.mxu0 %v1740
        %2402 = vmatprep.subr.bf16.mxu0 %v1749
        %2403 = vmatpush1.bf16.msra.mxu0 %v1748
        %2404 = vmatprep.subr.bf16.mxu0 %v1757
        %2405 = vmatpush1.bf16.msra.mxu0 %v1756
        %2406 = vmatprep.subr.bf16.mxu0 %v1765
        %2407 = vmatpush1.bf16.msra.mxu0 %v1764
        %2408 = vmatprep.subr.bf16.mxu0 %v1773
        %2409 = vmatpush1.bf16.msra.mxu0 %v1772
        %2410 = vmatprep.subr.bf16.mxu0 %v1781
        %2411 = vmatpush1.bf16.msra.mxu0 %v1780
        %2412 = vmatprep.subr.bf16.mxu0 %v1789
        %2413 = vmatpush1.bf16.msra.mxu0 %v1788
        %2414 = vmatprep.subr.bf16.mxu0 %v1797
        %2415 = vmatpush1.bf16.msra.mxu0 %v1796
        %2416 = vmatprep.subr.bf16.mxu0 %v1805
        %2417 = vmatpush1.bf16.msra.mxu0 %v1804
        %2418 = vmatprep.subr.bf16.mxu0 %v1813
        %2419 = vmatpush1.bf16.msra.mxu0 %v1812
        %2420 = vmatprep.subr.bf16.mxu0 %v1821
        %2421 = vmatpush1.bf16.msra.mxu0 %v1820
        %2422 = vmatprep.subr.bf16.mxu0 %v1829
        %2423 = vmatpush1.bf16.msra.mxu0 %v1828
        %2424 = vmatprep.subr.bf16.mxu0 %v1837
        %2425 = vmatpush1.bf16.msra.mxu0 %v1836
        %2426 = vmatprep.subr.bf16.mxu0 %v1845
        %2427 = vmatpush1.bf16.msra.mxu0 %v1844
        %2428 = vmatprep.mubr.bf16.mxu0 %v651
        %2429 = vmatmul.mubr.bf16.gmra.mrb[0].mxu0 %v650
        %v2430 = vpop.f32.mrb[0].mxu0
        %v2431 = vadd.f32 %v931, %v2430
        %v2432 = vpop.f32.mrb[0].mxu0
        %v2433 = vadd.f32 %v935, %v2432
        %v2434 = vpop.f32.mrb[0].mxu0
        %v2435 = vpop.f32.mrb[0].mxu0
        %2436 = vdwg.mxu0
        %2437 = vmatprep.subr.bf16.mxu0 %v1853
        %2438 = vmatpush1.bf16.msra.mxu0 %v1852
        %2439 = vmatprep.subr.bf16.mxu0 %v1861
        %2440 = vmatpush1.bf16.msra.mxu0 %v1860
        %2441 = vmatprep.subr.bf16.mxu0 %v1869
        %2442 = vmatpush1.bf16.msra.mxu0 %v1868
        %2443 = vmatprep.subr.bf16.mxu0 %v1877
        %2444 = vmatpush1.bf16.msra.mxu0 %v1876
        %2445 = vmatprep.subr.bf16.mxu0 %v1885
        %2446 = vmatpush1.bf16.msra.mxu0 %v1884
        %2447 = vmatprep.subr.bf16.mxu0 %v1893
        %2448 = vmatpush1.bf16.msra.mxu0 %v1892
        %2449 = vmatprep.subr.bf16.mxu0 %v1901
        %2450 = vmatpush1.bf16.msra.mxu0 %v1900
        %2451 = vmatprep.subr.bf16.mxu0 %v1909
        %2452 = vmatpush1.bf16.msra.mxu0 %v1908
        %2453 = vmatprep.subr.bf16.mxu0 %v1917
        %2454 = vmatpush1.bf16.msra.mxu0 %v1916
        %2455 = vmatprep.subr.bf16.mxu0 %v1925
        %2456 = vmatpush1.bf16.msra.mxu0 %v1924
        %2457 = vmatprep.subr.bf16.mxu0 %v1933
        %2458 = vmatpush1.bf16.msra.mxu0 %v1932
        %2459 = vmatprep.subr.bf16.mxu0 %v1941
        %2460 = vmatpush1.bf16.msra.mxu0 %v1940
        %2461 = vmatprep.subr.bf16.mxu0 %v1949
        %2462 = vmatpush1.bf16.msra.mxu0 %v1948
        %2463 = vmatprep.subr.bf16.mxu0 %v1957
        %2464 = vmatpush1.bf16.msra.mxu0 %v1956
        %2465 = vmatprep.subr.bf16.mxu0 %v1965
        %2466 = vmatpush1.bf16.msra.mxu0 %v1964
        %2467 = vmatprep.subr.bf16.mxu0 %v1973
        %2468 = vmatpush1.bf16.msra.mxu0 %v1972
        %2469 = vmatprep.mubr.bf16.mxu0 %v653
        %2470 = vmatmul.mubr.bf16.gmra.mrb[0].mxu0 %v652
        %v2471 = vpop.f32.mrb[0].mxu0
        %v2472 = vadd.f32 %v2431, %v2471
        %v2473 = vpop.f32.mrb[0].mxu0
        %v2474 = vadd.f32 %v2433, %v2473
        %v2475 = vpop.f32.mrb[0].mxu0
        %v2476 = vpop.f32.mrb[0].mxu0
        %2477 = vdwg.mxu0
        %2478 = vmatprep.subr.bf16.mxu0 %v1727
        %2479 = vmatpush1.bf16.msra.mxu0 %v1726
        %2480 = vmatprep.subr.bf16.mxu0 %v1735
        %2481 = vmatpush1.bf16.msra.mxu0 %v1734
        %2482 = vmatprep.subr.bf16.mxu0 %v1743
        %2483 = vmatpush1.bf16.msra.mxu0 %v1742
        %2484 = vmatprep.subr.bf16.mxu0 %v1751
        %2485 = vmatpush1.bf16.msra.mxu0 %v1750
        %2486 = vmatprep.subr.bf16.mxu0 %v1759
        %2487 = vmatpush1.bf16.msra.mxu0 %v1758
        %2488 = vmatprep.subr.bf16.mxu0 %v1767
        %2489 = vmatpush1.bf16.msra.mxu0 %v1766
        %2490 = vmatprep.subr.bf16.mxu0 %v1775
        %2491 = vmatpush1.bf16.msra.mxu0 %v1774
        %2492 = vmatprep.subr.bf16.mxu0 %v1783
        %2493 = vmatpush1.bf16.msra.mxu0 %v1782
        %2494 = vmatprep.subr.bf16.mxu0 %v1791
        %2495 = vmatpush1.bf16.msra.mxu0 %v1790
        %2496 = vmatprep.subr.bf16.mxu0 %v1799
        %2497 = vmatpush1.bf16.msra.mxu0 %v1798
        %2498 = vmatprep.subr.bf16.mxu0 %v1807
        %2499 = vmatpush1.bf16.msra.mxu0 %v1806
        %2500 = vmatprep.subr.bf16.mxu0 %v1815
        %2501 = vmatpush1.bf16.msra.mxu0 %v1814
        %2502 = vmatprep.subr.bf16.mxu0 %v1823
        %2503 = vmatpush1.bf16.msra.mxu0 %v1822
        %2504 = vmatprep.subr.bf16.mxu0 %v1831
        %2505 = vmatpush1.bf16.msra.mxu0 %v1830
        %2506 = vmatprep.subr.bf16.mxu0 %v1839
        %2507 = vmatpush1.bf16.msra.mxu0 %v1838
        %2508 = vmatprep.subr.bf16.mxu0 %v1847
        %2509 = vmatpush1.bf16.msra.mxu0 %v1846
        %2510 = vmatprep.mubr.bf16.mxu0 %v651
        %2511 = vmatmul.mubr.bf16.gmra.mrb[0].mxu0 %v650
        %v2512 = vpop.f32.mrb[0].mxu0
        %v2513 = vadd.f32 %v939, %v2512
        %v2514 = vpop.f32.mrb[0].mxu0
        %v2515 = vadd.f32 %v943, %v2514
        %v2516 = vpop.f32.mrb[0].mxu0
        %v2517 = vpop.f32.mrb[0].mxu0
        %2518 = vdwg.mxu0
        %2519 = vmatprep.subr.bf16.mxu0 %v1855
        %2520 = vmatpush1.bf16.msra.mxu0 %v1854
        %2521 = vmatprep.subr.bf16.mxu0 %v1863
        %2522 = vmatpush1.bf16.msra.mxu0 %v1862
        %2523 = vmatprep.subr.bf16.mxu0 %v1871
        %2524 = vmatpush1.bf16.msra.mxu0 %v1870
        %2525 = vmatprep.subr.bf16.mxu0 %v1879
        %2526 = vmatpush1.bf16.msra.mxu0 %v1878
        %2527 = vmatprep.subr.bf16.mxu0 %v1887
        %2528 = vmatpush1.bf16.msra.mxu0 %v1886
        %2529 = vmatprep.subr.bf16.mxu0 %v1895
        %2530 = vmatpush1.bf16.msra.mxu0 %v1894
        %2531 = vmatprep.subr.bf16.mxu0 %v1903
        %2532 = vmatpush1.bf16.msra.mxu0 %v1902
        %2533 = vmatprep.subr.bf16.mxu0 %v1911
        %2534 = vmatpush1.bf16.msra.mxu0 %v1910
        %2535 = vmatprep.subr.bf16.mxu0 %v1919
        %2536 = vmatpush1.bf16.msra.mxu0 %v1918
        %2537 = vmatprep.subr.bf16.mxu0 %v1927
        %2538 = vmatpush1.bf16.msra.mxu0 %v1926
        %2539 = vmatprep.subr.bf16.mxu0 %v1935
        %2540 = vmatpush1.bf16.msra.mxu0 %v1934
        %2541 = vmatprep.subr.bf16.mxu0 %v1943
        %2542 = vmatpush1.bf16.msra.mxu0 %v1942
        %2543 = vmatprep.subr.bf16.mxu0 %v1951
        %2544 = vmatpush1.bf16.msra.mxu0 %v1950
        %2545 = vmatprep.subr.bf16.mxu0 %v1959
        %2546 = vmatpush1.bf16.msra.mxu0 %v1958
        %2547 = vmatprep.subr.bf16.mxu0 %v1967
        %2548 = vmatpush1.bf16.msra.mxu0 %v1966
        %2549 = vmatprep.subr.bf16.mxu0 %v1975
        %2550 = vmatpush1.bf16.msra.mxu0 %v1974
        %2551 = vmatprep.mubr.bf16.mxu0 %v653
        %2552 = vmatmul.mubr.bf16.gmra.mrb[0].mxu0 %v652
        %v2553 = vpop.f32.mrb[0].mxu0
        %v2554 = vadd.f32 %v2513, %v2553
        %v2555 = vpop.f32.mrb[0].mxu0
        %v2556 = vadd.f32 %v2515, %v2555
        %v2557 = vpop.f32.mrb[0].mxu0
        %v2558 = vpop.f32.mrb[0].mxu0
        %2559 = vdwg.mxu0
        %vm2560 = vcmp.gt.f32.partialorder %v2308, 0.0
        %vm2561 = vcmp.gt.f32.partialorder %v2310, 0.0
        %vm2562 = vcmp.gt.f32.partialorder %v2390, 0.0
        %vm2563 = vcmp.gt.f32.partialorder %v2392, 0.0
        %vm2564 = vcmp.gt.f32.partialorder %v2472, 0.0
        %vm2565 = vcmp.gt.f32.partialorder %v2474, 0.0
        %vm2566 = vcmp.gt.f32.partialorder %v2554, 0.0
        %vm2567 = vcmp.gt.f32.partialorder %v2556, 0.0
        %v2568 = vmul.f32 %v2308, 0.01
        %v2569 = vmul.f32 %v2310, 0.01
        %v2570 = vmul.f32 %v2390, 0.01
        %v2571 = vmul.f32 %v2392, 0.01
        %v2572 = vmul.f32 %v2472, 0.01
        %v2573 = vmul.f32 %v2474, 0.01
        %v2574 = vmul.f32 %v2554, 0.01
        %v2575 = vmul.f32 %v2556, 0.01
        %v2576 = vsel %vm2560, %v2308, %v2568
        %v2577 = vsel %vm2561, %v2310, %v2569
        %v2578 = vsel %vm2562, %v2390, %v2570
        %v2579 = vsel %vm2563, %v2392, %v2571
        %v2580 = vsel %vm2564, %v2472, %v2572
        %v2581 = vsel %vm2565, %v2474, %v2573
        %v2582 = vsel %vm2566, %v2554, %v2574
        %v2583 = vsel %vm2567, %v2556, %v2575
        %v2584 = vpack.c.bf16 %v2576, %v2576
        %v2585 = vpack.c.bf16 %v2577, %v2577
        %v2586 = vpack.c.bf16 %v2578, %v2578
        %v2587 = vpack.c.bf16 %v2579, %v2579
        %v2588 = vpack.c.bf16 %v2580, %v2580
        %v2589 = vpack.c.bf16 %v2581, %v2581
        %v2590 = vpack.c.bf16 %v2582, %v2582
        %v2591 = vpack.c.bf16 %v2583, %v2583
        %v2592 = vld [vmem:[%s531] sm:$0xff]
        %v2593 = vld [vmem:[%s531 + $0x8] sm:$0xff]
        %v2594 = vld [vmem:[%s531 + $0x10] sm:$0xff]
        %v2595 = vld [vmem:[%s531 + $0x18] sm:$0xff]
        %v2596 = vld [vmem:[%s531 + $0x20] sm:$0xff]
        %v2597 = vld [vmem:[%s531 + $0x28] sm:$0xff]
        %v2598 = vld [vmem:[%s531 + $0x30] sm:$0xff]
        %v2599 = vld [vmem:[%s531 + $0x38] sm:$0xff]
        %v2600 = vld [vmem:[%s531 + $0x40] sm:$0xff]
        %v2601 = vld [vmem:[%s531 + $0x48] sm:$0xff]
        %v2602 = vld [vmem:[%s531 + $0x50] sm:$0xff]
        %v2603 = vld [vmem:[%s531 + $0x58] sm:$0xff]
        %v2604 = vld [vmem:[%s531 + $0x60] sm:$0xff]
        %v2605 = vld [vmem:[%s531 + $0x68] sm:$0xff]
        %v2606 = vld [vmem:[%s531 + $0x70] sm:$0xff]
        %v2607 = vld [vmem:[%s531 + $0x78] sm:$0xff]
        %v2608 = vld [vmem:[%s531 + $0x80] sm:$0xff]
        %v2609 = vld [vmem:[%s531 + $0x88] sm:$0xff]
        %v2610 = vld [vmem:[%s531 + $0x90] sm:$0xff]
        %v2611 = vld [vmem:[%s531 + $0x98] sm:$0xff]
        %v2612 = vld [vmem:[%s531 + $0xa0] sm:$0xff]
        %v2613 = vld [vmem:[%s531 + $0xa8] sm:$0xff]
        %v2614 = vld [vmem:[%s531 + $0xb0] sm:$0xff]
        %v2615 = vld [vmem:[%s531 + $0xb8] sm:$0xff]
        %v2616 = vld [vmem:[%s531 + $0xc0] sm:$0xff]
        %v2617 = vld [vmem:[%s531 + $0xc8] sm:$0xff]
        %v2618 = vld [vmem:[%s531 + $0xd0] sm:$0xff]
        %v2619 = vld [vmem:[%s531 + $0xd8] sm:$0xff]
        %v2620 = vld [vmem:[%s531 + $0xe0] sm:$0xff]
        %v2621 = vld [vmem:[%s531 + $0xe8] sm:$0xff]
        %v2622 = vld [vmem:[%s531 + $0xf0] sm:$0xff]
        %v2623 = vld [vmem:[%s531 + $0xf8] sm:$0xff]
        %v2624 = vld [vmem:[%s531 + $0x100] sm:$0xff]
        %v2625 = vld [vmem:[%s531 + $0x108] sm:$0xff]
        %v2626 = vld [vmem:[%s531 + $0x110] sm:$0xff]
        %v2627 = vld [vmem:[%s531 + $0x118] sm:$0xff]
        %v2628 = vld [vmem:[%s531 + $0x120] sm:$0xff]
        %v2629 = vld [vmem:[%s531 + $0x128] sm:$0xff]
        %v2630 = vld [vmem:[%s531 + $0x130] sm:$0xff]
        %v2631 = vld [vmem:[%s531 + $0x138] sm:$0xff]
        %v2632 = vld [vmem:[%s531 + $0x140] sm:$0xff]
        %v2633 = vld [vmem:[%s531 + $0x148] sm:$0xff]
        %v2634 = vld [vmem:[%s531 + $0x150] sm:$0xff]
        %v2635 = vld [vmem:[%s531 + $0x158] sm:$0xff]
        %v2636 = vld [vmem:[%s531 + $0x160] sm:$0xff]
        %v2637 = vld [vmem:[%s531 + $0x168] sm:$0xff]
        %v2638 = vld [vmem:[%s531 + $0x170] sm:$0xff]
        %v2639 = vld [vmem:[%s531 + $0x178] sm:$0xff]
        %v2640 = vld [vmem:[%s531 + $0x180] sm:$0xff]
        %v2641 = vld [vmem:[%s531 + $0x188] sm:$0xff]
        %v2642 = vld [vmem:[%s531 + $0x190] sm:$0xff]
        %v2643 = vld [vmem:[%s531 + $0x198] sm:$0xff]
        %v2644 = vld [vmem:[%s531 + $0x1a0] sm:$0xff]
        %v2645 = vld [vmem:[%s531 + $0x1a8] sm:$0xff]
        %v2646 = vld [vmem:[%s531 + $0x1b0] sm:$0xff]
        %v2647 = vld [vmem:[%s531 + $0x1b8] sm:$0xff]
        %v2648 = vld [vmem:[%s531 + $0x1c0] sm:$0xff]
        %v2649 = vld [vmem:[%s531 + $0x1c8] sm:$0xff]
        %v2650 = vld [vmem:[%s531 + $0x1d0] sm:$0xff]
        %v2651 = vld [vmem:[%s531 + $0x1d8] sm:$0xff]
        %v2652 = vld [vmem:[%s531 + $0x1e0] sm:$0xff]
        %v2653 = vld [vmem:[%s531 + $0x1e8] sm:$0xff]
        %v2654 = vld [vmem:[%s531 + $0x1f0] sm:$0xff]
        %v2655 = vld [vmem:[%s531 + $0x1f8] sm:$0xff]
        %v2656 = vld [vmem:[%s531 + $0x200] sm:$0xff]
        %v2657 = vld [vmem:[%s531 + $0x208] sm:$0xff]
        %v2658 = vld [vmem:[%s531 + $0x210] sm:$0xff]
        %v2659 = vld [vmem:[%s531 + $0x218] sm:$0xff]
        %v2660 = vld [vmem:[%s531 + $0x220] sm:$0xff]
        %v2661 = vld [vmem:[%s531 + $0x228] sm:$0xff]
        %v2662 = vld [vmem:[%s531 + $0x230] sm:$0xff]
        %v2663 = vld [vmem:[%s531 + $0x238] sm:$0xff]
        %v2664 = vld [vmem:[%s531 + $0x240] sm:$0xff]
        %v2665 = vld [vmem:[%s531 + $0x248] sm:$0xff]
        %v2666 = vld [vmem:[%s531 + $0x250] sm:$0xff]
        %v2667 = vld [vmem:[%s531 + $0x258] sm:$0xff]
        %v2668 = vld [vmem:[%s531 + $0x260] sm:$0xff]
        %v2669 = vld [vmem:[%s531 + $0x268] sm:$0xff]
        %v2670 = vld [vmem:[%s531 + $0x270] sm:$0xff]
        %v2671 = vld [vmem:[%s531 + $0x278] sm:$0xff]
        %v2672 = vld [vmem:[%s531 + $0x280] sm:$0xff]
        %v2673 = vld [vmem:[%s531 + $0x288] sm:$0xff]
        %v2674 = vld [vmem:[%s531 + $0x290] sm:$0xff]
        %v2675 = vld [vmem:[%s531 + $0x298] sm:$0xff]
        %v2676 = vld [vmem:[%s531 + $0x2a0] sm:$0xff]
        %v2677 = vld [vmem:[%s531 + $0x2a8] sm:$0xff]
        %v2678 = vld [vmem:[%s531 + $0x2b0] sm:$0xff]
        %v2679 = vld [vmem:[%s531 + $0x2b8] sm:$0xff]
        %v2680 = vld [vmem:[%s531 + $0x2c0] sm:$0xff]
        %v2681 = vld [vmem:[%s531 + $0x2c8] sm:$0xff]
        %v2682 = vld [vmem:[%s531 + $0x2d0] sm:$0xff]
        %v2683 = vld [vmem:[%s531 + $0x2d8] sm:$0xff]
        %v2684 = vld [vmem:[%s531 + $0x2e0] sm:$0xff]
        %v2685 = vld [vmem:[%s531 + $0x2e8] sm:$0xff]
        %v2686 = vld [vmem:[%s531 + $0x2f0] sm:$0xff]
        %v2687 = vld [vmem:[%s531 + $0x2f8] sm:$0xff]
        %v2688 = vld [vmem:[%s531 + $0x300] sm:$0xff]
        %v2689 = vld [vmem:[%s531 + $0x308] sm:$0xff]
        %v2690 = vld [vmem:[%s531 + $0x310] sm:$0xff]
        %v2691 = vld [vmem:[%s531 + $0x318] sm:$0xff]
        %v2692 = vld [vmem:[%s531 + $0x320] sm:$0xff]
        %v2693 = vld [vmem:[%s531 + $0x328] sm:$0xff]
        %v2694 = vld [vmem:[%s531 + $0x330] sm:$0xff]
        %v2695 = vld [vmem:[%s531 + $0x338] sm:$0xff]
        %v2696 = vld [vmem:[%s531 + $0x340] sm:$0xff]
        %v2697 = vld [vmem:[%s531 + $0x348] sm:$0xff]
        %v2698 = vld [vmem:[%s531 + $0x350] sm:$0xff]
        %v2699 = vld [vmem:[%s531 + $0x358] sm:$0xff]
        %v2700 = vld [vmem:[%s531 + $0x360] sm:$0xff]
        %v2701 = vld [vmem:[%s531 + $0x368] sm:$0xff]
        %v2702 = vld [vmem:[%s531 + $0x370] sm:$0xff]
        %v2703 = vld [vmem:[%s531 + $0x378] sm:$0xff]
        %v2704 = vld [vmem:[%s531 + $0x380] sm:$0xff]
        %v2705 = vld [vmem:[%s531 + $0x388] sm:$0xff]
        %v2706 = vld [vmem:[%s531 + $0x390] sm:$0xff]
        %v2707 = vld [vmem:[%s531 + $0x398] sm:$0xff]
        %v2708 = vld [vmem:[%s531 + $0x3a0] sm:$0xff]
        %v2709 = vld [vmem:[%s531 + $0x3a8] sm:$0xff]
        %v2710 = vld [vmem:[%s531 + $0x3b0] sm:$0xff]
        %v2711 = vld [vmem:[%s531 + $0x3b8] sm:$0xff]
        %v2712 = vld [vmem:[%s531 + $0x3c0] sm:$0xff]
        %v2713 = vld [vmem:[%s531 + $0x3c8] sm:$0xff]
        %v2714 = vld [vmem:[%s531 + $0x3d0] sm:$0xff]
        %v2715 = vld [vmem:[%s531 + $0x3d8] sm:$0xff]
        %v2716 = vld [vmem:[%s531 + $0x3e0] sm:$0xff]
        %v2717 = vld [vmem:[%s531 + $0x3e8] sm:$0xff]
        %v2718 = vld [vmem:[%s531 + $0x3f0] sm:$0xff]
        %v2719 = vld [vmem:[%s531 + $0x3f8] sm:$0xff]
        %v2720 = vld [vmem:[%s531 + $0x400] sm:$0xff]
        %v2721 = vld [vmem:[%s531 + $0x408] sm:$0xff]
        %v2722 = vld [vmem:[%s531 + $0x410] sm:$0xff]
        %v2723 = vld [vmem:[%s531 + $0x418] sm:$0xff]
        %v2724 = vld [vmem:[%s531 + $0x420] sm:$0xff]
        %v2725 = vld [vmem:[%s531 + $0x428] sm:$0xff]
        %v2726 = vld [vmem:[%s531 + $0x430] sm:$0xff]
        %v2727 = vld [vmem:[%s531 + $0x438] sm:$0xff]
        %v2728 = vld [vmem:[%s531 + $0x440] sm:$0xff]
        %v2729 = vld [vmem:[%s531 + $0x448] sm:$0xff]
        %v2730 = vld [vmem:[%s531 + $0x450] sm:$0xff]
        %v2731 = vld [vmem:[%s531 + $0x458] sm:$0xff]
        %v2732 = vld [vmem:[%s531 + $0x460] sm:$0xff]
        %v2733 = vld [vmem:[%s531 + $0x468] sm:$0xff]
        %v2734 = vld [vmem:[%s531 + $0x470] sm:$0xff]
        %v2735 = vld [vmem:[%s531 + $0x478] sm:$0xff]
        %v2736 = vld [vmem:[%s531 + $0x480] sm:$0xff]
        %v2737 = vld [vmem:[%s531 + $0x488] sm:$0xff]
        %v2738 = vld [vmem:[%s531 + $0x490] sm:$0xff]
        %v2739 = vld [vmem:[%s531 + $0x498] sm:$0xff]
        %v2740 = vld [vmem:[%s531 + $0x4a0] sm:$0xff]
        %v2741 = vld [vmem:[%s531 + $0x4a8] sm:$0xff]
        %v2742 = vld [vmem:[%s531 + $0x4b0] sm:$0xff]
        %v2743 = vld [vmem:[%s531 + $0x4b8] sm:$0xff]
        %v2744 = vld [vmem:[%s531 + $0x4c0] sm:$0xff]
        %v2745 = vld [vmem:[%s531 + $0x4c8] sm:$0xff]
        %v2746 = vld [vmem:[%s531 + $0x4d0] sm:$0xff]
        %v2747 = vld [vmem:[%s531 + $0x4d8] sm:$0xff]
        %v2748 = vld [vmem:[%s531 + $0x4e0] sm:$0xff]
        %v2749 = vld [vmem:[%s531 + $0x4e8] sm:$0xff]
        %v2750 = vld [vmem:[%s531 + $0x4f0] sm:$0xff]
        %v2751 = vld [vmem:[%s531 + $0x4f8] sm:$0xff]
        %v2752 = vld [vmem:[%s531 + $0x500] sm:$0xff]
        %v2753 = vld [vmem:[%s531 + $0x508] sm:$0xff]
        %v2754 = vld [vmem:[%s531 + $0x510] sm:$0xff]
        %v2755 = vld [vmem:[%s531 + $0x518] sm:$0xff]
        %v2756 = vld [vmem:[%s531 + $0x520] sm:$0xff]
        %v2757 = vld [vmem:[%s531 + $0x528] sm:$0xff]
        %v2758 = vld [vmem:[%s531 + $0x530] sm:$0xff]
        %v2759 = vld [vmem:[%s531 + $0x538] sm:$0xff]
        %v2760 = vld [vmem:[%s531 + $0x540] sm:$0xff]
        %v2761 = vld [vmem:[%s531 + $0x548] sm:$0xff]
        %v2762 = vld [vmem:[%s531 + $0x550] sm:$0xff]
        %v2763 = vld [vmem:[%s531 + $0x558] sm:$0xff]
        %v2764 = vld [vmem:[%s531 + $0x560] sm:$0xff]
        %v2765 = vld [vmem:[%s531 + $0x568] sm:$0xff]
        %v2766 = vld [vmem:[%s531 + $0x570] sm:$0xff]
        %v2767 = vld [vmem:[%s531 + $0x578] sm:$0xff]
        %v2768 = vld [vmem:[%s531 + $0x580] sm:$0xff]
        %v2769 = vld [vmem:[%s531 + $0x588] sm:$0xff]
        %v2770 = vld [vmem:[%s531 + $0x590] sm:$0xff]
        %v2771 = vld [vmem:[%s531 + $0x598] sm:$0xff]
        %v2772 = vld [vmem:[%s531 + $0x5a0] sm:$0xff]
        %v2773 = vld [vmem:[%s531 + $0x5a8] sm:$0xff]
        %v2774 = vld [vmem:[%s531 + $0x5b0] sm:$0xff]
        %v2775 = vld [vmem:[%s531 + $0x5b8] sm:$0xff]
        %v2776 = vld [vmem:[%s531 + $0x5c0] sm:$0xff]
        %v2777 = vld [vmem:[%s531 + $0x5c8] sm:$0xff]
        %v2778 = vld [vmem:[%s531 + $0x5d0] sm:$0xff]
        %v2779 = vld [vmem:[%s531 + $0x5d8] sm:$0xff]
        %v2780 = vld [vmem:[%s531 + $0x5e0] sm:$0xff]
        %v2781 = vld [vmem:[%s531 + $0x5e8] sm:$0xff]
        %v2782 = vld [vmem:[%s531 + $0x5f0] sm:$0xff]
        %v2783 = vld [vmem:[%s531 + $0x5f8] sm:$0xff]
        %v2784 = vld [vmem:[%s531 + $0x600] sm:$0xff]
        %v2785 = vld [vmem:[%s531 + $0x608] sm:$0xff]
        %v2786 = vld [vmem:[%s531 + $0x610] sm:$0xff]
        %v2787 = vld [vmem:[%s531 + $0x618] sm:$0xff]
        %v2788 = vld [vmem:[%s531 + $0x620] sm:$0xff]
        %v2789 = vld [vmem:[%s531 + $0x628] sm:$0xff]
        %v2790 = vld [vmem:[%s531 + $0x630] sm:$0xff]
        %v2791 = vld [vmem:[%s531 + $0x638] sm:$0xff]
        %v2792 = vld [vmem:[%s531 + $0x640] sm:$0xff]
        %v2793 = vld [vmem:[%s531 + $0x648] sm:$0xff]
        %v2794 = vld [vmem:[%s531 + $0x650] sm:$0xff]
        %v2795 = vld [vmem:[%s531 + $0x658] sm:$0xff]
        %v2796 = vld [vmem:[%s531 + $0x660] sm:$0xff]
        %v2797 = vld [vmem:[%s531 + $0x668] sm:$0xff]
        %v2798 = vld [vmem:[%s531 + $0x670] sm:$0xff]
        %v2799 = vld [vmem:[%s531 + $0x678] sm:$0xff]
        %v2800 = vld [vmem:[%s531 + $0x680] sm:$0xff]
        %v2801 = vld [vmem:[%s531 + $0x688] sm:$0xff]
        %v2802 = vld [vmem:[%s531 + $0x690] sm:$0xff]
        %v2803 = vld [vmem:[%s531 + $0x698] sm:$0xff]
        %v2804 = vld [vmem:[%s531 + $0x6a0] sm:$0xff]
        %v2805 = vld [vmem:[%s531 + $0x6a8] sm:$0xff]
        %v2806 = vld [vmem:[%s531 + $0x6b0] sm:$0xff]
        %v2807 = vld [vmem:[%s531 + $0x6b8] sm:$0xff]
        %v2808 = vld [vmem:[%s531 + $0x6c0] sm:$0xff]
        %v2809 = vld [vmem:[%s531 + $0x6c8] sm:$0xff]
        %v2810 = vld [vmem:[%s531 + $0x6d0] sm:$0xff]
        %v2811 = vld [vmem:[%s531 + $0x6d8] sm:$0xff]
        %v2812 = vld [vmem:[%s531 + $0x6e0] sm:$0xff]
        %v2813 = vld [vmem:[%s531 + $0x6e8] sm:$0xff]
        %v2814 = vld [vmem:[%s531 + $0x6f0] sm:$0xff]
        %v2815 = vld [vmem:[%s531 + $0x6f8] sm:$0xff]
        %v2816 = vld [vmem:[%s531 + $0x700] sm:$0xff]
        %v2817 = vld [vmem:[%s531 + $0x708] sm:$0xff]
        %v2818 = vld [vmem:[%s531 + $0x710] sm:$0xff]
        %v2819 = vld [vmem:[%s531 + $0x718] sm:$0xff]
        %v2820 = vld [vmem:[%s531 + $0x720] sm:$0xff]
        %v2821 = vld [vmem:[%s531 + $0x728] sm:$0xff]
        %v2822 = vld [vmem:[%s531 + $0x730] sm:$0xff]
        %v2823 = vld [vmem:[%s531 + $0x738] sm:$0xff]
        %v2824 = vld [vmem:[%s531 + $0x740] sm:$0xff]
        %v2825 = vld [vmem:[%s531 + $0x748] sm:$0xff]
        %v2826 = vld [vmem:[%s531 + $0x750] sm:$0xff]
        %v2827 = vld [vmem:[%s531 + $0x758] sm:$0xff]
        %v2828 = vld [vmem:[%s531 + $0x760] sm:$0xff]
        %v2829 = vld [vmem:[%s531 + $0x768] sm:$0xff]
        %v2830 = vld [vmem:[%s531 + $0x770] sm:$0xff]
        %v2831 = vld [vmem:[%s531 + $0x778] sm:$0xff]
        %v2832 = vld [vmem:[%s531 + $0x780] sm:$0xff]
        %v2833 = vld [vmem:[%s531 + $0x788] sm:$0xff]
        %v2834 = vld [vmem:[%s531 + $0x790] sm:$0xff]
        %v2835 = vld [vmem:[%s531 + $0x798] sm:$0xff]
        %v2836 = vld [vmem:[%s531 + $0x7a0] sm:$0xff]
        %v2837 = vld [vmem:[%s531 + $0x7a8] sm:$0xff]
        %v2838 = vld [vmem:[%s531 + $0x7b0] sm:$0xff]
        %v2839 = vld [vmem:[%s531 + $0x7b8] sm:$0xff]
        %v2840 = vld [vmem:[%s531 + $0x7c0] sm:$0xff]
        %v2841 = vld [vmem:[%s531 + $0x7c8] sm:$0xff]
        %v2842 = vld [vmem:[%s531 + $0x7d0] sm:$0xff]
        %v2843 = vld [vmem:[%s531 + $0x7d8] sm:$0xff]
        %v2844 = vld [vmem:[%s531 + $0x7e0] sm:$0xff]
        %v2845 = vld [vmem:[%s531 + $0x7e8] sm:$0xff]
        %v2846 = vld [vmem:[%s531 + $0x7f0] sm:$0xff]
        %v2847 = vld [vmem:[%s531 + $0x7f8] sm:$0xff]
        %v2848 = vld [vmem:[%s531 + $0x800] sm:$0xff]
        %v2849 = vld [vmem:[%s531 + $0x808] sm:$0xff]
        %v2850 = vld [vmem:[%s531 + $0x810] sm:$0xff]
        %v2851 = vld [vmem:[%s531 + $0x818] sm:$0xff]
        %v2852 = vld [vmem:[%s531 + $0x820] sm:$0xff]
        %v2853 = vld [vmem:[%s531 + $0x828] sm:$0xff]
        %v2854 = vld [vmem:[%s531 + $0x830] sm:$0xff]
        %v2855 = vld [vmem:[%s531 + $0x838] sm:$0xff]
        %v2856 = vld [vmem:[%s531 + $0x840] sm:$0xff]
        %v2857 = vld [vmem:[%s531 + $0x848] sm:$0xff]
        %v2858 = vld [vmem:[%s531 + $0x850] sm:$0xff]
        %v2859 = vld [vmem:[%s531 + $0x858] sm:$0xff]
        %v2860 = vld [vmem:[%s531 + $0x860] sm:$0xff]
        %v2861 = vld [vmem:[%s531 + $0x868] sm:$0xff]
        %v2862 = vld [vmem:[%s531 + $0x870] sm:$0xff]
        %v2863 = vld [vmem:[%s531 + $0x878] sm:$0xff]
        %v2864 = vld [vmem:[%s531 + $0x880] sm:$0xff]
        %v2865 = vld [vmem:[%s531 + $0x888] sm:$0xff]
        %v2866 = vld [vmem:[%s531 + $0x890] sm:$0xff]
        %v2867 = vld [vmem:[%s531 + $0x898] sm:$0xff]
        %v2868 = vld [vmem:[%s531 + $0x8a0] sm:$0xff]
        %v2869 = vld [vmem:[%s531 + $0x8a8] sm:$0xff]
        %v2870 = vld [vmem:[%s531 + $0x8b0] sm:$0xff]
        %v2871 = vld [vmem:[%s531 + $0x8b8] sm:$0xff]
        %v2872 = vld [vmem:[%s531 + $0x8c0] sm:$0xff]
        %v2873 = vld [vmem:[%s531 + $0x8c8] sm:$0xff]
        %v2874 = vld [vmem:[%s531 + $0x8d0] sm:$0xff]
        %v2875 = vld [vmem:[%s531 + $0x8d8] sm:$0xff]
        %v2876 = vld [vmem:[%s531 + $0x8e0] sm:$0xff]
        %v2877 = vld [vmem:[%s531 + $0x8e8] sm:$0xff]
        %v2878 = vld [vmem:[%s531 + $0x8f0] sm:$0xff]
        %v2879 = vld [vmem:[%s531 + $0x8f8] sm:$0xff]
        %v2880 = vld [vmem:[%s531 + $0x900] sm:$0xff]
        %v2881 = vld [vmem:[%s531 + $0x908] sm:$0xff]
        %v2882 = vld [vmem:[%s531 + $0x910] sm:$0xff]
        %v2883 = vld [vmem:[%s531 + $0x918] sm:$0xff]
        %v2884 = vld [vmem:[%s531 + $0x920] sm:$0xff]
        %v2885 = vld [vmem:[%s531 + $0x928] sm:$0xff]
        %v2886 = vld [vmem:[%s531 + $0x930] sm:$0xff]
        %v2887 = vld [vmem:[%s531 + $0x938] sm:$0xff]
        %v2888 = vld [vmem:[%s531 + $0x940] sm:$0xff]
        %v2889 = vld [vmem:[%s531 + $0x948] sm:$0xff]
        %v2890 = vld [vmem:[%s531 + $0x950] sm:$0xff]
        %v2891 = vld [vmem:[%s531 + $0x958] sm:$0xff]
        %v2892 = vld [vmem:[%s531 + $0x960] sm:$0xff]
        %v2893 = vld [vmem:[%s531 + $0x968] sm:$0xff]
        %v2894 = vld [vmem:[%s531 + $0x970] sm:$0xff]
        %v2895 = vld [vmem:[%s531 + $0x978] sm:$0xff]
        %v2896 = vld [vmem:[%s531 + $0x980] sm:$0xff]
        %v2897 = vld [vmem:[%s531 + $0x988] sm:$0xff]
        %v2898 = vld [vmem:[%s531 + $0x990] sm:$0xff]
        %v2899 = vld [vmem:[%s531 + $0x998] sm:$0xff]
        %v2900 = vld [vmem:[%s531 + $0x9a0] sm:$0xff]
        %v2901 = vld [vmem:[%s531 + $0x9a8] sm:$0xff]
        %v2902 = vld [vmem:[%s531 + $0x9b0] sm:$0xff]
        %v2903 = vld [vmem:[%s531 + $0x9b8] sm:$0xff]
        %v2904 = vld [vmem:[%s531 + $0x9c0] sm:$0xff]
        %v2905 = vld [vmem:[%s531 + $0x9c8] sm:$0xff]
        %v2906 = vld [vmem:[%s531 + $0x9d0] sm:$0xff]
        %v2907 = vld [vmem:[%s531 + $0x9d8] sm:$0xff]
        %v2908 = vld [vmem:[%s531 + $0x9e0] sm:$0xff]
        %v2909 = vld [vmem:[%s531 + $0x9e8] sm:$0xff]
        %v2910 = vld [vmem:[%s531 + $0x9f0] sm:$0xff]
        %v2911 = vld [vmem:[%s531 + $0x9f8] sm:$0xff]
        %v2912 = vld [vmem:[%s531 + $0xa00] sm:$0xff]
        %v2913 = vld [vmem:[%s531 + $0xa08] sm:$0xff]
        %v2914 = vld [vmem:[%s531 + $0xa10] sm:$0xff]
        %v2915 = vld [vmem:[%s531 + $0xa18] sm:$0xff]
        %v2916 = vld [vmem:[%s531 + $0xa20] sm:$0xff]
        %v2917 = vld [vmem:[%s531 + $0xa28] sm:$0xff]
        %v2918 = vld [vmem:[%s531 + $0xa30] sm:$0xff]
        %v2919 = vld [vmem:[%s531 + $0xa38] sm:$0xff]
        %v2920 = vld [vmem:[%s531 + $0xa40] sm:$0xff]
        %v2921 = vld [vmem:[%s531 + $0xa48] sm:$0xff]
        %v2922 = vld [vmem:[%s531 + $0xa50] sm:$0xff]
        %v2923 = vld [vmem:[%s531 + $0xa58] sm:$0xff]
        %v2924 = vld [vmem:[%s531 + $0xa60] sm:$0xff]
        %v2925 = vld [vmem:[%s531 + $0xa68] sm:$0xff]
        %v2926 = vld [vmem:[%s531 + $0xa70] sm:$0xff]
        %v2927 = vld [vmem:[%s531 + $0xa78] sm:$0xff]
        %v2928 = vld [vmem:[%s531 + $0xa80] sm:$0xff]
        %v2929 = vld [vmem:[%s531 + $0xa88] sm:$0xff]
        %v2930 = vld [vmem:[%s531 + $0xa90] sm:$0xff]
        %v2931 = vld [vmem:[%s531 + $0xa98] sm:$0xff]
        %v2932 = vld [vmem:[%s531 + $0xaa0] sm:$0xff]
        %v2933 = vld [vmem:[%s531 + $0xaa8] sm:$0xff]
        %v2934 = vld [vmem:[%s531 + $0xab0] sm:$0xff]
        %v2935 = vld [vmem:[%s531 + $0xab8] sm:$0xff]
        %v2936 = vld [vmem:[%s531 + $0xac0] sm:$0xff]
        %v2937 = vld [vmem:[%s531 + $0xac8] sm:$0xff]
        %v2938 = vld [vmem:[%s531 + $0xad0] sm:$0xff]
        %v2939 = vld [vmem:[%s531 + $0xad8] sm:$0xff]
        %v2940 = vld [vmem:[%s531 + $0xae0] sm:$0xff]
        %v2941 = vld [vmem:[%s531 + $0xae8] sm:$0xff]
        %v2942 = vld [vmem:[%s531 + $0xaf0] sm:$0xff]
        %v2943 = vld [vmem:[%s531 + $0xaf8] sm:$0xff]
        %v2944 = vld [vmem:[%s531 + $0xb00] sm:$0xff]
        %v2945 = vld [vmem:[%s531 + $0xb08] sm:$0xff]
        %v2946 = vld [vmem:[%s531 + $0xb10] sm:$0xff]
        %v2947 = vld [vmem:[%s531 + $0xb18] sm:$0xff]
        %v2948 = vld [vmem:[%s531 + $0xb20] sm:$0xff]
        %v2949 = vld [vmem:[%s531 + $0xb28] sm:$0xff]
        %v2950 = vld [vmem:[%s531 + $0xb30] sm:$0xff]
        %v2951 = vld [vmem:[%s531 + $0xb38] sm:$0xff]
        %v2952 = vld [vmem:[%s531 + $0xb40] sm:$0xff]
        %v2953 = vld [vmem:[%s531 + $0xb48] sm:$0xff]
        %v2954 = vld [vmem:[%s531 + $0xb50] sm:$0xff]
        %v2955 = vld [vmem:[%s531 + $0xb58] sm:$0xff]
        %v2956 = vld [vmem:[%s531 + $0xb60] sm:$0xff]
        %v2957 = vld [vmem:[%s531 + $0xb68] sm:$0xff]
        %v2958 = vld [vmem:[%s531 + $0xb70] sm:$0xff]
        %v2959 = vld [vmem:[%s531 + $0xb78] sm:$0xff]
        %v2960 = vld [vmem:[%s531 + $0xb80] sm:$0xff]
        %v2961 = vld [vmem:[%s531 + $0xb88] sm:$0xff]
        %v2962 = vld [vmem:[%s531 + $0xb90] sm:$0xff]
        %v2963 = vld [vmem:[%s531 + $0xb98] sm:$0xff]
        %v2964 = vld [vmem:[%s531 + $0xba0] sm:$0xff]
        %v2965 = vld [vmem:[%s531 + $0xba8] sm:$0xff]
        %v2966 = vld [vmem:[%s531 + $0xbb0] sm:$0xff]
        %v2967 = vld [vmem:[%s531 + $0xbb8] sm:$0xff]
        %v2968 = vld [vmem:[%s531 + $0xbc0] sm:$0xff]
        %v2969 = vld [vmem:[%s531 + $0xbc8] sm:$0xff]
        %v2970 = vld [vmem:[%s531 + $0xbd0] sm:$0xff]
        %v2971 = vld [vmem:[%s531 + $0xbd8] sm:$0xff]
        %v2972 = vld [vmem:[%s531 + $0xbe0] sm:$0xff]
        %v2973 = vld [vmem:[%s531 + $0xbe8] sm:$0xff]
        %v2974 = vld [vmem:[%s531 + $0xbf0] sm:$0xff]
        %v2975 = vld [vmem:[%s531 + $0xbf8] sm:$0xff]
        %v2976 = vld [vmem:[%s531 + $0xc00] sm:$0xff]
        %v2977 = vld [vmem:[%s531 + $0xc08] sm:$0xff]
        %v2978 = vld [vmem:[%s531 + $0xc10] sm:$0xff]
        %v2979 = vld [vmem:[%s531 + $0xc18] sm:$0xff]
        %v2980 = vld [vmem:[%s531 + $0xc20] sm:$0xff]
        %v2981 = vld [vmem:[%s531 + $0xc28] sm:$0xff]
        %v2982 = vld [vmem:[%s531 + $0xc30] sm:$0xff]
        %v2983 = vld [vmem:[%s531 + $0xc38] sm:$0xff]
        %v2984 = vld [vmem:[%s531 + $0xc40] sm:$0xff]
        %v2985 = vld [vmem:[%s531 + $0xc48] sm:$0xff]
        %v2986 = vld [vmem:[%s531 + $0xc50] sm:$0xff]
        %v2987 = vld [vmem:[%s531 + $0xc58] sm:$0xff]
        %v2988 = vld [vmem:[%s531 + $0xc60] sm:$0xff]
        %v2989 = vld [vmem:[%s531 + $0xc68] sm:$0xff]
        %v2990 = vld [vmem:[%s531 + $0xc70] sm:$0xff]
        %v2991 = vld [vmem:[%s531 + $0xc78] sm:$0xff]
        %v2992 = vld [vmem:[%s531 + $0xc80] sm:$0xff]
        %v2993 = vld [vmem:[%s531 + $0xc88] sm:$0xff]
        %v2994 = vld [vmem:[%s531 + $0xc90] sm:$0xff]
        %v2995 = vld [vmem:[%s531 + $0xc98] sm:$0xff]
        %v2996 = vld [vmem:[%s531 + $0xca0] sm:$0xff]
        %v2997 = vld [vmem:[%s531 + $0xca8] sm:$0xff]
        %v2998 = vld [vmem:[%s531 + $0xcb0] sm:$0xff]
        %v2999 = vld [vmem:[%s531 + $0xcb8] sm:$0xff]
        %v3000 = vld [vmem:[%s531 + $0xcc0] sm:$0xff]
        %v3001 = vld [vmem:[%s531 + $0xcc8] sm:$0xff]
        %v3002 = vld [vmem:[%s531 + $0xcd0] sm:$0xff]
        %v3003 = vld [vmem:[%s531 + $0xcd8] sm:$0xff]
        %v3004 = vld [vmem:[%s531 + $0xce0] sm:$0xff]
        %v3005 = vld [vmem:[%s531 + $0xce8] sm:$0xff]
        %v3006 = vld [vmem:[%s531 + $0xcf0] sm:$0xff]
        %v3007 = vld [vmem:[%s531 + $0xcf8] sm:$0xff]
        %v3008 = vld [vmem:[%s531 + $0xd00] sm:$0xff]
        %v3009 = vld [vmem:[%s531 + $0xd08] sm:$0xff]
        %v3010 = vld [vmem:[%s531 + $0xd10] sm:$0xff]
        %v3011 = vld [vmem:[%s531 + $0xd18] sm:$0xff]
        %v3012 = vld [vmem:[%s531 + $0xd20] sm:$0xff]
        %v3013 = vld [vmem:[%s531 + $0xd28] sm:$0xff]
        %v3014 = vld [vmem:[%s531 + $0xd30] sm:$0xff]
        %v3015 = vld [vmem:[%s531 + $0xd38] sm:$0xff]
        %v3016 = vld [vmem:[%s531 + $0xd40] sm:$0xff]
        %v3017 = vld [vmem:[%s531 + $0xd48] sm:$0xff]
        %v3018 = vld [vmem:[%s531 + $0xd50] sm:$0xff]
        %v3019 = vld [vmem:[%s531 + $0xd58] sm:$0xff]
        %v3020 = vld [vmem:[%s531 + $0xd60] sm:$0xff]
        %v3021 = vld [vmem:[%s531 + $0xd68] sm:$0xff]
        %v3022 = vld [vmem:[%s531 + $0xd70] sm:$0xff]
        %v3023 = vld [vmem:[%s531 + $0xd78] sm:$0xff]
        %v3024 = vld [vmem:[%s531 + $0xd80] sm:$0xff]
        %v3025 = vld [vmem:[%s531 + $0xd88] sm:$0xff]
        %v3026 = vld [vmem:[%s531 + $0xd90] sm:$0xff]
        %v3027 = vld [vmem:[%s531 + $0xd98] sm:$0xff]
        %v3028 = vld [vmem:[%s531 + $0xda0] sm:$0xff]
        %v3029 = vld [vmem:[%s531 + $0xda8] sm:$0xff]
        %v3030 = vld [vmem:[%s531 + $0xdb0] sm:$0xff]
        %v3031 = vld [vmem:[%s531 + $0xdb8] sm:$0xff]
        %v3032 = vld [vmem:[%s531 + $0xdc0] sm:$0xff]
        %v3033 = vld [vmem:[%s531 + $0xdc8] sm:$0xff]
        %v3034 = vld [vmem:[%s531 + $0xdd0] sm:$0xff]
        %v3035 = vld [vmem:[%s531 + $0xdd8] sm:$0xff]
        %v3036 = vld [vmem:[%s531 + $0xde0] sm:$0xff]
        %v3037 = vld [vmem:[%s531 + $0xde8] sm:$0xff]
        %v3038 = vld [vmem:[%s531 + $0xdf0] sm:$0xff]
        %v3039 = vld [vmem:[%s531 + $0xdf8] sm:$0xff]
        %v3040 = vld [vmem:[%s531 + $0xe00] sm:$0xff]
        %v3041 = vld [vmem:[%s531 + $0xe08] sm:$0xff]
        %v3042 = vld [vmem:[%s531 + $0xe10] sm:$0xff]
        %v3043 = vld [vmem:[%s531 + $0xe18] sm:$0xff]
        %v3044 = vld [vmem:[%s531 + $0xe20] sm:$0xff]
        %v3045 = vld [vmem:[%s531 + $0xe28] sm:$0xff]
        %v3046 = vld [vmem:[%s531 + $0xe30] sm:$0xff]
        %v3047 = vld [vmem:[%s531 + $0xe38] sm:$0xff]
        %v3048 = vld [vmem:[%s531 + $0xe40] sm:$0xff]
        %v3049 = vld [vmem:[%s531 + $0xe48] sm:$0xff]
        %v3050 = vld [vmem:[%s531 + $0xe50] sm:$0xff]
        %v3051 = vld [vmem:[%s531 + $0xe58] sm:$0xff]
        %v3052 = vld [vmem:[%s531 + $0xe60] sm:$0xff]
        %v3053 = vld [vmem:[%s531 + $0xe68] sm:$0xff]
        %v3054 = vld [vmem:[%s531 + $0xe70] sm:$0xff]
        %v3055 = vld [vmem:[%s531 + $0xe78] sm:$0xff]
        %v3056 = vld [vmem:[%s531 + $0xe80] sm:$0xff]
        %v3057 = vld [vmem:[%s531 + $0xe88] sm:$0xff]
        %v3058 = vld [vmem:[%s531 + $0xe90] sm:$0xff]
        %v3059 = vld [vmem:[%s531 + $0xe98] sm:$0xff]
        %v3060 = vld [vmem:[%s531 + $0xea0] sm:$0xff]
        %v3061 = vld [vmem:[%s531 + $0xea8] sm:$0xff]
        %v3062 = vld [vmem:[%s531 + $0xeb0] sm:$0xff]
        %v3063 = vld [vmem:[%s531 + $0xeb8] sm:$0xff]
        %v3064 = vld [vmem:[%s531 + $0xec0] sm:$0xff]
        %v3065 = vld [vmem:[%s531 + $0xec8] sm:$0xff]
        %v3066 = vld [vmem:[%s531 + $0xed0] sm:$0xff]
        %v3067 = vld [vmem:[%s531 + $0xed8] sm:$0xff]
        %v3068 = vld [vmem:[%s531 + $0xee0] sm:$0xff]
        %v3069 = vld [vmem:[%s531 + $0xee8] sm:$0xff]
        %v3070 = vld [vmem:[%s531 + $0xef0] sm:$0xff]
        %v3071 = vld [vmem:[%s531 + $0xef8] sm:$0xff]
        %v3072 = vld [vmem:[%s531 + $0xf00] sm:$0xff]
        %v3073 = vld [vmem:[%s531 + $0xf08] sm:$0xff]
        %v3074 = vld [vmem:[%s531 + $0xf10] sm:$0xff]
        %v3075 = vld [vmem:[%s531 + $0xf18] sm:$0xff]
        %v3076 = vld [vmem:[%s531 + $0xf20] sm:$0xff]
        %v3077 = vld [vmem:[%s531 + $0xf28] sm:$0xff]
        %v3078 = vld [vmem:[%s531 + $0xf30] sm:$0xff]
        %v3079 = vld [vmem:[%s531 + $0xf38] sm:$0xff]
        %v3080 = vld [vmem:[%s531 + $0xf40] sm:$0xff]
        %v3081 = vld [vmem:[%s531 + $0xf48] sm:$0xff]
        %v3082 = vld [vmem:[%s531 + $0xf50] sm:$0xff]
        %v3083 = vld [vmem:[%s531 + $0xf58] sm:$0xff]
        %v3084 = vld [vmem:[%s531 + $0xf60] sm:$0xff]
        %v3085 = vld [vmem:[%s531 + $0xf68] sm:$0xff]
        %v3086 = vld [vmem:[%s531 + $0xf70] sm:$0xff]
        %v3087 = vld [vmem:[%s531 + $0xf78] sm:$0xff]
        %v3088 = vld [vmem:[%s531 + $0xf80] sm:$0xff]
        %v3089 = vld [vmem:[%s531 + $0xf88] sm:$0xff]
        %v3090 = vld [vmem:[%s531 + $0xf90] sm:$0xff]
        %v3091 = vld [vmem:[%s531 + $0xf98] sm:$0xff]
        %v3092 = vld [vmem:[%s531 + $0xfa0] sm:$0xff]
        %v3093 = vld [vmem:[%s531 + $0xfa8] sm:$0xff]
        %v3094 = vld [vmem:[%s531 + $0xfb0] sm:$0xff]
        %v3095 = vld [vmem:[%s531 + $0xfb8] sm:$0xff]
        %v3096 = vld [vmem:[%s531 + $0xfc0] sm:$0xff]
        %v3097 = vld [vmem:[%s531 + $0xfc8] sm:$0xff]
        %v3098 = vld [vmem:[%s531 + $0xfd0] sm:$0xff]
        %v3099 = vld [vmem:[%s531 + $0xfd8] sm:$0xff]
        %v3100 = vld [vmem:[%s531 + $0xfe0] sm:$0xff]
        %v3101 = vld [vmem:[%s531 + $0xfe8] sm:$0xff]
        %v3102 = vld [vmem:[%s531 + $0xff0] sm:$0xff]
        %v3103 = vld [vmem:[%s531 + $0xff8] sm:$0xff]
        %v3104 = vld [vmem:[%s540] sm:$0xff]
        %v3106 = vlaneseq
        %v3107 = vshrl.u32 %v3106, 7
        %v3108 = vsub.s32 0, %v3107
        %v3109 = vrot.slane %v3104, %v3108
        %v3110 = vlaneseq
        %v3111 = vshrl.u32 %v3110, 7
        %v3112 = vsub.s32 1, %v3111
        %v3113 = vrot.slane %v3104, %v3112
        %v3114 = vlaneseq
        %v3115 = vshrl.u32 %v3114, 7
        %v3116 = vsub.s32 2, %v3115
        %v3117 = vrot.slane %v3104, %v3116
        %v3118 = vlaneseq
        %v3119 = vshrl.u32 %v3118, 7
        %v3120 = vsub.s32 3, %v3119
        %v3121 = vrot.slane %v3104, %v3120
        %v3122 = vlaneseq
        %v3123 = vshrl.u32 %v3122, 7
        %v3124 = vsub.s32 4, %v3123
        %v3125 = vrot.slane %v3104, %v3124
        %v3126 = vlaneseq
        %v3127 = vshrl.u32 %v3126, 7
        %v3128 = vsub.s32 5, %v3127
        %v3129 = vrot.slane %v3104, %v3128
        %v3130 = vlaneseq
        %v3131 = vshrl.u32 %v3130, 7
        %v3132 = vsub.s32 6, %v3131
        %v3133 = vrot.slane %v3104, %v3132
        %v3134 = vlaneseq
        %v3135 = vshrl.u32 %v3134, 7
        %v3136 = vsub.s32 7, %v3135
        %v3137 = vrot.slane %v3104, %v3136
        %v3658 = vunpack.c.l.b16 %v2592
        %v3659 = vunpack.c.h.b16 %v2592
        %v3660 = vunpack.c.l.b16 %v2593
        %v3661 = vunpack.c.h.b16 %v2593
        %v3662 = vunpack.c.l.b16 %v2594
        %v3663 = vunpack.c.h.b16 %v2594
        %v3664 = vunpack.c.l.b16 %v2595
        %v3665 = vunpack.c.h.b16 %v2595
        %v3666 = vunpack.c.l.b16 %v2596
        %v3667 = vunpack.c.h.b16 %v2596
        %v3668 = vunpack.c.l.b16 %v2597
        %v3669 = vunpack.c.h.b16 %v2597
        %v3670 = vunpack.c.l.b16 %v2598
        %v3671 = vunpack.c.h.b16 %v2598
        %v3672 = vunpack.c.l.b16 %v2599
        %v3673 = vunpack.c.h.b16 %v2599
        %v3674 = vunpack.c.l.b16 %v2600
        %v3675 = vunpack.c.h.b16 %v2600
        %v3676 = vunpack.c.l.b16 %v2601
        %v3677 = vunpack.c.h.b16 %v2601
        %v3678 = vunpack.c.l.b16 %v2602
        %v3679 = vunpack.c.h.b16 %v2602
        %v3680 = vunpack.c.l.b16 %v2603
        %v3681 = vunpack.c.h.b16 %v2603
        %v3682 = vunpack.c.l.b16 %v2604
        %v3683 = vunpack.c.h.b16 %v2604
        %v3684 = vunpack.c.l.b16 %v2605
        %v3685 = vunpack.c.h.b16 %v2605
        %v3686 = vunpack.c.l.b16 %v2606
        %v3687 = vunpack.c.h.b16 %v2606
        %v3688 = vunpack.c.l.b16 %v2607
        %v3689 = vunpack.c.h.b16 %v2607
        %v3690 = vunpack.c.l.b16 %v2608
        %v3691 = vunpack.c.h.b16 %v2608
        %v3692 = vunpack.c.l.b16 %v2609
        %v3693 = vunpack.c.h.b16 %v2609
        %v3694 = vunpack.c.l.b16 %v2610
        %v3695 = vunpack.c.h.b16 %v2610
        %v3696 = vunpack.c.l.b16 %v2611
        %v3697 = vunpack.c.h.b16 %v2611
        %v3698 = vunpack.c.l.b16 %v2612
        %v3699 = vunpack.c.h.b16 %v2612
        %v3700 = vunpack.c.l.b16 %v2613
        %v3701 = vunpack.c.h.b16 %v2613
        %v3702 = vunpack.c.l.b16 %v2614
        %v3703 = vunpack.c.h.b16 %v2614
        %v3704 = vunpack.c.l.b16 %v2615
        %v3705 = vunpack.c.h.b16 %v2615
        %v3706 = vunpack.c.l.b16 %v2616
        %v3707 = vunpack.c.h.b16 %v2616
        %v3708 = vunpack.c.l.b16 %v2617
        %v3709 = vunpack.c.h.b16 %v2617
        %v3710 = vunpack.c.l.b16 %v2618
        %v3711 = vunpack.c.h.b16 %v2618
        %v3712 = vunpack.c.l.b16 %v2619
        %v3713 = vunpack.c.h.b16 %v2619
        %v3714 = vunpack.c.l.b16 %v2620
        %v3715 = vunpack.c.h.b16 %v2620
        %v3716 = vunpack.c.l.b16 %v2621
        %v3717 = vunpack.c.h.b16 %v2621
        %v3718 = vunpack.c.l.b16 %v2622
        %v3719 = vunpack.c.h.b16 %v2622
        %v3720 = vunpack.c.l.b16 %v2623
        %v3721 = vunpack.c.h.b16 %v2623
        %v3722 = vunpack.c.l.b16 %v2624
        %v3723 = vunpack.c.h.b16 %v2624
        %v3724 = vunpack.c.l.b16 %v2625
        %v3725 = vunpack.c.h.b16 %v2625
        %v3726 = vunpack.c.l.b16 %v2626
        %v3727 = vunpack.c.h.b16 %v2626
        %v3728 = vunpack.c.l.b16 %v2627
        %v3729 = vunpack.c.h.b16 %v2627
        %v3730 = vunpack.c.l.b16 %v2628
        %v3731 = vunpack.c.h.b16 %v2628
        %v3732 = vunpack.c.l.b16 %v2629
        %v3733 = vunpack.c.h.b16 %v2629
        %v3734 = vunpack.c.l.b16 %v2630
        %v3735 = vunpack.c.h.b16 %v2630
        %v3736 = vunpack.c.l.b16 %v2631
        %v3737 = vunpack.c.h.b16 %v2631
        %v3738 = vunpack.c.l.b16 %v2632
        %v3739 = vunpack.c.h.b16 %v2632
        %v3740 = vunpack.c.l.b16 %v2633
        %v3741 = vunpack.c.h.b16 %v2633
        %v3742 = vunpack.c.l.b16 %v2634
        %v3743 = vunpack.c.h.b16 %v2634
        %v3744 = vunpack.c.l.b16 %v2635
        %v3745 = vunpack.c.h.b16 %v2635
        %v3746 = vunpack.c.l.b16 %v2636
        %v3747 = vunpack.c.h.b16 %v2636
        %v3748 = vunpack.c.l.b16 %v2637
        %v3749 = vunpack.c.h.b16 %v2637
        %v3750 = vunpack.c.l.b16 %v2638
        %v3751 = vunpack.c.h.b16 %v2638
        %v3752 = vunpack.c.l.b16 %v2639
        %v3753 = vunpack.c.h.b16 %v2639
        %v3754 = vunpack.c.l.b16 %v2640
        %v3755 = vunpack.c.h.b16 %v2640
        %v3756 = vunpack.c.l.b16 %v2641
        %v3757 = vunpack.c.h.b16 %v2641
        %v3758 = vunpack.c.l.b16 %v2642
        %v3759 = vunpack.c.h.b16 %v2642
        %v3760 = vunpack.c.l.b16 %v2643
        %v3761 = vunpack.c.h.b16 %v2643
        %v3762 = vunpack.c.l.b16 %v2644
        %v3763 = vunpack.c.h.b16 %v2644
        %v3764 = vunpack.c.l.b16 %v2645
        %v3765 = vunpack.c.h.b16 %v2645
        %v3766 = vunpack.c.l.b16 %v2646
        %v3767 = vunpack.c.h.b16 %v2646
        %v3768 = vunpack.c.l.b16 %v2647
        %v3769 = vunpack.c.h.b16 %v2647
        %v3770 = vunpack.c.l.b16 %v2648
        %v3771 = vunpack.c.h.b16 %v2648
        %v3772 = vunpack.c.l.b16 %v2649
        %v3773 = vunpack.c.h.b16 %v2649
        %v3774 = vunpack.c.l.b16 %v2650
        %v3775 = vunpack.c.h.b16 %v2650
        %v3776 = vunpack.c.l.b16 %v2651
        %v3777 = vunpack.c.h.b16 %v2651
        %v3778 = vunpack.c.l.b16 %v2652
        %v3779 = vunpack.c.h.b16 %v2652
        %v3780 = vunpack.c.l.b16 %v2653
        %v3781 = vunpack.c.h.b16 %v2653
        %v3782 = vunpack.c.l.b16 %v2654
        %v3783 = vunpack.c.h.b16 %v2654
        %v3784 = vunpack.c.l.b16 %v2655
        %v3785 = vunpack.c.h.b16 %v2655
        %v3786 = vunpack.c.l.b16 %v2656
        %v3787 = vunpack.c.h.b16 %v2656
        %v3788 = vunpack.c.l.b16 %v2657
        %v3789 = vunpack.c.h.b16 %v2657
        %v3790 = vunpack.c.l.b16 %v2658
        %v3791 = vunpack.c.h.b16 %v2658
        %v3792 = vunpack.c.l.b16 %v2659
        %v3793 = vunpack.c.h.b16 %v2659
        %v3794 = vunpack.c.l.b16 %v2660
        %v3795 = vunpack.c.h.b16 %v2660
        %v3796 = vunpack.c.l.b16 %v2661
        %v3797 = vunpack.c.h.b16 %v2661
        %v3798 = vunpack.c.l.b16 %v2662
        %v3799 = vunpack.c.h.b16 %v2662
        %v3800 = vunpack.c.l.b16 %v2663
        %v3801 = vunpack.c.h.b16 %v2663
        %v3802 = vunpack.c.l.b16 %v2664
        %v3803 = vunpack.c.h.b16 %v2664
        %v3804 = vunpack.c.l.b16 %v2665
        %v3805 = vunpack.c.h.b16 %v2665
        %v3806 = vunpack.c.l.b16 %v2666
        %v3807 = vunpack.c.h.b16 %v2666
        %v3808 = vunpack.c.l.b16 %v2667
        %v3809 = vunpack.c.h.b16 %v2667
        %v3810 = vunpack.c.l.b16 %v2668
        %v3811 = vunpack.c.h.b16 %v2668
        %v3812 = vunpack.c.l.b16 %v2669
        %v3813 = vunpack.c.h.b16 %v2669
        %v3814 = vunpack.c.l.b16 %v2670
        %v3815 = vunpack.c.h.b16 %v2670
        %v3816 = vunpack.c.l.b16 %v2671
        %v3817 = vunpack.c.h.b16 %v2671
        %v3818 = vunpack.c.l.b16 %v2672
        %v3819 = vunpack.c.h.b16 %v2672
        %v3820 = vunpack.c.l.b16 %v2673
        %v3821 = vunpack.c.h.b16 %v2673
        %v3822 = vunpack.c.l.b16 %v2674
        %v3823 = vunpack.c.h.b16 %v2674
        %v3824 = vunpack.c.l.b16 %v2675
        %v3825 = vunpack.c.h.b16 %v2675
        %v3826 = vunpack.c.l.b16 %v2676
        %v3827 = vunpack.c.h.b16 %v2676
        %v3828 = vunpack.c.l.b16 %v2677
        %v3829 = vunpack.c.h.b16 %v2677
        %v3830 = vunpack.c.l.b16 %v2678
        %v3831 = vunpack.c.h.b16 %v2678
        %v3832 = vunpack.c.l.b16 %v2679
        %v3833 = vunpack.c.h.b16 %v2679
        %v3834 = vunpack.c.l.b16 %v2680
        %v3835 = vunpack.c.h.b16 %v2680
        %v3836 = vunpack.c.l.b16 %v2681
        %v3837 = vunpack.c.h.b16 %v2681
        %v3838 = vunpack.c.l.b16 %v2682
        %v3839 = vunpack.c.h.b16 %v2682
        %v3840 = vunpack.c.l.b16 %v2683
        %v3841 = vunpack.c.h.b16 %v2683
        %v3842 = vunpack.c.l.b16 %v2684
        %v3843 = vunpack.c.h.b16 %v2684
        %v3844 = vunpack.c.l.b16 %v2685
        %v3845 = vunpack.c.h.b16 %v2685
        %v3846 = vunpack.c.l.b16 %v2686
        %v3847 = vunpack.c.h.b16 %v2686
        %v3848 = vunpack.c.l.b16 %v2687
        %v3849 = vunpack.c.h.b16 %v2687
        %v3850 = vunpack.c.l.b16 %v2688
        %v3851 = vunpack.c.h.b16 %v2688
        %v3852 = vunpack.c.l.b16 %v2689
        %v3853 = vunpack.c.h.b16 %v2689
        %v3854 = vunpack.c.l.b16 %v2690
        %v3855 = vunpack.c.h.b16 %v2690
        %v3856 = vunpack.c.l.b16 %v2691
        %v3857 = vunpack.c.h.b16 %v2691
        %v3858 = vunpack.c.l.b16 %v2692
        %v3859 = vunpack.c.h.b16 %v2692
        %v3860 = vunpack.c.l.b16 %v2693
        %v3861 = vunpack.c.h.b16 %v2693
        %v3862 = vunpack.c.l.b16 %v2694
        %v3863 = vunpack.c.h.b16 %v2694
        %v3864 = vunpack.c.l.b16 %v2695
        %v3865 = vunpack.c.h.b16 %v2695
        %v3866 = vunpack.c.l.b16 %v2696
        %v3867 = vunpack.c.h.b16 %v2696
        %v3868 = vunpack.c.l.b16 %v2697
        %v3869 = vunpack.c.h.b16 %v2697
        %v3870 = vunpack.c.l.b16 %v2698
        %v3871 = vunpack.c.h.b16 %v2698
        %v3872 = vunpack.c.l.b16 %v2699
        %v3873 = vunpack.c.h.b16 %v2699
        %v3874 = vunpack.c.l.b16 %v2700
        %v3875 = vunpack.c.h.b16 %v2700
        %v3876 = vunpack.c.l.b16 %v2701
        %v3877 = vunpack.c.h.b16 %v2701
        %v3878 = vunpack.c.l.b16 %v2702
        %v3879 = vunpack.c.h.b16 %v2702
        %v3880 = vunpack.c.l.b16 %v2703
        %v3881 = vunpack.c.h.b16 %v2703
        %v3882 = vunpack.c.l.b16 %v2704
        %v3883 = vunpack.c.h.b16 %v2704
        %v3884 = vunpack.c.l.b16 %v2705
        %v3885 = vunpack.c.h.b16 %v2705
        %v3886 = vunpack.c.l.b16 %v2706
        %v3887 = vunpack.c.h.b16 %v2706
        %v3888 = vunpack.c.l.b16 %v2707
        %v3889 = vunpack.c.h.b16 %v2707
        %v3890 = vunpack.c.l.b16 %v2708
        %v3891 = vunpack.c.h.b16 %v2708
        %v3892 = vunpack.c.l.b16 %v2709
        %v3893 = vunpack.c.h.b16 %v2709
        %v3894 = vunpack.c.l.b16 %v2710
        %v3895 = vunpack.c.h.b16 %v2710
        %v3896 = vunpack.c.l.b16 %v2711
        %v3897 = vunpack.c.h.b16 %v2711
        %v3898 = vunpack.c.l.b16 %v2712
        %v3899 = vunpack.c.h.b16 %v2712
        %v3900 = vunpack.c.l.b16 %v2713
        %v3901 = vunpack.c.h.b16 %v2713
        %v3902 = vunpack.c.l.b16 %v2714
        %v3903 = vunpack.c.h.b16 %v2714
        %v3904 = vunpack.c.l.b16 %v2715
        %v3905 = vunpack.c.h.b16 %v2715
        %v3906 = vunpack.c.l.b16 %v2716
        %v3907 = vunpack.c.h.b16 %v2716
        %v3908 = vunpack.c.l.b16 %v2717
        %v3909 = vunpack.c.h.b16 %v2717
        %v3910 = vunpack.c.l.b16 %v2718
        %v3911 = vunpack.c.h.b16 %v2718
        %v3912 = vunpack.c.l.b16 %v2719
        %v3913 = vunpack.c.h.b16 %v2719
        %v3914 = vunpack.c.l.b16 %v2720
        %v3915 = vunpack.c.h.b16 %v2720
        %v3916 = vunpack.c.l.b16 %v2721
        %v3917 = vunpack.c.h.b16 %v2721
        %v3918 = vunpack.c.l.b16 %v2722
        %v3919 = vunpack.c.h.b16 %v2722
        %v3920 = vunpack.c.l.b16 %v2723
        %v3921 = vunpack.c.h.b16 %v2723
        %v3922 = vunpack.c.l.b16 %v2724
        %v3923 = vunpack.c.h.b16 %v2724
        %v3924 = vunpack.c.l.b16 %v2725
        %v3925 = vunpack.c.h.b16 %v2725
        %v3926 = vunpack.c.l.b16 %v2726
        %v3927 = vunpack.c.h.b16 %v2726
        %v3928 = vunpack.c.l.b16 %v2727
        %v3929 = vunpack.c.h.b16 %v2727
        %v3930 = vunpack.c.l.b16 %v2728
        %v3931 = vunpack.c.h.b16 %v2728
        %v3932 = vunpack.c.l.b16 %v2729
        %v3933 = vunpack.c.h.b16 %v2729
        %v3934 = vunpack.c.l.b16 %v2730
        %v3935 = vunpack.c.h.b16 %v2730
        %v3936 = vunpack.c.l.b16 %v2731
        %v3937 = vunpack.c.h.b16 %v2731
        %v3938 = vunpack.c.l.b16 %v2732
        %v3939 = vunpack.c.h.b16 %v2732
        %v3940 = vunpack.c.l.b16 %v2733
        %v3941 = vunpack.c.h.b16 %v2733
        %v3942 = vunpack.c.l.b16 %v2734
        %v3943 = vunpack.c.h.b16 %v2734
        %v3944 = vunpack.c.l.b16 %v2735
        %v3945 = vunpack.c.h.b16 %v2735
        %v3946 = vunpack.c.l.b16 %v2736
        %v3947 = vunpack.c.h.b16 %v2736
        %v3948 = vunpack.c.l.b16 %v2737
        %v3949 = vunpack.c.h.b16 %v2737
        %v3950 = vunpack.c.l.b16 %v2738
        %v3951 = vunpack.c.h.b16 %v2738
        %v3952 = vunpack.c.l.b16 %v2739
        %v3953 = vunpack.c.h.b16 %v2739
        %v3954 = vunpack.c.l.b16 %v2740
        %v3955 = vunpack.c.h.b16 %v2740
        %v3956 = vunpack.c.l.b16 %v2741
        %v3957 = vunpack.c.h.b16 %v2741
        %v3958 = vunpack.c.l.b16 %v2742
        %v3959 = vunpack.c.h.b16 %v2742
        %v3960 = vunpack.c.l.b16 %v2743
        %v3961 = vunpack.c.h.b16 %v2743
        %v3962 = vunpack.c.l.b16 %v2744
        %v3963 = vunpack.c.h.b16 %v2744
        %v3964 = vunpack.c.l.b16 %v2745
        %v3965 = vunpack.c.h.b16 %v2745
        %v3966 = vunpack.c.l.b16 %v2746
        %v3967 = vunpack.c.h.b16 %v2746
        %v3968 = vunpack.c.l.b16 %v2747
        %v3969 = vunpack.c.h.b16 %v2747
        %v3970 = vunpack.c.l.b16 %v2748
        %v3971 = vunpack.c.h.b16 %v2748
        %v3972 = vunpack.c.l.b16 %v2749
        %v3973 = vunpack.c.h.b16 %v2749
        %v3974 = vunpack.c.l.b16 %v2750
        %v3975 = vunpack.c.h.b16 %v2750
        %v3976 = vunpack.c.l.b16 %v2751
        %v3977 = vunpack.c.h.b16 %v2751
        %v3978 = vunpack.c.l.b16 %v2752
        %v3979 = vunpack.c.h.b16 %v2752
        %v3980 = vunpack.c.l.b16 %v2753
        %v3981 = vunpack.c.h.b16 %v2753
        %v3982 = vunpack.c.l.b16 %v2754
        %v3983 = vunpack.c.h.b16 %v2754
        %v3984 = vunpack.c.l.b16 %v2755
        %v3985 = vunpack.c.h.b16 %v2755
        %v3986 = vunpack.c.l.b16 %v2756
        %v3987 = vunpack.c.h.b16 %v2756
        %v3988 = vunpack.c.l.b16 %v2757
        %v3989 = vunpack.c.h.b16 %v2757
        %v3990 = vunpack.c.l.b16 %v2758
        %v3991 = vunpack.c.h.b16 %v2758
        %v3992 = vunpack.c.l.b16 %v2759
        %v3993 = vunpack.c.h.b16 %v2759
        %v3994 = vunpack.c.l.b16 %v2760
        %v3995 = vunpack.c.h.b16 %v2760
        %v3996 = vunpack.c.l.b16 %v2761
        %v3997 = vunpack.c.h.b16 %v2761
        %v3998 = vunpack.c.l.b16 %v2762
        %v3999 = vunpack.c.h.b16 %v2762
        %v4000 = vunpack.c.l.b16 %v2763
        %v4001 = vunpack.c.h.b16 %v2763
        %v4002 = vunpack.c.l.b16 %v2764
        %v4003 = vunpack.c.h.b16 %v2764
        %v4004 = vunpack.c.l.b16 %v2765
        %v4005 = vunpack.c.h.b16 %v2765
        %v4006 = vunpack.c.l.b16 %v2766
        %v4007 = vunpack.c.h.b16 %v2766
        %v4008 = vunpack.c.l.b16 %v2767
        %v4009 = vunpack.c.h.b16 %v2767
        %v4010 = vunpack.c.l.b16 %v2768
        %v4011 = vunpack.c.h.b16 %v2768
        %v4012 = vunpack.c.l.b16 %v2769
        %v4013 = vunpack.c.h.b16 %v2769
        %v4014 = vunpack.c.l.b16 %v2770
        %v4015 = vunpack.c.h.b16 %v2770
        %v4016 = vunpack.c.l.b16 %v2771
        %v4017 = vunpack.c.h.b16 %v2771
        %v4018 = vunpack.c.l.b16 %v2772
        %v4019 = vunpack.c.h.b16 %v2772
        %v4020 = vunpack.c.l.b16 %v2773
        %v4021 = vunpack.c.h.b16 %v2773
        %v4022 = vunpack.c.l.b16 %v2774
        %v4023 = vunpack.c.h.b16 %v2774
        %v4024 = vunpack.c.l.b16 %v2775
        %v4025 = vunpack.c.h.b16 %v2775
        %v4026 = vunpack.c.l.b16 %v2776
        %v4027 = vunpack.c.h.b16 %v2776
        %v4028 = vunpack.c.l.b16 %v2777
        %v4029 = vunpack.c.h.b16 %v2777
        %v4030 = vunpack.c.l.b16 %v2778
        %v4031 = vunpack.c.h.b16 %v2778
        %v4032 = vunpack.c.l.b16 %v2779
        %v4033 = vunpack.c.h.b16 %v2779
        %v4034 = vunpack.c.l.b16 %v2780
        %v4035 = vunpack.c.h.b16 %v2780
        %v4036 = vunpack.c.l.b16 %v2781
        %v4037 = vunpack.c.h.b16 %v2781
        %v4038 = vunpack.c.l.b16 %v2782
        %v4039 = vunpack.c.h.b16 %v2782
        %v4040 = vunpack.c.l.b16 %v2783
        %v4041 = vunpack.c.h.b16 %v2783
        %v4042 = vunpack.c.l.b16 %v2784
        %v4043 = vunpack.c.h.b16 %v2784
        %v4044 = vunpack.c.l.b16 %v2785
        %v4045 = vunpack.c.h.b16 %v2785
        %v4046 = vunpack.c.l.b16 %v2786
        %v4047 = vunpack.c.h.b16 %v2786
        %v4048 = vunpack.c.l.b16 %v2787
        %v4049 = vunpack.c.h.b16 %v2787
        %v4050 = vunpack.c.l.b16 %v2788
        %v4051 = vunpack.c.h.b16 %v2788
        %v4052 = vunpack.c.l.b16 %v2789
        %v4053 = vunpack.c.h.b16 %v2789
        %v4054 = vunpack.c.l.b16 %v2790
        %v4055 = vunpack.c.h.b16 %v2790
        %v4056 = vunpack.c.l.b16 %v2791
        %v4057 = vunpack.c.h.b16 %v2791
        %v4058 = vunpack.c.l.b16 %v2792
        %v4059 = vunpack.c.h.b16 %v2792
        %v4060 = vunpack.c.l.b16 %v2793
        %v4061 = vunpack.c.h.b16 %v2793
        %v4062 = vunpack.c.l.b16 %v2794
        %v4063 = vunpack.c.h.b16 %v2794
        %v4064 = vunpack.c.l.b16 %v2795
        %v4065 = vunpack.c.h.b16 %v2795
        %v4066 = vunpack.c.l.b16 %v2796
        %v4067 = vunpack.c.h.b16 %v2796
        %v4068 = vunpack.c.l.b16 %v2797
        %v4069 = vunpack.c.h.b16 %v2797
        %v4070 = vunpack.c.l.b16 %v2798
        %v4071 = vunpack.c.h.b16 %v2798
        %v4072 = vunpack.c.l.b16 %v2799
        %v4073 = vunpack.c.h.b16 %v2799
        %v4074 = vunpack.c.l.b16 %v2800
        %v4075 = vunpack.c.h.b16 %v2800
        %v4076 = vunpack.c.l.b16 %v2801
        %v4077 = vunpack.c.h.b16 %v2801
        %v4078 = vunpack.c.l.b16 %v2802
        %v4079 = vunpack.c.h.b16 %v2802
        %v4080 = vunpack.c.l.b16 %v2803
        %v4081 = vunpack.c.h.b16 %v2803
        %v4082 = vunpack.c.l.b16 %v2804
        %v4083 = vunpack.c.h.b16 %v2804
        %v4084 = vunpack.c.l.b16 %v2805
        %v4085 = vunpack.c.h.b16 %v2805
        %v4086 = vunpack.c.l.b16 %v2806
        %v4087 = vunpack.c.h.b16 %v2806
        %v4088 = vunpack.c.l.b16 %v2807
        %v4089 = vunpack.c.h.b16 %v2807
        %v4090 = vunpack.c.l.b16 %v2808
        %v4091 = vunpack.c.h.b16 %v2808
        %v4092 = vunpack.c.l.b16 %v2809
        %v4093 = vunpack.c.h.b16 %v2809
        %v4094 = vunpack.c.l.b16 %v2810
        %v4095 = vunpack.c.h.b16 %v2810
        %v4096 = vunpack.c.l.b16 %v2811
        %v4097 = vunpack.c.h.b16 %v2811
        %v4098 = vunpack.c.l.b16 %v2812
        %v4099 = vunpack.c.h.b16 %v2812
        %v4100 = vunpack.c.l.b16 %v2813
        %v4101 = vunpack.c.h.b16 %v2813
        %v4102 = vunpack.c.l.b16 %v2814
        %v4103 = vunpack.c.h.b16 %v2814
        %v4104 = vunpack.c.l.b16 %v2815
        %v4105 = vunpack.c.h.b16 %v2815
        %v4106 = vunpack.c.l.b16 %v2816
        %v4107 = vunpack.c.h.b16 %v2816
        %v4108 = vunpack.c.l.b16 %v2817
        %v4109 = vunpack.c.h.b16 %v2817
        %v4110 = vunpack.c.l.b16 %v2818
        %v4111 = vunpack.c.h.b16 %v2818
        %v4112 = vunpack.c.l.b16 %v2819
        %v4113 = vunpack.c.h.b16 %v2819
        %v4114 = vunpack.c.l.b16 %v2820
        %v4115 = vunpack.c.h.b16 %v2820
        %v4116 = vunpack.c.l.b16 %v2821
        %v4117 = vunpack.c.h.b16 %v2821
        %v4118 = vunpack.c.l.b16 %v2822
        %v4119 = vunpack.c.h.b16 %v2822
        %v4120 = vunpack.c.l.b16 %v2823
        %v4121 = vunpack.c.h.b16 %v2823
        %v4122 = vunpack.c.l.b16 %v2824
        %v4123 = vunpack.c.h.b16 %v2824
        %v4124 = vunpack.c.l.b16 %v2825
        %v4125 = vunpack.c.h.b16 %v2825
        %v4126 = vunpack.c.l.b16 %v2826
        %v4127 = vunpack.c.h.b16 %v2826
        %v4128 = vunpack.c.l.b16 %v2827
        %v4129 = vunpack.c.h.b16 %v2827
        %v4130 = vunpack.c.l.b16 %v2828
        %v4131 = vunpack.c.h.b16 %v2828
        %v4132 = vunpack.c.l.b16 %v2829
        %v4133 = vunpack.c.h.b16 %v2829
        %v4134 = vunpack.c.l.b16 %v2830
        %v4135 = vunpack.c.h.b16 %v2830
        %v4136 = vunpack.c.l.b16 %v2831
        %v4137 = vunpack.c.h.b16 %v2831
        %v4138 = vunpack.c.l.b16 %v2832
        %v4139 = vunpack.c.h.b16 %v2832
        %v4140 = vunpack.c.l.b16 %v2833
        %v4141 = vunpack.c.h.b16 %v2833
        %v4142 = vunpack.c.l.b16 %v2834
        %v4143 = vunpack.c.h.b16 %v2834
        %v4144 = vunpack.c.l.b16 %v2835
        %v4145 = vunpack.c.h.b16 %v2835
        %v4146 = vunpack.c.l.b16 %v2836
        %v4147 = vunpack.c.h.b16 %v2836
        %v4148 = vunpack.c.l.b16 %v2837
        %v4149 = vunpack.c.h.b16 %v2837
        %v4150 = vunpack.c.l.b16 %v2838
        %v4151 = vunpack.c.h.b16 %v2838
        %v4152 = vunpack.c.l.b16 %v2839
        %v4153 = vunpack.c.h.b16 %v2839
        %v4154 = vunpack.c.l.b16 %v2840
        %v4155 = vunpack.c.h.b16 %v2840
        %v4156 = vunpack.c.l.b16 %v2841
        %v4157 = vunpack.c.h.b16 %v2841
        %v4158 = vunpack.c.l.b16 %v2842
        %v4159 = vunpack.c.h.b16 %v2842
        %v4160 = vunpack.c.l.b16 %v2843
        %v4161 = vunpack.c.h.b16 %v2843
        %v4162 = vunpack.c.l.b16 %v2844
        %v4163 = vunpack.c.h.b16 %v2844
        %v4164 = vunpack.c.l.b16 %v2845
        %v4165 = vunpack.c.h.b16 %v2845
        %v4166 = vunpack.c.l.b16 %v2846
        %v4167 = vunpack.c.h.b16 %v2846
        %v4168 = vunpack.c.l.b16 %v2847
        %v4169 = vunpack.c.h.b16 %v2847
        %v4170 = vunpack.c.l.b16 %v2848
        %v4171 = vunpack.c.h.b16 %v2848
        %v4172 = vunpack.c.l.b16 %v2849
        %v4173 = vunpack.c.h.b16 %v2849
        %v4174 = vunpack.c.l.b16 %v2850
        %v4175 = vunpack.c.h.b16 %v2850
        %v4176 = vunpack.c.l.b16 %v2851
        %v4177 = vunpack.c.h.b16 %v2851
        %v4178 = vunpack.c.l.b16 %v2852
        %v4179 = vunpack.c.h.b16 %v2852
        %v4180 = vunpack.c.l.b16 %v2853
        %v4181 = vunpack.c.h.b16 %v2853
        %v4182 = vunpack.c.l.b16 %v2854
        %v4183 = vunpack.c.h.b16 %v2854
        %v4184 = vunpack.c.l.b16 %v2855
        %v4185 = vunpack.c.h.b16 %v2855
        %v4186 = vunpack.c.l.b16 %v2856
        %v4187 = vunpack.c.h.b16 %v2856
        %v4188 = vunpack.c.l.b16 %v2857
        %v4189 = vunpack.c.h.b16 %v2857
        %v4190 = vunpack.c.l.b16 %v2858
        %v4191 = vunpack.c.h.b16 %v2858
        %v4192 = vunpack.c.l.b16 %v2859
        %v4193 = vunpack.c.h.b16 %v2859
        %v4194 = vunpack.c.l.b16 %v2860
        %v4195 = vunpack.c.h.b16 %v2860
        %v4196 = vunpack.c.l.b16 %v2861
        %v4197 = vunpack.c.h.b16 %v2861
        %v4198 = vunpack.c.l.b16 %v2862
        %v4199 = vunpack.c.h.b16 %v2862
        %v4200 = vunpack.c.l.b16 %v2863
        %v4201 = vunpack.c.h.b16 %v2863
        %v4202 = vunpack.c.l.b16 %v2864
        %v4203 = vunpack.c.h.b16 %v2864
        %v4204 = vunpack.c.l.b16 %v2865
        %v4205 = vunpack.c.h.b16 %v2865
        %v4206 = vunpack.c.l.b16 %v2866
        %v4207 = vunpack.c.h.b16 %v2866
        %v4208 = vunpack.c.l.b16 %v2867
        %v4209 = vunpack.c.h.b16 %v2867
        %v4210 = vunpack.c.l.b16 %v2868
        %v4211 = vunpack.c.h.b16 %v2868
        %v4212 = vunpack.c.l.b16 %v2869
        %v4213 = vunpack.c.h.b16 %v2869
        %v4214 = vunpack.c.l.b16 %v2870
        %v4215 = vunpack.c.h.b16 %v2870
        %v4216 = vunpack.c.l.b16 %v2871
        %v4217 = vunpack.c.h.b16 %v2871
        %v4218 = vunpack.c.l.b16 %v2872
        %v4219 = vunpack.c.h.b16 %v2872
        %v4220 = vunpack.c.l.b16 %v2873
        %v4221 = vunpack.c.h.b16 %v2873
        %v4222 = vunpack.c.l.b16 %v2874
        %v4223 = vunpack.c.h.b16 %v2874
        %v4224 = vunpack.c.l.b16 %v2875
        %v4225 = vunpack.c.h.b16 %v2875
        %v4226 = vunpack.c.l.b16 %v2876
        %v4227 = vunpack.c.h.b16 %v2876
        %v4228 = vunpack.c.l.b16 %v2877
        %v4229 = vunpack.c.h.b16 %v2877
        %v4230 = vunpack.c.l.b16 %v2878
        %v4231 = vunpack.c.h.b16 %v2878
        %v4232 = vunpack.c.l.b16 %v2879
        %v4233 = vunpack.c.h.b16 %v2879
        %v4234 = vunpack.c.l.b16 %v2880
        %v4235 = vunpack.c.h.b16 %v2880
        %v4236 = vunpack.c.l.b16 %v2881
        %v4237 = vunpack.c.h.b16 %v2881
        %v4238 = vunpack.c.l.b16 %v2882
        %v4239 = vunpack.c.h.b16 %v2882
        %v4240 = vunpack.c.l.b16 %v2883
        %v4241 = vunpack.c.h.b16 %v2883
        %v4242 = vunpack.c.l.b16 %v2884
        %v4243 = vunpack.c.h.b16 %v2884
        %v4244 = vunpack.c.l.b16 %v2885
        %v4245 = vunpack.c.h.b16 %v2885
        %v4246 = vunpack.c.l.b16 %v2886
        %v4247 = vunpack.c.h.b16 %v2886
        %v4248 = vunpack.c.l.b16 %v2887
        %v4249 = vunpack.c.h.b16 %v2887
        %v4250 = vunpack.c.l.b16 %v2888
        %v4251 = vunpack.c.h.b16 %v2888
        %v4252 = vunpack.c.l.b16 %v2889
        %v4253 = vunpack.c.h.b16 %v2889
        %v4254 = vunpack.c.l.b16 %v2890
        %v4255 = vunpack.c.h.b16 %v2890
        %v4256 = vunpack.c.l.b16 %v2891
        %v4257 = vunpack.c.h.b16 %v2891
        %v4258 = vunpack.c.l.b16 %v2892
        %v4259 = vunpack.c.h.b16 %v2892
        %v4260 = vunpack.c.l.b16 %v2893
        %v4261 = vunpack.c.h.b16 %v2893
        %v4262 = vunpack.c.l.b16 %v2894
        %v4263 = vunpack.c.h.b16 %v2894
        %v4264 = vunpack.c.l.b16 %v2895
        %v4265 = vunpack.c.h.b16 %v2895
        %v4266 = vunpack.c.l.b16 %v2896
        %v4267 = vunpack.c.h.b16 %v2896
        %v4268 = vunpack.c.l.b16 %v2897
        %v4269 = vunpack.c.h.b16 %v2897
        %v4270 = vunpack.c.l.b16 %v2898
        %v4271 = vunpack.c.h.b16 %v2898
        %v4272 = vunpack.c.l.b16 %v2899
        %v4273 = vunpack.c.h.b16 %v2899
        %v4274 = vunpack.c.l.b16 %v2900
        %v4275 = vunpack.c.h.b16 %v2900
        %v4276 = vunpack.c.l.b16 %v2901
        %v4277 = vunpack.c.h.b16 %v2901
        %v4278 = vunpack.c.l.b16 %v2902
        %v4279 = vunpack.c.h.b16 %v2902
        %v4280 = vunpack.c.l.b16 %v2903
        %v4281 = vunpack.c.h.b16 %v2903
        %v4282 = vunpack.c.l.b16 %v2904
        %v4283 = vunpack.c.h.b16 %v2904
        %v4284 = vunpack.c.l.b16 %v2905
        %v4285 = vunpack.c.h.b16 %v2905
        %v4286 = vunpack.c.l.b16 %v2906
        %v4287 = vunpack.c.h.b16 %v2906
        %v4288 = vunpack.c.l.b16 %v2907
        %v4289 = vunpack.c.h.b16 %v2907
        %v4290 = vunpack.c.l.b16 %v2908
        %v4291 = vunpack.c.h.b16 %v2908
        %v4292 = vunpack.c.l.b16 %v2909
        %v4293 = vunpack.c.h.b16 %v2909
        %v4294 = vunpack.c.l.b16 %v2910
        %v4295 = vunpack.c.h.b16 %v2910
        %v4296 = vunpack.c.l.b16 %v2911
        %v4297 = vunpack.c.h.b16 %v2911
        %v4298 = vunpack.c.l.b16 %v2912
        %v4299 = vunpack.c.h.b16 %v2912
        %v4300 = vunpack.c.l.b16 %v2913
        %v4301 = vunpack.c.h.b16 %v2913
        %v4302 = vunpack.c.l.b16 %v2914
        %v4303 = vunpack.c.h.b16 %v2914
        %v4304 = vunpack.c.l.b16 %v2915
        %v4305 = vunpack.c.h.b16 %v2915
        %v4306 = vunpack.c.l.b16 %v2916
        %v4307 = vunpack.c.h.b16 %v2916
        %v4308 = vunpack.c.l.b16 %v2917
        %v4309 = vunpack.c.h.b16 %v2917
        %v4310 = vunpack.c.l.b16 %v2918
        %v4311 = vunpack.c.h.b16 %v2918
        %v4312 = vunpack.c.l.b16 %v2919
        %v4313 = vunpack.c.h.b16 %v2919
        %v4314 = vunpack.c.l.b16 %v2920
        %v4315 = vunpack.c.h.b16 %v2920
        %v4316 = vunpack.c.l.b16 %v2921
        %v4317 = vunpack.c.h.b16 %v2921
        %v4318 = vunpack.c.l.b16 %v2922
        %v4319 = vunpack.c.h.b16 %v2922
        %v4320 = vunpack.c.l.b16 %v2923
        %v4321 = vunpack.c.h.b16 %v2923
        %v4322 = vunpack.c.l.b16 %v2924
        %v4323 = vunpack.c.h.b16 %v2924
        %v4324 = vunpack.c.l.b16 %v2925
        %v4325 = vunpack.c.h.b16 %v2925
        %v4326 = vunpack.c.l.b16 %v2926
        %v4327 = vunpack.c.h.b16 %v2926
        %v4328 = vunpack.c.l.b16 %v2927
        %v4329 = vunpack.c.h.b16 %v2927
        %v4330 = vunpack.c.l.b16 %v2928
        %v4331 = vunpack.c.h.b16 %v2928
        %v4332 = vunpack.c.l.b16 %v2929
        %v4333 = vunpack.c.h.b16 %v2929
        %v4334 = vunpack.c.l.b16 %v2930
        %v4335 = vunpack.c.h.b16 %v2930
        %v4336 = vunpack.c.l.b16 %v2931
        %v4337 = vunpack.c.h.b16 %v2931
        %v4338 = vunpack.c.l.b16 %v2932
        %v4339 = vunpack.c.h.b16 %v2932
        %v4340 = vunpack.c.l.b16 %v2933
        %v4341 = vunpack.c.h.b16 %v2933
        %v4342 = vunpack.c.l.b16 %v2934
        %v4343 = vunpack.c.h.b16 %v2934
        %v4344 = vunpack.c.l.b16 %v2935
        %v4345 = vunpack.c.h.b16 %v2935
        %v4346 = vunpack.c.l.b16 %v2936
        %v4347 = vunpack.c.h.b16 %v2936
        %v4348 = vunpack.c.l.b16 %v2937
        %v4349 = vunpack.c.h.b16 %v2937
        %v4350 = vunpack.c.l.b16 %v2938
        %v4351 = vunpack.c.h.b16 %v2938
        %v4352 = vunpack.c.l.b16 %v2939
        %v4353 = vunpack.c.h.b16 %v2939
        %v4354 = vunpack.c.l.b16 %v2940
        %v4355 = vunpack.c.h.b16 %v2940
        %v4356 = vunpack.c.l.b16 %v2941
        %v4357 = vunpack.c.h.b16 %v2941
        %v4358 = vunpack.c.l.b16 %v2942
        %v4359 = vunpack.c.h.b16 %v2942
        %v4360 = vunpack.c.l.b16 %v2943
        %v4361 = vunpack.c.h.b16 %v2943
        %v4362 = vunpack.c.l.b16 %v2944
        %v4363 = vunpack.c.h.b16 %v2944
        %v4364 = vunpack.c.l.b16 %v2945
        %v4365 = vunpack.c.h.b16 %v2945
        %v4366 = vunpack.c.l.b16 %v2946
        %v4367 = vunpack.c.h.b16 %v2946
        %v4368 = vunpack.c.l.b16 %v2947
        %v4369 = vunpack.c.h.b16 %v2947
        %v4370 = vunpack.c.l.b16 %v2948
        %v4371 = vunpack.c.h.b16 %v2948
        %v4372 = vunpack.c.l.b16 %v2949
        %v4373 = vunpack.c.h.b16 %v2949
        %v4374 = vunpack.c.l.b16 %v2950
        %v4375 = vunpack.c.h.b16 %v2950
        %v4376 = vunpack.c.l.b16 %v2951
        %v4377 = vunpack.c.h.b16 %v2951
        %v4378 = vunpack.c.l.b16 %v2952
        %v4379 = vunpack.c.h.b16 %v2952
        %v4380 = vunpack.c.l.b16 %v2953
        %v4381 = vunpack.c.h.b16 %v2953
        %v4382 = vunpack.c.l.b16 %v2954
        %v4383 = vunpack.c.h.b16 %v2954
        %v4384 = vunpack.c.l.b16 %v2955
        %v4385 = vunpack.c.h.b16 %v2955
        %v4386 = vunpack.c.l.b16 %v2956
        %v4387 = vunpack.c.h.b16 %v2956
        %v4388 = vunpack.c.l.b16 %v2957
        %v4389 = vunpack.c.h.b16 %v2957
        %v4390 = vunpack.c.l.b16 %v2958
        %v4391 = vunpack.c.h.b16 %v2958
        %v4392 = vunpack.c.l.b16 %v2959
        %v4393 = vunpack.c.h.b16 %v2959
        %v4394 = vunpack.c.l.b16 %v2960
        %v4395 = vunpack.c.h.b16 %v2960
        %v4396 = vunpack.c.l.b16 %v2961
        %v4397 = vunpack.c.h.b16 %v2961
        %v4398 = vunpack.c.l.b16 %v2962
        %v4399 = vunpack.c.h.b16 %v2962
        %v4400 = vunpack.c.l.b16 %v2963
        %v4401 = vunpack.c.h.b16 %v2963
        %v4402 = vunpack.c.l.b16 %v2964
        %v4403 = vunpack.c.h.b16 %v2964
        %v4404 = vunpack.c.l.b16 %v2965
        %v4405 = vunpack.c.h.b16 %v2965
        %v4406 = vunpack.c.l.b16 %v2966
        %v4407 = vunpack.c.h.b16 %v2966
        %v4408 = vunpack.c.l.b16 %v2967
        %v4409 = vunpack.c.h.b16 %v2967
        %v4410 = vunpack.c.l.b16 %v2968
        %v4411 = vunpack.c.h.b16 %v2968
        %v4412 = vunpack.c.l.b16 %v2969
        %v4413 = vunpack.c.h.b16 %v2969
        %v4414 = vunpack.c.l.b16 %v2970
        %v4415 = vunpack.c.h.b16 %v2970
        %v4416 = vunpack.c.l.b16 %v2971
        %v4417 = vunpack.c.h.b16 %v2971
        %v4418 = vunpack.c.l.b16 %v2972
        %v4419 = vunpack.c.h.b16 %v2972
        %v4420 = vunpack.c.l.b16 %v2973
        %v4421 = vunpack.c.h.b16 %v2973
        %v4422 = vunpack.c.l.b16 %v2974
        %v4423 = vunpack.c.h.b16 %v2974
        %v4424 = vunpack.c.l.b16 %v2975
        %v4425 = vunpack.c.h.b16 %v2975
        %v4426 = vunpack.c.l.b16 %v2976
        %v4427 = vunpack.c.h.b16 %v2976
        %v4428 = vunpack.c.l.b16 %v2977
        %v4429 = vunpack.c.h.b16 %v2977
        %v4430 = vunpack.c.l.b16 %v2978
        %v4431 = vunpack.c.h.b16 %v2978
        %v4432 = vunpack.c.l.b16 %v2979
        %v4433 = vunpack.c.h.b16 %v2979
        %v4434 = vunpack.c.l.b16 %v2980
        %v4435 = vunpack.c.h.b16 %v2980
        %v4436 = vunpack.c.l.b16 %v2981
        %v4437 = vunpack.c.h.b16 %v2981
        %v4438 = vunpack.c.l.b16 %v2982
        %v4439 = vunpack.c.h.b16 %v2982
        %v4440 = vunpack.c.l.b16 %v2983
        %v4441 = vunpack.c.h.b16 %v2983
        %v4442 = vunpack.c.l.b16 %v2984
        %v4443 = vunpack.c.h.b16 %v2984
        %v4444 = vunpack.c.l.b16 %v2985
        %v4445 = vunpack.c.h.b16 %v2985
        %v4446 = vunpack.c.l.b16 %v2986
        %v4447 = vunpack.c.h.b16 %v2986
        %v4448 = vunpack.c.l.b16 %v2987
        %v4449 = vunpack.c.h.b16 %v2987
        %v4450 = vunpack.c.l.b16 %v2988
        %v4451 = vunpack.c.h.b16 %v2988
        %v4452 = vunpack.c.l.b16 %v2989
        %v4453 = vunpack.c.h.b16 %v2989
        %v4454 = vunpack.c.l.b16 %v2990
        %v4455 = vunpack.c.h.b16 %v2990
        %v4456 = vunpack.c.l.b16 %v2991
        %v4457 = vunpack.c.h.b16 %v2991
        %v4458 = vunpack.c.l.b16 %v2992
        %v4459 = vunpack.c.h.b16 %v2992
        %v4460 = vunpack.c.l.b16 %v2993
        %v4461 = vunpack.c.h.b16 %v2993
        %v4462 = vunpack.c.l.b16 %v2994
        %v4463 = vunpack.c.h.b16 %v2994
        %v4464 = vunpack.c.l.b16 %v2995
        %v4465 = vunpack.c.h.b16 %v2995
        %v4466 = vunpack.c.l.b16 %v2996
        %v4467 = vunpack.c.h.b16 %v2996
        %v4468 = vunpack.c.l.b16 %v2997
        %v4469 = vunpack.c.h.b16 %v2997
        %v4470 = vunpack.c.l.b16 %v2998
        %v4471 = vunpack.c.h.b16 %v2998
        %v4472 = vunpack.c.l.b16 %v2999
        %v4473 = vunpack.c.h.b16 %v2999
        %v4474 = vunpack.c.l.b16 %v3000
        %v4475 = vunpack.c.h.b16 %v3000
        %v4476 = vunpack.c.l.b16 %v3001
        %v4477 = vunpack.c.h.b16 %v3001
        %v4478 = vunpack.c.l.b16 %v3002
        %v4479 = vunpack.c.h.b16 %v3002
        %v4480 = vunpack.c.l.b16 %v3003
        %v4481 = vunpack.c.h.b16 %v3003
        %v4482 = vunpack.c.l.b16 %v3004
        %v4483 = vunpack.c.h.b16 %v3004
        %v4484 = vunpack.c.l.b16 %v3005
        %v4485 = vunpack.c.h.b16 %v3005
        %v4486 = vunpack.c.l.b16 %v3006
        %v4487 = vunpack.c.h.b16 %v3006
        %v4488 = vunpack.c.l.b16 %v3007
        %v4489 = vunpack.c.h.b16 %v3007
        %v4490 = vunpack.c.l.b16 %v3008
        %v4491 = vunpack.c.h.b16 %v3008
        %v4492 = vunpack.c.l.b16 %v3009
        %v4493 = vunpack.c.h.b16 %v3009
        %v4494 = vunpack.c.l.b16 %v3010
        %v4495 = vunpack.c.h.b16 %v3010
        %v4496 = vunpack.c.l.b16 %v3011
        %v4497 = vunpack.c.h.b16 %v3011
        %v4498 = vunpack.c.l.b16 %v3012
        %v4499 = vunpack.c.h.b16 %v3012
        %v4500 = vunpack.c.l.b16 %v3013
        %v4501 = vunpack.c.h.b16 %v3013
        %v4502 = vunpack.c.l.b16 %v3014
        %v4503 = vunpack.c.h.b16 %v3014
        %v4504 = vunpack.c.l.b16 %v3015
        %v4505 = vunpack.c.h.b16 %v3015
        %v4506 = vunpack.c.l.b16 %v3016
        %v4507 = vunpack.c.h.b16 %v3016
        %v4508 = vunpack.c.l.b16 %v3017
        %v4509 = vunpack.c.h.b16 %v3017
        %v4510 = vunpack.c.l.b16 %v3018
        %v4511 = vunpack.c.h.b16 %v3018
        %v4512 = vunpack.c.l.b16 %v3019
        %v4513 = vunpack.c.h.b16 %v3019
        %v4514 = vunpack.c.l.b16 %v3020
        %v4515 = vunpack.c.h.b16 %v3020
        %v4516 = vunpack.c.l.b16 %v3021
        %v4517 = vunpack.c.h.b16 %v3021
        %v4518 = vunpack.c.l.b16 %v3022
        %v4519 = vunpack.c.h.b16 %v3022
        %v4520 = vunpack.c.l.b16 %v3023
        %v4521 = vunpack.c.h.b16 %v3023
        %v4522 = vunpack.c.l.b16 %v3024
        %v4523 = vunpack.c.h.b16 %v3024
        %v4524 = vunpack.c.l.b16 %v3025
        %v4525 = vunpack.c.h.b16 %v3025
        %v4526 = vunpack.c.l.b16 %v3026
        %v4527 = vunpack.c.h.b16 %v3026
        %v4528 = vunpack.c.l.b16 %v3027
        %v4529 = vunpack.c.h.b16 %v3027
        %v4530 = vunpack.c.l.b16 %v3028
        %v4531 = vunpack.c.h.b16 %v3028
        %v4532 = vunpack.c.l.b16 %v3029
        %v4533 = vunpack.c.h.b16 %v3029
        %v4534 = vunpack.c.l.b16 %v3030
        %v4535 = vunpack.c.h.b16 %v3030
        %v4536 = vunpack.c.l.b16 %v3031
        %v4537 = vunpack.c.h.b16 %v3031
        %v4538 = vunpack.c.l.b16 %v3032
        %v4539 = vunpack.c.h.b16 %v3032
        %v4540 = vunpack.c.l.b16 %v3033
        %v4541 = vunpack.c.h.b16 %v3033
        %v4542 = vunpack.c.l.b16 %v3034
        %v4543 = vunpack.c.h.b16 %v3034
        %v4544 = vunpack.c.l.b16 %v3035
        %v4545 = vunpack.c.h.b16 %v3035
        %v4546 = vunpack.c.l.b16 %v3036
        %v4547 = vunpack.c.h.b16 %v3036
        %v4548 = vunpack.c.l.b16 %v3037
        %v4549 = vunpack.c.h.b16 %v3037
        %v4550 = vunpack.c.l.b16 %v3038
        %v4551 = vunpack.c.h.b16 %v3038
        %v4552 = vunpack.c.l.b16 %v3039
        %v4553 = vunpack.c.h.b16 %v3039
        %v4554 = vunpack.c.l.b16 %v3040
        %v4555 = vunpack.c.h.b16 %v3040
        %v4556 = vunpack.c.l.b16 %v3041
        %v4557 = vunpack.c.h.b16 %v3041
        %v4558 = vunpack.c.l.b16 %v3042
        %v4559 = vunpack.c.h.b16 %v3042
        %v4560 = vunpack.c.l.b16 %v3043
        %v4561 = vunpack.c.h.b16 %v3043
        %v4562 = vunpack.c.l.b16 %v3044
        %v4563 = vunpack.c.h.b16 %v3044
        %v4564 = vunpack.c.l.b16 %v3045
        %v4565 = vunpack.c.h.b16 %v3045
        %v4566 = vunpack.c.l.b16 %v3046
        %v4567 = vunpack.c.h.b16 %v3046
        %v4568 = vunpack.c.l.b16 %v3047
        %v4569 = vunpack.c.h.b16 %v3047
        %v4570 = vunpack.c.l.b16 %v3048
        %v4571 = vunpack.c.h.b16 %v3048
        %v4572 = vunpack.c.l.b16 %v3049
        %v4573 = vunpack.c.h.b16 %v3049
        %v4574 = vunpack.c.l.b16 %v3050
        %v4575 = vunpack.c.h.b16 %v3050
        %v4576 = vunpack.c.l.b16 %v3051
        %v4577 = vunpack.c.h.b16 %v3051
        %v4578 = vunpack.c.l.b16 %v3052
        %v4579 = vunpack.c.h.b16 %v3052
        %v4580 = vunpack.c.l.b16 %v3053
        %v4581 = vunpack.c.h.b16 %v3053
        %v4582 = vunpack.c.l.b16 %v3054
        %v4583 = vunpack.c.h.b16 %v3054
        %v4584 = vunpack.c.l.b16 %v3055
        %v4585 = vunpack.c.h.b16 %v3055
        %v4586 = vunpack.c.l.b16 %v3056
        %v4587 = vunpack.c.h.b16 %v3056
        %v4588 = vunpack.c.l.b16 %v3057
        %v4589 = vunpack.c.h.b16 %v3057
        %v4590 = vunpack.c.l.b16 %v3058
        %v4591 = vunpack.c.h.b16 %v3058
        %v4592 = vunpack.c.l.b16 %v3059
        %v4593 = vunpack.c.h.b16 %v3059
        %v4594 = vunpack.c.l.b16 %v3060
        %v4595 = vunpack.c.h.b16 %v3060
        %v4596 = vunpack.c.l.b16 %v3061
        %v4597 = vunpack.c.h.b16 %v3061
        %v4598 = vunpack.c.l.b16 %v3062
        %v4599 = vunpack.c.h.b16 %v3062
        %v4600 = vunpack.c.l.b16 %v3063
        %v4601 = vunpack.c.h.b16 %v3063
        %v4602 = vunpack.c.l.b16 %v3064
        %v4603 = vunpack.c.h.b16 %v3064
        %v4604 = vunpack.c.l.b16 %v3065
        %v4605 = vunpack.c.h.b16 %v3065
        %v4606 = vunpack.c.l.b16 %v3066
        %v4607 = vunpack.c.h.b16 %v3066
        %v4608 = vunpack.c.l.b16 %v3067
        %v4609 = vunpack.c.h.b16 %v3067
        %v4610 = vunpack.c.l.b16 %v3068
        %v4611 = vunpack.c.h.b16 %v3068
        %v4612 = vunpack.c.l.b16 %v3069
        %v4613 = vunpack.c.h.b16 %v3069
        %v4614 = vunpack.c.l.b16 %v3070
        %v4615 = vunpack.c.h.b16 %v3070
        %v4616 = vunpack.c.l.b16 %v3071
        %v4617 = vunpack.c.h.b16 %v3071
        %v4618 = vunpack.c.l.b16 %v3072
        %v4619 = vunpack.c.h.b16 %v3072
        %v4620 = vunpack.c.l.b16 %v3073
        %v4621 = vunpack.c.h.b16 %v3073
        %v4622 = vunpack.c.l.b16 %v3074
        %v4623 = vunpack.c.h.b16 %v3074
        %v4624 = vunpack.c.l.b16 %v3075
        %v4625 = vunpack.c.h.b16 %v3075
        %v4626 = vunpack.c.l.b16 %v3076
        %v4627 = vunpack.c.h.b16 %v3076
        %v4628 = vunpack.c.l.b16 %v3077
        %v4629 = vunpack.c.h.b16 %v3077
        %v4630 = vunpack.c.l.b16 %v3078
        %v4631 = vunpack.c.h.b16 %v3078
        %v4632 = vunpack.c.l.b16 %v3079
        %v4633 = vunpack.c.h.b16 %v3079
        %v4634 = vunpack.c.l.b16 %v3080
        %v4635 = vunpack.c.h.b16 %v3080
        %v4636 = vunpack.c.l.b16 %v3081
        %v4637 = vunpack.c.h.b16 %v3081
        %v4638 = vunpack.c.l.b16 %v3082
        %v4639 = vunpack.c.h.b16 %v3082
        %v4640 = vunpack.c.l.b16 %v3083
        %v4641 = vunpack.c.h.b16 %v3083
        %v4642 = vunpack.c.l.b16 %v3084
        %v4643 = vunpack.c.h.b16 %v3084
        %v4644 = vunpack.c.l.b16 %v3085
        %v4645 = vunpack.c.h.b16 %v3085
        %v4646 = vunpack.c.l.b16 %v3086
        %v4647 = vunpack.c.h.b16 %v3086
        %v4648 = vunpack.c.l.b16 %v3087
        %v4649 = vunpack.c.h.b16 %v3087
        %v4650 = vunpack.c.l.b16 %v3088
        %v4651 = vunpack.c.h.b16 %v3088
        %v4652 = vunpack.c.l.b16 %v3089
        %v4653 = vunpack.c.h.b16 %v3089
        %v4654 = vunpack.c.l.b16 %v3090
        %v4655 = vunpack.c.h.b16 %v3090
        %v4656 = vunpack.c.l.b16 %v3091
        %v4657 = vunpack.c.h.b16 %v3091
        %v4658 = vunpack.c.l.b16 %v3092
        %v4659 = vunpack.c.h.b16 %v3092
        %v4660 = vunpack.c.l.b16 %v3093
        %v4661 = vunpack.c.h.b16 %v3093
        %v4662 = vunpack.c.l.b16 %v3094
        %v4663 = vunpack.c.h.b16 %v3094
        %v4664 = vunpack.c.l.b16 %v3095
        %v4665 = vunpack.c.h.b16 %v3095
        %v4666 = vunpack.c.l.b16 %v3096
        %v4667 = vunpack.c.h.b16 %v3096
        %v4668 = vunpack.c.l.b16 %v3097
        %v4669 = vunpack.c.h.b16 %v3097
        %v4670 = vunpack.c.l.b16 %v3098
        %v4671 = vunpack.c.h.b16 %v3098
        %v4672 = vunpack.c.l.b16 %v3099
        %v4673 = vunpack.c.h.b16 %v3099
        %v4674 = vunpack.c.l.b16 %v3100
        %v4675 = vunpack.c.h.b16 %v3100
        %v4676 = vunpack.c.l.b16 %v3101
        %v4677 = vunpack.c.h.b16 %v3101
        %v4678 = vunpack.c.l.b16 %v3102
        %v4679 = vunpack.c.h.b16 %v3102
        %v4680 = vunpack.c.l.b16 %v3103
        %v4681 = vunpack.c.h.b16 %v3103
        %v4682 = vpack.c.b16 %v3666, %v3658
        %v4683 = vpack.c.b16 %v3667, %v3659
        %v4684 = vpack.c.b16 %v3668, %v3660
        %v4685 = vpack.c.b16 %v3669, %v3661
        %v4686 = vpack.c.b16 %v3670, %v3662
        %v4687 = vpack.c.b16 %v3671, %v3663
        %v4688 = vpack.c.b16 %v3672, %v3664
        %v4689 = vpack.c.b16 %v3673, %v3665
        %v4690 = vpack.c.b16 %v3682, %v3674
        %v4691 = vpack.c.b16 %v3683, %v3675
        %v4692 = vpack.c.b16 %v3684, %v3676
        %v4693 = vpack.c.b16 %v3685, %v3677
        %v4694 = vpack.c.b16 %v3686, %v3678
        %v4695 = vpack.c.b16 %v3687, %v3679
        %v4696 = vpack.c.b16 %v3688, %v3680
        %v4697 = vpack.c.b16 %v3689, %v3681
        %v4698 = vpack.c.b16 %v3698, %v3690
        %v4699 = vpack.c.b16 %v3699, %v3691
        %v4700 = vpack.c.b16 %v3700, %v3692
        %v4701 = vpack.c.b16 %v3701, %v3693
        %v4702 = vpack.c.b16 %v3702, %v3694
        %v4703 = vpack.c.b16 %v3703, %v3695
        %v4704 = vpack.c.b16 %v3704, %v3696
        %v4705 = vpack.c.b16 %v3705, %v3697
        %v4706 = vpack.c.b16 %v3714, %v3706
        %v4707 = vpack.c.b16 %v3715, %v3707
        %v4708 = vpack.c.b16 %v3716, %v3708
        %v4709 = vpack.c.b16 %v3717, %v3709
        %v4710 = vpack.c.b16 %v3718, %v3710
        %v4711 = vpack.c.b16 %v3719, %v3711
        %v4712 = vpack.c.b16 %v3720, %v3712
        %v4713 = vpack.c.b16 %v3721, %v3713
        %v4714 = vpack.c.b16 %v3730, %v3722
        %v4715 = vpack.c.b16 %v3731, %v3723
        %v4716 = vpack.c.b16 %v3732, %v3724
        %v4717 = vpack.c.b16 %v3733, %v3725
        %v4718 = vpack.c.b16 %v3734, %v3726
        %v4719 = vpack.c.b16 %v3735, %v3727
        %v4720 = vpack.c.b16 %v3736, %v3728
        %v4721 = vpack.c.b16 %v3737, %v3729
        %v4722 = vpack.c.b16 %v3746, %v3738
        %v4723 = vpack.c.b16 %v3747, %v3739
        %v4724 = vpack.c.b16 %v3748, %v3740
        %v4725 = vpack.c.b16 %v3749, %v3741
        %v4726 = vpack.c.b16 %v3750, %v3742
        %v4727 = vpack.c.b16 %v3751, %v3743
        %v4728 = vpack.c.b16 %v3752, %v3744
        %v4729 = vpack.c.b16 %v3753, %v3745
        %v4730 = vpack.c.b16 %v3762, %v3754
        %v4731 = vpack.c.b16 %v3763, %v3755
        %v4732 = vpack.c.b16 %v3764, %v3756
        %v4733 = vpack.c.b16 %v3765, %v3757
        %v4734 = vpack.c.b16 %v3766, %v3758
        %v4735 = vpack.c.b16 %v3767, %v3759
        %v4736 = vpack.c.b16 %v3768, %v3760
        %v4737 = vpack.c.b16 %v3769, %v3761
        %v4738 = vpack.c.b16 %v3778, %v3770
        %v4739 = vpack.c.b16 %v3779, %v3771
        %v4740 = vpack.c.b16 %v3780, %v3772
        %v4741 = vpack.c.b16 %v3781, %v3773
        %v4742 = vpack.c.b16 %v3782, %v3774
        %v4743 = vpack.c.b16 %v3783, %v3775
        %v4744 = vpack.c.b16 %v3784, %v3776
        %v4745 = vpack.c.b16 %v3785, %v3777
        %v4746 = vpack.c.b16 %v3794, %v3786
        %v4747 = vpack.c.b16 %v3795, %v3787
        %v4748 = vpack.c.b16 %v3796, %v3788
        %v4749 = vpack.c.b16 %v3797, %v3789
        %v4750 = vpack.c.b16 %v3798, %v3790
        %v4751 = vpack.c.b16 %v3799, %v3791
        %v4752 = vpack.c.b16 %v3800, %v3792
        %v4753 = vpack.c.b16 %v3801, %v3793
        %v4754 = vpack.c.b16 %v3810, %v3802
        %v4755 = vpack.c.b16 %v3811, %v3803
        %v4756 = vpack.c.b16 %v3812, %v3804
        %v4757 = vpack.c.b16 %v3813, %v3805
        %v4758 = vpack.c.b16 %v3814, %v3806
        %v4759 = vpack.c.b16 %v3815, %v3807
        %v4760 = vpack.c.b16 %v3816, %v3808
        %v4761 = vpack.c.b16 %v3817, %v3809
        %v4762 = vpack.c.b16 %v3826, %v3818
        %v4763 = vpack.c.b16 %v3827, %v3819
        %v4764 = vpack.c.b16 %v3828, %v3820
        %v4765 = vpack.c.b16 %v3829, %v3821
        %v4766 = vpack.c.b16 %v3830, %v3822
        %v4767 = vpack.c.b16 %v3831, %v3823
        %v4768 = vpack.c.b16 %v3832, %v3824
        %v4769 = vpack.c.b16 %v3833, %v3825
        %v4770 = vpack.c.b16 %v3842, %v3834
        %v4771 = vpack.c.b16 %v3843, %v3835
        %v4772 = vpack.c.b16 %v3844, %v3836
        %v4773 = vpack.c.b16 %v3845, %v3837
        %v4774 = vpack.c.b16 %v3846, %v3838
        %v4775 = vpack.c.b16 %v3847, %v3839
        %v4776 = vpack.c.b16 %v3848, %v3840
        %v4777 = vpack.c.b16 %v3849, %v3841
        %v4778 = vpack.c.b16 %v3858, %v3850
        %v4779 = vpack.c.b16 %v3859, %v3851
        %v4780 = vpack.c.b16 %v3860, %v3852
        %v4781 = vpack.c.b16 %v3861, %v3853
        %v4782 = vpack.c.b16 %v3862, %v3854
        %v4783 = vpack.c.b16 %v3863, %v3855
        %v4784 = vpack.c.b16 %v3864, %v3856
        %v4785 = vpack.c.b16 %v3865, %v3857
        %v4786 = vpack.c.b16 %v3874, %v3866
        %v4787 = vpack.c.b16 %v3875, %v3867
        %v4788 = vpack.c.b16 %v3876, %v3868
        %v4789 = vpack.c.b16 %v3877, %v3869
        %v4790 = vpack.c.b16 %v3878, %v3870
        %v4791 = vpack.c.b16 %v3879, %v3871
        %v4792 = vpack.c.b16 %v3880, %v3872
        %v4793 = vpack.c.b16 %v3881, %v3873
        %v4794 = vpack.c.b16 %v3890, %v3882
        %v4795 = vpack.c.b16 %v3891, %v3883
        %v4796 = vpack.c.b16 %v3892, %v3884
        %v4797 = vpack.c.b16 %v3893, %v3885
        %v4798 = vpack.c.b16 %v3894, %v3886
        %v4799 = vpack.c.b16 %v3895, %v3887
        %v4800 = vpack.c.b16 %v3896, %v3888
        %v4801 = vpack.c.b16 %v3897, %v3889
        %v4802 = vpack.c.b16 %v3906, %v3898
        %v4803 = vpack.c.b16 %v3907, %v3899
        %v4804 = vpack.c.b16 %v3908, %v3900
        %v4805 = vpack.c.b16 %v3909, %v3901
        %v4806 = vpack.c.b16 %v3910, %v3902
        %v4807 = vpack.c.b16 %v3911, %v3903
        %v4808 = vpack.c.b16 %v3912, %v3904
        %v4809 = vpack.c.b16 %v3913, %v3905
        %v4810 = vpack.c.b16 %v3922, %v3914
        %v4811 = vpack.c.b16 %v3923, %v3915
        %v4812 = vpack.c.b16 %v3924, %v3916
        %v4813 = vpack.c.b16 %v3925, %v3917
        %v4814 = vpack.c.b16 %v3926, %v3918
        %v4815 = vpack.c.b16 %v3927, %v3919
        %v4816 = vpack.c.b16 %v3928, %v3920
        %v4817 = vpack.c.b16 %v3929, %v3921
        %v4818 = vpack.c.b16 %v3938, %v3930
        %v4819 = vpack.c.b16 %v3939, %v3931
        %v4820 = vpack.c.b16 %v3940, %v3932
        %v4821 = vpack.c.b16 %v3941, %v3933
        %v4822 = vpack.c.b16 %v3942, %v3934
        %v4823 = vpack.c.b16 %v3943, %v3935
        %v4824 = vpack.c.b16 %v3944, %v3936
        %v4825 = vpack.c.b16 %v3945, %v3937
        %v4826 = vpack.c.b16 %v3954, %v3946
        %v4827 = vpack.c.b16 %v3955, %v3947
        %v4828 = vpack.c.b16 %v3956, %v3948
        %v4829 = vpack.c.b16 %v3957, %v3949
        %v4830 = vpack.c.b16 %v3958, %v3950
        %v4831 = vpack.c.b16 %v3959, %v3951
        %v4832 = vpack.c.b16 %v3960, %v3952
        %v4833 = vpack.c.b16 %v3961, %v3953
        %v4834 = vpack.c.b16 %v3970, %v3962
        %v4835 = vpack.c.b16 %v3971, %v3963
        %v4836 = vpack.c.b16 %v3972, %v3964
        %v4837 = vpack.c.b16 %v3973, %v3965
        %v4838 = vpack.c.b16 %v3974, %v3966
        %v4839 = vpack.c.b16 %v3975, %v3967
        %v4840 = vpack.c.b16 %v3976, %v3968
        %v4841 = vpack.c.b16 %v3977, %v3969
        %v4842 = vpack.c.b16 %v3986, %v3978
        %v4843 = vpack.c.b16 %v3987, %v3979
        %v4844 = vpack.c.b16 %v3988, %v3980
        %v4845 = vpack.c.b16 %v3989, %v3981
        %v4846 = vpack.c.b16 %v3990, %v3982
        %v4847 = vpack.c.b16 %v3991, %v3983
        %v4848 = vpack.c.b16 %v3992, %v3984
        %v4849 = vpack.c.b16 %v3993, %v3985
        %v4850 = vpack.c.b16 %v4002, %v3994
        %v4851 = vpack.c.b16 %v4003, %v3995
        %v4852 = vpack.c.b16 %v4004, %v3996
        %v4853 = vpack.c.b16 %v4005, %v3997
        %v4854 = vpack.c.b16 %v4006, %v3998
        %v4855 = vpack.c.b16 %v4007, %v3999
        %v4856 = vpack.c.b16 %v4008, %v4000
        %v4857 = vpack.c.b16 %v4009, %v4001
        %v4858 = vpack.c.b16 %v4018, %v4010
        %v4859 = vpack.c.b16 %v4019, %v4011
        %v4860 = vpack.c.b16 %v4020, %v4012
        %v4861 = vpack.c.b16 %v4021, %v4013
        %v4862 = vpack.c.b16 %v4022, %v4014
        %v4863 = vpack.c.b16 %v4023, %v4015
        %v4864 = vpack.c.b16 %v4024, %v4016
        %v4865 = vpack.c.b16 %v4025, %v4017
        %v4866 = vpack.c.b16 %v4034, %v4026
        %v4867 = vpack.c.b16 %v4035, %v4027
        %v4868 = vpack.c.b16 %v4036, %v4028
        %v4869 = vpack.c.b16 %v4037, %v4029
        %v4870 = vpack.c.b16 %v4038, %v4030
        %v4871 = vpack.c.b16 %v4039, %v4031
        %v4872 = vpack.c.b16 %v4040, %v4032
        %v4873 = vpack.c.b16 %v4041, %v4033
        %v4874 = vpack.c.b16 %v4050, %v4042
        %v4875 = vpack.c.b16 %v4051, %v4043
        %v4876 = vpack.c.b16 %v4052, %v4044
        %v4877 = vpack.c.b16 %v4053, %v4045
        %v4878 = vpack.c.b16 %v4054, %v4046
        %v4879 = vpack.c.b16 %v4055, %v4047
        %v4880 = vpack.c.b16 %v4056, %v4048
        %v4881 = vpack.c.b16 %v4057, %v4049
        %v4882 = vpack.c.b16 %v4066, %v4058
        %v4883 = vpack.c.b16 %v4067, %v4059
        %v4884 = vpack.c.b16 %v4068, %v4060
        %v4885 = vpack.c.b16 %v4069, %v4061
        %v4886 = vpack.c.b16 %v4070, %v4062
        %v4887 = vpack.c.b16 %v4071, %v4063
        %v4888 = vpack.c.b16 %v4072, %v4064
        %v4889 = vpack.c.b16 %v4073, %v4065
        %v4890 = vpack.c.b16 %v4082, %v4074
        %v4891 = vpack.c.b16 %v4083, %v4075
        %v4892 = vpack.c.b16 %v4084, %v4076
        %v4893 = vpack.c.b16 %v4085, %v4077
        %v4894 = vpack.c.b16 %v4086, %v4078
        %v4895 = vpack.c.b16 %v4087, %v4079
        %v4896 = vpack.c.b16 %v4088, %v4080
        %v4897 = vpack.c.b16 %v4089, %v4081
        %v4898 = vpack.c.b16 %v4098, %v4090
        %v4899 = vpack.c.b16 %v4099, %v4091
        %v4900 = vpack.c.b16 %v4100, %v4092
        %v4901 = vpack.c.b16 %v4101, %v4093
        %v4902 = vpack.c.b16 %v4102, %v4094
        %v4903 = vpack.c.b16 %v4103, %v4095
        %v4904 = vpack.c.b16 %v4104, %v4096
        %v4905 = vpack.c.b16 %v4105, %v4097
        %v4906 = vpack.c.b16 %v4114, %v4106
        %v4907 = vpack.c.b16 %v4115, %v4107
        %v4908 = vpack.c.b16 %v4116, %v4108
        %v4909 = vpack.c.b16 %v4117, %v4109
        %v4910 = vpack.c.b16 %v4118, %v4110
        %v4911 = vpack.c.b16 %v4119, %v4111
        %v4912 = vpack.c.b16 %v4120, %v4112
        %v4913 = vpack.c.b16 %v4121, %v4113
        %v4914 = vpack.c.b16 %v4130, %v4122
        %v4915 = vpack.c.b16 %v4131, %v4123
        %v4916 = vpack.c.b16 %v4132, %v4124
        %v4917 = vpack.c.b16 %v4133, %v4125
        %v4918 = vpack.c.b16 %v4134, %v4126
        %v4919 = vpack.c.b16 %v4135, %v4127
        %v4920 = vpack.c.b16 %v4136, %v4128
        %v4921 = vpack.c.b16 %v4137, %v4129
        %v4922 = vpack.c.b16 %v4146, %v4138
        %v4923 = vpack.c.b16 %v4147, %v4139
        %v4924 = vpack.c.b16 %v4148, %v4140
        %v4925 = vpack.c.b16 %v4149, %v4141
        %v4926 = vpack.c.b16 %v4150, %v4142
        %v4927 = vpack.c.b16 %v4151, %v4143
        %v4928 = vpack.c.b16 %v4152, %v4144
        %v4929 = vpack.c.b16 %v4153, %v4145
        %v4930 = vpack.c.b16 %v4162, %v4154
        %v4931 = vpack.c.b16 %v4163, %v4155
        %v4932 = vpack.c.b16 %v4164, %v4156
        %v4933 = vpack.c.b16 %v4165, %v4157
        %v4934 = vpack.c.b16 %v4166, %v4158
        %v4935 = vpack.c.b16 %v4167, %v4159
        %v4936 = vpack.c.b16 %v4168, %v4160
        %v4937 = vpack.c.b16 %v4169, %v4161
        %v4938 = vpack.c.b16 %v4178, %v4170
        %v4939 = vpack.c.b16 %v4179, %v4171
        %v4940 = vpack.c.b16 %v4180, %v4172
        %v4941 = vpack.c.b16 %v4181, %v4173
        %v4942 = vpack.c.b16 %v4182, %v4174
        %v4943 = vpack.c.b16 %v4183, %v4175
        %v4944 = vpack.c.b16 %v4184, %v4176
        %v4945 = vpack.c.b16 %v4185, %v4177
        %v4946 = vpack.c.b16 %v4194, %v4186
        %v4947 = vpack.c.b16 %v4195, %v4187
        %v4948 = vpack.c.b16 %v4196, %v4188
        %v4949 = vpack.c.b16 %v4197, %v4189
        %v4950 = vpack.c.b16 %v4198, %v4190
        %v4951 = vpack.c.b16 %v4199, %v4191
        %v4952 = vpack.c.b16 %v4200, %v4192
        %v4953 = vpack.c.b16 %v4201, %v4193
        %v4954 = vpack.c.b16 %v4210, %v4202
        %v4955 = vpack.c.b16 %v4211, %v4203
        %v4956 = vpack.c.b16 %v4212, %v4204
        %v4957 = vpack.c.b16 %v4213, %v4205
        %v4958 = vpack.c.b16 %v4214, %v4206
        %v4959 = vpack.c.b16 %v4215, %v4207
        %v4960 = vpack.c.b16 %v4216, %v4208
        %v4961 = vpack.c.b16 %v4217, %v4209
        %v4962 = vpack.c.b16 %v4226, %v4218
        %v4963 = vpack.c.b16 %v4227, %v4219
        %v4964 = vpack.c.b16 %v4228, %v4220
        %v4965 = vpack.c.b16 %v4229, %v4221
        %v4966 = vpack.c.b16 %v4230, %v4222
        %v4967 = vpack.c.b16 %v4231, %v4223
        %v4968 = vpack.c.b16 %v4232, %v4224
        %v4969 = vpack.c.b16 %v4233, %v4225
        %v4970 = vpack.c.b16 %v4242, %v4234
        %v4971 = vpack.c.b16 %v4243, %v4235
        %v4972 = vpack.c.b16 %v4244, %v4236
        %v4973 = vpack.c.b16 %v4245, %v4237
        %v4974 = vpack.c.b16 %v4246, %v4238
        %v4975 = vpack.c.b16 %v4247, %v4239
        %v4976 = vpack.c.b16 %v4248, %v4240
        %v4977 = vpack.c.b16 %v4249, %v4241
        %v4978 = vpack.c.b16 %v4258, %v4250
        %v4979 = vpack.c.b16 %v4259, %v4251
        %v4980 = vpack.c.b16 %v4260, %v4252
        %v4981 = vpack.c.b16 %v4261, %v4253
        %v4982 = vpack.c.b16 %v4262, %v4254
        %v4983 = vpack.c.b16 %v4263, %v4255
        %v4984 = vpack.c.b16 %v4264, %v4256
        %v4985 = vpack.c.b16 %v4265, %v4257
        %v4986 = vpack.c.b16 %v4274, %v4266
        %v4987 = vpack.c.b16 %v4275, %v4267
        %v4988 = vpack.c.b16 %v4276, %v4268
        %v4989 = vpack.c.b16 %v4277, %v4269
        %v4990 = vpack.c.b16 %v4278, %v4270
        %v4991 = vpack.c.b16 %v4279, %v4271
        %v4992 = vpack.c.b16 %v4280, %v4272
        %v4993 = vpack.c.b16 %v4281, %v4273
        %v4994 = vpack.c.b16 %v4290, %v4282
        %v4995 = vpack.c.b16 %v4291, %v4283
        %v4996 = vpack.c.b16 %v4292, %v4284
        %v4997 = vpack.c.b16 %v4293, %v4285
        %v4998 = vpack.c.b16 %v4294, %v4286
        %v4999 = vpack.c.b16 %v4295, %v4287
        %v5000 = vpack.c.b16 %v4296, %v4288
        %v5001 = vpack.c.b16 %v4297, %v4289
        %v5002 = vpack.c.b16 %v4306, %v4298
        %v5003 = vpack.c.b16 %v4307, %v4299
        %v5004 = vpack.c.b16 %v4308, %v4300
        %v5005 = vpack.c.b16 %v4309, %v4301
        %v5006 = vpack.c.b16 %v4310, %v4302
        %v5007 = vpack.c.b16 %v4311, %v4303
        %v5008 = vpack.c.b16 %v4312, %v4304
        %v5009 = vpack.c.b16 %v4313, %v4305
        %v5010 = vpack.c.b16 %v4322, %v4314
        %v5011 = vpack.c.b16 %v4323, %v4315
        %v5012 = vpack.c.b16 %v4324, %v4316
        %v5013 = vpack.c.b16 %v4325, %v4317
        %v5014 = vpack.c.b16 %v4326, %v4318
        %v5015 = vpack.c.b16 %v4327, %v4319
        %v5016 = vpack.c.b16 %v4328, %v4320
        %v5017 = vpack.c.b16 %v4329, %v4321
        %v5018 = vpack.c.b16 %v4338, %v4330
        %v5019 = vpack.c.b16 %v4339, %v4331
        %v5020 = vpack.c.b16 %v4340, %v4332
        %v5021 = vpack.c.b16 %v4341, %v4333
        %v5022 = vpack.c.b16 %v4342, %v4334
        %v5023 = vpack.c.b16 %v4343, %v4335
        %v5024 = vpack.c.b16 %v4344, %v4336
        %v5025 = vpack.c.b16 %v4345, %v4337
        %v5026 = vpack.c.b16 %v4354, %v4346
        %v5027 = vpack.c.b16 %v4355, %v4347
        %v5028 = vpack.c.b16 %v4356, %v4348
        %v5029 = vpack.c.b16 %v4357, %v4349
        %v5030 = vpack.c.b16 %v4358, %v4350
        %v5031 = vpack.c.b16 %v4359, %v4351
        %v5032 = vpack.c.b16 %v4360, %v4352
        %v5033 = vpack.c.b16 %v4361, %v4353
        %v5034 = vpack.c.b16 %v4370, %v4362
        %v5035 = vpack.c.b16 %v4371, %v4363
        %v5036 = vpack.c.b16 %v4372, %v4364
        %v5037 = vpack.c.b16 %v4373, %v4365
        %v5038 = vpack.c.b16 %v4374, %v4366
        %v5039 = vpack.c.b16 %v4375, %v4367
        %v5040 = vpack.c.b16 %v4376, %v4368
        %v5041 = vpack.c.b16 %v4377, %v4369
        %v5042 = vpack.c.b16 %v4386, %v4378
        %v5043 = vpack.c.b16 %v4387, %v4379
        %v5044 = vpack.c.b16 %v4388, %v4380
        %v5045 = vpack.c.b16 %v4389, %v4381
        %v5046 = vpack.c.b16 %v4390, %v4382
        %v5047 = vpack.c.b16 %v4391, %v4383
        %v5048 = vpack.c.b16 %v4392, %v4384
        %v5049 = vpack.c.b16 %v4393, %v4385
        %v5050 = vpack.c.b16 %v4402, %v4394
        %v5051 = vpack.c.b16 %v4403, %v4395
        %v5052 = vpack.c.b16 %v4404, %v4396
        %v5053 = vpack.c.b16 %v4405, %v4397
        %v5054 = vpack.c.b16 %v4406, %v4398
        %v5055 = vpack.c.b16 %v4407, %v4399
        %v5056 = vpack.c.b16 %v4408, %v4400
        %v5057 = vpack.c.b16 %v4409, %v4401
        %v5058 = vpack.c.b16 %v4418, %v4410
        %v5059 = vpack.c.b16 %v4419, %v4411
        %v5060 = vpack.c.b16 %v4420, %v4412
        %v5061 = vpack.c.b16 %v4421, %v4413
        %v5062 = vpack.c.b16 %v4422, %v4414
        %v5063 = vpack.c.b16 %v4423, %v4415
        %v5064 = vpack.c.b16 %v4424, %v4416
        %v5065 = vpack.c.b16 %v4425, %v4417
        %v5066 = vpack.c.b16 %v4434, %v4426
        %v5067 = vpack.c.b16 %v4435, %v4427
        %v5068 = vpack.c.b16 %v4436, %v4428
        %v5069 = vpack.c.b16 %v4437, %v4429
        %v5070 = vpack.c.b16 %v4438, %v4430
        %v5071 = vpack.c.b16 %v4439, %v4431
        %v5072 = vpack.c.b16 %v4440, %v4432
        %v5073 = vpack.c.b16 %v4441, %v4433
        %v5074 = vpack.c.b16 %v4450, %v4442
        %v5075 = vpack.c.b16 %v4451, %v4443
        %v5076 = vpack.c.b16 %v4452, %v4444
        %v5077 = vpack.c.b16 %v4453, %v4445
        %v5078 = vpack.c.b16 %v4454, %v4446
        %v5079 = vpack.c.b16 %v4455, %v4447
        %v5080 = vpack.c.b16 %v4456, %v4448
        %v5081 = vpack.c.b16 %v4457, %v4449
        %v5082 = vpack.c.b16 %v4466, %v4458
        %v5083 = vpack.c.b16 %v4467, %v4459
        %v5084 = vpack.c.b16 %v4468, %v4460
        %v5085 = vpack.c.b16 %v4469, %v4461
        %v5086 = vpack.c.b16 %v4470, %v4462
        %v5087 = vpack.c.b16 %v4471, %v4463
        %v5088 = vpack.c.b16 %v4472, %v4464
        %v5089 = vpack.c.b16 %v4473, %v4465
        %v5090 = vpack.c.b16 %v4482, %v4474
        %v5091 = vpack.c.b16 %v4483, %v4475
        %v5092 = vpack.c.b16 %v4484, %v4476
        %v5093 = vpack.c.b16 %v4485, %v4477
        %v5094 = vpack.c.b16 %v4486, %v4478
        %v5095 = vpack.c.b16 %v4487, %v4479
        %v5096 = vpack.c.b16 %v4488, %v4480
        %v5097 = vpack.c.b16 %v4489, %v4481
        %v5098 = vpack.c.b16 %v4498, %v4490
        %v5099 = vpack.c.b16 %v4499, %v4491
        %v5100 = vpack.c.b16 %v4500, %v4492
        %v5101 = vpack.c.b16 %v4501, %v4493
        %v5102 = vpack.c.b16 %v4502, %v4494
        %v5103 = vpack.c.b16 %v4503, %v4495
        %v5104 = vpack.c.b16 %v4504, %v4496
        %v5105 = vpack.c.b16 %v4505, %v4497
        %v5106 = vpack.c.b16 %v4514, %v4506
        %v5107 = vpack.c.b16 %v4515, %v4507
        %v5108 = vpack.c.b16 %v4516, %v4508
        %v5109 = vpack.c.b16 %v4517, %v4509
        %v5110 = vpack.c.b16 %v4518, %v4510
        %v5111 = vpack.c.b16 %v4519, %v4511
        %v5112 = vpack.c.b16 %v4520, %v4512
        %v5113 = vpack.c.b16 %v4521, %v4513
        %v5114 = vpack.c.b16 %v4530, %v4522
        %v5115 = vpack.c.b16 %v4531, %v4523
        %v5116 = vpack.c.b16 %v4532, %v4524
        %v5117 = vpack.c.b16 %v4533, %v4525
        %v5118 = vpack.c.b16 %v4534, %v4526
        %v5119 = vpack.c.b16 %v4535, %v4527
        %v5120 = vpack.c.b16 %v4536, %v4528
        %v5121 = vpack.c.b16 %v4537, %v4529
        %v5122 = vpack.c.b16 %v4546, %v4538
        %v5123 = vpack.c.b16 %v4547, %v4539
        %v5124 = vpack.c.b16 %v4548, %v4540
        %v5125 = vpack.c.b16 %v4549, %v4541
        %v5126 = vpack.c.b16 %v4550, %v4542
        %v5127 = vpack.c.b16 %v4551, %v4543
        %v5128 = vpack.c.b16 %v4552, %v4544
        %v5129 = vpack.c.b16 %v4553, %v4545
        %v5130 = vpack.c.b16 %v4562, %v4554
        %v5131 = vpack.c.b16 %v4563, %v4555
        %v5132 = vpack.c.b16 %v4564, %v4556
        %v5133 = vpack.c.b16 %v4565, %v4557
        %v5134 = vpack.c.b16 %v4566, %v4558
        %v5135 = vpack.c.b16 %v4567, %v4559
        %v5136 = vpack.c.b16 %v4568, %v4560
        %v5137 = vpack.c.b16 %v4569, %v4561
        %v5138 = vpack.c.b16 %v4578, %v4570
        %v5139 = vpack.c.b16 %v4579, %v4571
        %v5140 = vpack.c.b16 %v4580, %v4572
        %v5141 = vpack.c.b16 %v4581, %v4573
        %v5142 = vpack.c.b16 %v4582, %v4574
        %v5143 = vpack.c.b16 %v4583, %v4575
        %v5144 = vpack.c.b16 %v4584, %v4576
        %v5145 = vpack.c.b16 %v4585, %v4577
        %v5146 = vpack.c.b16 %v4594, %v4586
        %v5147 = vpack.c.b16 %v4595, %v4587
        %v5148 = vpack.c.b16 %v4596, %v4588
        %v5149 = vpack.c.b16 %v4597, %v4589
        %v5150 = vpack.c.b16 %v4598, %v4590
        %v5151 = vpack.c.b16 %v4599, %v4591
        %v5152 = vpack.c.b16 %v4600, %v4592
        %v5153 = vpack.c.b16 %v4601, %v4593
        %v5154 = vpack.c.b16 %v4610, %v4602
        %v5155 = vpack.c.b16 %v4611, %v4603
        %v5156 = vpack.c.b16 %v4612, %v4604
        %v5157 = vpack.c.b16 %v4613, %v4605
        %v5158 = vpack.c.b16 %v4614, %v4606
        %v5159 = vpack.c.b16 %v4615, %v4607
        %v5160 = vpack.c.b16 %v4616, %v4608
        %v5161 = vpack.c.b16 %v4617, %v4609
        %v5162 = vpack.c.b16 %v4626, %v4618
        %v5163 = vpack.c.b16 %v4627, %v4619
        %v5164 = vpack.c.b16 %v4628, %v4620
        %v5165 = vpack.c.b16 %v4629, %v4621
        %v5166 = vpack.c.b16 %v4630, %v4622
        %v5167 = vpack.c.b16 %v4631, %v4623
        %v5168 = vpack.c.b16 %v4632, %v4624
        %v5169 = vpack.c.b16 %v4633, %v4625
        %v5170 = vpack.c.b16 %v4642, %v4634
        %v5171 = vpack.c.b16 %v4643, %v4635
        %v5172 = vpack.c.b16 %v4644, %v4636
        %v5173 = vpack.c.b16 %v4645, %v4637
        %v5174 = vpack.c.b16 %v4646, %v4638
        %v5175 = vpack.c.b16 %v4647, %v4639
        %v5176 = vpack.c.b16 %v4648, %v4640
        %v5177 = vpack.c.b16 %v4649, %v4641
        %v5178 = vpack.c.b16 %v4658, %v4650
        %v5179 = vpack.c.b16 %v4659, %v4651
        %v5180 = vpack.c.b16 %v4660, %v4652
        %v5181 = vpack.c.b16 %v4661, %v4653
        %v5182 = vpack.c.b16 %v4662, %v4654
        %v5183 = vpack.c.b16 %v4663, %v4655
        %v5184 = vpack.c.b16 %v4664, %v4656
        %v5185 = vpack.c.b16 %v4665, %v4657
        %v5186 = vpack.c.b16 %v4674, %v4666
        %v5187 = vpack.c.b16 %v4675, %v4667
        %v5188 = vpack.c.b16 %v4676, %v4668
        %v5189 = vpack.c.b16 %v4677, %v4669
        %v5190 = vpack.c.b16 %v4678, %v4670
        %v5191 = vpack.c.b16 %v4679, %v4671
        %v5192 = vpack.c.b16 %v4680, %v4672
        %v5193 = vpack.c.b16 %v4681, %v4673
        %5706 = vmatprep.subr.bf16.mxu0 %v4683
        %5707 = vmatpush1.bf16.msra.mxu0 %v4682
        %5708 = vmatprep.subr.bf16.mxu0 %v4691
        %5709 = vmatpush1.bf16.msra.mxu0 %v4690
        %5710 = vmatprep.subr.bf16.mxu0 %v4699
        %5711 = vmatpush1.bf16.msra.mxu0 %v4698
        %5712 = vmatprep.subr.bf16.mxu0 %v4707
        %5713 = vmatpush1.bf16.msra.mxu0 %v4706
        %5714 = vmatprep.subr.bf16.mxu0 %v4715
        %5715 = vmatpush1.bf16.msra.mxu0 %v4714
        %5716 = vmatprep.subr.bf16.mxu0 %v4723
        %5717 = vmatpush1.bf16.msra.mxu0 %v4722
        %5718 = vmatprep.subr.bf16.mxu0 %v4731
        %5719 = vmatpush1.bf16.msra.mxu0 %v4730
        %5720 = vmatprep.subr.bf16.mxu0 %v4739
        %5721 = vmatpush1.bf16.msra.mxu0 %v4738
        %5722 = vmatprep.subr.bf16.mxu0 %v4747
        %5723 = vmatpush1.bf16.msra.mxu0 %v4746
        %5724 = vmatprep.subr.bf16.mxu0 %v4755
        %5725 = vmatpush1.bf16.msra.mxu0 %v4754
        %5726 = vmatprep.subr.bf16.mxu0 %v4763
        %5727 = vmatpush1.bf16.msra.mxu0 %v4762
        %5728 = vmatprep.subr.bf16.mxu0 %v4771
        %5729 = vmatpush1.bf16.msra.mxu0 %v4770
        %5730 = vmatprep.subr.bf16.mxu0 %v4779
        %5731 = vmatpush1.bf16.msra.mxu0 %v4778
        %5732 = vmatprep.subr.bf16.mxu0 %v4787
        %5733 = vmatpush1.bf16.msra.mxu0 %v4786
        %5734 = vmatprep.subr.bf16.mxu0 %v4795
        %5735 = vmatpush1.bf16.msra.mxu0 %v4794
        %5736 = vmatprep.subr.bf16.mxu0 %v4803
        %5737 = vmatpush1.bf16.msra.mxu0 %v4802
        %5738 = vmatprep.mubr.bf16.mxu0 %v2585
        %5739 = vmatmul.mubr.bf16.gmra.mrb[0].mxu0 %v2584
        %v5740 = vpop.f32.mrb[0].mxu0
        %v5741 = vadd.f32 %v3109, %v5740
        %v5742 = vpop.f32.mrb[0].mxu0
        %v5743 = vadd.f32 %v3113, %v5742
        %v5744 = vpop.f32.mrb[0].mxu0
        %v5745 = vpop.f32.mrb[0].mxu0
        %5746 = vdwg.mxu0
        %5747 = vmatprep.subr.bf16.mxu0 %v4811
        %5748 = vmatpush1.bf16.msra.mxu0 %v4810
        %5749 = vmatprep.subr.bf16.mxu0 %v4819
        %5750 = vmatpush1.bf16.msra.mxu0 %v4818
        %5751 = vmatprep.subr.bf16.mxu0 %v4827
        %5752 = vmatpush1.bf16.msra.mxu0 %v4826
        %5753 = vmatprep.subr.bf16.mxu0 %v4835
        %5754 = vmatpush1.bf16.msra.mxu0 %v4834
        %5755 = vmatprep.subr.bf16.mxu0 %v4843
        %5756 = vmatpush1.bf16.msra.mxu0 %v4842
        %5757 = vmatprep.subr.bf16.mxu0 %v4851
        %5758 = vmatpush1.bf16.msra.mxu0 %v4850
        %5759 = vmatprep.subr.bf16.mxu0 %v4859
        %5760 = vmatpush1.bf16.msra.mxu0 %v4858
        %5761 = vmatprep.subr.bf16.mxu0 %v4867
        %5762 = vmatpush1.bf16.msra.mxu0 %v4866
        %5763 = vmatprep.subr.bf16.mxu0 %v4875
        %5764 = vmatpush1.bf16.msra.mxu0 %v4874
        %5765 = vmatprep.subr.bf16.mxu0 %v4883
        %5766 = vmatpush1.bf16.msra.mxu0 %v4882
        %5767 = vmatprep.subr.bf16.mxu0 %v4891
        %5768 = vmatpush1.bf16.msra.mxu0 %v4890
        %5769 = vmatprep.subr.bf16.mxu0 %v4899
        %5770 = vmatpush1.bf16.msra.mxu0 %v4898
        %5771 = vmatprep.subr.bf16.mxu0 %v4907
        %5772 = vmatpush1.bf16.msra.mxu0 %v4906
        %5773 = vmatprep.subr.bf16.mxu0 %v4915
        %5774 = vmatpush1.bf16.msra.mxu0 %v4914
        %5775 = vmatprep.subr.bf16.mxu0 %v4923
        %5776 = vmatpush1.bf16.msra.mxu0 %v4922
        %5777 = vmatprep.subr.bf16.mxu0 %v4931
        %5778 = vmatpush1.bf16.msra.mxu0 %v4930
        %5779 = vmatprep.mubr.bf16.mxu0 %v2587
        %5780 = vmatmul.mubr.bf16.gmra.mrb[0].mxu0 %v2586
        %v5781 = vpop.f32.mrb[0].mxu0
        %v5782 = vadd.f32 %v5741, %v5781
        %v5783 = vpop.f32.mrb[0].mxu0
        %v5784 = vadd.f32 %v5743, %v5783
        %v5785 = vpop.f32.mrb[0].mxu0
        %v5786 = vpop.f32.mrb[0].mxu0
        %5787 = vdwg.mxu0
        %5788 = vmatprep.subr.bf16.mxu0 %v4939
        %5789 = vmatpush1.bf16.msra.mxu0 %v4938
        %5790 = vmatprep.subr.bf16.mxu0 %v4947
        %5791 = vmatpush1.bf16.msra.mxu0 %v4946
        %5792 = vmatprep.subr.bf16.mxu0 %v4955
        %5793 = vmatpush1.bf16.msra.mxu0 %v4954
        %5794 = vmatprep.subr.bf16.mxu0 %v4963
        %5795 = vmatpush1.bf16.msra.mxu0 %v4962
        %5796 = vmatprep.subr.bf16.mxu0 %v4971
        %5797 = vmatpush1.bf16.msra.mxu0 %v4970
        %5798 = vmatprep.subr.bf16.mxu0 %v4979
        %5799 = vmatpush1.bf16.msra.mxu0 %v4978
        %5800 = vmatprep.subr.bf16.mxu0 %v4987
        %5801 = vmatpush1.bf16.msra.mxu0 %v4986
        %5802 = vmatprep.subr.bf16.mxu0 %v4995
        %5803 = vmatpush1.bf16.msra.mxu0 %v4994
        %5804 = vmatprep.subr.bf16.mxu0 %v5003
        %5805 = vmatpush1.bf16.msra.mxu0 %v5002
        %5806 = vmatprep.subr.bf16.mxu0 %v5011
        %5807 = vmatpush1.bf16.msra.mxu0 %v5010
        %5808 = vmatprep.subr.bf16.mxu0 %v5019
        %5809 = vmatpush1.bf16.msra.mxu0 %v5018
        %5810 = vmatprep.subr.bf16.mxu0 %v5027
        %5811 = vmatpush1.bf16.msra.mxu0 %v5026
        %5812 = vmatprep.subr.bf16.mxu0 %v5035
        %5813 = vmatpush1.bf16.msra.mxu0 %v5034
        %5814 = vmatprep.subr.bf16.mxu0 %v5043
        %5815 = vmatpush1.bf16.msra.mxu0 %v5042
        %5816 = vmatprep.subr.bf16.mxu0 %v5051
        %5817 = vmatpush1.bf16.msra.mxu0 %v5050
        %5818 = vmatprep.subr.bf16.mxu0 %v5059
        %5819 = vmatpush1.bf16.msra.mxu0 %v5058
        %5820 = vmatprep.mubr.bf16.mxu0 %v2589
        %5821 = vmatmul.mubr.bf16.gmra.mrb[0].mxu0 %v2588
        %v5822 = vpop.f32.mrb[0].mxu0
        %v5823 = vadd.f32 %v5782, %v5822
        %v5824 = vpop.f32.mrb[0].mxu0
        %v5825 = vadd.f32 %v5784, %v5824
        %v5826 = vpop.f32.mrb[0].mxu0
        %v5827 = vpop.f32.mrb[0].mxu0
        %5828 = vdwg.mxu0
        %5829 = vmatprep.subr.bf16.mxu0 %v5067
        %5830 = vmatpush1.bf16.msra.mxu0 %v5066
        %5831 = vmatprep.subr.bf16.mxu0 %v5075
        %5832 = vmatpush1.bf16.msra.mxu0 %v5074
        %5833 = vmatprep.subr.bf16.mxu0 %v5083
        %5834 = vmatpush1.bf16.msra.mxu0 %v5082
        %5835 = vmatprep.subr.bf16.mxu0 %v5091
        %5836 = vmatpush1.bf16.msra.mxu0 %v5090
        %5837 = vmatprep.subr.bf16.mxu0 %v5099
        %5838 = vmatpush1.bf16.msra.mxu0 %v5098
        %5839 = vmatprep.subr.bf16.mxu0 %v5107
        %5840 = vmatpush1.bf16.msra.mxu0 %v5106
        %5841 = vmatprep.subr.bf16.mxu0 %v5115
        %5842 = vmatpush1.bf16.msra.mxu0 %v5114
        %5843 = vmatprep.subr.bf16.mxu0 %v5123
        %5844 = vmatpush1.bf16.msra.mxu0 %v5122
        %5845 = vmatprep.subr.bf16.mxu0 %v5131
        %5846 = vmatpush1.bf16.msra.mxu0 %v5130
        %5847 = vmatprep.subr.bf16.mxu0 %v5139
        %5848 = vmatpush1.bf16.msra.mxu0 %v5138
        %5849 = vmatprep.subr.bf16.mxu0 %v5147
        %5850 = vmatpush1.bf16.msra.mxu0 %v5146
        %5851 = vmatprep.subr.bf16.mxu0 %v5155
        %5852 = vmatpush1.bf16.msra.mxu0 %v5154
        %5853 = vmatprep.subr.bf16.mxu0 %v5163
        %5854 = vmatpush1.bf16.msra.mxu0 %v5162
        %5855 = vmatprep.subr.bf16.mxu0 %v5171
        %5856 = vmatpush1.bf16.msra.mxu0 %v5170
        %5857 = vmatprep.subr.bf16.mxu0 %v5179
        %5858 = vmatpush1.bf16.msra.mxu0 %v5178
        %5859 = vmatprep.subr.bf16.mxu0 %v5187
        %5860 = vmatpush1.bf16.msra.mxu0 %v5186
        %5861 = vmatprep.mubr.bf16.mxu0 %v2591
        %5862 = vmatmul.mubr.bf16.gmra.mrb[0].mxu0 %v2590
        %v5863 = vpop.f32.mrb[0].mxu0
        %v5864 = vadd.f32 %v5823, %v5863
        %v5865 = vpop.f32.mrb[0].mxu0
        %v5866 = vadd.f32 %v5825, %v5865
        %v5867 = vpop.f32.mrb[0].mxu0
        %v5868 = vpop.f32.mrb[0].mxu0
        %5869 = vdwg.mxu0
        %5870 = vmatprep.subr.bf16.mxu0 %v4685
        %5871 = vmatpush1.bf16.msra.mxu0 %v4684
        %5872 = vmatprep.subr.bf16.mxu0 %v4693
        %5873 = vmatpush1.bf16.msra.mxu0 %v4692
        %5874 = vmatprep.subr.bf16.mxu0 %v4701
        %5875 = vmatpush1.bf16.msra.mxu0 %v4700
        %5876 = vmatprep.subr.bf16.mxu0 %v4709
        %5877 = vmatpush1.bf16.msra.mxu0 %v4708
        %5878 = vmatprep.subr.bf16.mxu0 %v4717
        %5879 = vmatpush1.bf16.msra.mxu0 %v4716
        %5880 = vmatprep.subr.bf16.mxu0 %v4725
        %5881 = vmatpush1.bf16.msra.mxu0 %v4724
        %5882 = vmatprep.subr.bf16.mxu0 %v4733
        %5883 = vmatpush1.bf16.msra.mxu0 %v4732
        %5884 = vmatprep.subr.bf16.mxu0 %v4741
        %5885 = vmatpush1.bf16.msra.mxu0 %v4740
        %5886 = vmatprep.subr.bf16.mxu0 %v4749
        %5887 = vmatpush1.bf16.msra.mxu0 %v4748
        %5888 = vmatprep.subr.bf16.mxu0 %v4757
        %5889 = vmatpush1.bf16.msra.mxu0 %v4756
        %5890 = vmatprep.subr.bf16.mxu0 %v4765
        %5891 = vmatpush1.bf16.msra.mxu0 %v4764
        %5892 = vmatprep.subr.bf16.mxu0 %v4773
        %5893 = vmatpush1.bf16.msra.mxu0 %v4772
        %5894 = vmatprep.subr.bf16.mxu0 %v4781
        %5895 = vmatpush1.bf16.msra.mxu0 %v4780
        %5896 = vmatprep.subr.bf16.mxu0 %v4789
        %5897 = vmatpush1.bf16.msra.mxu0 %v4788
        %5898 = vmatprep.subr.bf16.mxu0 %v4797
        %5899 = vmatpush1.bf16.msra.mxu0 %v4796
        %5900 = vmatprep.subr.bf16.mxu0 %v4805
        %5901 = vmatpush1.bf16.msra.mxu0 %v4804
        %5902 = vmatprep.mubr.bf16.mxu0 %v2585
        %5903 = vmatmul.mubr.bf16.gmra.mrb[0].mxu0 %v2584
        %v5904 = vpop.f32.mrb[0].mxu0
        %v5905 = vadd.f32 %v3117, %v5904
        %v5906 = vpop.f32.mrb[0].mxu0
        %v5907 = vadd.f32 %v3121, %v5906
        %v5908 = vpop.f32.mrb[0].mxu0
        %v5909 = vpop.f32.mrb[0].mxu0
        %5910 = vdwg.mxu0
        %5911 = vmatprep.subr.bf16.mxu0 %v4813
        %5912 = vmatpush1.bf16.msra.mxu0 %v4812
        %5913 = vmatprep.subr.bf16.mxu0 %v4821
        %5914 = vmatpush1.bf16.msra.mxu0 %v4820
        %5915 = vmatprep.subr.bf16.mxu0 %v4829
        %5916 = vmatpush1.bf16.msra.mxu0 %v4828
        %5917 = vmatprep.subr.bf16.mxu0 %v4837
        %5918 = vmatpush1.bf16.msra.mxu0 %v4836
        %5919 = vmatprep.subr.bf16.mxu0 %v4845
        %5920 = vmatpush1.bf16.msra.mxu0 %v4844
        %5921 = vmatprep.subr.bf16.mxu0 %v4853
        %5922 = vmatpush1.bf16.msra.mxu0 %v4852
        %5923 = vmatprep.subr.bf16.mxu0 %v4861
        %5924 = vmatpush1.bf16.msra.mxu0 %v4860
        %5925 = vmatprep.subr.bf16.mxu0 %v4869
        %5926 = vmatpush1.bf16.msra.mxu0 %v4868
        %5927 = vmatprep.subr.bf16.mxu0 %v4877
        %5928 = vmatpush1.bf16.msra.mxu0 %v4876
        %5929 = vmatprep.subr.bf16.mxu0 %v4885
        %5930 = vmatpush1.bf16.msra.mxu0 %v4884
        %5931 = vmatprep.subr.bf16.mxu0 %v4893
        %5932 = vmatpush1.bf16.msra.mxu0 %v4892
        %5933 = vmatprep.subr.bf16.mxu0 %v4901
        %5934 = vmatpush1.bf16.msra.mxu0 %v4900
        %5935 = vmatprep.subr.bf16.mxu0 %v4909
        %5936 = vmatpush1.bf16.msra.mxu0 %v4908
        %5937 = vmatprep.subr.bf16.mxu0 %v4917
        %5938 = vmatpush1.bf16.msra.mxu0 %v4916
        %5939 = vmatprep.subr.bf16.mxu0 %v4925
        %5940 = vmatpush1.bf16.msra.mxu0 %v4924
        %5941 = vmatprep.subr.bf16.mxu0 %v4933
        %5942 = vmatpush1.bf16.msra.mxu0 %v4932
        %5943 = vmatprep.mubr.bf16.mxu0 %v2587
        %5944 = vmatmul.mubr.bf16.gmra.mrb[0].mxu0 %v2586
        %v5945 = vpop.f32.mrb[0].mxu0
        %v5946 = vadd.f32 %v5905, %v5945
        %v5947 = vpop.f32.mrb[0].mxu0
        %v5948 = vadd.f32 %v5907, %v5947
        %v5949 = vpop.f32.mrb[0].mxu0
        %v5950 = vpop.f32.mrb[0].mxu0
        %5951 = vdwg.mxu0
        %5952 = vmatprep.subr.bf16.mxu0 %v4941
        %5953 = vmatpush1.bf16.msra.mxu0 %v4940
        %5954 = vmatprep.subr.bf16.mxu0 %v4949
        %5955 = vmatpush1.bf16.msra.mxu0 %v4948
        %5956 = vmatprep.subr.bf16.mxu0 %v4957
        %5957 = vmatpush1.bf16.msra.mxu0 %v4956
        %5958 = vmatprep.subr.bf16.mxu0 %v4965
        %5959 = vmatpush1.bf16.msra.mxu0 %v4964
        %5960 = vmatprep.subr.bf16.mxu0 %v4973
        %5961 = vmatpush1.bf16.msra.mxu0 %v4972
        %5962 = vmatprep.subr.bf16.mxu0 %v4981
        %5963 = vmatpush1.bf16.msra.mxu0 %v4980
        %5964 = vmatprep.subr.bf16.mxu0 %v4989
        %5965 = vmatpush1.bf16.msra.mxu0 %v4988
        %5966 = vmatprep.subr.bf16.mxu0 %v4997
        %5967 = vmatpush1.bf16.msra.mxu0 %v4996
        %5968 = vmatprep.subr.bf16.mxu0 %v5005
        %5969 = vmatpush1.bf16.msra.mxu0 %v5004
        %5970 = vmatprep.subr.bf16.mxu0 %v5013
        %5971 = vmatpush1.bf16.msra.mxu0 %v5012
        %5972 = vmatprep.subr.bf16.mxu0 %v5021
        %5973 = vmatpush1.bf16.msra.mxu0 %v5020
        %5974 = vmatprep.subr.bf16.mxu0 %v5029
        %5975 = vmatpush1.bf16.msra.mxu0 %v5028
        %5976 = vmatprep.subr.bf16.mxu0 %v5037
        %5977 = vmatpush1.bf16.msra.mxu0 %v5036
        %5978 = vmatprep.subr.bf16.mxu0 %v5045
        %5979 = vmatpush1.bf16.msra.mxu0 %v5044
        %5980 = vmatprep.subr.bf16.mxu0 %v5053
        %5981 = vmatpush1.bf16.msra.mxu0 %v5052
        %5982 = vmatprep.subr.bf16.mxu0 %v5061
        %5983 = vmatpush1.bf16.msra.mxu0 %v5060
        %5984 = vmatprep.mubr.bf16.mxu0 %v2589
        %5985 = vmatmul.mubr.bf16.gmra.mrb[0].mxu0 %v2588
        %v5986 = vpop.f32.mrb[0].mxu0
        %v5987 = vadd.f32 %v5946, %v5986
        %v5988 = vpop.f32.mrb[0].mxu0
        %v5989 = vadd.f32 %v5948, %v5988
        %v5990 = vpop.f32.mrb[0].mxu0
        %v5991 = vpop.f32.mrb[0].mxu0
        %5992 = vdwg.mxu0
        %5993 = vmatprep.subr.bf16.mxu0 %v5069
        %5994 = vmatpush1.bf16.msra.mxu0 %v5068
        %5995 = vmatprep.subr.bf16.mxu0 %v5077
        %5996 = vmatpush1.bf16.msra.mxu0 %v5076
        %5997 = vmatprep.subr.bf16.mxu0 %v5085
        %5998 = vmatpush1.bf16.msra.mxu0 %v5084
        %5999 = vmatprep.subr.bf16.mxu0 %v5093
        %6000 = vmatpush1.bf16.msra.mxu0 %v5092
        %6001 = vmatprep.subr.bf16.mxu0 %v5101
        %6002 = vmatpush1.bf16.msra.mxu0 %v5100
        %6003 = vmatprep.subr.bf16.mxu0 %v5109
        %6004 = vmatpush1.bf16.msra.mxu0 %v5108
        %6005 = vmatprep.subr.bf16.mxu0 %v5117
        %6006 = vmatpush1.bf16.msra.mxu0 %v5116
        %6007 = vmatprep.subr.bf16.mxu0 %v5125
        %6008 = vmatpush1.bf16.msra.mxu0 %v5124
        %6009 = vmatprep.subr.bf16.mxu0 %v5133
        %6010 = vmatpush1.bf16.msra.mxu0 %v5132
        %6011 = vmatprep.subr.bf16.mxu0 %v5141
        %6012 = vmatpush1.bf16.msra.mxu0 %v5140
        %6013 = vmatprep.subr.bf16.mxu0 %v5149
        %6014 = vmatpush1.bf16.msra.mxu0 %v5148
        %6015 = vmatprep.subr.bf16.mxu0 %v5157
        %6016 = vmatpush1.bf16.msra.mxu0 %v5156
        %6017 = vmatprep.subr.bf16.mxu0 %v5165
        %6018 = vmatpush1.bf16.msra.mxu0 %v5164
        %6019 = vmatprep.subr.bf16.mxu0 %v5173
        %6020 = vmatpush1.bf16.msra.mxu0 %v5172
        %6021 = vmatprep.subr.bf16.mxu0 %v5181
        %6022 = vmatpush1.bf16.msra.mxu0 %v5180
        %6023 = vmatprep.subr.bf16.mxu0 %v5189
        %6024 = vmatpush1.bf16.msra.mxu0 %v5188
        %6025 = vmatprep.mubr.bf16.mxu0 %v2591
        %6026 = vmatmul.mubr.bf16.gmra.mrb[0].mxu0 %v2590
        %v6027 = vpop.f32.mrb[0].mxu0
        %v6028 = vadd.f32 %v5987, %v6027
        %v6029 = vpop.f32.mrb[0].mxu0
        %v6030 = vadd.f32 %v5989, %v6029
        %v6031 = vpop.f32.mrb[0].mxu0
        %v6032 = vpop.f32.mrb[0].mxu0
        %6033 = vdwg.mxu0
        %6034 = vmatprep.subr.bf16.mxu0 %v4687
        %6035 = vmatpush1.bf16.msra.mxu0 %v4686
        %6036 = vmatprep.subr.bf16.mxu0 %v4695
        %6037 = vmatpush1.bf16.msra.mxu0 %v4694
        %6038 = vmatprep.subr.bf16.mxu0 %v4703
        %6039 = vmatpush1.bf16.msra.mxu0 %v4702
        %6040 = vmatprep.subr.bf16.mxu0 %v4711
        %6041 = vmatpush1.bf16.msra.mxu0 %v4710
        %6042 = vmatprep.subr.bf16.mxu0 %v4719
        %6043 = vmatpush1.bf16.msra.mxu0 %v4718
        %6044 = vmatprep.subr.bf16.mxu0 %v4727
        %6045 = vmatpush1.bf16.msra.mxu0 %v4726
        %6046 = vmatprep.subr.bf16.mxu0 %v4735
        %6047 = vmatpush1.bf16.msra.mxu0 %v4734
        %6048 = vmatprep.subr.bf16.mxu0 %v4743
        %6049 = vmatpush1.bf16.msra.mxu0 %v4742
        %6050 = vmatprep.subr.bf16.mxu0 %v4751
        %6051 = vmatpush1.bf16.msra.mxu0 %v4750
        %6052 = vmatprep.subr.bf16.mxu0 %v4759
        %6053 = vmatpush1.bf16.msra.mxu0 %v4758
        %6054 = vmatprep.subr.bf16.mxu0 %v4767
        %6055 = vmatpush1.bf16.msra.mxu0 %v4766
        %6056 = vmatprep.subr.bf16.mxu0 %v4775
        %6057 = vmatpush1.bf16.msra.mxu0 %v4774
        %6058 = vmatprep.subr.bf16.mxu0 %v4783
        %6059 = vmatpush1.bf16.msra.mxu0 %v4782
        %6060 = vmatprep.subr.bf16.mxu0 %v4791
        %6061 = vmatpush1.bf16.msra.mxu0 %v4790
        %6062 = vmatprep.subr.bf16.mxu0 %v4799
        %6063 = vmatpush1.bf16.msra.mxu0 %v4798
        %6064 = vmatprep.subr.bf16.mxu0 %v4807
        %6065 = vmatpush1.bf16.msra.mxu0 %v4806
        %6066 = vmatprep.mubr.bf16.mxu0 %v2585
        %6067 = vmatmul.mubr.bf16.gmra.mrb[0].mxu0 %v2584
        %v6068 = vpop.f32.mrb[0].mxu0
        %v6069 = vadd.f32 %v3125, %v6068
        %v6070 = vpop.f32.mrb[0].mxu0
        %v6071 = vadd.f32 %v3129, %v6070
        %v6072 = vpop.f32.mrb[0].mxu0
        %v6073 = vpop.f32.mrb[0].mxu0
        %6074 = vdwg.mxu0
        %6075 = vmatprep.subr.bf16.mxu0 %v4815
        %6076 = vmatpush1.bf16.msra.mxu0 %v4814
        %6077 = vmatprep.subr.bf16.mxu0 %v4823
        %6078 = vmatpush1.bf16.msra.mxu0 %v4822
        %6079 = vmatprep.subr.bf16.mxu0 %v4831
        %6080 = vmatpush1.bf16.msra.mxu0 %v4830
        %6081 = vmatprep.subr.bf16.mxu0 %v4839
        %6082 = vmatpush1.bf16.msra.mxu0 %v4838
        %6083 = vmatprep.subr.bf16.mxu0 %v4847
        %6084 = vmatpush1.bf16.msra.mxu0 %v4846
        %6085 = vmatprep.subr.bf16.mxu0 %v4855
        %6086 = vmatpush1.bf16.msra.mxu0 %v4854
        %6087 = vmatprep.subr.bf16.mxu0 %v4863
        %6088 = vmatpush1.bf16.msra.mxu0 %v4862
        %6089 = vmatprep.subr.bf16.mxu0 %v4871
        %6090 = vmatpush1.bf16.msra.mxu0 %v4870
        %6091 = vmatprep.subr.bf16.mxu0 %v4879
        %6092 = vmatpush1.bf16.msra.mxu0 %v4878
        %6093 = vmatprep.subr.bf16.mxu0 %v4887
        %6094 = vmatpush1.bf16.msra.mxu0 %v4886
        %6095 = vmatprep.subr.bf16.mxu0 %v4895
        %6096 = vmatpush1.bf16.msra.mxu0 %v4894
        %6097 = vmatprep.subr.bf16.mxu0 %v4903
        %6098 = vmatpush1.bf16.msra.mxu0 %v4902
        %6099 = vmatprep.subr.bf16.mxu0 %v4911
        %6100 = vmatpush1.bf16.msra.mxu0 %v4910
        %6101 = vmatprep.subr.bf16.mxu0 %v4919
        %6102 = vmatpush1.bf16.msra.mxu0 %v4918
        %6103 = vmatprep.subr.bf16.mxu0 %v4927
        %6104 = vmatpush1.bf16.msra.mxu0 %v4926
        %6105 = vmatprep.subr.bf16.mxu0 %v4935
        %6106 = vmatpush1.bf16.msra.mxu0 %v4934
        %6107 = vmatprep.mubr.bf16.mxu0 %v2587
        %6108 = vmatmul.mubr.bf16.gmra.mrb[0].mxu0 %v2586
        %v6109 = vpop.f32.mrb[0].mxu0
        %v6110 = vadd.f32 %v6069, %v6109
        %v6111 = vpop.f32.mrb[0].mxu0
        %v6112 = vadd.f32 %v6071, %v6111
        %v6113 = vpop.f32.mrb[0].mxu0
        %v6114 = vpop.f32.mrb[0].mxu0
        %6115 = vdwg.mxu0
        %6116 = vmatprep.subr.bf16.mxu0 %v4943
        %6117 = vmatpush1.bf16.msra.mxu0 %v4942
        %6118 = vmatprep.subr.bf16.mxu0 %v4951
        %6119 = vmatpush1.bf16.msra.mxu0 %v4950
        %6120 = vmatprep.subr.bf16.mxu0 %v4959
        %6121 = vmatpush1.bf16.msra.mxu0 %v4958
        %6122 = vmatprep.subr.bf16.mxu0 %v4967
        %6123 = vmatpush1.bf16.msra.mxu0 %v4966
        %6124 = vmatprep.subr.bf16.mxu0 %v4975
        %6125 = vmatpush1.bf16.msra.mxu0 %v4974
        %6126 = vmatprep.subr.bf16.mxu0 %v4983
        %6127 = vmatpush1.bf16.msra.mxu0 %v4982
        %6128 = vmatprep.subr.bf16.mxu0 %v4991
        %6129 = vmatpush1.bf16.msra.mxu0 %v4990
        %6130 = vmatprep.subr.bf16.mxu0 %v4999
        %6131 = vmatpush1.bf16.msra.mxu0 %v4998
        %6132 = vmatprep.subr.bf16.mxu0 %v5007
        %6133 = vmatpush1.bf16.msra.mxu0 %v5006
        %6134 = vmatprep.subr.bf16.mxu0 %v5015
        %6135 = vmatpush1.bf16.msra.mxu0 %v5014
        %6136 = vmatprep.subr.bf16.mxu0 %v5023
        %6137 = vmatpush1.bf16.msra.mxu0 %v5022
        %6138 = vmatprep.subr.bf16.mxu0 %v5031
        %6139 = vmatpush1.bf16.msra.mxu0 %v5030
        %6140 = vmatprep.subr.bf16.mxu0 %v5039
        %6141 = vmatpush1.bf16.msra.mxu0 %v5038
        %6142 = vmatprep.subr.bf16.mxu0 %v5047
        %6143 = vmatpush1.bf16.msra.mxu0 %v5046
        %6144 = vmatprep.subr.bf16.mxu0 %v5055
        %6145 = vmatpush1.bf16.msra.mxu0 %v5054
        %6146 = vmatprep.subr.bf16.mxu0 %v5063
        %6147 = vmatpush1.bf16.msra.mxu0 %v5062
        %6148 = vmatprep.mubr.bf16.mxu0 %v2589
        %6149 = vmatmul.mubr.bf16.gmra.mrb[0].mxu0 %v2588
        %v6150 = vpop.f32.mrb[0].mxu0
        %v6151 = vadd.f32 %v6110, %v6150
        %v6152 = vpop.f32.mrb[0].mxu0
        %v6153 = vadd.f32 %v6112, %v6152
        %v6154 = vpop.f32.mrb[0].mxu0
        %v6155 = vpop.f32.mrb[0].mxu0
        %6156 = vdwg.mxu0
        %6157 = vmatprep.subr.bf16.mxu0 %v5071
        %6158 = vmatpush1.bf16.msra.mxu0 %v5070
        %6159 = vmatprep.subr.bf16.mxu0 %v5079
        %6160 = vmatpush1.bf16.msra.mxu0 %v5078
        %6161 = vmatprep.subr.bf16.mxu0 %v5087
        %6162 = vmatpush1.bf16.msra.mxu0 %v5086
        %6163 = vmatprep.subr.bf16.mxu0 %v5095
        %6164 = vmatpush1.bf16.msra.mxu0 %v5094
        %6165 = vmatprep.subr.bf16.mxu0 %v5103
        %6166 = vmatpush1.bf16.msra.mxu0 %v5102
        %6167 = vmatprep.subr.bf16.mxu0 %v5111
        %6168 = vmatpush1.bf16.msra.mxu0 %v5110
        %6169 = vmatprep.subr.bf16.mxu0 %v5119
        %6170 = vmatpush1.bf16.msra.mxu0 %v5118
        %6171 = vmatprep.subr.bf16.mxu0 %v5127
        %6172 = vmatpush1.bf16.msra.mxu0 %v5126
        %6173 = vmatprep.subr.bf16.mxu0 %v5135
        %6174 = vmatpush1.bf16.msra.mxu0 %v5134
        %6175 = vmatprep.subr.bf16.mxu0 %v5143
        %6176 = vmatpush1.bf16.msra.mxu0 %v5142
        %6177 = vmatprep.subr.bf16.mxu0 %v5151
        %6178 = vmatpush1.bf16.msra.mxu0 %v5150
        %6179 = vmatprep.subr.bf16.mxu0 %v5159
        %6180 = vmatpush1.bf16.msra.mxu0 %v5158
        %6181 = vmatprep.subr.bf16.mxu0 %v5167
        %6182 = vmatpush1.bf16.msra.mxu0 %v5166
        %6183 = vmatprep.subr.bf16.mxu0 %v5175
        %6184 = vmatpush1.bf16.msra.mxu0 %v5174
        %6185 = vmatprep.subr.bf16.mxu0 %v5183
        %6186 = vmatpush1.bf16.msra.mxu0 %v5182
        %6187 = vmatprep.subr.bf16.mxu0 %v5191
        %6188 = vmatpush1.bf16.msra.mxu0 %v5190
        %6189 = vmatprep.mubr.bf16.mxu0 %v2591
        %6190 = vmatmul.mubr.bf16.gmra.mrb[0].mxu0 %v2590
        %v6191 = vpop.f32.mrb[0].mxu0
        %v6192 = vadd.f32 %v6151, %v6191
        %v6193 = vpop.f32.mrb[0].mxu0
        %v6194 = vadd.f32 %v6153, %v6193
        %v6195 = vpop.f32.mrb[0].mxu0
        %v6196 = vpop.f32.mrb[0].mxu0
        %6197 = vdwg.mxu0
        %6198 = vmatprep.subr.bf16.mxu0 %v4689
        %6199 = vmatpush1.bf16.msra.mxu0 %v4688
        %6200 = vmatprep.subr.bf16.mxu0 %v4697
        %6201 = vmatpush1.bf16.msra.mxu0 %v4696
        %6202 = vmatprep.subr.bf16.mxu0 %v4705
        %6203 = vmatpush1.bf16.msra.mxu0 %v4704
        %6204 = vmatprep.subr.bf16.mxu0 %v4713
        %6205 = vmatpush1.bf16.msra.mxu0 %v4712
        %6206 = vmatprep.subr.bf16.mxu0 %v4721
        %6207 = vmatpush1.bf16.msra.mxu0 %v4720
        %6208 = vmatprep.subr.bf16.mxu0 %v4729
        %6209 = vmatpush1.bf16.msra.mxu0 %v4728
        %6210 = vmatprep.subr.bf16.mxu0 %v4737
        %6211 = vmatpush1.bf16.msra.mxu0 %v4736
        %6212 = vmatprep.subr.bf16.mxu0 %v4745
        %6213 = vmatpush1.bf16.msra.mxu0 %v4744
        %6214 = vmatprep.subr.bf16.mxu0 %v4753
        %6215 = vmatpush1.bf16.msra.mxu0 %v4752
        %6216 = vmatprep.subr.bf16.mxu0 %v4761
        %6217 = vmatpush1.bf16.msra.mxu0 %v4760
        %6218 = vmatprep.subr.bf16.mxu0 %v4769
        %6219 = vmatpush1.bf16.msra.mxu0 %v4768
        %6220 = vmatprep.subr.bf16.mxu0 %v4777
        %6221 = vmatpush1.bf16.msra.mxu0 %v4776
        %6222 = vmatprep.subr.bf16.mxu0 %v4785
        %6223 = vmatpush1.bf16.msra.mxu0 %v4784
        %6224 = vmatprep.subr.bf16.mxu0 %v4793
        %6225 = vmatpush1.bf16.msra.mxu0 %v4792
        %6226 = vmatprep.subr.bf16.mxu0 %v4801
        %6227 = vmatpush1.bf16.msra.mxu0 %v4800
        %6228 = vmatprep.subr.bf16.mxu0 %v4809
        %6229 = vmatpush1.bf16.msra.mxu0 %v4808
        %6230 = vmatprep.mubr.bf16.mxu0 %v2585
        %6231 = vmatmul.mubr.bf16.gmra.mrb[0].mxu0 %v2584
        %v6232 = vpop.f32.mrb[0].mxu0
        %v6233 = vadd.f32 %v3133, %v6232
        %v6234 = vpop.f32.mrb[0].mxu0
        %v6235 = vadd.f32 %v3137, %v6234
        %v6236 = vpop.f32.mrb[0].mxu0
        %v6237 = vpop.f32.mrb[0].mxu0
        %6238 = vdwg.mxu0
        %6239 = vmatprep.subr.bf16.mxu0 %v4817
        %6240 = vmatpush1.bf16.msra.mxu0 %v4816
        %6241 = vmatprep.subr.bf16.mxu0 %v4825
        %6242 = vmatpush1.bf16.msra.mxu0 %v4824
        %6243 = vmatprep.subr.bf16.mxu0 %v4833
        %6244 = vmatpush1.bf16.msra.mxu0 %v4832
        %6245 = vmatprep.subr.bf16.mxu0 %v4841
        %6246 = vmatpush1.bf16.msra.mxu0 %v4840
        %6247 = vmatprep.subr.bf16.mxu0 %v4849
        %6248 = vmatpush1.bf16.msra.mxu0 %v4848
        %6249 = vmatprep.subr.bf16.mxu0 %v4857
        %6250 = vmatpush1.bf16.msra.mxu0 %v4856
        %6251 = vmatprep.subr.bf16.mxu0 %v4865
        %6252 = vmatpush1.bf16.msra.mxu0 %v4864
        %6253 = vmatprep.subr.bf16.mxu0 %v4873
        %6254 = vmatpush1.bf16.msra.mxu0 %v4872
        %6255 = vmatprep.subr.bf16.mxu0 %v4881
        %6256 = vmatpush1.bf16.msra.mxu0 %v4880
        %6257 = vmatprep.subr.bf16.mxu0 %v4889
        %6258 = vmatpush1.bf16.msra.mxu0 %v4888
        %6259 = vmatprep.subr.bf16.mxu0 %v4897
        %6260 = vmatpush1.bf16.msra.mxu0 %v4896
        %6261 = vmatprep.subr.bf16.mxu0 %v4905
        %6262 = vmatpush1.bf16.msra.mxu0 %v4904
        %6263 = vmatprep.subr.bf16.mxu0 %v4913
        %6264 = vmatpush1.bf16.msra.mxu0 %v4912
        %6265 = vmatprep.subr.bf16.mxu0 %v4921
        %6266 = vmatpush1.bf16.msra.mxu0 %v4920
        %6267 = vmatprep.subr.bf16.mxu0 %v4929
        %6268 = vmatpush1.bf16.msra.mxu0 %v4928
        %6269 = vmatprep.subr.bf16.mxu0 %v4937
        %6270 = vmatpush1.bf16.msra.mxu0 %v4936
        %6271 = vmatprep.mubr.bf16.mxu0 %v2587
        %6272 = vmatmul.mubr.bf16.gmra.mrb[0].mxu0 %v2586
        %v6273 = vpop.f32.mrb[0].mxu0
        %v6274 = vadd.f32 %v6233, %v6273
        %v6275 = vpop.f32.mrb[0].mxu0
        %v6276 = vadd.f32 %v6235, %v6275
        %v6277 = vpop.f32.mrb[0].mxu0
        %v6278 = vpop.f32.mrb[0].mxu0
        %6279 = vdwg.mxu0
        %6280 = vmatprep.subr.bf16.mxu0 %v4945
        %6281 = vmatpush1.bf16.msra.mxu0 %v4944
        %6282 = vmatprep.subr.bf16.mxu0 %v4953
        %6283 = vmatpush1.bf16.msra.mxu0 %v4952
        %6284 = vmatprep.subr.bf16.mxu0 %v4961
        %6285 = vmatpush1.bf16.msra.mxu0 %v4960
        %6286 = vmatprep.subr.bf16.mxu0 %v4969
        %6287 = vmatpush1.bf16.msra.mxu0 %v4968
        %6288 = vmatprep.subr.bf16.mxu0 %v4977
        %6289 = vmatpush1.bf16.msra.mxu0 %v4976
        %6290 = vmatprep.subr.bf16.mxu0 %v4985
        %6291 = vmatpush1.bf16.msra.mxu0 %v4984
        %6292 = vmatprep.subr.bf16.mxu0 %v4993
        %6293 = vmatpush1.bf16.msra.mxu0 %v4992
        %6294 = vmatprep.subr.bf16.mxu0 %v5001
        %6295 = vmatpush1.bf16.msra.mxu0 %v5000
        %6296 = vmatprep.subr.bf16.mxu0 %v5009
        %6297 = vmatpush1.bf16.msra.mxu0 %v5008
        %6298 = vmatprep.subr.bf16.mxu0 %v5017
        %6299 = vmatpush1.bf16.msra.mxu0 %v5016
        %6300 = vmatprep.subr.bf16.mxu0 %v5025
        %6301 = vmatpush1.bf16.msra.mxu0 %v5024
        %6302 = vmatprep.subr.bf16.mxu0 %v5033
        %6303 = vmatpush1.bf16.msra.mxu0 %v5032
        %6304 = vmatprep.subr.bf16.mxu0 %v5041
        %6305 = vmatpush1.bf16.msra.mxu0 %v5040
        %6306 = vmatprep.subr.bf16.mxu0 %v5049
        %6307 = vmatpush1.bf16.msra.mxu0 %v5048
        %6308 = vmatprep.subr.bf16.mxu0 %v5057
        %6309 = vmatpush1.bf16.msra.mxu0 %v5056
        %6310 = vmatprep.subr.bf16.mxu0 %v5065
        %6311 = vmatpush1.bf16.msra.mxu0 %v5064
        %6312 = vmatprep.mubr.bf16.mxu0 %v2589
        %6313 = vmatmul.mubr.bf16.gmra.mrb[0].mxu0 %v2588
        %v6314 = vpop.f32.mrb[0].mxu0
        %v6315 = vadd.f32 %v6274, %v6314
        %v6316 = vpop.f32.mrb[0].mxu0
        %v6317 = vadd.f32 %v6276, %v6316
        %v6318 = vpop.f32.mrb[0].mxu0
        %v6319 = vpop.f32.mrb[0].mxu0
        %6320 = vdwg.mxu0
        %6321 = vmatprep.subr.bf16.mxu0 %v5073
        %6322 = vmatpush1.bf16.msra.mxu0 %v5072
        %6323 = vmatprep.subr.bf16.mxu0 %v5081
        %6324 = vmatpush1.bf16.msra.mxu0 %v5080
        %6325 = vmatprep.subr.bf16.mxu0 %v5089
        %6326 = vmatpush1.bf16.msra.mxu0 %v5088
        %6327 = vmatprep.subr.bf16.mxu0 %v5097
        %6328 = vmatpush1.bf16.msra.mxu0 %v5096
        %6329 = vmatprep.subr.bf16.mxu0 %v5105
        %6330 = vmatpush1.bf16.msra.mxu0 %v5104
        %6331 = vmatprep.subr.bf16.mxu0 %v5113
        %6332 = vmatpush1.bf16.msra.mxu0 %v5112
        %6333 = vmatprep.subr.bf16.mxu0 %v5121
        %6334 = vmatpush1.bf16.msra.mxu0 %v5120
        %6335 = vmatprep.subr.bf16.mxu0 %v5129
        %6336 = vmatpush1.bf16.msra.mxu0 %v5128
        %6337 = vmatprep.subr.bf16.mxu0 %v5137
        %6338 = vmatpush1.bf16.msra.mxu0 %v5136
        %6339 = vmatprep.subr.bf16.mxu0 %v5145
        %6340 = vmatpush1.bf16.msra.mxu0 %v5144
        %6341 = vmatprep.subr.bf16.mxu0 %v5153
        %6342 = vmatpush1.bf16.msra.mxu0 %v5152
        %6343 = vmatprep.subr.bf16.mxu0 %v5161
        %6344 = vmatpush1.bf16.msra.mxu0 %v5160
        %6345 = vmatprep.subr.bf16.mxu0 %v5169
        %6346 = vmatpush1.bf16.msra.mxu0 %v5168
        %6347 = vmatprep.subr.bf16.mxu0 %v5177
        %6348 = vmatpush1.bf16.msra.mxu0 %v5176
        %6349 = vmatprep.subr.bf16.mxu0 %v5185
        %6350 = vmatpush1.bf16.msra.mxu0 %v5184
        %6351 = vmatprep.subr.bf16.mxu0 %v5193
        %6352 = vmatpush1.bf16.msra.mxu0 %v5192
        %6353 = vmatprep.mubr.bf16.mxu0 %v2591
        %6354 = vmatmul.mubr.bf16.gmra.mrb[0].mxu0 %v2590
        %v6355 = vpop.f32.mrb[0].mxu0
        %v6356 = vadd.f32 %v6315, %v6355
        %v6357 = vpop.f32.mrb[0].mxu0
        %v6358 = vadd.f32 %v6317, %v6357
        %v6359 = vpop.f32.mrb[0].mxu0
        %v6360 = vpop.f32.mrb[0].mxu0
        %6361 = vdwg.mxu0
        %vm6362 = vcmp.gt.f32.partialorder %v5864, 0.0
        %vm6363 = vcmp.gt.f32.partialorder %v5866, 0.0
        %vm6364 = vcmp.gt.f32.partialorder %v6028, 0.0
        %vm6365 = vcmp.gt.f32.partialorder %v6030, 0.0
        %vm6366 = vcmp.gt.f32.partialorder %v6192, 0.0
        %vm6367 = vcmp.gt.f32.partialorder %v6194, 0.0
        %vm6368 = vcmp.gt.f32.partialorder %v6356, 0.0
        %vm6369 = vcmp.gt.f32.partialorder %v6358, 0.0
        %v6370 = vmul.f32 %v5864, 0.01
        %v6371 = vmul.f32 %v5866, 0.01
        %v6372 = vmul.f32 %v6028, 0.01
        %v6373 = vmul.f32 %v6030, 0.01
        %v6374 = vmul.f32 %v6192, 0.01
        %v6375 = vmul.f32 %v6194, 0.01
        %v6376 = vmul.f32 %v6356, 0.01
        %v6377 = vmul.f32 %v6358, 0.01
        %v6378 = vsel %vm6362, %v5864, %v6370
        %v6379 = vsel %vm6363, %v5866, %v6371
        %v6380 = vsel %vm6364, %v6028, %v6372
        %v6381 = vsel %vm6365, %v6030, %v6373
        %v6382 = vsel %vm6366, %v6192, %v6374
        %v6383 = vsel %vm6367, %v6194, %v6375
        %v6384 = vsel %vm6368, %v6356, %v6376
        %v6385 = vsel %vm6369, %v6358, %v6377
        %v6386 = vpack.c.bf16 %v6378, %v6378
        %v6387 = vpack.c.bf16 %v6379, %v6379
        %v6388 = vpack.c.bf16 %v6380, %v6380
        %v6389 = vpack.c.bf16 %v6381, %v6381
        %v6390 = vpack.c.bf16 %v6382, %v6382
        %v6391 = vpack.c.bf16 %v6383, %v6383
        %v6392 = vpack.c.bf16 %v6384, %v6384
        %v6393 = vpack.c.bf16 %v6385, %v6385
        %v6394 = vld [vmem:[%s549] sm:$0xff]
        %v6395 = vld [vmem:[%s549 + $0x8] sm:$0xff]
        %v6396 = vld [vmem:[%s549 + $0x10] sm:$0xff]
        %v6397 = vld [vmem:[%s549 + $0x18] sm:$0xff]
        %v6398 = vld [vmem:[%s549 + $0x20] sm:$0xff]
        %v6399 = vld [vmem:[%s549 + $0x28] sm:$0xff]
        %v6400 = vld [vmem:[%s549 + $0x30] sm:$0xff]
        %v6401 = vld [vmem:[%s549 + $0x38] sm:$0xff]
        %v6402 = vld [vmem:[%s549 + $0x40] sm:$0xff]
        %v6403 = vld [vmem:[%s549 + $0x48] sm:$0xff]
        %v6404 = vld [vmem:[%s549 + $0x50] sm:$0xff]
        %v6405 = vld [vmem:[%s549 + $0x58] sm:$0xff]
        %v6406 = vld [vmem:[%s549 + $0x60] sm:$0xff]
        %v6407 = vld [vmem:[%s549 + $0x68] sm:$0xff]
        %v6408 = vld [vmem:[%s549 + $0x70] sm:$0xff]
        %v6409 = vld [vmem:[%s549 + $0x78] sm:$0xff]
        %v6410 = vld [vmem:[%s549 + $0x80] sm:$0xff]
        %v6411 = vld [vmem:[%s549 + $0x88] sm:$0xff]
        %v6412 = vld [vmem:[%s549 + $0x90] sm:$0xff]
        %v6413 = vld [vmem:[%s549 + $0x98] sm:$0xff]
        %v6414 = vld [vmem:[%s549 + $0xa0] sm:$0xff]
        %v6415 = vld [vmem:[%s549 + $0xa8] sm:$0xff]
        %v6416 = vld [vmem:[%s549 + $0xb0] sm:$0xff]
        %v6417 = vld [vmem:[%s549 + $0xb8] sm:$0xff]
        %v6418 = vld [vmem:[%s549 + $0xc0] sm:$0xff]
        %v6419 = vld [vmem:[%s549 + $0xc8] sm:$0xff]
        %v6420 = vld [vmem:[%s549 + $0xd0] sm:$0xff]
        %v6421 = vld [vmem:[%s549 + $0xd8] sm:$0xff]
        %v6422 = vld [vmem:[%s549 + $0xe0] sm:$0xff]
        %v6423 = vld [vmem:[%s549 + $0xe8] sm:$0xff]
        %v6424 = vld [vmem:[%s549 + $0xf0] sm:$0xff]
        %v6425 = vld [vmem:[%s549 + $0xf8] sm:$0xff]
        %v6426 = vld [vmem:[%s549 + $0x100] sm:$0xff]
        %v6427 = vld [vmem:[%s549 + $0x108] sm:$0xff]
        %v6428 = vld [vmem:[%s549 + $0x110] sm:$0xff]
        %v6429 = vld [vmem:[%s549 + $0x118] sm:$0xff]
        %v6430 = vld [vmem:[%s549 + $0x120] sm:$0xff]
        %v6431 = vld [vmem:[%s549 + $0x128] sm:$0xff]
        %v6432 = vld [vmem:[%s549 + $0x130] sm:$0xff]
        %v6433 = vld [vmem:[%s549 + $0x138] sm:$0xff]
        %v6434 = vld [vmem:[%s549 + $0x140] sm:$0xff]
        %v6435 = vld [vmem:[%s549 + $0x148] sm:$0xff]
        %v6436 = vld [vmem:[%s549 + $0x150] sm:$0xff]
        %v6437 = vld [vmem:[%s549 + $0x158] sm:$0xff]
        %v6438 = vld [vmem:[%s549 + $0x160] sm:$0xff]
        %v6439 = vld [vmem:[%s549 + $0x168] sm:$0xff]
        %v6440 = vld [vmem:[%s549 + $0x170] sm:$0xff]
        %v6441 = vld [vmem:[%s549 + $0x178] sm:$0xff]
        %v6442 = vld [vmem:[%s549 + $0x180] sm:$0xff]
        %v6443 = vld [vmem:[%s549 + $0x188] sm:$0xff]
        %v6444 = vld [vmem:[%s549 + $0x190] sm:$0xff]
        %v6445 = vld [vmem:[%s549 + $0x198] sm:$0xff]
        %v6446 = vld [vmem:[%s549 + $0x1a0] sm:$0xff]
        %v6447 = vld [vmem:[%s549 + $0x1a8] sm:$0xff]
        %v6448 = vld [vmem:[%s549 + $0x1b0] sm:$0xff]
        %v6449 = vld [vmem:[%s549 + $0x1b8] sm:$0xff]
        %v6450 = vld [vmem:[%s549 + $0x1c0] sm:$0xff]
        %v6451 = vld [vmem:[%s549 + $0x1c8] sm:$0xff]
        %v6452 = vld [vmem:[%s549 + $0x1d0] sm:$0xff]
        %v6453 = vld [vmem:[%s549 + $0x1d8] sm:$0xff]
        %v6454 = vld [vmem:[%s549 + $0x1e0] sm:$0xff]
        %v6455 = vld [vmem:[%s549 + $0x1e8] sm:$0xff]
        %v6456 = vld [vmem:[%s549 + $0x1f0] sm:$0xff]
        %v6457 = vld [vmem:[%s549 + $0x1f8] sm:$0xff]
        %v6458 = vld [vmem:[%s549 + $0x200] sm:$0xff]
        %v6459 = vld [vmem:[%s549 + $0x208] sm:$0xff]
        %v6460 = vld [vmem:[%s549 + $0x210] sm:$0xff]
        %v6461 = vld [vmem:[%s549 + $0x218] sm:$0xff]
        %v6462 = vld [vmem:[%s549 + $0x220] sm:$0xff]
        %v6463 = vld [vmem:[%s549 + $0x228] sm:$0xff]
        %v6464 = vld [vmem:[%s549 + $0x230] sm:$0xff]
        %v6465 = vld [vmem:[%s549 + $0x238] sm:$0xff]
        %v6466 = vld [vmem:[%s549 + $0x240] sm:$0xff]
        %v6467 = vld [vmem:[%s549 + $0x248] sm:$0xff]
        %v6468 = vld [vmem:[%s549 + $0x250] sm:$0xff]
        %v6469 = vld [vmem:[%s549 + $0x258] sm:$0xff]
        %v6470 = vld [vmem:[%s549 + $0x260] sm:$0xff]
        %v6471 = vld [vmem:[%s549 + $0x268] sm:$0xff]
        %v6472 = vld [vmem:[%s549 + $0x270] sm:$0xff]
        %v6473 = vld [vmem:[%s549 + $0x278] sm:$0xff]
        %v6474 = vld [vmem:[%s549 + $0x280] sm:$0xff]
        %v6475 = vld [vmem:[%s549 + $0x288] sm:$0xff]
        %v6476 = vld [vmem:[%s549 + $0x290] sm:$0xff]
        %v6477 = vld [vmem:[%s549 + $0x298] sm:$0xff]
        %v6478 = vld [vmem:[%s549 + $0x2a0] sm:$0xff]
        %v6479 = vld [vmem:[%s549 + $0x2a8] sm:$0xff]
        %v6480 = vld [vmem:[%s549 + $0x2b0] sm:$0xff]
        %v6481 = vld [vmem:[%s549 + $0x2b8] sm:$0xff]
        %v6482 = vld [vmem:[%s549 + $0x2c0] sm:$0xff]
        %v6483 = vld [vmem:[%s549 + $0x2c8] sm:$0xff]
        %v6484 = vld [vmem:[%s549 + $0x2d0] sm:$0xff]
        %v6485 = vld [vmem:[%s549 + $0x2d8] sm:$0xff]
        %v6486 = vld [vmem:[%s549 + $0x2e0] sm:$0xff]
        %v6487 = vld [vmem:[%s549 + $0x2e8] sm:$0xff]
        %v6488 = vld [vmem:[%s549 + $0x2f0] sm:$0xff]
        %v6489 = vld [vmem:[%s549 + $0x2f8] sm:$0xff]
        %v6490 = vld [vmem:[%s549 + $0x300] sm:$0xff]
        %v6491 = vld [vmem:[%s549 + $0x308] sm:$0xff]
        %v6492 = vld [vmem:[%s549 + $0x310] sm:$0xff]
        %v6493 = vld [vmem:[%s549 + $0x318] sm:$0xff]
        %v6494 = vld [vmem:[%s549 + $0x320] sm:$0xff]
        %v6495 = vld [vmem:[%s549 + $0x328] sm:$0xff]
        %v6496 = vld [vmem:[%s549 + $0x330] sm:$0xff]
        %v6497 = vld [vmem:[%s549 + $0x338] sm:$0xff]
        %v6498 = vld [vmem:[%s549 + $0x340] sm:$0xff]
        %v6499 = vld [vmem:[%s549 + $0x348] sm:$0xff]
        %v6500 = vld [vmem:[%s549 + $0x350] sm:$0xff]
        %v6501 = vld [vmem:[%s549 + $0x358] sm:$0xff]
        %v6502 = vld [vmem:[%s549 + $0x360] sm:$0xff]
        %v6503 = vld [vmem:[%s549 + $0x368] sm:$0xff]
        %v6504 = vld [vmem:[%s549 + $0x370] sm:$0xff]
        %v6505 = vld [vmem:[%s549 + $0x378] sm:$0xff]
        %v6506 = vld [vmem:[%s549 + $0x380] sm:$0xff]
        %v6507 = vld [vmem:[%s549 + $0x388] sm:$0xff]
        %v6508 = vld [vmem:[%s549 + $0x390] sm:$0xff]
        %v6509 = vld [vmem:[%s549 + $0x398] sm:$0xff]
        %v6510 = vld [vmem:[%s549 + $0x3a0] sm:$0xff]
        %v6511 = vld [vmem:[%s549 + $0x3a8] sm:$0xff]
        %v6512 = vld [vmem:[%s549 + $0x3b0] sm:$0xff]
        %v6513 = vld [vmem:[%s549 + $0x3b8] sm:$0xff]
        %v6514 = vld [vmem:[%s549 + $0x3c0] sm:$0xff]
        %v6515 = vld [vmem:[%s549 + $0x3c8] sm:$0xff]
        %v6516 = vld [vmem:[%s549 + $0x3d0] sm:$0xff]
        %v6517 = vld [vmem:[%s549 + $0x3d8] sm:$0xff]
        %v6518 = vld [vmem:[%s549 + $0x3e0] sm:$0xff]
        %v6519 = vld [vmem:[%s549 + $0x3e8] sm:$0xff]
        %v6520 = vld [vmem:[%s549 + $0x3f0] sm:$0xff]
        %v6521 = vld [vmem:[%s549 + $0x3f8] sm:$0xff]
        %v6522 = vld [vmem:[%s549 + $0x400] sm:$0xff]
        %v6523 = vld [vmem:[%s549 + $0x408] sm:$0xff]
        %v6524 = vld [vmem:[%s549 + $0x410] sm:$0xff]
        %v6525 = vld [vmem:[%s549 + $0x418] sm:$0xff]
        %v6526 = vld [vmem:[%s549 + $0x420] sm:$0xff]
        %v6527 = vld [vmem:[%s549 + $0x428] sm:$0xff]
        %v6528 = vld [vmem:[%s549 + $0x430] sm:$0xff]
        %v6529 = vld [vmem:[%s549 + $0x438] sm:$0xff]
        %v6530 = vld [vmem:[%s549 + $0x440] sm:$0xff]
        %v6531 = vld [vmem:[%s549 + $0x448] sm:$0xff]
        %v6532 = vld [vmem:[%s549 + $0x450] sm:$0xff]
        %v6533 = vld [vmem:[%s549 + $0x458] sm:$0xff]
        %v6534 = vld [vmem:[%s549 + $0x460] sm:$0xff]
        %v6535 = vld [vmem:[%s549 + $0x468] sm:$0xff]
        %v6536 = vld [vmem:[%s549 + $0x470] sm:$0xff]
        %v6537 = vld [vmem:[%s549 + $0x478] sm:$0xff]
        %v6538 = vld [vmem:[%s549 + $0x480] sm:$0xff]
        %v6539 = vld [vmem:[%s549 + $0x488] sm:$0xff]
        %v6540 = vld [vmem:[%s549 + $0x490] sm:$0xff]
        %v6541 = vld [vmem:[%s549 + $0x498] sm:$0xff]
        %v6542 = vld [vmem:[%s549 + $0x4a0] sm:$0xff]
        %v6543 = vld [vmem:[%s549 + $0x4a8] sm:$0xff]
        %v6544 = vld [vmem:[%s549 + $0x4b0] sm:$0xff]
        %v6545 = vld [vmem:[%s549 + $0x4b8] sm:$0xff]
        %v6546 = vld [vmem:[%s549 + $0x4c0] sm:$0xff]
        %v6547 = vld [vmem:[%s549 + $0x4c8] sm:$0xff]
        %v6548 = vld [vmem:[%s549 + $0x4d0] sm:$0xff]
        %v6549 = vld [vmem:[%s549 + $0x4d8] sm:$0xff]
        %v6550 = vld [vmem:[%s549 + $0x4e0] sm:$0xff]
        %v6551 = vld [vmem:[%s549 + $0x4e8] sm:$0xff]
        %v6552 = vld [vmem:[%s549 + $0x4f0] sm:$0xff]
        %v6553 = vld [vmem:[%s549 + $0x4f8] sm:$0xff]
        %v6554 = vld [vmem:[%s549 + $0x500] sm:$0xff]
        %v6555 = vld [vmem:[%s549 + $0x508] sm:$0xff]
        %v6556 = vld [vmem:[%s549 + $0x510] sm:$0xff]
        %v6557 = vld [vmem:[%s549 + $0x518] sm:$0xff]
        %v6558 = vld [vmem:[%s549 + $0x520] sm:$0xff]
        %v6559 = vld [vmem:[%s549 + $0x528] sm:$0xff]
        %v6560 = vld [vmem:[%s549 + $0x530] sm:$0xff]
        %v6561 = vld [vmem:[%s549 + $0x538] sm:$0xff]
        %v6562 = vld [vmem:[%s549 + $0x540] sm:$0xff]
        %v6563 = vld [vmem:[%s549 + $0x548] sm:$0xff]
        %v6564 = vld [vmem:[%s549 + $0x550] sm:$0xff]
        %v6565 = vld [vmem:[%s549 + $0x558] sm:$0xff]
        %v6566 = vld [vmem:[%s549 + $0x560] sm:$0xff]
        %v6567 = vld [vmem:[%s549 + $0x568] sm:$0xff]
        %v6568 = vld [vmem:[%s549 + $0x570] sm:$0xff]
        %v6569 = vld [vmem:[%s549 + $0x578] sm:$0xff]
        %v6570 = vld [vmem:[%s549 + $0x580] sm:$0xff]
        %v6571 = vld [vmem:[%s549 + $0x588] sm:$0xff]
        %v6572 = vld [vmem:[%s549 + $0x590] sm:$0xff]
        %v6573 = vld [vmem:[%s549 + $0x598] sm:$0xff]
        %v6574 = vld [vmem:[%s549 + $0x5a0] sm:$0xff]
        %v6575 = vld [vmem:[%s549 + $0x5a8] sm:$0xff]
        %v6576 = vld [vmem:[%s549 + $0x5b0] sm:$0xff]
        %v6577 = vld [vmem:[%s549 + $0x5b8] sm:$0xff]
        %v6578 = vld [vmem:[%s549 + $0x5c0] sm:$0xff]
        %v6579 = vld [vmem:[%s549 + $0x5c8] sm:$0xff]
        %v6580 = vld [vmem:[%s549 + $0x5d0] sm:$0xff]
        %v6581 = vld [vmem:[%s549 + $0x5d8] sm:$0xff]
        %v6582 = vld [vmem:[%s549 + $0x5e0] sm:$0xff]
        %v6583 = vld [vmem:[%s549 + $0x5e8] sm:$0xff]
        %v6584 = vld [vmem:[%s549 + $0x5f0] sm:$0xff]
        %v6585 = vld [vmem:[%s549 + $0x5f8] sm:$0xff]
        %v6586 = vld [vmem:[%s549 + $0x600] sm:$0xff]
        %v6587 = vld [vmem:[%s549 + $0x608] sm:$0xff]
        %v6588 = vld [vmem:[%s549 + $0x610] sm:$0xff]
        %v6589 = vld [vmem:[%s549 + $0x618] sm:$0xff]
        %v6590 = vld [vmem:[%s549 + $0x620] sm:$0xff]
        %v6591 = vld [vmem:[%s549 + $0x628] sm:$0xff]
        %v6592 = vld [vmem:[%s549 + $0x630] sm:$0xff]
        %v6593 = vld [vmem:[%s549 + $0x638] sm:$0xff]
        %v6594 = vld [vmem:[%s549 + $0x640] sm:$0xff]
        %v6595 = vld [vmem:[%s549 + $0x648] sm:$0xff]
        %v6596 = vld [vmem:[%s549 + $0x650] sm:$0xff]
        %v6597 = vld [vmem:[%s549 + $0x658] sm:$0xff]
        %v6598 = vld [vmem:[%s549 + $0x660] sm:$0xff]
        %v6599 = vld [vmem:[%s549 + $0x668] sm:$0xff]
        %v6600 = vld [vmem:[%s549 + $0x670] sm:$0xff]
        %v6601 = vld [vmem:[%s549 + $0x678] sm:$0xff]
        %v6602 = vld [vmem:[%s549 + $0x680] sm:$0xff]
        %v6603 = vld [vmem:[%s549 + $0x688] sm:$0xff]
        %v6604 = vld [vmem:[%s549 + $0x690] sm:$0xff]
        %v6605 = vld [vmem:[%s549 + $0x698] sm:$0xff]
        %v6606 = vld [vmem:[%s549 + $0x6a0] sm:$0xff]
        %v6607 = vld [vmem:[%s549 + $0x6a8] sm:$0xff]
        %v6608 = vld [vmem:[%s549 + $0x6b0] sm:$0xff]
        %v6609 = vld [vmem:[%s549 + $0x6b8] sm:$0xff]
        %v6610 = vld [vmem:[%s549 + $0x6c0] sm:$0xff]
        %v6611 = vld [vmem:[%s549 + $0x6c8] sm:$0xff]
        %v6612 = vld [vmem:[%s549 + $0x6d0] sm:$0xff]
        %v6613 = vld [vmem:[%s549 + $0x6d8] sm:$0xff]
        %v6614 = vld [vmem:[%s549 + $0x6e0] sm:$0xff]
        %v6615 = vld [vmem:[%s549 + $0x6e8] sm:$0xff]
        %v6616 = vld [vmem:[%s549 + $0x6f0] sm:$0xff]
        %v6617 = vld [vmem:[%s549 + $0x6f8] sm:$0xff]
        %v6618 = vld [vmem:[%s549 + $0x700] sm:$0xff]
        %v6619 = vld [vmem:[%s549 + $0x708] sm:$0xff]
        %v6620 = vld [vmem:[%s549 + $0x710] sm:$0xff]
        %v6621 = vld [vmem:[%s549 + $0x718] sm:$0xff]
        %v6622 = vld [vmem:[%s549 + $0x720] sm:$0xff]
        %v6623 = vld [vmem:[%s549 + $0x728] sm:$0xff]
        %v6624 = vld [vmem:[%s549 + $0x730] sm:$0xff]
        %v6625 = vld [vmem:[%s549 + $0x738] sm:$0xff]
        %v6626 = vld [vmem:[%s549 + $0x740] sm:$0xff]
        %v6627 = vld [vmem:[%s549 + $0x748] sm:$0xff]
        %v6628 = vld [vmem:[%s549 + $0x750] sm:$0xff]
        %v6629 = vld [vmem:[%s549 + $0x758] sm:$0xff]
        %v6630 = vld [vmem:[%s549 + $0x760] sm:$0xff]
        %v6631 = vld [vmem:[%s549 + $0x768] sm:$0xff]
        %v6632 = vld [vmem:[%s549 + $0x770] sm:$0xff]
        %v6633 = vld [vmem:[%s549 + $0x778] sm:$0xff]
        %v6634 = vld [vmem:[%s549 + $0x780] sm:$0xff]
        %v6635 = vld [vmem:[%s549 + $0x788] sm:$0xff]
        %v6636 = vld [vmem:[%s549 + $0x790] sm:$0xff]
        %v6637 = vld [vmem:[%s549 + $0x798] sm:$0xff]
        %v6638 = vld [vmem:[%s549 + $0x7a0] sm:$0xff]
        %v6639 = vld [vmem:[%s549 + $0x7a8] sm:$0xff]
        %v6640 = vld [vmem:[%s549 + $0x7b0] sm:$0xff]
        %v6641 = vld [vmem:[%s549 + $0x7b8] sm:$0xff]
        %v6642 = vld [vmem:[%s549 + $0x7c0] sm:$0xff]
        %v6643 = vld [vmem:[%s549 + $0x7c8] sm:$0xff]
        %v6644 = vld [vmem:[%s549 + $0x7d0] sm:$0xff]
        %v6645 = vld [vmem:[%s549 + $0x7d8] sm:$0xff]
        %v6646 = vld [vmem:[%s549 + $0x7e0] sm:$0xff]
        %v6647 = vld [vmem:[%s549 + $0x7e8] sm:$0xff]
        %v6648 = vld [vmem:[%s549 + $0x7f0] sm:$0xff]
        %v6649 = vld [vmem:[%s549 + $0x7f8] sm:$0xff]
        %v6650 = vld [vmem:[%s549 + $0x800] sm:$0xff]
        %v6651 = vld [vmem:[%s549 + $0x808] sm:$0xff]
        %v6652 = vld [vmem:[%s549 + $0x810] sm:$0xff]
        %v6653 = vld [vmem:[%s549 + $0x818] sm:$0xff]
        %v6654 = vld [vmem:[%s549 + $0x820] sm:$0xff]
        %v6655 = vld [vmem:[%s549 + $0x828] sm:$0xff]
        %v6656 = vld [vmem:[%s549 + $0x830] sm:$0xff]
        %v6657 = vld [vmem:[%s549 + $0x838] sm:$0xff]
        %v6658 = vld [vmem:[%s549 + $0x840] sm:$0xff]
        %v6659 = vld [vmem:[%s549 + $0x848] sm:$0xff]
        %v6660 = vld [vmem:[%s549 + $0x850] sm:$0xff]
        %v6661 = vld [vmem:[%s549 + $0x858] sm:$0xff]
        %v6662 = vld [vmem:[%s549 + $0x860] sm:$0xff]
        %v6663 = vld [vmem:[%s549 + $0x868] sm:$0xff]
        %v6664 = vld [vmem:[%s549 + $0x870] sm:$0xff]
        %v6665 = vld [vmem:[%s549 + $0x878] sm:$0xff]
        %v6666 = vld [vmem:[%s549 + $0x880] sm:$0xff]
        %v6667 = vld [vmem:[%s549 + $0x888] sm:$0xff]
        %v6668 = vld [vmem:[%s549 + $0x890] sm:$0xff]
        %v6669 = vld [vmem:[%s549 + $0x898] sm:$0xff]
        %v6670 = vld [vmem:[%s549 + $0x8a0] sm:$0xff]
        %v6671 = vld [vmem:[%s549 + $0x8a8] sm:$0xff]
        %v6672 = vld [vmem:[%s549 + $0x8b0] sm:$0xff]
        %v6673 = vld [vmem:[%s549 + $0x8b8] sm:$0xff]
        %v6674 = vld [vmem:[%s549 + $0x8c0] sm:$0xff]
        %v6675 = vld [vmem:[%s549 + $0x8c8] sm:$0xff]
        %v6676 = vld [vmem:[%s549 + $0x8d0] sm:$0xff]
        %v6677 = vld [vmem:[%s549 + $0x8d8] sm:$0xff]
        %v6678 = vld [vmem:[%s549 + $0x8e0] sm:$0xff]
        %v6679 = vld [vmem:[%s549 + $0x8e8] sm:$0xff]
        %v6680 = vld [vmem:[%s549 + $0x8f0] sm:$0xff]
        %v6681 = vld [vmem:[%s549 + $0x8f8] sm:$0xff]
        %v6682 = vld [vmem:[%s549 + $0x900] sm:$0xff]
        %v6683 = vld [vmem:[%s549 + $0x908] sm:$0xff]
        %v6684 = vld [vmem:[%s549 + $0x910] sm:$0xff]
        %v6685 = vld [vmem:[%s549 + $0x918] sm:$0xff]
        %v6686 = vld [vmem:[%s549 + $0x920] sm:$0xff]
        %v6687 = vld [vmem:[%s549 + $0x928] sm:$0xff]
        %v6688 = vld [vmem:[%s549 + $0x930] sm:$0xff]
        %v6689 = vld [vmem:[%s549 + $0x938] sm:$0xff]
        %v6690 = vld [vmem:[%s549 + $0x940] sm:$0xff]
        %v6691 = vld [vmem:[%s549 + $0x948] sm:$0xff]
        %v6692 = vld [vmem:[%s549 + $0x950] sm:$0xff]
        %v6693 = vld [vmem:[%s549 + $0x958] sm:$0xff]
        %v6694 = vld [vmem:[%s549 + $0x960] sm:$0xff]
        %v6695 = vld [vmem:[%s549 + $0x968] sm:$0xff]
        %v6696 = vld [vmem:[%s549 + $0x970] sm:$0xff]
        %v6697 = vld [vmem:[%s549 + $0x978] sm:$0xff]
        %v6698 = vld [vmem:[%s549 + $0x980] sm:$0xff]
        %v6699 = vld [vmem:[%s549 + $0x988] sm:$0xff]
        %v6700 = vld [vmem:[%s549 + $0x990] sm:$0xff]
        %v6701 = vld [vmem:[%s549 + $0x998] sm:$0xff]
        %v6702 = vld [vmem:[%s549 + $0x9a0] sm:$0xff]
        %v6703 = vld [vmem:[%s549 + $0x9a8] sm:$0xff]
        %v6704 = vld [vmem:[%s549 + $0x9b0] sm:$0xff]
        %v6705 = vld [vmem:[%s549 + $0x9b8] sm:$0xff]
        %v6706 = vld [vmem:[%s549 + $0x9c0] sm:$0xff]
        %v6707 = vld [vmem:[%s549 + $0x9c8] sm:$0xff]
        %v6708 = vld [vmem:[%s549 + $0x9d0] sm:$0xff]
        %v6709 = vld [vmem:[%s549 + $0x9d8] sm:$0xff]
        %v6710 = vld [vmem:[%s549 + $0x9e0] sm:$0xff]
        %v6711 = vld [vmem:[%s549 + $0x9e8] sm:$0xff]
        %v6712 = vld [vmem:[%s549 + $0x9f0] sm:$0xff]
        %v6713 = vld [vmem:[%s549 + $0x9f8] sm:$0xff]
        %v6714 = vld [vmem:[%s549 + $0xa00] sm:$0xff]
        %v6715 = vld [vmem:[%s549 + $0xa08] sm:$0xff]
        %v6716 = vld [vmem:[%s549 + $0xa10] sm:$0xff]
        %v6717 = vld [vmem:[%s549 + $0xa18] sm:$0xff]
        %v6718 = vld [vmem:[%s549 + $0xa20] sm:$0xff]
        %v6719 = vld [vmem:[%s549 + $0xa28] sm:$0xff]
        %v6720 = vld [vmem:[%s549 + $0xa30] sm:$0xff]
        %v6721 = vld [vmem:[%s549 + $0xa38] sm:$0xff]
        %v6722 = vld [vmem:[%s549 + $0xa40] sm:$0xff]
        %v6723 = vld [vmem:[%s549 + $0xa48] sm:$0xff]
        %v6724 = vld [vmem:[%s549 + $0xa50] sm:$0xff]
        %v6725 = vld [vmem:[%s549 + $0xa58] sm:$0xff]
        %v6726 = vld [vmem:[%s549 + $0xa60] sm:$0xff]
        %v6727 = vld [vmem:[%s549 + $0xa68] sm:$0xff]
        %v6728 = vld [vmem:[%s549 + $0xa70] sm:$0xff]
        %v6729 = vld [vmem:[%s549 + $0xa78] sm:$0xff]
        %v6730 = vld [vmem:[%s549 + $0xa80] sm:$0xff]
        %v6731 = vld [vmem:[%s549 + $0xa88] sm:$0xff]
        %v6732 = vld [vmem:[%s549 + $0xa90] sm:$0xff]
        %v6733 = vld [vmem:[%s549 + $0xa98] sm:$0xff]
        %v6734 = vld [vmem:[%s549 + $0xaa0] sm:$0xff]
        %v6735 = vld [vmem:[%s549 + $0xaa8] sm:$0xff]
        %v6736 = vld [vmem:[%s549 + $0xab0] sm:$0xff]
        %v6737 = vld [vmem:[%s549 + $0xab8] sm:$0xff]
        %v6738 = vld [vmem:[%s549 + $0xac0] sm:$0xff]
        %v6739 = vld [vmem:[%s549 + $0xac8] sm:$0xff]
        %v6740 = vld [vmem:[%s549 + $0xad0] sm:$0xff]
        %v6741 = vld [vmem:[%s549 + $0xad8] sm:$0xff]
        %v6742 = vld [vmem:[%s549 + $0xae0] sm:$0xff]
        %v6743 = vld [vmem:[%s549 + $0xae8] sm:$0xff]
        %v6744 = vld [vmem:[%s549 + $0xaf0] sm:$0xff]
        %v6745 = vld [vmem:[%s549 + $0xaf8] sm:$0xff]
        %v6746 = vld [vmem:[%s549 + $0xb00] sm:$0xff]
        %v6747 = vld [vmem:[%s549 + $0xb08] sm:$0xff]
        %v6748 = vld [vmem:[%s549 + $0xb10] sm:$0xff]
        %v6749 = vld [vmem:[%s549 + $0xb18] sm:$0xff]
        %v6750 = vld [vmem:[%s549 + $0xb20] sm:$0xff]
        %v6751 = vld [vmem:[%s549 + $0xb28] sm:$0xff]
        %v6752 = vld [vmem:[%s549 + $0xb30] sm:$0xff]
        %v6753 = vld [vmem:[%s549 + $0xb38] sm:$0xff]
        %v6754 = vld [vmem:[%s549 + $0xb40] sm:$0xff]
        %v6755 = vld [vmem:[%s549 + $0xb48] sm:$0xff]
        %v6756 = vld [vmem:[%s549 + $0xb50] sm:$0xff]
        %v6757 = vld [vmem:[%s549 + $0xb58] sm:$0xff]
        %v6758 = vld [vmem:[%s549 + $0xb60] sm:$0xff]
        %v6759 = vld [vmem:[%s549 + $0xb68] sm:$0xff]
        %v6760 = vld [vmem:[%s549 + $0xb70] sm:$0xff]
        %v6761 = vld [vmem:[%s549 + $0xb78] sm:$0xff]
        %v6762 = vld [vmem:[%s549 + $0xb80] sm:$0xff]
        %v6763 = vld [vmem:[%s549 + $0xb88] sm:$0xff]
        %v6764 = vld [vmem:[%s549 + $0xb90] sm:$0xff]
        %v6765 = vld [vmem:[%s549 + $0xb98] sm:$0xff]
        %v6766 = vld [vmem:[%s549 + $0xba0] sm:$0xff]
        %v6767 = vld [vmem:[%s549 + $0xba8] sm:$0xff]
        %v6768 = vld [vmem:[%s549 + $0xbb0] sm:$0xff]
        %v6769 = vld [vmem:[%s549 + $0xbb8] sm:$0xff]
        %v6770 = vld [vmem:[%s549 + $0xbc0] sm:$0xff]
        %v6771 = vld [vmem:[%s549 + $0xbc8] sm:$0xff]
        %v6772 = vld [vmem:[%s549 + $0xbd0] sm:$0xff]
        %v6773 = vld [vmem:[%s549 + $0xbd8] sm:$0xff]
        %v6774 = vld [vmem:[%s549 + $0xbe0] sm:$0xff]
        %v6775 = vld [vmem:[%s549 + $0xbe8] sm:$0xff]
        %v6776 = vld [vmem:[%s549 + $0xbf0] sm:$0xff]
        %v6777 = vld [vmem:[%s549 + $0xbf8] sm:$0xff]
        %v6778 = vld [vmem:[%s549 + $0xc00] sm:$0xff]
        %v6779 = vld [vmem:[%s549 + $0xc08] sm:$0xff]
        %v6780 = vld [vmem:[%s549 + $0xc10] sm:$0xff]
        %v6781 = vld [vmem:[%s549 + $0xc18] sm:$0xff]
        %v6782 = vld [vmem:[%s549 + $0xc20] sm:$0xff]
        %v6783 = vld [vmem:[%s549 + $0xc28] sm:$0xff]
        %v6784 = vld [vmem:[%s549 + $0xc30] sm:$0xff]
        %v6785 = vld [vmem:[%s549 + $0xc38] sm:$0xff]
        %v6786 = vld [vmem:[%s549 + $0xc40] sm:$0xff]
        %v6787 = vld [vmem:[%s549 + $0xc48] sm:$0xff]
        %v6788 = vld [vmem:[%s549 + $0xc50] sm:$0xff]
        %v6789 = vld [vmem:[%s549 + $0xc58] sm:$0xff]
        %v6790 = vld [vmem:[%s549 + $0xc60] sm:$0xff]
        %v6791 = vld [vmem:[%s549 + $0xc68] sm:$0xff]
        %v6792 = vld [vmem:[%s549 + $0xc70] sm:$0xff]
        %v6793 = vld [vmem:[%s549 + $0xc78] sm:$0xff]
        %v6794 = vld [vmem:[%s549 + $0xc80] sm:$0xff]
        %v6795 = vld [vmem:[%s549 + $0xc88] sm:$0xff]
        %v6796 = vld [vmem:[%s549 + $0xc90] sm:$0xff]
        %v6797 = vld [vmem:[%s549 + $0xc98] sm:$0xff]
        %v6798 = vld [vmem:[%s549 + $0xca0] sm:$0xff]
        %v6799 = vld [vmem:[%s549 + $0xca8] sm:$0xff]
        %v6800 = vld [vmem:[%s549 + $0xcb0] sm:$0xff]
        %v6801 = vld [vmem:[%s549 + $0xcb8] sm:$0xff]
        %v6802 = vld [vmem:[%s549 + $0xcc0] sm:$0xff]
        %v6803 = vld [vmem:[%s549 + $0xcc8] sm:$0xff]
        %v6804 = vld [vmem:[%s549 + $0xcd0] sm:$0xff]
        %v6805 = vld [vmem:[%s549 + $0xcd8] sm:$0xff]
        %v6806 = vld [vmem:[%s549 + $0xce0] sm:$0xff]
        %v6807 = vld [vmem:[%s549 + $0xce8] sm:$0xff]
        %v6808 = vld [vmem:[%s549 + $0xcf0] sm:$0xff]
        %v6809 = vld [vmem:[%s549 + $0xcf8] sm:$0xff]
        %v6810 = vld [vmem:[%s549 + $0xd00] sm:$0xff]
        %v6811 = vld [vmem:[%s549 + $0xd08] sm:$0xff]
        %v6812 = vld [vmem:[%s549 + $0xd10] sm:$0xff]
        %v6813 = vld [vmem:[%s549 + $0xd18] sm:$0xff]
        %v6814 = vld [vmem:[%s549 + $0xd20] sm:$0xff]
        %v6815 = vld [vmem:[%s549 + $0xd28] sm:$0xff]
        %v6816 = vld [vmem:[%s549 + $0xd30] sm:$0xff]
        %v6817 = vld [vmem:[%s549 + $0xd38] sm:$0xff]
        %v6818 = vld [vmem:[%s549 + $0xd40] sm:$0xff]
        %v6819 = vld [vmem:[%s549 + $0xd48] sm:$0xff]
        %v6820 = vld [vmem:[%s549 + $0xd50] sm:$0xff]
        %v6821 = vld [vmem:[%s549 + $0xd58] sm:$0xff]
        %v6822 = vld [vmem:[%s549 + $0xd60] sm:$0xff]
        %v6823 = vld [vmem:[%s549 + $0xd68] sm:$0xff]
        %v6824 = vld [vmem:[%s549 + $0xd70] sm:$0xff]
        %v6825 = vld [vmem:[%s549 + $0xd78] sm:$0xff]
        %v6826 = vld [vmem:[%s549 + $0xd80] sm:$0xff]
        %v6827 = vld [vmem:[%s549 + $0xd88] sm:$0xff]
        %v6828 = vld [vmem:[%s549 + $0xd90] sm:$0xff]
        %v6829 = vld [vmem:[%s549 + $0xd98] sm:$0xff]
        %v6830 = vld [vmem:[%s549 + $0xda0] sm:$0xff]
        %v6831 = vld [vmem:[%s549 + $0xda8] sm:$0xff]
        %v6832 = vld [vmem:[%s549 + $0xdb0] sm:$0xff]
        %v6833 = vld [vmem:[%s549 + $0xdb8] sm:$0xff]
        %v6834 = vld [vmem:[%s549 + $0xdc0] sm:$0xff]
        %v6835 = vld [vmem:[%s549 + $0xdc8] sm:$0xff]
        %v6836 = vld [vmem:[%s549 + $0xdd0] sm:$0xff]
        %v6837 = vld [vmem:[%s549 + $0xdd8] sm:$0xff]
        %v6838 = vld [vmem:[%s549 + $0xde0] sm:$0xff]
        %v6839 = vld [vmem:[%s549 + $0xde8] sm:$0xff]
        %v6840 = vld [vmem:[%s549 + $0xdf0] sm:$0xff]
        %v6841 = vld [vmem:[%s549 + $0xdf8] sm:$0xff]
        %v6842 = vld [vmem:[%s549 + $0xe00] sm:$0xff]
        %v6843 = vld [vmem:[%s549 + $0xe08] sm:$0xff]
        %v6844 = vld [vmem:[%s549 + $0xe10] sm:$0xff]
        %v6845 = vld [vmem:[%s549 + $0xe18] sm:$0xff]
        %v6846 = vld [vmem:[%s549 + $0xe20] sm:$0xff]
        %v6847 = vld [vmem:[%s549 + $0xe28] sm:$0xff]
        %v6848 = vld [vmem:[%s549 + $0xe30] sm:$0xff]
        %v6849 = vld [vmem:[%s549 + $0xe38] sm:$0xff]
        %v6850 = vld [vmem:[%s549 + $0xe40] sm:$0xff]
        %v6851 = vld [vmem:[%s549 + $0xe48] sm:$0xff]
        %v6852 = vld [vmem:[%s549 + $0xe50] sm:$0xff]
        %v6853 = vld [vmem:[%s549 + $0xe58] sm:$0xff]
        %v6854 = vld [vmem:[%s549 + $0xe60] sm:$0xff]
        %v6855 = vld [vmem:[%s549 + $0xe68] sm:$0xff]
        %v6856 = vld [vmem:[%s549 + $0xe70] sm:$0xff]
        %v6857 = vld [vmem:[%s549 + $0xe78] sm:$0xff]
        %v6858 = vld [vmem:[%s549 + $0xe80] sm:$0xff]
        %v6859 = vld [vmem:[%s549 + $0xe88] sm:$0xff]
        %v6860 = vld [vmem:[%s549 + $0xe90] sm:$0xff]
        %v6861 = vld [vmem:[%s549 + $0xe98] sm:$0xff]
        %v6862 = vld [vmem:[%s549 + $0xea0] sm:$0xff]
        %v6863 = vld [vmem:[%s549 + $0xea8] sm:$0xff]
        %v6864 = vld [vmem:[%s549 + $0xeb0] sm:$0xff]
        %v6865 = vld [vmem:[%s549 + $0xeb8] sm:$0xff]
        %v6866 = vld [vmem:[%s549 + $0xec0] sm:$0xff]
        %v6867 = vld [vmem:[%s549 + $0xec8] sm:$0xff]
        %v6868 = vld [vmem:[%s549 + $0xed0] sm:$0xff]
        %v6869 = vld [vmem:[%s549 + $0xed8] sm:$0xff]
        %v6870 = vld [vmem:[%s549 + $0xee0] sm:$0xff]
        %v6871 = vld [vmem:[%s549 + $0xee8] sm:$0xff]
        %v6872 = vld [vmem:[%s549 + $0xef0] sm:$0xff]
        %v6873 = vld [vmem:[%s549 + $0xef8] sm:$0xff]
        %v6874 = vld [vmem:[%s549 + $0xf00] sm:$0xff]
        %v6875 = vld [vmem:[%s549 + $0xf08] sm:$0xff]
        %v6876 = vld [vmem:[%s549 + $0xf10] sm:$0xff]
        %v6877 = vld [vmem:[%s549 + $0xf18] sm:$0xff]
        %v6878 = vld [vmem:[%s549 + $0xf20] sm:$0xff]
        %v6879 = vld [vmem:[%s549 + $0xf28] sm:$0xff]
        %v6880 = vld [vmem:[%s549 + $0xf30] sm:$0xff]
        %v6881 = vld [vmem:[%s549 + $0xf38] sm:$0xff]
        %v6882 = vld [vmem:[%s549 + $0xf40] sm:$0xff]
        %v6883 = vld [vmem:[%s549 + $0xf48] sm:$0xff]
        %v6884 = vld [vmem:[%s549 + $0xf50] sm:$0xff]
        %v6885 = vld [vmem:[%s549 + $0xf58] sm:$0xff]
        %v6886 = vld [vmem:[%s549 + $0xf60] sm:$0xff]
        %v6887 = vld [vmem:[%s549 + $0xf68] sm:$0xff]
        %v6888 = vld [vmem:[%s549 + $0xf70] sm:$0xff]
        %v6889 = vld [vmem:[%s549 + $0xf78] sm:$0xff]
        %v6890 = vld [vmem:[%s549 + $0xf80] sm:$0xff]
        %v6891 = vld [vmem:[%s549 + $0xf88] sm:$0xff]
        %v6892 = vld [vmem:[%s549 + $0xf90] sm:$0xff]
        %v6893 = vld [vmem:[%s549 + $0xf98] sm:$0xff]
        %v6894 = vld [vmem:[%s549 + $0xfa0] sm:$0xff]
        %v6895 = vld [vmem:[%s549 + $0xfa8] sm:$0xff]
        %v6896 = vld [vmem:[%s549 + $0xfb0] sm:$0xff]
        %v6897 = vld [vmem:[%s549 + $0xfb8] sm:$0xff]
        %v6898 = vld [vmem:[%s549 + $0xfc0] sm:$0xff]
        %v6899 = vld [vmem:[%s549 + $0xfc8] sm:$0xff]
        %v6900 = vld [vmem:[%s549 + $0xfd0] sm:$0xff]
        %v6901 = vld [vmem:[%s549 + $0xfd8] sm:$0xff]
        %v6902 = vld [vmem:[%s549 + $0xfe0] sm:$0xff]
        %v6903 = vld [vmem:[%s549 + $0xfe8] sm:$0xff]
        %v6904 = vld [vmem:[%s549 + $0xff0] sm:$0xff]
        %v6905 = vld [vmem:[%s549 + $0xff8] sm:$0xff]
        %v6906 = vld [vmem:[%s558] sm:$0xff]
        %v6908 = vlaneseq
        %v6909 = vshrl.u32 %v6908, 7
        %v6910 = vsub.s32 0, %v6909
        %v6911 = vrot.slane %v6906, %v6910
        %v6912 = vlaneseq
        %v6913 = vshrl.u32 %v6912, 7
        %v6914 = vsub.s32 1, %v6913
        %v6915 = vrot.slane %v6906, %v6914
        %v6916 = vlaneseq
        %v6917 = vshrl.u32 %v6916, 7
        %v6918 = vsub.s32 2, %v6917
        %v6919 = vrot.slane %v6906, %v6918
        %v6920 = vlaneseq
        %v6921 = vshrl.u32 %v6920, 7
        %v6922 = vsub.s32 3, %v6921
        %v6923 = vrot.slane %v6906, %v6922
        %v6924 = vlaneseq
        %v6925 = vshrl.u32 %v6924, 7
        %v6926 = vsub.s32 4, %v6925
        %v6927 = vrot.slane %v6906, %v6926
        %v6928 = vlaneseq
        %v6929 = vshrl.u32 %v6928, 7
        %v6930 = vsub.s32 5, %v6929
        %v6931 = vrot.slane %v6906, %v6930
        %v6932 = vlaneseq
        %v6933 = vshrl.u32 %v6932, 7
        %v6934 = vsub.s32 6, %v6933
        %v6935 = vrot.slane %v6906, %v6934
        %v6936 = vlaneseq
        %v6937 = vshrl.u32 %v6936, 7
        %v6938 = vsub.s32 7, %v6937
        %v6939 = vrot.slane %v6906, %v6938
        %v7460 = vunpack.c.l.b16 %v6394
        %v7461 = vunpack.c.h.b16 %v6394
        %v7462 = vunpack.c.l.b16 %v6395
        %v7463 = vunpack.c.h.b16 %v6395
        %v7464 = vunpack.c.l.b16 %v6396
        %v7465 = vunpack.c.h.b16 %v6396
        %v7466 = vunpack.c.l.b16 %v6397
        %v7467 = vunpack.c.h.b16 %v6397
        %v7468 = vunpack.c.l.b16 %v6398
        %v7469 = vunpack.c.h.b16 %v6398
        %v7470 = vunpack.c.l.b16 %v6399
        %v7471 = vunpack.c.h.b16 %v6399
        %v7472 = vunpack.c.l.b16 %v6400
        %v7473 = vunpack.c.h.b16 %v6400
        %v7474 = vunpack.c.l.b16 %v6401
        %v7475 = vunpack.c.h.b16 %v6401
        %v7476 = vunpack.c.l.b16 %v6402
        %v7477 = vunpack.c.h.b16 %v6402
        %v7478 = vunpack.c.l.b16 %v6403
        %v7479 = vunpack.c.h.b16 %v6403
        %v7480 = vunpack.c.l.b16 %v6404
        %v7481 = vunpack.c.h.b16 %v6404
        %v7482 = vunpack.c.l.b16 %v6405
        %v7483 = vunpack.c.h.b16 %v6405
        %v7484 = vunpack.c.l.b16 %v6406
        %v7485 = vunpack.c.h.b16 %v6406
        %v7486 = vunpack.c.l.b16 %v6407
        %v7487 = vunpack.c.h.b16 %v6407
        %v7488 = vunpack.c.l.b16 %v6408
        %v7489 = vunpack.c.h.b16 %v6408
        %v7490 = vunpack.c.l.b16 %v6409
        %v7491 = vunpack.c.h.b16 %v6409
        %v7492 = vunpack.c.l.b16 %v6410
        %v7493 = vunpack.c.h.b16 %v6410
        %v7494 = vunpack.c.l.b16 %v6411
        %v7495 = vunpack.c.h.b16 %v6411
        %v7496 = vunpack.c.l.b16 %v6412
        %v7497 = vunpack.c.h.b16 %v6412
        %v7498 = vunpack.c.l.b16 %v6413
        %v7499 = vunpack.c.h.b16 %v6413
        %v7500 = vunpack.c.l.b16 %v6414
        %v7501 = vunpack.c.h.b16 %v6414
        %v7502 = vunpack.c.l.b16 %v6415
        %v7503 = vunpack.c.h.b16 %v6415
        %v7504 = vunpack.c.l.b16 %v6416
        %v7505 = vunpack.c.h.b16 %v6416
        %v7506 = vunpack.c.l.b16 %v6417
        %v7507 = vunpack.c.h.b16 %v6417
        %v7508 = vunpack.c.l.b16 %v6418
        %v7509 = vunpack.c.h.b16 %v6418
        %v7510 = vunpack.c.l.b16 %v6419
        %v7511 = vunpack.c.h.b16 %v6419
        %v7512 = vunpack.c.l.b16 %v6420
        %v7513 = vunpack.c.h.b16 %v6420
        %v7514 = vunpack.c.l.b16 %v6421
        %v7515 = vunpack.c.h.b16 %v6421
        %v7516 = vunpack.c.l.b16 %v6422
        %v7517 = vunpack.c.h.b16 %v6422
        %v7518 = vunpack.c.l.b16 %v6423
        %v7519 = vunpack.c.h.b16 %v6423
        %v7520 = vunpack.c.l.b16 %v6424
        %v7521 = vunpack.c.h.b16 %v6424
        %v7522 = vunpack.c.l.b16 %v6425
        %v7523 = vunpack.c.h.b16 %v6425
        %v7524 = vunpack.c.l.b16 %v6426
        %v7525 = vunpack.c.h.b16 %v6426
        %v7526 = vunpack.c.l.b16 %v6427
        %v7527 = vunpack.c.h.b16 %v6427
        %v7528 = vunpack.c.l.b16 %v6428
        %v7529 = vunpack.c.h.b16 %v6428
        %v7530 = vunpack.c.l.b16 %v6429
        %v7531 = vunpack.c.h.b16 %v6429
        %v7532 = vunpack.c.l.b16 %v6430
        %v7533 = vunpack.c.h.b16 %v6430
        %v7534 = vunpack.c.l.b16 %v6431
        %v7535 = vunpack.c.h.b16 %v6431
        %v7536 = vunpack.c.l.b16 %v6432
        %v7537 = vunpack.c.h.b16 %v6432
        %v7538 = vunpack.c.l.b16 %v6433
        %v7539 = vunpack.c.h.b16 %v6433
        %v7540 = vunpack.c.l.b16 %v6434
        %v7541 = vunpack.c.h.b16 %v6434
        %v7542 = vunpack.c.l.b16 %v6435
        %v7543 = vunpack.c.h.b16 %v6435
        %v7544 = vunpack.c.l.b16 %v6436
        %v7545 = vunpack.c.h.b16 %v6436
        %v7546 = vunpack.c.l.b16 %v6437
        %v7547 = vunpack.c.h.b16 %v6437
        %v7548 = vunpack.c.l.b16 %v6438
        %v7549 = vunpack.c.h.b16 %v6438
        %v7550 = vunpack.c.l.b16 %v6439
        %v7551 = vunpack.c.h.b16 %v6439
        %v7552 = vunpack.c.l.b16 %v6440
        %v7553 = vunpack.c.h.b16 %v6440
        %v7554 = vunpack.c.l.b16 %v6441
        %v7555 = vunpack.c.h.b16 %v6441
        %v7556 = vunpack.c.l.b16 %v6442
        %v7557 = vunpack.c.h.b16 %v6442
        %v7558 = vunpack.c.l.b16 %v6443
        %v7559 = vunpack.c.h.b16 %v6443
        %v7560 = vunpack.c.l.b16 %v6444
        %v7561 = vunpack.c.h.b16 %v6444
        %v7562 = vunpack.c.l.b16 %v6445
        %v7563 = vunpack.c.h.b16 %v6445
        %v7564 = vunpack.c.l.b16 %v6446
        %v7565 = vunpack.c.h.b16 %v6446
        %v7566 = vunpack.c.l.b16 %v6447
        %v7567 = vunpack.c.h.b16 %v6447
        %v7568 = vunpack.c.l.b16 %v6448
        %v7569 = vunpack.c.h.b16 %v6448
        %v7570 = vunpack.c.l.b16 %v6449
        %v7571 = vunpack.c.h.b16 %v6449
        %v7572 = vunpack.c.l.b16 %v6450
        %v7573 = vunpack.c.h.b16 %v6450
        %v7574 = vunpack.c.l.b16 %v6451
        %v7575 = vunpack.c.h.b16 %v6451
        %v7576 = vunpack.c.l.b16 %v6452
        %v7577 = vunpack.c.h.b16 %v6452
        %v7578 = vunpack.c.l.b16 %v6453
        %v7579 = vunpack.c.h.b16 %v6453
        %v7580 = vunpack.c.l.b16 %v6454
        %v7581 = vunpack.c.h.b16 %v6454
        %v7582 = vunpack.c.l.b16 %v6455
        %v7583 = vunpack.c.h.b16 %v6455
        %v7584 = vunpack.c.l.b16 %v6456
        %v7585 = vunpack.c.h.b16 %v6456
        %v7586 = vunpack.c.l.b16 %v6457
        %v7587 = vunpack.c.h.b16 %v6457
        %v7588 = vunpack.c.l.b16 %v6458
        %v7589 = vunpack.c.h.b16 %v6458
        %v7590 = vunpack.c.l.b16 %v6459
        %v7591 = vunpack.c.h.b16 %v6459
        %v7592 = vunpack.c.l.b16 %v6460
        %v7593 = vunpack.c.h.b16 %v6460
        %v7594 = vunpack.c.l.b16 %v6461
        %v7595 = vunpack.c.h.b16 %v6461
        %v7596 = vunpack.c.l.b16 %v6462
        %v7597 = vunpack.c.h.b16 %v6462
        %v7598 = vunpack.c.l.b16 %v6463
        %v7599 = vunpack.c.h.b16 %v6463
        %v7600 = vunpack.c.l.b16 %v6464
        %v7601 = vunpack.c.h.b16 %v6464
        %v7602 = vunpack.c.l.b16 %v6465
        %v7603 = vunpack.c.h.b16 %v6465
        %v7604 = vunpack.c.l.b16 %v6466
        %v7605 = vunpack.c.h.b16 %v6466
        %v7606 = vunpack.c.l.b16 %v6467
        %v7607 = vunpack.c.h.b16 %v6467
        %v7608 = vunpack.c.l.b16 %v6468
        %v7609 = vunpack.c.h.b16 %v6468
        %v7610 = vunpack.c.l.b16 %v6469
        %v7611 = vunpack.c.h.b16 %v6469
        %v7612 = vunpack.c.l.b16 %v6470
        %v7613 = vunpack.c.h.b16 %v6470
        %v7614 = vunpack.c.l.b16 %v6471
        %v7615 = vunpack.c.h.b16 %v6471
        %v7616 = vunpack.c.l.b16 %v6472
        %v7617 = vunpack.c.h.b16 %v6472
        %v7618 = vunpack.c.l.b16 %v6473
        %v7619 = vunpack.c.h.b16 %v6473
        %v7620 = vunpack.c.l.b16 %v6474
        %v7621 = vunpack.c.h.b16 %v6474
        %v7622 = vunpack.c.l.b16 %v6475
        %v7623 = vunpack.c.h.b16 %v6475
        %v7624 = vunpack.c.l.b16 %v6476
        %v7625 = vunpack.c.h.b16 %v6476
        %v7626 = vunpack.c.l.b16 %v6477
        %v7627 = vunpack.c.h.b16 %v6477
        %v7628 = vunpack.c.l.b16 %v6478
        %v7629 = vunpack.c.h.b16 %v6478
        %v7630 = vunpack.c.l.b16 %v6479
        %v7631 = vunpack.c.h.b16 %v6479
        %v7632 = vunpack.c.l.b16 %v6480
        %v7633 = vunpack.c.h.b16 %v6480
        %v7634 = vunpack.c.l.b16 %v6481
        %v7635 = vunpack.c.h.b16 %v6481
        %v7636 = vunpack.c.l.b16 %v6482
        %v7637 = vunpack.c.h.b16 %v6482
        %v7638 = vunpack.c.l.b16 %v6483
        %v7639 = vunpack.c.h.b16 %v6483
        %v7640 = vunpack.c.l.b16 %v6484
        %v7641 = vunpack.c.h.b16 %v6484
        %v7642 = vunpack.c.l.b16 %v6485
        %v7643 = vunpack.c.h.b16 %v6485
        %v7644 = vunpack.c.l.b16 %v6486
        %v7645 = vunpack.c.h.b16 %v6486
        %v7646 = vunpack.c.l.b16 %v6487
        %v7647 = vunpack.c.h.b16 %v6487
        %v7648 = vunpack.c.l.b16 %v6488
        %v7649 = vunpack.c.h.b16 %v6488
        %v7650 = vunpack.c.l.b16 %v6489
        %v7651 = vunpack.c.h.b16 %v6489
        %v7652 = vunpack.c.l.b16 %v6490
        %v7653 = vunpack.c.h.b16 %v6490
        %v7654 = vunpack.c.l.b16 %v6491
        %v7655 = vunpack.c.h.b16 %v6491
        %v7656 = vunpack.c.l.b16 %v6492
        %v7657 = vunpack.c.h.b16 %v6492
        %v7658 = vunpack.c.l.b16 %v6493
        %v7659 = vunpack.c.h.b16 %v6493
        %v7660 = vunpack.c.l.b16 %v6494
        %v7661 = vunpack.c.h.b16 %v6494
        %v7662 = vunpack.c.l.b16 %v6495
        %v7663 = vunpack.c.h.b16 %v6495
        %v7664 = vunpack.c.l.b16 %v6496
        %v7665 = vunpack.c.h.b16 %v6496
        %v7666 = vunpack.c.l.b16 %v6497
        %v7667 = vunpack.c.h.b16 %v6497
        %v7668 = vunpack.c.l.b16 %v6498
        %v7669 = vunpack.c.h.b16 %v6498
        %v7670 = vunpack.c.l.b16 %v6499
        %v7671 = vunpack.c.h.b16 %v6499
        %v7672 = vunpack.c.l.b16 %v6500
        %v7673 = vunpack.c.h.b16 %v6500
        %v7674 = vunpack.c.l.b16 %v6501
        %v7675 = vunpack.c.h.b16 %v6501
        %v7676 = vunpack.c.l.b16 %v6502
        %v7677 = vunpack.c.h.b16 %v6502
        %v7678 = vunpack.c.l.b16 %v6503
        %v7679 = vunpack.c.h.b16 %v6503
        %v7680 = vunpack.c.l.b16 %v6504
        %v7681 = vunpack.c.h.b16 %v6504
        %v7682 = vunpack.c.l.b16 %v6505
        %v7683 = vunpack.c.h.b16 %v6505
        %v7684 = vunpack.c.l.b16 %v6506
        %v7685 = vunpack.c.h.b16 %v6506
        %v7686 = vunpack.c.l.b16 %v6507
        %v7687 = vunpack.c.h.b16 %v6507
        %v7688 = vunpack.c.l.b16 %v6508
        %v7689 = vunpack.c.h.b16 %v6508
        %v7690 = vunpack.c.l.b16 %v6509
        %v7691 = vunpack.c.h.b16 %v6509
        %v7692 = vunpack.c.l.b16 %v6510
        %v7693 = vunpack.c.h.b16 %v6510
        %v7694 = vunpack.c.l.b16 %v6511
        %v7695 = vunpack.c.h.b16 %v6511
        %v7696 = vunpack.c.l.b16 %v6512
        %v7697 = vunpack.c.h.b16 %v6512
        %v7698 = vunpack.c.l.b16 %v6513
        %v7699 = vunpack.c.h.b16 %v6513
        %v7700 = vunpack.c.l.b16 %v6514
        %v7701 = vunpack.c.h.b16 %v6514
        %v7702 = vunpack.c.l.b16 %v6515
        %v7703 = vunpack.c.h.b16 %v6515
        %v7704 = vunpack.c.l.b16 %v6516
        %v7705 = vunpack.c.h.b16 %v6516
        %v7706 = vunpack.c.l.b16 %v6517
        %v7707 = vunpack.c.h.b16 %v6517
        %v7708 = vunpack.c.l.b16 %v6518
        %v7709 = vunpack.c.h.b16 %v6518
        %v7710 = vunpack.c.l.b16 %v6519
        %v7711 = vunpack.c.h.b16 %v6519
        %v7712 = vunpack.c.l.b16 %v6520
        %v7713 = vunpack.c.h.b16 %v6520
        %v7714 = vunpack.c.l.b16 %v6521
        %v7715 = vunpack.c.h.b16 %v6521
        %v7716 = vunpack.c.l.b16 %v6522
        %v7717 = vunpack.c.h.b16 %v6522
        %v7718 = vunpack.c.l.b16 %v6523
        %v7719 = vunpack.c.h.b16 %v6523
        %v7720 = vunpack.c.l.b16 %v6524
        %v7721 = vunpack.c.h.b16 %v6524
        %v7722 = vunpack.c.l.b16 %v6525
        %v7723 = vunpack.c.h.b16 %v6525
        %v7724 = vunpack.c.l.b16 %v6526
        %v7725 = vunpack.c.h.b16 %v6526
        %v7726 = vunpack.c.l.b16 %v6527
        %v7727 = vunpack.c.h.b16 %v6527
        %v7728 = vunpack.c.l.b16 %v6528
        %v7729 = vunpack.c.h.b16 %v6528
        %v7730 = vunpack.c.l.b16 %v6529
        %v7731 = vunpack.c.h.b16 %v6529
        %v7732 = vunpack.c.l.b16 %v6530
        %v7733 = vunpack.c.h.b16 %v6530
        %v7734 = vunpack.c.l.b16 %v6531
        %v7735 = vunpack.c.h.b16 %v6531
        %v7736 = vunpack.c.l.b16 %v6532
        %v7737 = vunpack.c.h.b16 %v6532
        %v7738 = vunpack.c.l.b16 %v6533
        %v7739 = vunpack.c.h.b16 %v6533
        %v7740 = vunpack.c.l.b16 %v6534
        %v7741 = vunpack.c.h.b16 %v6534
        %v7742 = vunpack.c.l.b16 %v6535
        %v7743 = vunpack.c.h.b16 %v6535
        %v7744 = vunpack.c.l.b16 %v6536
        %v7745 = vunpack.c.h.b16 %v6536
        %v7746 = vunpack.c.l.b16 %v6537
        %v7747 = vunpack.c.h.b16 %v6537
        %v7748 = vunpack.c.l.b16 %v6538
        %v7749 = vunpack.c.h.b16 %v6538
        %v7750 = vunpack.c.l.b16 %v6539
        %v7751 = vunpack.c.h.b16 %v6539
        %v7752 = vunpack.c.l.b16 %v6540
        %v7753 = vunpack.c.h.b16 %v6540
        %v7754 = vunpack.c.l.b16 %v6541
        %v7755 = vunpack.c.h.b16 %v6541
        %v7756 = vunpack.c.l.b16 %v6542
        %v7757 = vunpack.c.h.b16 %v6542
        %v7758 = vunpack.c.l.b16 %v6543
        %v7759 = vunpack.c.h.b16 %v6543
        %v7760 = vunpack.c.l.b16 %v6544
        %v7761 = vunpack.c.h.b16 %v6544
        %v7762 = vunpack.c.l.b16 %v6545
        %v7763 = vunpack.c.h.b16 %v6545
        %v7764 = vunpack.c.l.b16 %v6546
        %v7765 = vunpack.c.h.b16 %v6546
        %v7766 = vunpack.c.l.b16 %v6547
        %v7767 = vunpack.c.h.b16 %v6547
        %v7768 = vunpack.c.l.b16 %v6548
        %v7769 = vunpack.c.h.b16 %v6548
        %v7770 = vunpack.c.l.b16 %v6549
        %v7771 = vunpack.c.h.b16 %v6549
        %v7772 = vunpack.c.l.b16 %v6550
        %v7773 = vunpack.c.h.b16 %v6550
        %v7774 = vunpack.c.l.b16 %v6551
        %v7775 = vunpack.c.h.b16 %v6551
        %v7776 = vunpack.c.l.b16 %v6552
        %v7777 = vunpack.c.h.b16 %v6552
        %v7778 = vunpack.c.l.b16 %v6553
        %v7779 = vunpack.c.h.b16 %v6553
        %v7780 = vunpack.c.l.b16 %v6554
        %v7781 = vunpack.c.h.b16 %v6554
        %v7782 = vunpack.c.l.b16 %v6555
        %v7783 = vunpack.c.h.b16 %v6555
        %v7784 = vunpack.c.l.b16 %v6556
        %v7785 = vunpack.c.h.b16 %v6556
        %v7786 = vunpack.c.l.b16 %v6557
        %v7787 = vunpack.c.h.b16 %v6557
        %v7788 = vunpack.c.l.b16 %v6558
        %v7789 = vunpack.c.h.b16 %v6558
        %v7790 = vunpack.c.l.b16 %v6559
        %v7791 = vunpack.c.h.b16 %v6559
        %v7792 = vunpack.c.l.b16 %v6560
        %v7793 = vunpack.c.h.b16 %v6560
        %v7794 = vunpack.c.l.b16 %v6561
        %v7795 = vunpack.c.h.b16 %v6561
        %v7796 = vunpack.c.l.b16 %v6562
        %v7797 = vunpack.c.h.b16 %v6562
        %v7798 = vunpack.c.l.b16 %v6563
        %v7799 = vunpack.c.h.b16 %v6563
        %v7800 = vunpack.c.l.b16 %v6564
        %v7801 = vunpack.c.h.b16 %v6564
        %v7802 = vunpack.c.l.b16 %v6565
        %v7803 = vunpack.c.h.b16 %v6565
        %v7804 = vunpack.c.l.b16 %v6566
        %v7805 = vunpack.c.h.b16 %v6566
        %v7806 = vunpack.c.l.b16 %v6567
        %v7807 = vunpack.c.h.b16 %v6567
        %v7808 = vunpack.c.l.b16 %v6568
        %v7809 = vunpack.c.h.b16 %v6568
        %v7810 = vunpack.c.l.b16 %v6569
        %v7811 = vunpack.c.h.b16 %v6569
        %v7812 = vunpack.c.l.b16 %v6570
        %v7813 = vunpack.c.h.b16 %v6570
        %v7814 = vunpack.c.l.b16 %v6571
        %v7815 = vunpack.c.h.b16 %v6571
        %v7816 = vunpack.c.l.b16 %v6572
        %v7817 = vunpack.c.h.b16 %v6572
        %v7818 = vunpack.c.l.b16 %v6573
        %v7819 = vunpack.c.h.b16 %v6573
        %v7820 = vunpack.c.l.b16 %v6574
        %v7821 = vunpack.c.h.b16 %v6574
        %v7822 = vunpack.c.l.b16 %v6575
        %v7823 = vunpack.c.h.b16 %v6575
        %v7824 = vunpack.c.l.b16 %v6576
        %v7825 = vunpack.c.h.b16 %v6576
        %v7826 = vunpack.c.l.b16 %v6577
        %v7827 = vunpack.c.h.b16 %v6577
        %v7828 = vunpack.c.l.b16 %v6578
        %v7829 = vunpack.c.h.b16 %v6578
        %v7830 = vunpack.c.l.b16 %v6579
        %v7831 = vunpack.c.h.b16 %v6579
        %v7832 = vunpack.c.l.b16 %v6580
        %v7833 = vunpack.c.h.b16 %v6580
        %v7834 = vunpack.c.l.b16 %v6581
        %v7835 = vunpack.c.h.b16 %v6581
        %v7836 = vunpack.c.l.b16 %v6582
        %v7837 = vunpack.c.h.b16 %v6582
        %v7838 = vunpack.c.l.b16 %v6583
        %v7839 = vunpack.c.h.b16 %v6583
        %v7840 = vunpack.c.l.b16 %v6584
        %v7841 = vunpack.c.h.b16 %v6584
        %v7842 = vunpack.c.l.b16 %v6585
        %v7843 = vunpack.c.h.b16 %v6585
        %v7844 = vunpack.c.l.b16 %v6586
        %v7845 = vunpack.c.h.b16 %v6586
        %v7846 = vunpack.c.l.b16 %v6587
        %v7847 = vunpack.c.h.b16 %v6587
        %v7848 = vunpack.c.l.b16 %v6588
        %v7849 = vunpack.c.h.b16 %v6588
        %v7850 = vunpack.c.l.b16 %v6589
        %v7851 = vunpack.c.h.b16 %v6589
        %v7852 = vunpack.c.l.b16 %v6590
        %v7853 = vunpack.c.h.b16 %v6590
        %v7854 = vunpack.c.l.b16 %v6591
        %v7855 = vunpack.c.h.b16 %v6591
        %v7856 = vunpack.c.l.b16 %v6592
        %v7857 = vunpack.c.h.b16 %v6592
        %v7858 = vunpack.c.l.b16 %v6593
        %v7859 = vunpack.c.h.b16 %v6593
        %v7860 = vunpack.c.l.b16 %v6594
        %v7861 = vunpack.c.h.b16 %v6594
        %v7862 = vunpack.c.l.b16 %v6595
        %v7863 = vunpack.c.h.b16 %v6595
        %v7864 = vunpack.c.l.b16 %v6596
        %v7865 = vunpack.c.h.b16 %v6596
        %v7866 = vunpack.c.l.b16 %v6597
        %v7867 = vunpack.c.h.b16 %v6597
        %v7868 = vunpack.c.l.b16 %v6598
        %v7869 = vunpack.c.h.b16 %v6598
        %v7870 = vunpack.c.l.b16 %v6599
        %v7871 = vunpack.c.h.b16 %v6599
        %v7872 = vunpack.c.l.b16 %v6600
        %v7873 = vunpack.c.h.b16 %v6600
        %v7874 = vunpack.c.l.b16 %v6601
        %v7875 = vunpack.c.h.b16 %v6601
        %v7876 = vunpack.c.l.b16 %v6602
        %v7877 = vunpack.c.h.b16 %v6602
        %v7878 = vunpack.c.l.b16 %v6603
        %v7879 = vunpack.c.h.b16 %v6603
        %v7880 = vunpack.c.l.b16 %v6604
        %v7881 = vunpack.c.h.b16 %v6604
        %v7882 = vunpack.c.l.b16 %v6605
        %v7883 = vunpack.c.h.b16 %v6605
        %v7884 = vunpack.c.l.b16 %v6606
        %v7885 = vunpack.c.h.b16 %v6606
        %v7886 = vunpack.c.l.b16 %v6607
        %v7887 = vunpack.c.h.b16 %v6607
        %v7888 = vunpack.c.l.b16 %v6608
        %v7889 = vunpack.c.h.b16 %v6608
        %v7890 = vunpack.c.l.b16 %v6609
        %v7891 = vunpack.c.h.b16 %v6609
        %v7892 = vunpack.c.l.b16 %v6610
        %v7893 = vunpack.c.h.b16 %v6610
        %v7894 = vunpack.c.l.b16 %v6611
        %v7895 = vunpack.c.h.b16 %v6611
        %v7896 = vunpack.c.l.b16 %v6612
        %v7897 = vunpack.c.h.b16 %v6612
        %v7898 = vunpack.c.l.b16 %v6613
        %v7899 = vunpack.c.h.b16 %v6613
        %v7900 = vunpack.c.l.b16 %v6614
        %v7901 = vunpack.c.h.b16 %v6614
        %v7902 = vunpack.c.l.b16 %v6615
        %v7903 = vunpack.c.h.b16 %v6615
        %v7904 = vunpack.c.l.b16 %v6616
        %v7905 = vunpack.c.h.b16 %v6616
        %v7906 = vunpack.c.l.b16 %v6617
        %v7907 = vunpack.c.h.b16 %v6617
        %v7908 = vunpack.c.l.b16 %v6618
        %v7909 = vunpack.c.h.b16 %v6618
        %v7910 = vunpack.c.l.b16 %v6619
        %v7911 = vunpack.c.h.b16 %v6619
        %v7912 = vunpack.c.l.b16 %v6620
        %v7913 = vunpack.c.h.b16 %v6620
        %v7914 = vunpack.c.l.b16 %v6621
        %v7915 = vunpack.c.h.b16 %v6621
        %v7916 = vunpack.c.l.b16 %v6622
        %v7917 = vunpack.c.h.b16 %v6622
        %v7918 = vunpack.c.l.b16 %v6623
        %v7919 = vunpack.c.h.b16 %v6623
        %v7920 = vunpack.c.l.b16 %v6624
        %v7921 = vunpack.c.h.b16 %v6624
        %v7922 = vunpack.c.l.b16 %v6625
        %v7923 = vunpack.c.h.b16 %v6625
        %v7924 = vunpack.c.l.b16 %v6626
        %v7925 = vunpack.c.h.b16 %v6626
        %v7926 = vunpack.c.l.b16 %v6627
        %v7927 = vunpack.c.h.b16 %v6627
        %v7928 = vunpack.c.l.b16 %v6628
        %v7929 = vunpack.c.h.b16 %v6628
        %v7930 = vunpack.c.l.b16 %v6629
        %v7931 = vunpack.c.h.b16 %v6629
        %v7932 = vunpack.c.l.b16 %v6630
        %v7933 = vunpack.c.h.b16 %v6630
        %v7934 = vunpack.c.l.b16 %v6631
        %v7935 = vunpack.c.h.b16 %v6631
        %v7936 = vunpack.c.l.b16 %v6632
        %v7937 = vunpack.c.h.b16 %v6632
        %v7938 = vunpack.c.l.b16 %v6633
        %v7939 = vunpack.c.h.b16 %v6633
        %v7940 = vunpack.c.l.b16 %v6634
        %v7941 = vunpack.c.h.b16 %v6634
        %v7942 = vunpack.c.l.b16 %v6635
        %v7943 = vunpack.c.h.b16 %v6635
        %v7944 = vunpack.c.l.b16 %v6636
        %v7945 = vunpack.c.h.b16 %v6636
        %v7946 = vunpack.c.l.b16 %v6637
        %v7947 = vunpack.c.h.b16 %v6637
        %v7948 = vunpack.c.l.b16 %v6638
        %v7949 = vunpack.c.h.b16 %v6638
        %v7950 = vunpack.c.l.b16 %v6639
        %v7951 = vunpack.c.h.b16 %v6639
        %v7952 = vunpack.c.l.b16 %v6640
        %v7953 = vunpack.c.h.b16 %v6640
        %v7954 = vunpack.c.l.b16 %v6641
        %v7955 = vunpack.c.h.b16 %v6641
        %v7956 = vunpack.c.l.b16 %v6642
        %v7957 = vunpack.c.h.b16 %v6642
        %v7958 = vunpack.c.l.b16 %v6643
        %v7959 = vunpack.c.h.b16 %v6643
        %v7960 = vunpack.c.l.b16 %v6644
        %v7961 = vunpack.c.h.b16 %v6644
        %v7962 = vunpack.c.l.b16 %v6645
        %v7963 = vunpack.c.h.b16 %v6645
        %v7964 = vunpack.c.l.b16 %v6646
        %v7965 = vunpack.c.h.b16 %v6646
        %v7966 = vunpack.c.l.b16 %v6647
        %v7967 = vunpack.c.h.b16 %v6647
        %v7968 = vunpack.c.l.b16 %v6648
        %v7969 = vunpack.c.h.b16 %v6648
        %v7970 = vunpack.c.l.b16 %v6649
        %v7971 = vunpack.c.h.b16 %v6649
        %v7972 = vunpack.c.l.b16 %v6650
        %v7973 = vunpack.c.h.b16 %v6650
        %v7974 = vunpack.c.l.b16 %v6651
        %v7975 = vunpack.c.h.b16 %v6651
        %v7976 = vunpack.c.l.b16 %v6652
        %v7977 = vunpack.c.h.b16 %v6652
        %v7978 = vunpack.c.l.b16 %v6653
        %v7979 = vunpack.c.h.b16 %v6653
        %v7980 = vunpack.c.l.b16 %v6654
        %v7981 = vunpack.c.h.b16 %v6654
        %v7982 = vunpack.c.l.b16 %v6655
        %v7983 = vunpack.c.h.b16 %v6655
        %v7984 = vunpack.c.l.b16 %v6656
        %v7985 = vunpack.c.h.b16 %v6656
        %v7986 = vunpack.c.l.b16 %v6657
        %v7987 = vunpack.c.h.b16 %v6657
        %v7988 = vunpack.c.l.b16 %v6658
        %v7989 = vunpack.c.h.b16 %v6658
        %v7990 = vunpack.c.l.b16 %v6659
        %v7991 = vunpack.c.h.b16 %v6659
        %v7992 = vunpack.c.l.b16 %v6660
        %v7993 = vunpack.c.h.b16 %v6660
        %v7994 = vunpack.c.l.b16 %v6661
        %v7995 = vunpack.c.h.b16 %v6661
        %v7996 = vunpack.c.l.b16 %v6662
        %v7997 = vunpack.c.h.b16 %v6662
        %v7998 = vunpack.c.l.b16 %v6663
        %v7999 = vunpack.c.h.b16 %v6663
        %v8000 = vunpack.c.l.b16 %v6664
        %v8001 = vunpack.c.h.b16 %v6664
        %v8002 = vunpack.c.l.b16 %v6665
        %v8003 = vunpack.c.h.b16 %v6665
        %v8004 = vunpack.c.l.b16 %v6666
        %v8005 = vunpack.c.h.b16 %v6666
        %v8006 = vunpack.c.l.b16 %v6667
        %v8007 = vunpack.c.h.b16 %v6667
        %v8008 = vunpack.c.l.b16 %v6668
        %v8009 = vunpack.c.h.b16 %v6668
        %v8010 = vunpack.c.l.b16 %v6669
        %v8011 = vunpack.c.h.b16 %v6669
        %v8012 = vunpack.c.l.b16 %v6670
        %v8013 = vunpack.c.h.b16 %v6670
        %v8014 = vunpack.c.l.b16 %v6671
        %v8015 = vunpack.c.h.b16 %v6671
        %v8016 = vunpack.c.l.b16 %v6672
        %v8017 = vunpack.c.h.b16 %v6672
        %v8018 = vunpack.c.l.b16 %v6673
        %v8019 = vunpack.c.h.b16 %v6673
        %v8020 = vunpack.c.l.b16 %v6674
        %v8021 = vunpack.c.h.b16 %v6674
        %v8022 = vunpack.c.l.b16 %v6675
        %v8023 = vunpack.c.h.b16 %v6675
        %v8024 = vunpack.c.l.b16 %v6676
        %v8025 = vunpack.c.h.b16 %v6676
        %v8026 = vunpack.c.l.b16 %v6677
        %v8027 = vunpack.c.h.b16 %v6677
        %v8028 = vunpack.c.l.b16 %v6678
        %v8029 = vunpack.c.h.b16 %v6678
        %v8030 = vunpack.c.l.b16 %v6679
        %v8031 = vunpack.c.h.b16 %v6679
        %v8032 = vunpack.c.l.b16 %v6680
        %v8033 = vunpack.c.h.b16 %v6680
        %v8034 = vunpack.c.l.b16 %v6681
        %v8035 = vunpack.c.h.b16 %v6681
        %v8036 = vunpack.c.l.b16 %v6682
        %v8037 = vunpack.c.h.b16 %v6682
        %v8038 = vunpack.c.l.b16 %v6683
        %v8039 = vunpack.c.h.b16 %v6683
        %v8040 = vunpack.c.l.b16 %v6684
        %v8041 = vunpack.c.h.b16 %v6684
        %v8042 = vunpack.c.l.b16 %v6685
        %v8043 = vunpack.c.h.b16 %v6685
        %v8044 = vunpack.c.l.b16 %v6686
        %v8045 = vunpack.c.h.b16 %v6686
        %v8046 = vunpack.c.l.b16 %v6687
        %v8047 = vunpack.c.h.b16 %v6687
        %v8048 = vunpack.c.l.b16 %v6688
        %v8049 = vunpack.c.h.b16 %v6688
        %v8050 = vunpack.c.l.b16 %v6689
        %v8051 = vunpack.c.h.b16 %v6689
        %v8052 = vunpack.c.l.b16 %v6690
        %v8053 = vunpack.c.h.b16 %v6690
        %v8054 = vunpack.c.l.b16 %v6691
        %v8055 = vunpack.c.h.b16 %v6691
        %v8056 = vunpack.c.l.b16 %v6692
        %v8057 = vunpack.c.h.b16 %v6692
        %v8058 = vunpack.c.l.b16 %v6693
        %v8059 = vunpack.c.h.b16 %v6693
        %v8060 = vunpack.c.l.b16 %v6694
        %v8061 = vunpack.c.h.b16 %v6694
        %v8062 = vunpack.c.l.b16 %v6695
        %v8063 = vunpack.c.h.b16 %v6695
        %v8064 = vunpack.c.l.b16 %v6696
        %v8065 = vunpack.c.h.b16 %v6696
        %v8066 = vunpack.c.l.b16 %v6697
        %v8067 = vunpack.c.h.b16 %v6697
        %v8068 = vunpack.c.l.b16 %v6698
        %v8069 = vunpack.c.h.b16 %v6698
        %v8070 = vunpack.c.l.b16 %v6699
        %v8071 = vunpack.c.h.b16 %v6699
        %v8072 = vunpack.c.l.b16 %v6700
        %v8073 = vunpack.c.h.b16 %v6700
        %v8074 = vunpack.c.l.b16 %v6701
        %v8075 = vunpack.c.h.b16 %v6701
        %v8076 = vunpack.c.l.b16 %v6702
        %v8077 = vunpack.c.h.b16 %v6702
        %v8078 = vunpack.c.l.b16 %v6703
        %v8079 = vunpack.c.h.b16 %v6703
        %v8080 = vunpack.c.l.b16 %v6704
        %v8081 = vunpack.c.h.b16 %v6704
        %v8082 = vunpack.c.l.b16 %v6705
        %v8083 = vunpack.c.h.b16 %v6705
        %v8084 = vunpack.c.l.b16 %v6706
        %v8085 = vunpack.c.h.b16 %v6706
        %v8086 = vunpack.c.l.b16 %v6707
        %v8087 = vunpack.c.h.b16 %v6707
        %v8088 = vunpack.c.l.b16 %v6708
        %v8089 = vunpack.c.h.b16 %v6708
        %v8090 = vunpack.c.l.b16 %v6709
        %v8091 = vunpack.c.h.b16 %v6709
        %v8092 = vunpack.c.l.b16 %v6710
        %v8093 = vunpack.c.h.b16 %v6710
        %v8094 = vunpack.c.l.b16 %v6711
        %v8095 = vunpack.c.h.b16 %v6711
        %v8096 = vunpack.c.l.b16 %v6712
        %v8097 = vunpack.c.h.b16 %v6712
        %v8098 = vunpack.c.l.b16 %v6713
        %v8099 = vunpack.c.h.b16 %v6713
        %v8100 = vunpack.c.l.b16 %v6714
        %v8101 = vunpack.c.h.b16 %v6714
        %v8102 = vunpack.c.l.b16 %v6715
        %v8103 = vunpack.c.h.b16 %v6715
        %v8104 = vunpack.c.l.b16 %v6716
        %v8105 = vunpack.c.h.b16 %v6716
        %v8106 = vunpack.c.l.b16 %v6717
        %v8107 = vunpack.c.h.b16 %v6717
        %v8108 = vunpack.c.l.b16 %v6718
        %v8109 = vunpack.c.h.b16 %v6718
        %v8110 = vunpack.c.l.b16 %v6719
        %v8111 = vunpack.c.h.b16 %v6719
        %v8112 = vunpack.c.l.b16 %v6720
        %v8113 = vunpack.c.h.b16 %v6720
        %v8114 = vunpack.c.l.b16 %v6721
        %v8115 = vunpack.c.h.b16 %v6721
        %v8116 = vunpack.c.l.b16 %v6722
        %v8117 = vunpack.c.h.b16 %v6722
        %v8118 = vunpack.c.l.b16 %v6723
        %v8119 = vunpack.c.h.b16 %v6723
        %v8120 = vunpack.c.l.b16 %v6724
        %v8121 = vunpack.c.h.b16 %v6724
        %v8122 = vunpack.c.l.b16 %v6725
        %v8123 = vunpack.c.h.b16 %v6725
        %v8124 = vunpack.c.l.b16 %v6726
        %v8125 = vunpack.c.h.b16 %v6726
        %v8126 = vunpack.c.l.b16 %v6727
        %v8127 = vunpack.c.h.b16 %v6727
        %v8128 = vunpack.c.l.b16 %v6728
        %v8129 = vunpack.c.h.b16 %v6728
        %v8130 = vunpack.c.l.b16 %v6729
        %v8131 = vunpack.c.h.b16 %v6729
        %v8132 = vunpack.c.l.b16 %v6730
        %v8133 = vunpack.c.h.b16 %v6730
        %v8134 = vunpack.c.l.b16 %v6731
        %v8135 = vunpack.c.h.b16 %v6731
        %v8136 = vunpack.c.l.b16 %v6732
        %v8137 = vunpack.c.h.b16 %v6732
        %v8138 = vunpack.c.l.b16 %v6733
        %v8139 = vunpack.c.h.b16 %v6733
        %v8140 = vunpack.c.l.b16 %v6734
        %v8141 = vunpack.c.h.b16 %v6734
        %v8142 = vunpack.c.l.b16 %v6735
        %v8143 = vunpack.c.h.b16 %v6735
        %v8144 = vunpack.c.l.b16 %v6736
        %v8145 = vunpack.c.h.b16 %v6736
        %v8146 = vunpack.c.l.b16 %v6737
        %v8147 = vunpack.c.h.b16 %v6737
        %v8148 = vunpack.c.l.b16 %v6738
        %v8149 = vunpack.c.h.b16 %v6738
        %v8150 = vunpack.c.l.b16 %v6739
        %v8151 = vunpack.c.h.b16 %v6739
        %v8152 = vunpack.c.l.b16 %v6740
        %v8153 = vunpack.c.h.b16 %v6740
        %v8154 = vunpack.c.l.b16 %v6741
        %v8155 = vunpack.c.h.b16 %v6741
        %v8156 = vunpack.c.l.b16 %v6742
        %v8157 = vunpack.c.h.b16 %v6742
        %v8158 = vunpack.c.l.b16 %v6743
        %v8159 = vunpack.c.h.b16 %v6743
        %v8160 = vunpack.c.l.b16 %v6744
        %v8161 = vunpack.c.h.b16 %v6744
        %v8162 = vunpack.c.l.b16 %v6745
        %v8163 = vunpack.c.h.b16 %v6745
        %v8164 = vunpack.c.l.b16 %v6746
        %v8165 = vunpack.c.h.b16 %v6746
        %v8166 = vunpack.c.l.b16 %v6747
        %v8167 = vunpack.c.h.b16 %v6747
        %v8168 = vunpack.c.l.b16 %v6748
        %v8169 = vunpack.c.h.b16 %v6748
        %v8170 = vunpack.c.l.b16 %v6749
        %v8171 = vunpack.c.h.b16 %v6749
        %v8172 = vunpack.c.l.b16 %v6750
        %v8173 = vunpack.c.h.b16 %v6750
        %v8174 = vunpack.c.l.b16 %v6751
        %v8175 = vunpack.c.h.b16 %v6751
        %v8176 = vunpack.c.l.b16 %v6752
        %v8177 = vunpack.c.h.b16 %v6752
        %v8178 = vunpack.c.l.b16 %v6753
        %v8179 = vunpack.c.h.b16 %v6753
        %v8180 = vunpack.c.l.b16 %v6754
        %v8181 = vunpack.c.h.b16 %v6754
        %v8182 = vunpack.c.l.b16 %v6755
        %v8183 = vunpack.c.h.b16 %v6755
        %v8184 = vunpack.c.l.b16 %v6756
        %v8185 = vunpack.c.h.b16 %v6756
        %v8186 = vunpack.c.l.b16 %v6757
        %v8187 = vunpack.c.h.b16 %v6757
        %v8188 = vunpack.c.l.b16 %v6758
        %v8189 = vunpack.c.h.b16 %v6758
        %v8190 = vunpack.c.l.b16 %v6759
        %v8191 = vunpack.c.h.b16 %v6759
        %v8192 = vunpack.c.l.b16 %v6760
        %v8193 = vunpack.c.h.b16 %v6760
        %v8194 = vunpack.c.l.b16 %v6761
        %v8195 = vunpack.c.h.b16 %v6761
        %v8196 = vunpack.c.l.b16 %v6762
        %v8197 = vunpack.c.h.b16 %v6762
        %v8198 = vunpack.c.l.b16 %v6763
        %v8199 = vunpack.c.h.b16 %v6763
        %v8200 = vunpack.c.l.b16 %v6764
        %v8201 = vunpack.c.h.b16 %v6764
        %v8202 = vunpack.c.l.b16 %v6765
        %v8203 = vunpack.c.h.b16 %v6765
        %v8204 = vunpack.c.l.b16 %v6766
        %v8205 = vunpack.c.h.b16 %v6766
        %v8206 = vunpack.c.l.b16 %v6767
        %v8207 = vunpack.c.h.b16 %v6767
        %v8208 = vunpack.c.l.b16 %v6768
        %v8209 = vunpack.c.h.b16 %v6768
        %v8210 = vunpack.c.l.b16 %v6769
        %v8211 = vunpack.c.h.b16 %v6769
        %v8212 = vunpack.c.l.b16 %v6770
        %v8213 = vunpack.c.h.b16 %v6770
        %v8214 = vunpack.c.l.b16 %v6771
        %v8215 = vunpack.c.h.b16 %v6771
        %v8216 = vunpack.c.l.b16 %v6772
        %v8217 = vunpack.c.h.b16 %v6772
        %v8218 = vunpack.c.l.b16 %v6773
        %v8219 = vunpack.c.h.b16 %v6773
        %v8220 = vunpack.c.l.b16 %v6774
        %v8221 = vunpack.c.h.b16 %v6774
        %v8222 = vunpack.c.l.b16 %v6775
        %v8223 = vunpack.c.h.b16 %v6775
        %v8224 = vunpack.c.l.b16 %v6776
        %v8225 = vunpack.c.h.b16 %v6776
        %v8226 = vunpack.c.l.b16 %v6777
        %v8227 = vunpack.c.h.b16 %v6777
        %v8228 = vunpack.c.l.b16 %v6778
        %v8229 = vunpack.c.h.b16 %v6778
        %v8230 = vunpack.c.l.b16 %v6779
        %v8231 = vunpack.c.h.b16 %v6779
        %v8232 = vunpack.c.l.b16 %v6780
        %v8233 = vunpack.c.h.b16 %v6780
        %v8234 = vunpack.c.l.b16 %v6781
        %v8235 = vunpack.c.h.b16 %v6781
        %v8236 = vunpack.c.l.b16 %v6782
        %v8237 = vunpack.c.h.b16 %v6782
        %v8238 = vunpack.c.l.b16 %v6783
        %v8239 = vunpack.c.h.b16 %v6783
        %v8240 = vunpack.c.l.b16 %v6784
        %v8241 = vunpack.c.h.b16 %v6784
        %v8242 = vunpack.c.l.b16 %v6785
        %v8243 = vunpack.c.h.b16 %v6785
        %v8244 = vunpack.c.l.b16 %v6786
        %v8245 = vunpack.c.h.b16 %v6786
        %v8246 = vunpack.c.l.b16 %v6787
        %v8247 = vunpack.c.h.b16 %v6787
        %v8248 = vunpack.c.l.b16 %v6788
        %v8249 = vunpack.c.h.b16 %v6788
        %v8250 = vunpack.c.l.b16 %v6789
        %v8251 = vunpack.c.h.b16 %v6789
        %v8252 = vunpack.c.l.b16 %v6790
        %v8253 = vunpack.c.h.b16 %v6790
        %v8254 = vunpack.c.l.b16 %v6791
        %v8255 = vunpack.c.h.b16 %v6791
        %v8256 = vunpack.c.l.b16 %v6792
        %v8257 = vunpack.c.h.b16 %v6792
        %v8258 = vunpack.c.l.b16 %v6793
        %v8259 = vunpack.c.h.b16 %v6793
        %v8260 = vunpack.c.l.b16 %v6794
        %v8261 = vunpack.c.h.b16 %v6794
        %v8262 = vunpack.c.l.b16 %v6795
        %v8263 = vunpack.c.h.b16 %v6795
        %v8264 = vunpack.c.l.b16 %v6796
        %v8265 = vunpack.c.h.b16 %v6796
        %v8266 = vunpack.c.l.b16 %v6797
        %v8267 = vunpack.c.h.b16 %v6797
        %v8268 = vunpack.c.l.b16 %v6798
        %v8269 = vunpack.c.h.b16 %v6798
        %v8270 = vunpack.c.l.b16 %v6799
        %v8271 = vunpack.c.h.b16 %v6799
        %v8272 = vunpack.c.l.b16 %v6800
        %v8273 = vunpack.c.h.b16 %v6800
        %v8274 = vunpack.c.l.b16 %v6801
        %v8275 = vunpack.c.h.b16 %v6801
        %v8276 = vunpack.c.l.b16 %v6802
        %v8277 = vunpack.c.h.b16 %v6802
        %v8278 = vunpack.c.l.b16 %v6803
        %v8279 = vunpack.c.h.b16 %v6803
        %v8280 = vunpack.c.l.b16 %v6804
        %v8281 = vunpack.c.h.b16 %v6804
        %v8282 = vunpack.c.l.b16 %v6805
        %v8283 = vunpack.c.h.b16 %v6805
        %v8284 = vunpack.c.l.b16 %v6806
        %v8285 = vunpack.c.h.b16 %v6806
        %v8286 = vunpack.c.l.b16 %v6807
        %v8287 = vunpack.c.h.b16 %v6807
        %v8288 = vunpack.c.l.b16 %v6808
        %v8289 = vunpack.c.h.b16 %v6808
        %v8290 = vunpack.c.l.b16 %v6809
        %v8291 = vunpack.c.h.b16 %v6809
        %v8292 = vunpack.c.l.b16 %v6810
        %v8293 = vunpack.c.h.b16 %v6810
        %v8294 = vunpack.c.l.b16 %v6811
        %v8295 = vunpack.c.h.b16 %v6811
        %v8296 = vunpack.c.l.b16 %v6812
        %v8297 = vunpack.c.h.b16 %v6812
        %v8298 = vunpack.c.l.b16 %v6813
        %v8299 = vunpack.c.h.b16 %v6813
        %v8300 = vunpack.c.l.b16 %v6814
        %v8301 = vunpack.c.h.b16 %v6814
        %v8302 = vunpack.c.l.b16 %v6815
        %v8303 = vunpack.c.h.b16 %v6815
        %v8304 = vunpack.c.l.b16 %v6816
        %v8305 = vunpack.c.h.b16 %v6816
        %v8306 = vunpack.c.l.b16 %v6817
        %v8307 = vunpack.c.h.b16 %v6817
        %v8308 = vunpack.c.l.b16 %v6818
        %v8309 = vunpack.c.h.b16 %v6818
        %v8310 = vunpack.c.l.b16 %v6819
        %v8311 = vunpack.c.h.b16 %v6819
        %v8312 = vunpack.c.l.b16 %v6820
        %v8313 = vunpack.c.h.b16 %v6820
        %v8314 = vunpack.c.l.b16 %v6821
        %v8315 = vunpack.c.h.b16 %v6821
        %v8316 = vunpack.c.l.b16 %v6822
        %v8317 = vunpack.c.h.b16 %v6822
        %v8318 = vunpack.c.l.b16 %v6823
        %v8319 = vunpack.c.h.b16 %v6823
        %v8320 = vunpack.c.l.b16 %v6824
        %v8321 = vunpack.c.h.b16 %v6824
        %v8322 = vunpack.c.l.b16 %v6825
        %v8323 = vunpack.c.h.b16 %v6825
        %v8324 = vunpack.c.l.b16 %v6826
        %v8325 = vunpack.c.h.b16 %v6826
        %v8326 = vunpack.c.l.b16 %v6827
        %v8327 = vunpack.c.h.b16 %v6827
        %v8328 = vunpack.c.l.b16 %v6828
        %v8329 = vunpack.c.h.b16 %v6828
        %v8330 = vunpack.c.l.b16 %v6829
        %v8331 = vunpack.c.h.b16 %v6829
        %v8332 = vunpack.c.l.b16 %v6830
        %v8333 = vunpack.c.h.b16 %v6830
        %v8334 = vunpack.c.l.b16 %v6831
        %v8335 = vunpack.c.h.b16 %v6831
        %v8336 = vunpack.c.l.b16 %v6832
        %v8337 = vunpack.c.h.b16 %v6832
        %v8338 = vunpack.c.l.b16 %v6833
        %v8339 = vunpack.c.h.b16 %v6833
        %v8340 = vunpack.c.l.b16 %v6834
        %v8341 = vunpack.c.h.b16 %v6834
        %v8342 = vunpack.c.l.b16 %v6835
        %v8343 = vunpack.c.h.b16 %v6835
        %v8344 = vunpack.c.l.b16 %v6836
        %v8345 = vunpack.c.h.b16 %v6836
        %v8346 = vunpack.c.l.b16 %v6837
        %v8347 = vunpack.c.h.b16 %v6837
        %v8348 = vunpack.c.l.b16 %v6838
        %v8349 = vunpack.c.h.b16 %v6838
        %v8350 = vunpack.c.l.b16 %v6839
        %v8351 = vunpack.c.h.b16 %v6839
        %v8352 = vunpack.c.l.b16 %v6840
        %v8353 = vunpack.c.h.b16 %v6840
        %v8354 = vunpack.c.l.b16 %v6841
        %v8355 = vunpack.c.h.b16 %v6841
        %v8356 = vunpack.c.l.b16 %v6842
        %v8357 = vunpack.c.h.b16 %v6842
        %v8358 = vunpack.c.l.b16 %v6843
        %v8359 = vunpack.c.h.b16 %v6843
        %v8360 = vunpack.c.l.b16 %v6844
        %v8361 = vunpack.c.h.b16 %v6844
        %v8362 = vunpack.c.l.b16 %v6845
        %v8363 = vunpack.c.h.b16 %v6845
        %v8364 = vunpack.c.l.b16 %v6846
        %v8365 = vunpack.c.h.b16 %v6846
        %v8366 = vunpack.c.l.b16 %v6847
        %v8367 = vunpack.c.h.b16 %v6847
        %v8368 = vunpack.c.l.b16 %v6848
        %v8369 = vunpack.c.h.b16 %v6848
        %v8370 = vunpack.c.l.b16 %v6849
        %v8371 = vunpack.c.h.b16 %v6849
        %v8372 = vunpack.c.l.b16 %v6850
        %v8373 = vunpack.c.h.b16 %v6850
        %v8374 = vunpack.c.l.b16 %v6851
        %v8375 = vunpack.c.h.b16 %v6851
        %v8376 = vunpack.c.l.b16 %v6852
        %v8377 = vunpack.c.h.b16 %v6852
        %v8378 = vunpack.c.l.b16 %v6853
        %v8379 = vunpack.c.h.b16 %v6853
        %v8380 = vunpack.c.l.b16 %v6854
        %v8381 = vunpack.c.h.b16 %v6854
        %v8382 = vunpack.c.l.b16 %v6855
        %v8383 = vunpack.c.h.b16 %v6855
        %v8384 = vunpack.c.l.b16 %v6856
        %v8385 = vunpack.c.h.b16 %v6856
        %v8386 = vunpack.c.l.b16 %v6857
        %v8387 = vunpack.c.h.b16 %v6857
        %v8388 = vunpack.c.l.b16 %v6858
        %v8389 = vunpack.c.h.b16 %v6858
        %v8390 = vunpack.c.l.b16 %v6859
        %v8391 = vunpack.c.h.b16 %v6859
        %v8392 = vunpack.c.l.b16 %v6860
        %v8393 = vunpack.c.h.b16 %v6860
        %v8394 = vunpack.c.l.b16 %v6861
        %v8395 = vunpack.c.h.b16 %v6861
        %v8396 = vunpack.c.l.b16 %v6862
        %v8397 = vunpack.c.h.b16 %v6862
        %v8398 = vunpack.c.l.b16 %v6863
        %v8399 = vunpack.c.h.b16 %v6863
        %v8400 = vunpack.c.l.b16 %v6864
        %v8401 = vunpack.c.h.b16 %v6864
        %v8402 = vunpack.c.l.b16 %v6865
        %v8403 = vunpack.c.h.b16 %v6865
        %v8404 = vunpack.c.l.b16 %v6866
        %v8405 = vunpack.c.h.b16 %v6866
        %v8406 = vunpack.c.l.b16 %v6867
        %v8407 = vunpack.c.h.b16 %v6867
        %v8408 = vunpack.c.l.b16 %v6868
        %v8409 = vunpack.c.h.b16 %v6868
        %v8410 = vunpack.c.l.b16 %v6869
        %v8411 = vunpack.c.h.b16 %v6869
        %v8412 = vunpack.c.l.b16 %v6870
        %v8413 = vunpack.c.h.b16 %v6870
        %v8414 = vunpack.c.l.b16 %v6871
        %v8415 = vunpack.c.h.b16 %v6871
        %v8416 = vunpack.c.l.b16 %v6872
        %v8417 = vunpack.c.h.b16 %v6872
        %v8418 = vunpack.c.l.b16 %v6873
        %v8419 = vunpack.c.h.b16 %v6873
        %v8420 = vunpack.c.l.b16 %v6874
        %v8421 = vunpack.c.h.b16 %v6874
        %v8422 = vunpack.c.l.b16 %v6875
        %v8423 = vunpack.c.h.b16 %v6875
        %v8424 = vunpack.c.l.b16 %v6876
        %v8425 = vunpack.c.h.b16 %v6876
        %v8426 = vunpack.c.l.b16 %v6877
        %v8427 = vunpack.c.h.b16 %v6877
        %v8428 = vunpack.c.l.b16 %v6878
        %v8429 = vunpack.c.h.b16 %v6878
        %v8430 = vunpack.c.l.b16 %v6879
        %v8431 = vunpack.c.h.b16 %v6879
        %v8432 = vunpack.c.l.b16 %v6880
        %v8433 = vunpack.c.h.b16 %v6880
        %v8434 = vunpack.c.l.b16 %v6881
        %v8435 = vunpack.c.h.b16 %v6881
        %v8436 = vunpack.c.l.b16 %v6882
        %v8437 = vunpack.c.h.b16 %v6882
        %v8438 = vunpack.c.l.b16 %v6883
        %v8439 = vunpack.c.h.b16 %v6883
        %v8440 = vunpack.c.l.b16 %v6884
        %v8441 = vunpack.c.h.b16 %v6884
        %v8442 = vunpack.c.l.b16 %v6885
        %v8443 = vunpack.c.h.b16 %v6885
        %v8444 = vunpack.c.l.b16 %v6886
        %v8445 = vunpack.c.h.b16 %v6886
        %v8446 = vunpack.c.l.b16 %v6887
        %v8447 = vunpack.c.h.b16 %v6887
        %v8448 = vunpack.c.l.b16 %v6888
        %v8449 = vunpack.c.h.b16 %v6888
        %v8450 = vunpack.c.l.b16 %v6889
        %v8451 = vunpack.c.h.b16 %v6889
        %v8452 = vunpack.c.l.b16 %v6890
        %v8453 = vunpack.c.h.b16 %v6890
        %v8454 = vunpack.c.l.b16 %v6891
        %v8455 = vunpack.c.h.b16 %v6891
        %v8456 = vunpack.c.l.b16 %v6892
        %v8457 = vunpack.c.h.b16 %v6892
        %v8458 = vunpack.c.l.b16 %v6893
        %v8459 = vunpack.c.h.b16 %v6893
        %v8460 = vunpack.c.l.b16 %v6894
        %v8461 = vunpack.c.h.b16 %v6894
        %v8462 = vunpack.c.l.b16 %v6895
        %v8463 = vunpack.c.h.b16 %v6895
        %v8464 = vunpack.c.l.b16 %v6896
        %v8465 = vunpack.c.h.b16 %v6896
        %v8466 = vunpack.c.l.b16 %v6897
        %v8467 = vunpack.c.h.b16 %v6897
        %v8468 = vunpack.c.l.b16 %v6898
        %v8469 = vunpack.c.h.b16 %v6898
        %v8470 = vunpack.c.l.b16 %v6899
        %v8471 = vunpack.c.h.b16 %v6899
        %v8472 = vunpack.c.l.b16 %v6900
        %v8473 = vunpack.c.h.b16 %v6900
        %v8474 = vunpack.c.l.b16 %v6901
        %v8475 = vunpack.c.h.b16 %v6901
        %v8476 = vunpack.c.l.b16 %v6902
        %v8477 = vunpack.c.h.b16 %v6902
        %v8478 = vunpack.c.l.b16 %v6903
        %v8479 = vunpack.c.h.b16 %v6903
        %v8480 = vunpack.c.l.b16 %v6904
        %v8481 = vunpack.c.h.b16 %v6904
        %v8482 = vunpack.c.l.b16 %v6905
        %v8483 = vunpack.c.h.b16 %v6905
        %v8484 = vpack.c.b16 %v7468, %v7460
        %v8485 = vpack.c.b16 %v7469, %v7461
        %v8486 = vpack.c.b16 %v7470, %v7462
        %v8487 = vpack.c.b16 %v7471, %v7463
        %v8488 = vpack.c.b16 %v7472, %v7464
        %v8489 = vpack.c.b16 %v7473, %v7465
        %v8490 = vpack.c.b16 %v7474, %v7466
        %v8491 = vpack.c.b16 %v7475, %v7467
        %v8492 = vpack.c.b16 %v7484, %v7476
        %v8493 = vpack.c.b16 %v7485, %v7477
        %v8494 = vpack.c.b16 %v7486, %v7478
        %v8495 = vpack.c.b16 %v7487, %v7479
        %v8496 = vpack.c.b16 %v7488, %v7480
        %v8497 = vpack.c.b16 %v7489, %v7481
        %v8498 = vpack.c.b16 %v7490, %v7482
        %v8499 = vpack.c.b16 %v7491, %v7483
        %v8500 = vpack.c.b16 %v7500, %v7492
        %v8501 = vpack.c.b16 %v7501, %v7493
        %v8502 = vpack.c.b16 %v7502, %v7494
        %v8503 = vpack.c.b16 %v7503, %v7495
        %v8504 = vpack.c.b16 %v7504, %v7496
        %v8505 = vpack.c.b16 %v7505, %v7497
        %v8506 = vpack.c.b16 %v7506, %v7498
        %v8507 = vpack.c.b16 %v7507, %v7499
        %v8508 = vpack.c.b16 %v7516, %v7508
        %v8509 = vpack.c.b16 %v7517, %v7509
        %v8510 = vpack.c.b16 %v7518, %v7510
        %v8511 = vpack.c.b16 %v7519, %v7511
        %v8512 = vpack.c.b16 %v7520, %v7512
        %v8513 = vpack.c.b16 %v7521, %v7513
        %v8514 = vpack.c.b16 %v7522, %v7514
        %v8515 = vpack.c.b16 %v7523, %v7515
        %v8516 = vpack.c.b16 %v7532, %v7524
        %v8517 = vpack.c.b16 %v7533, %v7525
        %v8518 = vpack.c.b16 %v7534, %v7526
        %v8519 = vpack.c.b16 %v7535, %v7527
        %v8520 = vpack.c.b16 %v7536, %v7528
        %v8521 = vpack.c.b16 %v7537, %v7529
        %v8522 = vpack.c.b16 %v7538, %v7530
        %v8523 = vpack.c.b16 %v7539, %v7531
        %v8524 = vpack.c.b16 %v7548, %v7540
        %v8525 = vpack.c.b16 %v7549, %v7541
        %v8526 = vpack.c.b16 %v7550, %v7542
        %v8527 = vpack.c.b16 %v7551, %v7543
        %v8528 = vpack.c.b16 %v7552, %v7544
        %v8529 = vpack.c.b16 %v7553, %v7545
        %v8530 = vpack.c.b16 %v7554, %v7546
        %v8531 = vpack.c.b16 %v7555, %v7547
        %v8532 = vpack.c.b16 %v7564, %v7556
        %v8533 = vpack.c.b16 %v7565, %v7557
        %v8534 = vpack.c.b16 %v7566, %v7558
        %v8535 = vpack.c.b16 %v7567, %v7559
        %v8536 = vpack.c.b16 %v7568, %v7560
        %v8537 = vpack.c.b16 %v7569, %v7561
        %v8538 = vpack.c.b16 %v7570, %v7562
        %v8539 = vpack.c.b16 %v7571, %v7563
        %v8540 = vpack.c.b16 %v7580, %v7572
        %v8541 = vpack.c.b16 %v7581, %v7573
        %v8542 = vpack.c.b16 %v7582, %v7574
        %v8543 = vpack.c.b16 %v7583, %v7575
        %v8544 = vpack.c.b16 %v7584, %v7576
        %v8545 = vpack.c.b16 %v7585, %v7577
        %v8546 = vpack.c.b16 %v7586, %v7578
        %v8547 = vpack.c.b16 %v7587, %v7579
        %v8548 = vpack.c.b16 %v7596, %v7588
        %v8549 = vpack.c.b16 %v7597, %v7589
        %v8550 = vpack.c.b16 %v7598, %v7590
        %v8551 = vpack.c.b16 %v7599, %v7591
        %v8552 = vpack.c.b16 %v7600, %v7592
        %v8553 = vpack.c.b16 %v7601, %v7593
        %v8554 = vpack.c.b16 %v7602, %v7594
        %v8555 = vpack.c.b16 %v7603, %v7595
        %v8556 = vpack.c.b16 %v7612, %v7604
        %v8557 = vpack.c.b16 %v7613, %v7605
        %v8558 = vpack.c.b16 %v7614, %v7606
        %v8559 = vpack.c.b16 %v7615, %v7607
        %v8560 = vpack.c.b16 %v7616, %v7608
        %v8561 = vpack.c.b16 %v7617, %v7609
        %v8562 = vpack.c.b16 %v7618, %v7610
        %v8563 = vpack.c.b16 %v7619, %v7611
        %v8564 = vpack.c.b16 %v7628, %v7620
        %v8565 = vpack.c.b16 %v7629, %v7621
        %v8566 = vpack.c.b16 %v7630, %v7622
        %v8567 = vpack.c.b16 %v7631, %v7623
        %v8568 = vpack.c.b16 %v7632, %v7624
        %v8569 = vpack.c.b16 %v7633, %v7625
        %v8570 = vpack.c.b16 %v7634, %v7626
        %v8571 = vpack.c.b16 %v7635, %v7627
        %v8572 = vpack.c.b16 %v7644, %v7636
        %v8573 = vpack.c.b16 %v7645, %v7637
        %v8574 = vpack.c.b16 %v7646, %v7638
        %v8575 = vpack.c.b16 %v7647, %v7639
        %v8576 = vpack.c.b16 %v7648, %v7640
        %v8577 = vpack.c.b16 %v7649, %v7641
        %v8578 = vpack.c.b16 %v7650, %v7642
        %v8579 = vpack.c.b16 %v7651, %v7643
        %v8580 = vpack.c.b16 %v7660, %v7652
        %v8581 = vpack.c.b16 %v7661, %v7653
        %v8582 = vpack.c.b16 %v7662, %v7654
        %v8583 = vpack.c.b16 %v7663, %v7655
        %v8584 = vpack.c.b16 %v7664, %v7656
        %v8585 = vpack.c.b16 %v7665, %v7657
        %v8586 = vpack.c.b16 %v7666, %v7658
        %v8587 = vpack.c.b16 %v7667, %v7659
        %v8588 = vpack.c.b16 %v7676, %v7668
        %v8589 = vpack.c.b16 %v7677, %v7669
        %v8590 = vpack.c.b16 %v7678, %v7670
        %v8591 = vpack.c.b16 %v7679, %v7671
        %v8592 = vpack.c.b16 %v7680, %v7672
        %v8593 = vpack.c.b16 %v7681, %v7673
        %v8594 = vpack.c.b16 %v7682, %v7674
        %v8595 = vpack.c.b16 %v7683, %v7675
        %v8596 = vpack.c.b16 %v7692, %v7684
        %v8597 = vpack.c.b16 %v7693, %v7685
        %v8598 = vpack.c.b16 %v7694, %v7686
        %v8599 = vpack.c.b16 %v7695, %v7687
        %v8600 = vpack.c.b16 %v7696, %v7688
        %v8601 = vpack.c.b16 %v7697, %v7689
        %v8602 = vpack.c.b16 %v7698, %v7690
        %v8603 = vpack.c.b16 %v7699, %v7691
        %v8604 = vpack.c.b16 %v7708, %v7700
        %v8605 = vpack.c.b16 %v7709, %v7701
        %v8606 = vpack.c.b16 %v7710, %v7702
        %v8607 = vpack.c.b16 %v7711, %v7703
        %v8608 = vpack.c.b16 %v7712, %v7704
        %v8609 = vpack.c.b16 %v7713, %v7705
        %v8610 = vpack.c.b16 %v7714, %v7706
        %v8611 = vpack.c.b16 %v7715, %v7707
        %v8612 = vpack.c.b16 %v7724, %v7716
        %v8613 = vpack.c.b16 %v7725, %v7717
        %v8614 = vpack.c.b16 %v7726, %v7718
        %v8615 = vpack.c.b16 %v7727, %v7719
        %v8616 = vpack.c.b16 %v7728, %v7720
        %v8617 = vpack.c.b16 %v7729, %v7721
        %v8618 = vpack.c.b16 %v7730, %v7722
        %v8619 = vpack.c.b16 %v7731, %v7723
        %v8620 = vpack.c.b16 %v7740, %v7732
        %v8621 = vpack.c.b16 %v7741, %v7733
        %v8622 = vpack.c.b16 %v7742, %v7734
        %v8623 = vpack.c.b16 %v7743, %v7735
        %v8624 = vpack.c.b16 %v7744, %v7736
        %v8625 = vpack.c.b16 %v7745, %v7737
        %v8626 = vpack.c.b16 %v7746, %v7738
        %v8627 = vpack.c.b16 %v7747, %v7739
        %v8628 = vpack.c.b16 %v7756, %v7748
        %v8629 = vpack.c.b16 %v7757, %v7749
        %v8630 = vpack.c.b16 %v7758, %v7750
        %v8631 = vpack.c.b16 %v7759, %v7751
        %v8632 = vpack.c.b16 %v7760, %v7752
        %v8633 = vpack.c.b16 %v7761, %v7753
        %v8634 = vpack.c.b16 %v7762, %v7754
        %v8635 = vpack.c.b16 %v7763, %v7755
        %v8636 = vpack.c.b16 %v7772, %v7764
        %v8637 = vpack.c.b16 %v7773, %v7765
        %v8638 = vpack.c.b16 %v7774, %v7766
        %v8639 = vpack.c.b16 %v7775, %v7767
        %v8640 = vpack.c.b16 %v7776, %v7768
        %v8641 = vpack.c.b16 %v7777, %v7769
        %v8642 = vpack.c.b16 %v7778, %v7770
        %v8643 = vpack.c.b16 %v7779, %v7771
        %v8644 = vpack.c.b16 %v7788, %v7780
        %v8645 = vpack.c.b16 %v7789, %v7781
        %v8646 = vpack.c.b16 %v7790, %v7782
        %v8647 = vpack.c.b16 %v7791, %v7783
        %v8648 = vpack.c.b16 %v7792, %v7784
        %v8649 = vpack.c.b16 %v7793, %v7785
        %v8650 = vpack.c.b16 %v7794, %v7786
        %v8651 = vpack.c.b16 %v7795, %v7787
        %v8652 = vpack.c.b16 %v7804, %v7796
        %v8653 = vpack.c.b16 %v7805, %v7797
        %v8654 = vpack.c.b16 %v7806, %v7798
        %v8655 = vpack.c.b16 %v7807, %v7799
        %v8656 = vpack.c.b16 %v7808, %v7800
        %v8657 = vpack.c.b16 %v7809, %v7801
        %v8658 = vpack.c.b16 %v7810, %v7802
        %v8659 = vpack.c.b16 %v7811, %v7803
        %v8660 = vpack.c.b16 %v7820, %v7812
        %v8661 = vpack.c.b16 %v7821, %v7813
        %v8662 = vpack.c.b16 %v7822, %v7814
        %v8663 = vpack.c.b16 %v7823, %v7815
        %v8664 = vpack.c.b16 %v7824, %v7816
        %v8665 = vpack.c.b16 %v7825, %v7817
        %v8666 = vpack.c.b16 %v7826, %v7818
        %v8667 = vpack.c.b16 %v7827, %v7819
        %v8668 = vpack.c.b16 %v7836, %v7828
        %v8669 = vpack.c.b16 %v7837, %v7829
        %v8670 = vpack.c.b16 %v7838, %v7830
        %v8671 = vpack.c.b16 %v7839, %v7831
        %v8672 = vpack.c.b16 %v7840, %v7832
        %v8673 = vpack.c.b16 %v7841, %v7833
        %v8674 = vpack.c.b16 %v7842, %v7834
        %v8675 = vpack.c.b16 %v7843, %v7835
        %v8676 = vpack.c.b16 %v7852, %v7844
        %v8677 = vpack.c.b16 %v7853, %v7845
        %v8678 = vpack.c.b16 %v7854, %v7846
        %v8679 = vpack.c.b16 %v7855, %v7847
        %v8680 = vpack.c.b16 %v7856, %v7848
        %v8681 = vpack.c.b16 %v7857, %v7849
        %v8682 = vpack.c.b16 %v7858, %v7850
        %v8683 = vpack.c.b16 %v7859, %v7851
        %v8684 = vpack.c.b16 %v7868, %v7860
        %v8685 = vpack.c.b16 %v7869, %v7861
        %v8686 = vpack.c.b16 %v7870, %v7862
        %v8687 = vpack.c.b16 %v7871, %v7863
        %v8688 = vpack.c.b16 %v7872, %v7864
        %v8689 = vpack.c.b16 %v7873, %v7865
        %v8690 = vpack.c.b16 %v7874, %v7866
        %v8691 = vpack.c.b16 %v7875, %v7867
        %v8692 = vpack.c.b16 %v7884, %v7876
        %v8693 = vpack.c.b16 %v7885, %v7877
        %v8694 = vpack.c.b16 %v7886, %v7878
        %v8695 = vpack.c.b16 %v7887, %v7879
        %v8696 = vpack.c.b16 %v7888, %v7880
        %v8697 = vpack.c.b16 %v7889, %v7881
        %v8698 = vpack.c.b16 %v7890, %v7882
        %v8699 = vpack.c.b16 %v7891, %v7883
        %v8700 = vpack.c.b16 %v7900, %v7892
        %v8701 = vpack.c.b16 %v7901, %v7893
        %v8702 = vpack.c.b16 %v7902, %v7894
        %v8703 = vpack.c.b16 %v7903, %v7895
        %v8704 = vpack.c.b16 %v7904, %v7896
        %v8705 = vpack.c.b16 %v7905, %v7897
        %v8706 = vpack.c.b16 %v7906, %v7898
        %v8707 = vpack.c.b16 %v7907, %v7899
        %v8708 = vpack.c.b16 %v7916, %v7908
        %v8709 = vpack.c.b16 %v7917, %v7909
        %v8710 = vpack.c.b16 %v7918, %v7910
        %v8711 = vpack.c.b16 %v7919, %v7911
        %v8712 = vpack.c.b16 %v7920, %v7912
        %v8713 = vpack.c.b16 %v7921, %v7913
        %v8714 = vpack.c.b16 %v7922, %v7914
        %v8715 = vpack.c.b16 %v7923, %v7915
        %v8716 = vpack.c.b16 %v7932, %v7924
        %v8717 = vpack.c.b16 %v7933, %v7925
        %v8718 = vpack.c.b16 %v7934, %v7926
        %v8719 = vpack.c.b16 %v7935, %v7927
        %v8720 = vpack.c.b16 %v7936, %v7928
        %v8721 = vpack.c.b16 %v7937, %v7929
        %v8722 = vpack.c.b16 %v7938, %v7930
        %v8723 = vpack.c.b16 %v7939, %v7931
        %v8724 = vpack.c.b16 %v7948, %v7940
        %v8725 = vpack.c.b16 %v7949, %v7941
        %v8726 = vpack.c.b16 %v7950, %v7942
        %v8727 = vpack.c.b16 %v7951, %v7943
        %v8728 = vpack.c.b16 %v7952, %v7944
        %v8729 = vpack.c.b16 %v7953, %v7945
        %v8730 = vpack.c.b16 %v7954, %v7946
        %v8731 = vpack.c.b16 %v7955, %v7947
        %v8732 = vpack.c.b16 %v7964, %v7956
        %v8733 = vpack.c.b16 %v7965, %v7957
        %v8734 = vpack.c.b16 %v7966, %v7958
        %v8735 = vpack.c.b16 %v7967, %v7959
        %v8736 = vpack.c.b16 %v7968, %v7960
        %v8737 = vpack.c.b16 %v7969, %v7961
        %v8738 = vpack.c.b16 %v7970, %v7962
        %v8739 = vpack.c.b16 %v7971, %v7963
        %v8740 = vpack.c.b16 %v7980, %v7972
        %v8741 = vpack.c.b16 %v7981, %v7973
        %v8742 = vpack.c.b16 %v7982, %v7974
        %v8743 = vpack.c.b16 %v7983, %v7975
        %v8744 = vpack.c.b16 %v7984, %v7976
        %v8745 = vpack.c.b16 %v7985, %v7977
        %v8746 = vpack.c.b16 %v7986, %v7978
        %v8747 = vpack.c.b16 %v7987, %v7979
        %v8748 = vpack.c.b16 %v7996, %v7988
        %v8749 = vpack.c.b16 %v7997, %v7989
        %v8750 = vpack.c.b16 %v7998, %v7990
        %v8751 = vpack.c.b16 %v7999, %v7991
        %v8752 = vpack.c.b16 %v8000, %v7992
        %v8753 = vpack.c.b16 %v8001, %v7993
        %v8754 = vpack.c.b16 %v8002, %v7994
        %v8755 = vpack.c.b16 %v8003, %v7995
        %v8756 = vpack.c.b16 %v8012, %v8004
        %v8757 = vpack.c.b16 %v8013, %v8005
        %v8758 = vpack.c.b16 %v8014, %v8006
        %v8759 = vpack.c.b16 %v8015, %v8007
        %v8760 = vpack.c.b16 %v8016, %v8008
        %v8761 = vpack.c.b16 %v8017, %v8009
        %v8762 = vpack.c.b16 %v8018, %v8010
        %v8763 = vpack.c.b16 %v8019, %v8011
        %v8764 = vpack.c.b16 %v8028, %v8020
        %v8765 = vpack.c.b16 %v8029, %v8021
        %v8766 = vpack.c.b16 %v8030, %v8022
        %v8767 = vpack.c.b16 %v8031, %v8023
        %v8768 = vpack.c.b16 %v8032, %v8024
        %v8769 = vpack.c.b16 %v8033, %v8025
        %v8770 = vpack.c.b16 %v8034, %v8026
        %v8771 = vpack.c.b16 %v8035, %v8027
        %v8772 = vpack.c.b16 %v8044, %v8036
        %v8773 = vpack.c.b16 %v8045, %v8037
        %v8774 = vpack.c.b16 %v8046, %v8038
        %v8775 = vpack.c.b16 %v8047, %v8039
        %v8776 = vpack.c.b16 %v8048, %v8040
        %v8777 = vpack.c.b16 %v8049, %v8041
        %v8778 = vpack.c.b16 %v8050, %v8042
        %v8779 = vpack.c.b16 %v8051, %v8043
        %v8780 = vpack.c.b16 %v8060, %v8052
        %v8781 = vpack.c.b16 %v8061, %v8053
        %v8782 = vpack.c.b16 %v8062, %v8054
        %v8783 = vpack.c.b16 %v8063, %v8055
        %v8784 = vpack.c.b16 %v8064, %v8056
        %v8785 = vpack.c.b16 %v8065, %v8057
        %v8786 = vpack.c.b16 %v8066, %v8058
        %v8787 = vpack.c.b16 %v8067, %v8059
        %v8788 = vpack.c.b16 %v8076, %v8068
        %v8789 = vpack.c.b16 %v8077, %v8069
        %v8790 = vpack.c.b16 %v8078, %v8070
        %v8791 = vpack.c.b16 %v8079, %v8071
        %v8792 = vpack.c.b16 %v8080, %v8072
        %v8793 = vpack.c.b16 %v8081, %v8073
        %v8794 = vpack.c.b16 %v8082, %v8074
        %v8795 = vpack.c.b16 %v8083, %v8075
        %v8796 = vpack.c.b16 %v8092, %v8084
        %v8797 = vpack.c.b16 %v8093, %v8085
        %v8798 = vpack.c.b16 %v8094, %v8086
        %v8799 = vpack.c.b16 %v8095, %v8087
        %v8800 = vpack.c.b16 %v8096, %v8088
        %v8801 = vpack.c.b16 %v8097, %v8089
        %v8802 = vpack.c.b16 %v8098, %v8090
        %v8803 = vpack.c.b16 %v8099, %v8091
        %v8804 = vpack.c.b16 %v8108, %v8100
        %v8805 = vpack.c.b16 %v8109, %v8101
        %v8806 = vpack.c.b16 %v8110, %v8102
        %v8807 = vpack.c.b16 %v8111, %v8103
        %v8808 = vpack.c.b16 %v8112, %v8104
        %v8809 = vpack.c.b16 %v8113, %v8105
        %v8810 = vpack.c.b16 %v8114, %v8106
        %v8811 = vpack.c.b16 %v8115, %v8107
        %v8812 = vpack.c.b16 %v8124, %v8116
        %v8813 = vpack.c.b16 %v8125, %v8117
        %v8814 = vpack.c.b16 %v8126, %v8118
        %v8815 = vpack.c.b16 %v8127, %v8119
        %v8816 = vpack.c.b16 %v8128, %v8120
        %v8817 = vpack.c.b16 %v8129, %v8121
        %v8818 = vpack.c.b16 %v8130, %v8122
        %v8819 = vpack.c.b16 %v8131, %v8123
        %v8820 = vpack.c.b16 %v8140, %v8132
        %v8821 = vpack.c.b16 %v8141, %v8133
        %v8822 = vpack.c.b16 %v8142, %v8134
        %v8823 = vpack.c.b16 %v8143, %v8135
        %v8824 = vpack.c.b16 %v8144, %v8136
        %v8825 = vpack.c.b16 %v8145, %v8137
        %v8826 = vpack.c.b16 %v8146, %v8138
        %v8827 = vpack.c.b16 %v8147, %v8139
        %v8828 = vpack.c.b16 %v8156, %v8148
        %v8829 = vpack.c.b16 %v8157, %v8149
        %v8830 = vpack.c.b16 %v8158, %v8150
        %v8831 = vpack.c.b16 %v8159, %v8151
        %v8832 = vpack.c.b16 %v8160, %v8152
        %v8833 = vpack.c.b16 %v8161, %v8153
        %v8834 = vpack.c.b16 %v8162, %v8154
        %v8835 = vpack.c.b16 %v8163, %v8155
        %v8836 = vpack.c.b16 %v8172, %v8164
        %v8837 = vpack.c.b16 %v8173, %v8165
        %v8838 = vpack.c.b16 %v8174, %v8166
        %v8839 = vpack.c.b16 %v8175, %v8167
        %v8840 = vpack.c.b16 %v8176, %v8168
        %v8841 = vpack.c.b16 %v8177, %v8169
        %v8842 = vpack.c.b16 %v8178, %v8170
        %v8843 = vpack.c.b16 %v8179, %v8171
        %v8844 = vpack.c.b16 %v8188, %v8180
        %v8845 = vpack.c.b16 %v8189, %v8181
        %v8846 = vpack.c.b16 %v8190, %v8182
        %v8847 = vpack.c.b16 %v8191, %v8183
        %v8848 = vpack.c.b16 %v8192, %v8184
        %v8849 = vpack.c.b16 %v8193, %v8185
        %v8850 = vpack.c.b16 %v8194, %v8186
        %v8851 = vpack.c.b16 %v8195, %v8187
        %v8852 = vpack.c.b16 %v8204, %v8196
        %v8853 = vpack.c.b16 %v8205, %v8197
        %v8854 = vpack.c.b16 %v8206, %v8198
        %v8855 = vpack.c.b16 %v8207, %v8199
        %v8856 = vpack.c.b16 %v8208, %v8200
        %v8857 = vpack.c.b16 %v8209, %v8201
        %v8858 = vpack.c.b16 %v8210, %v8202
        %v8859 = vpack.c.b16 %v8211, %v8203
        %v8860 = vpack.c.b16 %v8220, %v8212
        %v8861 = vpack.c.b16 %v8221, %v8213
        %v8862 = vpack.c.b16 %v8222, %v8214
        %v8863 = vpack.c.b16 %v8223, %v8215
        %v8864 = vpack.c.b16 %v8224, %v8216
        %v8865 = vpack.c.b16 %v8225, %v8217
        %v8866 = vpack.c.b16 %v8226, %v8218
        %v8867 = vpack.c.b16 %v8227, %v8219
        %v8868 = vpack.c.b16 %v8236, %v8228
        %v8869 = vpack.c.b16 %v8237, %v8229
        %v8870 = vpack.c.b16 %v8238, %v8230
        %v8871 = vpack.c.b16 %v8239, %v8231
        %v8872 = vpack.c.b16 %v8240, %v8232
        %v8873 = vpack.c.b16 %v8241, %v8233
        %v8874 = vpack.c.b16 %v8242, %v8234
        %v8875 = vpack.c.b16 %v8243, %v8235
        %v8876 = vpack.c.b16 %v8252, %v8244
        %v8877 = vpack.c.b16 %v8253, %v8245
        %v8878 = vpack.c.b16 %v8254, %v8246
        %v8879 = vpack.c.b16 %v8255, %v8247
        %v8880 = vpack.c.b16 %v8256, %v8248
        %v8881 = vpack.c.b16 %v8257, %v8249
        %v8882 = vpack.c.b16 %v8258, %v8250
        %v8883 = vpack.c.b16 %v8259, %v8251
        %v8884 = vpack.c.b16 %v8268, %v8260
        %v8885 = vpack.c.b16 %v8269, %v8261
        %v8886 = vpack.c.b16 %v8270, %v8262
        %v8887 = vpack.c.b16 %v8271, %v8263
        %v8888 = vpack.c.b16 %v8272, %v8264
        %v8889 = vpack.c.b16 %v8273, %v8265
        %v8890 = vpack.c.b16 %v8274, %v8266
        %v8891 = vpack.c.b16 %v8275, %v8267
        %v8892 = vpack.c.b16 %v8284, %v8276
        %v8893 = vpack.c.b16 %v8285, %v8277
        %v8894 = vpack.c.b16 %v8286, %v8278
        %v8895 = vpack.c.b16 %v8287, %v8279
        %v8896 = vpack.c.b16 %v8288, %v8280
        %v8897 = vpack.c.b16 %v8289, %v8281
        %v8898 = vpack.c.b16 %v8290, %v8282
        %v8899 = vpack.c.b16 %v8291, %v8283
        %v8900 = vpack.c.b16 %v8300, %v8292
        %v8901 = vpack.c.b16 %v8301, %v8293
        %v8902 = vpack.c.b16 %v8302, %v8294
        %v8903 = vpack.c.b16 %v8303, %v8295
        %v8904 = vpack.c.b16 %v8304, %v8296
        %v8905 = vpack.c.b16 %v8305, %v8297
        %v8906 = vpack.c.b16 %v8306, %v8298
        %v8907 = vpack.c.b16 %v8307, %v8299
        %v8908 = vpack.c.b16 %v8316, %v8308
        %v8909 = vpack.c.b16 %v8317, %v8309
        %v8910 = vpack.c.b16 %v8318, %v8310
        %v8911 = vpack.c.b16 %v8319, %v8311
        %v8912 = vpack.c.b16 %v8320, %v8312
        %v8913 = vpack.c.b16 %v8321, %v8313
        %v8914 = vpack.c.b16 %v8322, %v8314
        %v8915 = vpack.c.b16 %v8323, %v8315
        %v8916 = vpack.c.b16 %v8332, %v8324
        %v8917 = vpack.c.b16 %v8333, %v8325
        %v8918 = vpack.c.b16 %v8334, %v8326
        %v8919 = vpack.c.b16 %v8335, %v8327
        %v8920 = vpack.c.b16 %v8336, %v8328
        %v8921 = vpack.c.b16 %v8337, %v8329
        %v8922 = vpack.c.b16 %v8338, %v8330
        %v8923 = vpack.c.b16 %v8339, %v8331
        %v8924 = vpack.c.b16 %v8348, %v8340
        %v8925 = vpack.c.b16 %v8349, %v8341
        %v8926 = vpack.c.b16 %v8350, %v8342
        %v8927 = vpack.c.b16 %v8351, %v8343
        %v8928 = vpack.c.b16 %v8352, %v8344
        %v8929 = vpack.c.b16 %v8353, %v8345
        %v8930 = vpack.c.b16 %v8354, %v8346
        %v8931 = vpack.c.b16 %v8355, %v8347
        %v8932 = vpack.c.b16 %v8364, %v8356
        %v8933 = vpack.c.b16 %v8365, %v8357
        %v8934 = vpack.c.b16 %v8366, %v8358
        %v8935 = vpack.c.b16 %v8367, %v8359
        %v8936 = vpack.c.b16 %v8368, %v8360
        %v8937 = vpack.c.b16 %v8369, %v8361
        %v8938 = vpack.c.b16 %v8370, %v8362
        %v8939 = vpack.c.b16 %v8371, %v8363
        %v8940 = vpack.c.b16 %v8380, %v8372
        %v8941 = vpack.c.b16 %v8381, %v8373
        %v8942 = vpack.c.b16 %v8382, %v8374
        %v8943 = vpack.c.b16 %v8383, %v8375
        %v8944 = vpack.c.b16 %v8384, %v8376
        %v8945 = vpack.c.b16 %v8385, %v8377
        %v8946 = vpack.c.b16 %v8386, %v8378
        %v8947 = vpack.c.b16 %v8387, %v8379
        %v8948 = vpack.c.b16 %v8396, %v8388
        %v8949 = vpack.c.b16 %v8397, %v8389
        %v8950 = vpack.c.b16 %v8398, %v8390
        %v8951 = vpack.c.b16 %v8399, %v8391
        %v8952 = vpack.c.b16 %v8400, %v8392
        %v8953 = vpack.c.b16 %v8401, %v8393
        %v8954 = vpack.c.b16 %v8402, %v8394
        %v8955 = vpack.c.b16 %v8403, %v8395
        %v8956 = vpack.c.b16 %v8412, %v8404
        %v8957 = vpack.c.b16 %v8413, %v8405
        %v8958 = vpack.c.b16 %v8414, %v8406
        %v8959 = vpack.c.b16 %v8415, %v8407
        %v8960 = vpack.c.b16 %v8416, %v8408
        %v8961 = vpack.c.b16 %v8417, %v8409
        %v8962 = vpack.c.b16 %v8418, %v8410
        %v8963 = vpack.c.b16 %v8419, %v8411
        %v8964 = vpack.c.b16 %v8428, %v8420
        %v8965 = vpack.c.b16 %v8429, %v8421
        %v8966 = vpack.c.b16 %v8430, %v8422
        %v8967 = vpack.c.b16 %v8431, %v8423
        %v8968 = vpack.c.b16 %v8432, %v8424
        %v8969 = vpack.c.b16 %v8433, %v8425
        %v8970 = vpack.c.b16 %v8434, %v8426
        %v8971 = vpack.c.b16 %v8435, %v8427
        %v8972 = vpack.c.b16 %v8444, %v8436
        %v8973 = vpack.c.b16 %v8445, %v8437
        %v8974 = vpack.c.b16 %v8446, %v8438
        %v8975 = vpack.c.b16 %v8447, %v8439
        %v8976 = vpack.c.b16 %v8448, %v8440
        %v8977 = vpack.c.b16 %v8449, %v8441
        %v8978 = vpack.c.b16 %v8450, %v8442
        %v8979 = vpack.c.b16 %v8451, %v8443
        %v8980 = vpack.c.b16 %v8460, %v8452
        %v8981 = vpack.c.b16 %v8461, %v8453
        %v8982 = vpack.c.b16 %v8462, %v8454
        %v8983 = vpack.c.b16 %v8463, %v8455
        %v8984 = vpack.c.b16 %v8464, %v8456
        %v8985 = vpack.c.b16 %v8465, %v8457
        %v8986 = vpack.c.b16 %v8466, %v8458
        %v8987 = vpack.c.b16 %v8467, %v8459
        %v8988 = vpack.c.b16 %v8476, %v8468
        %v8989 = vpack.c.b16 %v8477, %v8469
        %v8990 = vpack.c.b16 %v8478, %v8470
        %v8991 = vpack.c.b16 %v8479, %v8471
        %v8992 = vpack.c.b16 %v8480, %v8472
        %v8993 = vpack.c.b16 %v8481, %v8473
        %v8994 = vpack.c.b16 %v8482, %v8474
        %v8995 = vpack.c.b16 %v8483, %v8475
        %9508 = vmatprep.subr.bf16.mxu0 %v8485
        %9509 = vmatpush1.bf16.msra.mxu0 %v8484
        %9510 = vmatprep.subr.bf16.mxu0 %v8493
        %9511 = vmatpush1.bf16.msra.mxu0 %v8492
        %9512 = vmatprep.subr.bf16.mxu0 %v8501
        %9513 = vmatpush1.bf16.msra.mxu0 %v8500
        %9514 = vmatprep.subr.bf16.mxu0 %v8509
        %9515 = vmatpush1.bf16.msra.mxu0 %v8508
        %9516 = vmatprep.subr.bf16.mxu0 %v8517
        %9517 = vmatpush1.bf16.msra.mxu0 %v8516
        %9518 = vmatprep.subr.bf16.mxu0 %v8525
        %9519 = vmatpush1.bf16.msra.mxu0 %v8524
        %9520 = vmatprep.subr.bf16.mxu0 %v8533
        %9521 = vmatpush1.bf16.msra.mxu0 %v8532
        %9522 = vmatprep.subr.bf16.mxu0 %v8541
        %9523 = vmatpush1.bf16.msra.mxu0 %v8540
        %9524 = vmatprep.subr.bf16.mxu0 %v8549
        %9525 = vmatpush1.bf16.msra.mxu0 %v8548
        %9526 = vmatprep.subr.bf16.mxu0 %v8557
        %9527 = vmatpush1.bf16.msra.mxu0 %v8556
        %9528 = vmatprep.subr.bf16.mxu0 %v8565
        %9529 = vmatpush1.bf16.msra.mxu0 %v8564
        %9530 = vmatprep.subr.bf16.mxu0 %v8573
        %9531 = vmatpush1.bf16.msra.mxu0 %v8572
        %9532 = vmatprep.subr.bf16.mxu0 %v8581
        %9533 = vmatpush1.bf16.msra.mxu0 %v8580
        %9534 = vmatprep.subr.bf16.mxu0 %v8589
        %9535 = vmatpush1.bf16.msra.mxu0 %v8588
        %9536 = vmatprep.subr.bf16.mxu0 %v8597
        %9537 = vmatpush1.bf16.msra.mxu0 %v8596
        %9538 = vmatprep.subr.bf16.mxu0 %v8605
        %9539 = vmatpush1.bf16.msra.mxu0 %v8604
        %9540 = vmatprep.mubr.bf16.mxu0 %v6387
        %9541 = vmatmul.mubr.bf16.gmra.mrb[0].mxu0 %v6386
        %v9542 = vpop.f32.mrb[0].mxu0
        %v9543 = vadd.f32 %v6911, %v9542
        %v9544 = vpop.f32.mrb[0].mxu0
        %v9545 = vadd.f32 %v6915, %v9544
        %v9546 = vpop.f32.mrb[0].mxu0
        %v9547 = vpop.f32.mrb[0].mxu0
        %9548 = vdwg.mxu0
        %9549 = vmatprep.subr.bf16.mxu0 %v8613
        %9550 = vmatpush1.bf16.msra.mxu0 %v8612
        %9551 = vmatprep.subr.bf16.mxu0 %v8621
        %9552 = vmatpush1.bf16.msra.mxu0 %v8620
        %9553 = vmatprep.subr.bf16.mxu0 %v8629
        %9554 = vmatpush1.bf16.msra.mxu0 %v8628
        %9555 = vmatprep.subr.bf16.mxu0 %v8637
        %9556 = vmatpush1.bf16.msra.mxu0 %v8636
        %9557 = vmatprep.subr.bf16.mxu0 %v8645
        %9558 = vmatpush1.bf16.msra.mxu0 %v8644
        %9559 = vmatprep.subr.bf16.mxu0 %v8653
        %9560 = vmatpush1.bf16.msra.mxu0 %v8652
        %9561 = vmatprep.subr.bf16.mxu0 %v8661
        %9562 = vmatpush1.bf16.msra.mxu0 %v8660
        %9563 = vmatprep.subr.bf16.mxu0 %v8669
        %9564 = vmatpush1.bf16.msra.mxu0 %v8668
        %9565 = vmatprep.subr.bf16.mxu0 %v8677
        %9566 = vmatpush1.bf16.msra.mxu0 %v8676
        %9567 = vmatprep.subr.bf16.mxu0 %v8685
        %9568 = vmatpush1.bf16.msra.mxu0 %v8684
        %9569 = vmatprep.subr.bf16.mxu0 %v8693
        %9570 = vmatpush1.bf16.msra.mxu0 %v8692
        %9571 = vmatprep.subr.bf16.mxu0 %v8701
        %9572 = vmatpush1.bf16.msra.mxu0 %v8700
        %9573 = vmatprep.subr.bf16.mxu0 %v8709
        %9574 = vmatpush1.bf16.msra.mxu0 %v8708
        %9575 = vmatprep.subr.bf16.mxu0 %v8717
        %9576 = vmatpush1.bf16.msra.mxu0 %v8716
        %9577 = vmatprep.subr.bf16.mxu0 %v8725
        %9578 = vmatpush1.bf16.msra.mxu0 %v8724
        %9579 = vmatprep.subr.bf16.mxu0 %v8733
        %9580 = vmatpush1.bf16.msra.mxu0 %v8732
        %9581 = vmatprep.mubr.bf16.mxu0 %v6389
        %9582 = vmatmul.mubr.bf16.gmra.mrb[0].mxu0 %v6388
        %v9583 = vpop.f32.mrb[0].mxu0
        %v9584 = vadd.f32 %v9543, %v9583
        %v9585 = vpop.f32.mrb[0].mxu0
        %v9586 = vadd.f32 %v9545, %v9585
        %v9587 = vpop.f32.mrb[0].mxu0
        %v9588 = vpop.f32.mrb[0].mxu0
        %9589 = vdwg.mxu0
        %9590 = vmatprep.subr.bf16.mxu0 %v8741
        %9591 = vmatpush1.bf16.msra.mxu0 %v8740
        %9592 = vmatprep.subr.bf16.mxu0 %v8749
        %9593 = vmatpush1.bf16.msra.mxu0 %v8748
        %9594 = vmatprep.subr.bf16.mxu0 %v8757
        %9595 = vmatpush1.bf16.msra.mxu0 %v8756
        %9596 = vmatprep.subr.bf16.mxu0 %v8765
        %9597 = vmatpush1.bf16.msra.mxu0 %v8764
        %9598 = vmatprep.subr.bf16.mxu0 %v8773
        %9599 = vmatpush1.bf16.msra.mxu0 %v8772
        %9600 = vmatprep.subr.bf16.mxu0 %v8781
        %9601 = vmatpush1.bf16.msra.mxu0 %v8780
        %9602 = vmatprep.subr.bf16.mxu0 %v8789
        %9603 = vmatpush1.bf16.msra.mxu0 %v8788
        %9604 = vmatprep.subr.bf16.mxu0 %v8797
        %9605 = vmatpush1.bf16.msra.mxu0 %v8796
        %9606 = vmatprep.subr.bf16.mxu0 %v8805
        %9607 = vmatpush1.bf16.msra.mxu0 %v8804
        %9608 = vmatprep.subr.bf16.mxu0 %v8813
        %9609 = vmatpush1.bf16.msra.mxu0 %v8812
        %9610 = vmatprep.subr.bf16.mxu0 %v8821
        %9611 = vmatpush1.bf16.msra.mxu0 %v8820
        %9612 = vmatprep.subr.bf16.mxu0 %v8829
        %9613 = vmatpush1.bf16.msra.mxu0 %v8828
        %9614 = vmatprep.subr.bf16.mxu0 %v8837
        %9615 = vmatpush1.bf16.msra.mxu0 %v8836
        %9616 = vmatprep.subr.bf16.mxu0 %v8845
        %9617 = vmatpush1.bf16.msra.mxu0 %v8844
        %9618 = vmatprep.subr.bf16.mxu0 %v8853
        %9619 = vmatpush1.bf16.msra.mxu0 %v8852
        %9620 = vmatprep.subr.bf16.mxu0 %v8861
        %9621 = vmatpush1.bf16.msra.mxu0 %v8860
        %9622 = vmatprep.mubr.bf16.mxu0 %v6391
        %9623 = vmatmul.mubr.bf16.gmra.mrb[0].mxu0 %v6390
        %v9624 = vpop.f32.mrb[0].mxu0
        %v9625 = vadd.f32 %v9584, %v9624
        %v9626 = vpop.f32.mrb[0].mxu0
        %v9627 = vadd.f32 %v9586, %v9626
        %v9628 = vpop.f32.mrb[0].mxu0
        %v9629 = vpop.f32.mrb[0].mxu0
        %9630 = vdwg.mxu0
        %9631 = vmatprep.subr.bf16.mxu0 %v8869
        %9632 = vmatpush1.bf16.msra.mxu0 %v8868
        %9633 = vmatprep.subr.bf16.mxu0 %v8877
        %9634 = vmatpush1.bf16.msra.mxu0 %v8876
        %9635 = vmatprep.subr.bf16.mxu0 %v8885
        %9636 = vmatpush1.bf16.msra.mxu0 %v8884
        %9637 = vmatprep.subr.bf16.mxu0 %v8893
        %9638 = vmatpush1.bf16.msra.mxu0 %v8892
        %9639 = vmatprep.subr.bf16.mxu0 %v8901
        %9640 = vmatpush1.bf16.msra.mxu0 %v8900
        %9641 = vmatprep.subr.bf16.mxu0 %v8909
        %9642 = vmatpush1.bf16.msra.mxu0 %v8908
        %9643 = vmatprep.subr.bf16.mxu0 %v8917
        %9644 = vmatpush1.bf16.msra.mxu0 %v8916
        %9645 = vmatprep.subr.bf16.mxu0 %v8925
        %9646 = vmatpush1.bf16.msra.mxu0 %v8924
        %9647 = vmatprep.subr.bf16.mxu0 %v8933
        %9648 = vmatpush1.bf16.msra.mxu0 %v8932
        %9649 = vmatprep.subr.bf16.mxu0 %v8941
        %9650 = vmatpush1.bf16.msra.mxu0 %v8940
        %9651 = vmatprep.subr.bf16.mxu0 %v8949
        %9652 = vmatpush1.bf16.msra.mxu0 %v8948
        %9653 = vmatprep.subr.bf16.mxu0 %v8957
        %9654 = vmatpush1.bf16.msra.mxu0 %v8956
        %9655 = vmatprep.subr.bf16.mxu0 %v8965
        %9656 = vmatpush1.bf16.msra.mxu0 %v8964
        %9657 = vmatprep.subr.bf16.mxu0 %v8973
        %9658 = vmatpush1.bf16.msra.mxu0 %v8972
        %9659 = vmatprep.subr.bf16.mxu0 %v8981
        %9660 = vmatpush1.bf16.msra.mxu0 %v8980
        %9661 = vmatprep.subr.bf16.mxu0 %v8989
        %9662 = vmatpush1.bf16.msra.mxu0 %v8988
        %9663 = vmatprep.mubr.bf16.mxu0 %v6393
        %9664 = vmatmul.mubr.bf16.gmra.mrb[0].mxu0 %v6392
        %v9665 = vpop.f32.mrb[0].mxu0
        %v9666 = vadd.f32 %v9625, %v9665
        %v9667 = vpop.f32.mrb[0].mxu0
        %v9668 = vadd.f32 %v9627, %v9667
        %v9669 = vpop.f32.mrb[0].mxu0
        %v9670 = vpop.f32.mrb[0].mxu0
        %9671 = vdwg.mxu0
        %9672 = vmatprep.subr.bf16.mxu0 %v8487
        %9673 = vmatpush1.bf16.msra.mxu0 %v8486
        %9674 = vmatprep.subr.bf16.mxu0 %v8495
        %9675 = vmatpush1.bf16.msra.mxu0 %v8494
        %9676 = vmatprep.subr.bf16.mxu0 %v8503
        %9677 = vmatpush1.bf16.msra.mxu0 %v8502
        %9678 = vmatprep.subr.bf16.mxu0 %v8511
        %9679 = vmatpush1.bf16.msra.mxu0 %v8510
        %9680 = vmatprep.subr.bf16.mxu0 %v8519
        %9681 = vmatpush1.bf16.msra.mxu0 %v8518
        %9682 = vmatprep.subr.bf16.mxu0 %v8527
        %9683 = vmatpush1.bf16.msra.mxu0 %v8526
        %9684 = vmatprep.subr.bf16.mxu0 %v8535
        %9685 = vmatpush1.bf16.msra.mxu0 %v8534
        %9686 = vmatprep.subr.bf16.mxu0 %v8543
        %9687 = vmatpush1.bf16.msra.mxu0 %v8542
        %9688 = vmatprep.subr.bf16.mxu0 %v8551
        %9689 = vmatpush1.bf16.msra.mxu0 %v8550
        %9690 = vmatprep.subr.bf16.mxu0 %v8559
        %9691 = vmatpush1.bf16.msra.mxu0 %v8558
        %9692 = vmatprep.subr.bf16.mxu0 %v8567
        %9693 = vmatpush1.bf16.msra.mxu0 %v8566
        %9694 = vmatprep.subr.bf16.mxu0 %v8575
        %9695 = vmatpush1.bf16.msra.mxu0 %v8574
        %9696 = vmatprep.subr.bf16.mxu0 %v8583
        %9697 = vmatpush1.bf16.msra.mxu0 %v8582
        %9698 = vmatprep.subr.bf16.mxu0 %v8591
        %9699 = vmatpush1.bf16.msra.mxu0 %v8590
        %9700 = vmatprep.subr.bf16.mxu0 %v8599
        %9701 = vmatpush1.bf16.msra.mxu0 %v8598
        %9702 = vmatprep.subr.bf16.mxu0 %v8607
        %9703 = vmatpush1.bf16.msra.mxu0 %v8606
        %9704 = vmatprep.mubr.bf16.mxu0 %v6387
        %9705 = vmatmul.mubr.bf16.gmra.mrb[0].mxu0 %v6386
        %v9706 = vpop.f32.mrb[0].mxu0
        %v9707 = vadd.f32 %v6919, %v9706
        %v9708 = vpop.f32.mrb[0].mxu0
        %v9709 = vadd.f32 %v6923, %v9708
        %v9710 = vpop.f32.mrb[0].mxu0
        %v9711 = vpop.f32.mrb[0].mxu0
        %9712 = vdwg.mxu0
        %9713 = vmatprep.subr.bf16.mxu0 %v8615
        %9714 = vmatpush1.bf16.msra.mxu0 %v8614
        %9715 = vmatprep.subr.bf16.mxu0 %v8623
        %9716 = vmatpush1.bf16.msra.mxu0 %v8622
        %9717 = vmatprep.subr.bf16.mxu0 %v8631
        %9718 = vmatpush1.bf16.msra.mxu0 %v8630
        %9719 = vmatprep.subr.bf16.mxu0 %v8639
        %9720 = vmatpush1.bf16.msra.mxu0 %v8638
        %9721 = vmatprep.subr.bf16.mxu0 %v8647
        %9722 = vmatpush1.bf16.msra.mxu0 %v8646
        %9723 = vmatprep.subr.bf16.mxu0 %v8655
        %9724 = vmatpush1.bf16.msra.mxu0 %v8654
        %9725 = vmatprep.subr.bf16.mxu0 %v8663
        %9726 = vmatpush1.bf16.msra.mxu0 %v8662
        %9727 = vmatprep.subr.bf16.mxu0 %v8671
        %9728 = vmatpush1.bf16.msra.mxu0 %v8670
        %9729 = vmatprep.subr.bf16.mxu0 %v8679
        %9730 = vmatpush1.bf16.msra.mxu0 %v8678
        %9731 = vmatprep.subr.bf16.mxu0 %v8687
        %9732 = vmatpush1.bf16.msra.mxu0 %v8686
        %9733 = vmatprep.subr.bf16.mxu0 %v8695
        %9734 = vmatpush1.bf16.msra.mxu0 %v8694
        %9735 = vmatprep.subr.bf16.mxu0 %v8703
        %9736 = vmatpush1.bf16.msra.mxu0 %v8702
        %9737 = vmatprep.subr.bf16.mxu0 %v8711
        %9738 = vmatpush1.bf16.msra.mxu0 %v8710
        %9739 = vmatprep.subr.bf16.mxu0 %v8719
        %9740 = vmatpush1.bf16.msra.mxu0 %v8718
        %9741 = vmatprep.subr.bf16.mxu0 %v8727
        %9742 = vmatpush1.bf16.msra.mxu0 %v8726
        %9743 = vmatprep.subr.bf16.mxu0 %v8735
        %9744 = vmatpush1.bf16.msra.mxu0 %v8734
        %9745 = vmatprep.mubr.bf16.mxu0 %v6389
        %9746 = vmatmul.mubr.bf16.gmra.mrb[0].mxu0 %v6388
        %v9747 = vpop.f32.mrb[0].mxu0
        %v9748 = vadd.f32 %v9707, %v9747
        %v9749 = vpop.f32.mrb[0].mxu0
        %v9750 = vadd.f32 %v9709, %v9749
        %v9751 = vpop.f32.mrb[0].mxu0
        %v9752 = vpop.f32.mrb[0].mxu0
        %9753 = vdwg.mxu0
        %9754 = vmatprep.subr.bf16.mxu0 %v8743
        %9755 = vmatpush1.bf16.msra.mxu0 %v8742
        %9756 = vmatprep.subr.bf16.mxu0 %v8751
        %9757 = vmatpush1.bf16.msra.mxu0 %v8750
        %9758 = vmatprep.subr.bf16.mxu0 %v8759
        %9759 = vmatpush1.bf16.msra.mxu0 %v8758
        %9760 = vmatprep.subr.bf16.mxu0 %v8767
        %9761 = vmatpush1.bf16.msra.mxu0 %v8766
        %9762 = vmatprep.subr.bf16.mxu0 %v8775
        %9763 = vmatpush1.bf16.msra.mxu0 %v8774
        %9764 = vmatprep.subr.bf16.mxu0 %v8783
        %9765 = vmatpush1.bf16.msra.mxu0 %v8782
        %9766 = vmatprep.subr.bf16.mxu0 %v8791
        %9767 = vmatpush1.bf16.msra.mxu0 %v8790
        %9768 = vmatprep.subr.bf16.mxu0 %v8799
        %9769 = vmatpush1.bf16.msra.mxu0 %v8798
        %9770 = vmatprep.subr.bf16.mxu0 %v8807
        %9771 = vmatpush1.bf16.msra.mxu0 %v8806
        %9772 = vmatprep.subr.bf16.mxu0 %v8815
        %9773 = vmatpush1.bf16.msra.mxu0 %v8814
        %9774 = vmatprep.subr.bf16.mxu0 %v8823
        %9775 = vmatpush1.bf16.msra.mxu0 %v8822
        %9776 = vmatprep.subr.bf16.mxu0 %v8831
        %9777 = vmatpush1.bf16.msra.mxu0 %v8830
        %9778 = vmatprep.subr.bf16.mxu0 %v8839
        %9779 = vmatpush1.bf16.msra.mxu0 %v8838
        %9780 = vmatprep.subr.bf16.mxu0 %v8847
        %9781 = vmatpush1.bf16.msra.mxu0 %v8846
        %9782 = vmatprep.subr.bf16.mxu0 %v8855
        %9783 = vmatpush1.bf16.msra.mxu0 %v8854
        %9784 = vmatprep.subr.bf16.mxu0 %v8863
        %9785 = vmatpush1.bf16.msra.mxu0 %v8862
        %9786 = vmatprep.mubr.bf16.mxu0 %v6391
        %9787 = vmatmul.mubr.bf16.gmra.mrb[0].mxu0 %v6390
        %v9788 = vpop.f32.mrb[0].mxu0
        %v9789 = vadd.f32 %v9748, %v9788
        %v9790 = vpop.f32.mrb[0].mxu0
        %v9791 = vadd.f32 %v9750, %v9790
        %v9792 = vpop.f32.mrb[0].mxu0
        %v9793 = vpop.f32.mrb[0].mxu0
        %9794 = vdwg.mxu0
        %9795 = vmatprep.subr.bf16.mxu0 %v8871
        %9796 = vmatpush1.bf16.msra.mxu0 %v8870
        %9797 = vmatprep.subr.bf16.mxu0 %v8879
        %9798 = vmatpush1.bf16.msra.mxu0 %v8878
        %9799 = vmatprep.subr.bf16.mxu0 %v8887
        %9800 = vmatpush1.bf16.msra.mxu0 %v8886
        %9801 = vmatprep.subr.bf16.mxu0 %v8895
        %9802 = vmatpush1.bf16.msra.mxu0 %v8894
        %9803 = vmatprep.subr.bf16.mxu0 %v8903
        %9804 = vmatpush1.bf16.msra.mxu0 %v8902
        %9805 = vmatprep.subr.bf16.mxu0 %v8911
        %9806 = vmatpush1.bf16.msra.mxu0 %v8910
        %9807 = vmatprep.subr.bf16.mxu0 %v8919
        %9808 = vmatpush1.bf16.msra.mxu0 %v8918
        %9809 = vmatprep.subr.bf16.mxu0 %v8927
        %9810 = vmatpush1.bf16.msra.mxu0 %v8926
        %9811 = vmatprep.subr.bf16.mxu0 %v8935
        %9812 = vmatpush1.bf16.msra.mxu0 %v8934
        %9813 = vmatprep.subr.bf16.mxu0 %v8943
        %9814 = vmatpush1.bf16.msra.mxu0 %v8942
        %9815 = vmatprep.subr.bf16.mxu0 %v8951
        %9816 = vmatpush1.bf16.msra.mxu0 %v8950
        %9817 = vmatprep.subr.bf16.mxu0 %v8959
        %9818 = vmatpush1.bf16.msra.mxu0 %v8958
        %9819 = vmatprep.subr.bf16.mxu0 %v8967
        %9820 = vmatpush1.bf16.msra.mxu0 %v8966
        %9821 = vmatprep.subr.bf16.mxu0 %v8975
        %9822 = vmatpush1.bf16.msra.mxu0 %v8974
        %9823 = vmatprep.subr.bf16.mxu0 %v8983
        %9824 = vmatpush1.bf16.msra.mxu0 %v8982
        %9825 = vmatprep.subr.bf16.mxu0 %v8991
        %9826 = vmatpush1.bf16.msra.mxu0 %v8990
        %9827 = vmatprep.mubr.bf16.mxu0 %v6393
        %9828 = vmatmul.mubr.bf16.gmra.mrb[0].mxu0 %v6392
        %v9829 = vpop.f32.mrb[0].mxu0
        %v9830 = vadd.f32 %v9789, %v9829
        %v9831 = vpop.f32.mrb[0].mxu0
        %v9832 = vadd.f32 %v9791, %v9831
        %v9833 = vpop.f32.mrb[0].mxu0
        %v9834 = vpop.f32.mrb[0].mxu0
        %9835 = vdwg.mxu0
        %9836 = vmatprep.subr.bf16.mxu0 %v8489
        %9837 = vmatpush1.bf16.msra.mxu0 %v8488
        %9838 = vmatprep.subr.bf16.mxu0 %v8497
        %9839 = vmatpush1.bf16.msra.mxu0 %v8496
        %9840 = vmatprep.subr.bf16.mxu0 %v8505
        %9841 = vmatpush1.bf16.msra.mxu0 %v8504
        %9842 = vmatprep.subr.bf16.mxu0 %v8513
        %9843 = vmatpush1.bf16.msra.mxu0 %v8512
        %9844 = vmatprep.subr.bf16.mxu0 %v8521
        %9845 = vmatpush1.bf16.msra.mxu0 %v8520
        %9846 = vmatprep.subr.bf16.mxu0 %v8529
        %9847 = vmatpush1.bf16.msra.mxu0 %v8528
        %9848 = vmatprep.subr.bf16.mxu0 %v8537
        %9849 = vmatpush1.bf16.msra.mxu0 %v8536
        %9850 = vmatprep.subr.bf16.mxu0 %v8545
        %9851 = vmatpush1.bf16.msra.mxu0 %v8544
        %9852 = vmatprep.subr.bf16.mxu0 %v8553
        %9853 = vmatpush1.bf16.msra.mxu0 %v8552
        %9854 = vmatprep.subr.bf16.mxu0 %v8561
        %9855 = vmatpush1.bf16.msra.mxu0 %v8560
        %9856 = vmatprep.subr.bf16.mxu0 %v8569
        %9857 = vmatpush1.bf16.msra.mxu0 %v8568
        %9858 = vmatprep.subr.bf16.mxu0 %v8577
        %9859 = vmatpush1.bf16.msra.mxu0 %v8576
        %9860 = vmatprep.subr.bf16.mxu0 %v8585
        %9861 = vmatpush1.bf16.msra.mxu0 %v8584
        %9862 = vmatprep.subr.bf16.mxu0 %v8593
        %9863 = vmatpush1.bf16.msra.mxu0 %v8592
        %9864 = vmatprep.subr.bf16.mxu0 %v8601
        %9865 = vmatpush1.bf16.msra.mxu0 %v8600
        %9866 = vmatprep.subr.bf16.mxu0 %v8609
        %9867 = vmatpush1.bf16.msra.mxu0 %v8608
        %9868 = vmatprep.mubr.bf16.mxu0 %v6387
        %9869 = vmatmul.mubr.bf16.gmra.mrb[0].mxu0 %v6386
        %v9870 = vpop.f32.mrb[0].mxu0
        %v9871 = vadd.f32 %v6927, %v9870
        %v9872 = vpop.f32.mrb[0].mxu0
        %v9873 = vadd.f32 %v6931, %v9872
        %v9874 = vpop.f32.mrb[0].mxu0
        %v9875 = vpop.f32.mrb[0].mxu0
        %9876 = vdwg.mxu0
        %9877 = vmatprep.subr.bf16.mxu0 %v8617
        %9878 = vmatpush1.bf16.msra.mxu0 %v8616
        %9879 = vmatprep.subr.bf16.mxu0 %v8625
        %9880 = vmatpush1.bf16.msra.mxu0 %v8624
        %9881 = vmatprep.subr.bf16.mxu0 %v8633
        %9882 = vmatpush1.bf16.msra.mxu0 %v8632
        %9883 = vmatprep.subr.bf16.mxu0 %v8641
        %9884 = vmatpush1.bf16.msra.mxu0 %v8640
        %9885 = vmatprep.subr.bf16.mxu0 %v8649
        %9886 = vmatpush1.bf16.msra.mxu0 %v8648
        %9887 = vmatprep.subr.bf16.mxu0 %v8657
        %9888 = vmatpush1.bf16.msra.mxu0 %v8656
        %9889 = vmatprep.subr.bf16.mxu0 %v8665
        %9890 = vmatpush1.bf16.msra.mxu0 %v8664
        %9891 = vmatprep.subr.bf16.mxu0 %v8673
        %9892 = vmatpush1.bf16.msra.mxu0 %v8672
        %9893 = vmatprep.subr.bf16.mxu0 %v8681
        %9894 = vmatpush1.bf16.msra.mxu0 %v8680
        %9895 = vmatprep.subr.bf16.mxu0 %v8689
        %9896 = vmatpush1.bf16.msra.mxu0 %v8688
        %9897 = vmatprep.subr.bf16.mxu0 %v8697
        %9898 = vmatpush1.bf16.msra.mxu0 %v8696
        %9899 = vmatprep.subr.bf16.mxu0 %v8705
        %9900 = vmatpush1.bf16.msra.mxu0 %v8704
        %9901 = vmatprep.subr.bf16.mxu0 %v8713
        %9902 = vmatpush1.bf16.msra.mxu0 %v8712
        %9903 = vmatprep.subr.bf16.mxu0 %v8721
        %9904 = vmatpush1.bf16.msra.mxu0 %v8720
        %9905 = vmatprep.subr.bf16.mxu0 %v8729
        %9906 = vmatpush1.bf16.msra.mxu0 %v8728
        %9907 = vmatprep.subr.bf16.mxu0 %v8737
        %9908 = vmatpush1.bf16.msra.mxu0 %v8736
        %9909 = vmatprep.mubr.bf16.mxu0 %v6389
        %9910 = vmatmul.mubr.bf16.gmra.mrb[0].mxu0 %v6388
        %v9911 = vpop.f32.mrb[0].mxu0
        %v9912 = vadd.f32 %v9871, %v9911
        %v9913 = vpop.f32.mrb[0].mxu0
        %v9914 = vadd.f32 %v9873, %v9913
        %v9915 = vpop.f32.mrb[0].mxu0
        %v9916 = vpop.f32.mrb[0].mxu0
        %9917 = vdwg.mxu0
        %9918 = vmatprep.subr.bf16.mxu0 %v8745
        %9919 = vmatpush1.bf16.msra.mxu0 %v8744
        %9920 = vmatprep.subr.bf16.mxu0 %v8753
        %9921 = vmatpush1.bf16.msra.mxu0 %v8752
        %9922 = vmatprep.subr.bf16.mxu0 %v8761
        %9923 = vmatpush1.bf16.msra.mxu0 %v8760
        %9924 = vmatprep.subr.bf16.mxu0 %v8769
        %9925 = vmatpush1.bf16.msra.mxu0 %v8768
        %9926 = vmatprep.subr.bf16.mxu0 %v8777
        %9927 = vmatpush1.bf16.msra.mxu0 %v8776
        %9928 = vmatprep.subr.bf16.mxu0 %v8785
        %9929 = vmatpush1.bf16.msra.mxu0 %v8784
        %9930 = vmatprep.subr.bf16.mxu0 %v8793
        %9931 = vmatpush1.bf16.msra.mxu0 %v8792
        %9932 = vmatprep.subr.bf16.mxu0 %v8801
        %9933 = vmatpush1.bf16.msra.mxu0 %v8800
        %9934 = vmatprep.subr.bf16.mxu0 %v8809
        %9935 = vmatpush1.bf16.msra.mxu0 %v8808
        %9936 = vmatprep.subr.bf16.mxu0 %v8817
        %9937 = vmatpush1.bf16.msra.mxu0 %v8816
        %9938 = vmatprep.subr.bf16.mxu0 %v8825
        %9939 = vmatpush1.bf16.msra.mxu0 %v8824
        %9940 = vmatprep.subr.bf16.mxu0 %v8833
        %9941 = vmatpush1.bf16.msra.mxu0 %v8832
        %9942 = vmatprep.subr.bf16.mxu0 %v8841
        %9943 = vmatpush1.bf16.msra.mxu0 %v8840
        %9944 = vmatprep.subr.bf16.mxu0 %v8849
        %9945 = vmatpush1.bf16.msra.mxu0 %v8848
        %9946 = vmatprep.subr.bf16.mxu0 %v8857
        %9947 = vmatpush1.bf16.msra.mxu0 %v8856
        %9948 = vmatprep.subr.bf16.mxu0 %v8865
        %9949 = vmatpush1.bf16.msra.mxu0 %v8864
        %9950 = vmatprep.mubr.bf16.mxu0 %v6391
        %9951 = vmatmul.mubr.bf16.gmra.mrb[0].mxu0 %v6390
        %v9952 = vpop.f32.mrb[0].mxu0
        %v9953 = vadd.f32 %v9912, %v9952
        %v9954 = vpop.f32.mrb[0].mxu0
        %v9955 = vadd.f32 %v9914, %v9954
        %v9956 = vpop.f32.mrb[0].mxu0
        %v9957 = vpop.f32.mrb[0].mxu0
        %9958 = vdwg.mxu0
        %9959 = vmatprep.subr.bf16.mxu0 %v8873
        %9960 = vmatpush1.bf16.msra.mxu0 %v8872
        %9961 = vmatprep.subr.bf16.mxu0 %v8881
        %9962 = vmatpush1.bf16.msra.mxu0 %v8880
        %9963 = vmatprep.subr.bf16.mxu0 %v8889
        %9964 = vmatpush1.bf16.msra.mxu0 %v8888
        %9965 = vmatprep.subr.bf16.mxu0 %v8897
        %9966 = vmatpush1.bf16.msra.mxu0 %v8896
        %9967 = vmatprep.subr.bf16.mxu0 %v8905
        %9968 = vmatpush1.bf16.msra.mxu0 %v8904
        %9969 = vmatprep.subr.bf16.mxu0 %v8913
        %9970 = vmatpush1.bf16.msra.mxu0 %v8912
        %9971 = vmatprep.subr.bf16.mxu0 %v8921
        %9972 = vmatpush1.bf16.msra.mxu0 %v8920
        %9973 = vmatprep.subr.bf16.mxu0 %v8929
        %9974 = vmatpush1.bf16.msra.mxu0 %v8928
        %9975 = vmatprep.subr.bf16.mxu0 %v8937
        %9976 = vmatpush1.bf16.msra.mxu0 %v8936
        %9977 = vmatprep.subr.bf16.mxu0 %v8945
        %9978 = vmatpush1.bf16.msra.mxu0 %v8944
        %9979 = vmatprep.subr.bf16.mxu0 %v8953
        %9980 = vmatpush1.bf16.msra.mxu0 %v8952
        %9981 = vmatprep.subr.bf16.mxu0 %v8961
        %9982 = vmatpush1.bf16.msra.mxu0 %v8960
        %9983 = vmatprep.subr.bf16.mxu0 %v8969
        %9984 = vmatpush1.bf16.msra.mxu0 %v8968
        %9985 = vmatprep.subr.bf16.mxu0 %v8977
        %9986 = vmatpush1.bf16.msra.mxu0 %v8976
        %9987 = vmatprep.subr.bf16.mxu0 %v8985
        %9988 = vmatpush1.bf16.msra.mxu0 %v8984
        %9989 = vmatprep.subr.bf16.mxu0 %v8993
        %9990 = vmatpush1.bf16.msra.mxu0 %v8992
        %9991 = vmatprep.mubr.bf16.mxu0 %v6393
        %9992 = vmatmul.mubr.bf16.gmra.mrb[0].mxu0 %v6392
        %v9993 = vpop.f32.mrb[0].mxu0
        %v9994 = vadd.f32 %v9953, %v9993
        %v9995 = vpop.f32.mrb[0].mxu0
        %v9996 = vadd.f32 %v9955, %v9995
        %v9997 = vpop.f32.mrb[0].mxu0
        %v9998 = vpop.f32.mrb[0].mxu0
        %9999 = vdwg.mxu0
        %10000 = vmatprep.subr.bf16.mxu0 %v8491
        %10001 = vmatpush1.bf16.msra.mxu0 %v8490
        %10002 = vmatprep.subr.bf16.mxu0 %v8499
        %10003 = vmatpush1.bf16.msra.mxu0 %v8498
        %10004 = vmatprep.subr.bf16.mxu0 %v8507
        %10005 = vmatpush1.bf16.msra.mxu0 %v8506
        %10006 = vmatprep.subr.bf16.mxu0 %v8515
        %10007 = vmatpush1.bf16.msra.mxu0 %v8514
        %10008 = vmatprep.subr.bf16.mxu0 %v8523
        %10009 = vmatpush1.bf16.msra.mxu0 %v8522
        %10010 = vmatprep.subr.bf16.mxu0 %v8531
        %10011 = vmatpush1.bf16.msra.mxu0 %v8530
        %10012 = vmatprep.subr.bf16.mxu0 %v8539
        %10013 = vmatpush1.bf16.msra.mxu0 %v8538
        %10014 = vmatprep.subr.bf16.mxu0 %v8547
        %10015 = vmatpush1.bf16.msra.mxu0 %v8546
        %10016 = vmatprep.subr.bf16.mxu0 %v8555
        %10017 = vmatpush1.bf16.msra.mxu0 %v8554
        %10018 = vmatprep.subr.bf16.mxu0 %v8563
        %10019 = vmatpush1.bf16.msra.mxu0 %v8562
        %10020 = vmatprep.subr.bf16.mxu0 %v8571
        %10021 = vmatpush1.bf16.msra.mxu0 %v8570
        %10022 = vmatprep.subr.bf16.mxu0 %v8579
        %10023 = vmatpush1.bf16.msra.mxu0 %v8578
        %10024 = vmatprep.subr.bf16.mxu0 %v8587
        %10025 = vmatpush1.bf16.msra.mxu0 %v8586
        %10026 = vmatprep.subr.bf16.mxu0 %v8595
        %10027 = vmatpush1.bf16.msra.mxu0 %v8594
        %10028 = vmatprep.subr.bf16.mxu0 %v8603
        %10029 = vmatpush1.bf16.msra.mxu0 %v8602
        %10030 = vmatprep.subr.bf16.mxu0 %v8611
        %10031 = vmatpush1.bf16.msra.mxu0 %v8610
        %10032 = vmatprep.mubr.bf16.mxu0 %v6387
        %10033 = vmatmul.mubr.bf16.gmra.mrb[0].mxu0 %v6386
        %v10034 = vpop.f32.mrb[0].mxu0
        %v10035 = vadd.f32 %v6935, %v10034
        %v10036 = vpop.f32.mrb[0].mxu0
        %v10037 = vadd.f32 %v6939, %v10036
        %v10038 = vpop.f32.mrb[0].mxu0
        %v10039 = vpop.f32.mrb[0].mxu0
        %10040 = vdwg.mxu0
        %10041 = vmatprep.subr.bf16.mxu0 %v8619
        %10042 = vmatpush1.bf16.msra.mxu0 %v8618
        %10043 = vmatprep.subr.bf16.mxu0 %v8627
        %10044 = vmatpush1.bf16.msra.mxu0 %v8626
        %10045 = vmatprep.subr.bf16.mxu0 %v8635
        %10046 = vmatpush1.bf16.msra.mxu0 %v8634
        %10047 = vmatprep.subr.bf16.mxu0 %v8643
        %10048 = vmatpush1.bf16.msra.mxu0 %v8642
        %10049 = vmatprep.subr.bf16.mxu0 %v8651
        %10050 = vmatpush1.bf16.msra.mxu0 %v8650
        %10051 = vmatprep.subr.bf16.mxu0 %v8659
        %10052 = vmatpush1.bf16.msra.mxu0 %v8658
        %10053 = vmatprep.subr.bf16.mxu0 %v8667
        %10054 = vmatpush1.bf16.msra.mxu0 %v8666
        %10055 = vmatprep.subr.bf16.mxu0 %v8675
        %10056 = vmatpush1.bf16.msra.mxu0 %v8674
        %10057 = vmatprep.subr.bf16.mxu0 %v8683
        %10058 = vmatpush1.bf16.msra.mxu0 %v8682
        %10059 = vmatprep.subr.bf16.mxu0 %v8691
        %10060 = vmatpush1.bf16.msra.mxu0 %v8690
        %10061 = vmatprep.subr.bf16.mxu0 %v8699
        %10062 = vmatpush1.bf16.msra.mxu0 %v8698
        %10063 = vmatprep.subr.bf16.mxu0 %v8707
        %10064 = vmatpush1.bf16.msra.mxu0 %v8706
        %10065 = vmatprep.subr.bf16.mxu0 %v8715
        %10066 = vmatpush1.bf16.msra.mxu0 %v8714
        %10067 = vmatprep.subr.bf16.mxu0 %v8723
        %10068 = vmatpush1.bf16.msra.mxu0 %v8722
        %10069 = vmatprep.subr.bf16.mxu0 %v8731
        %10070 = vmatpush1.bf16.msra.mxu0 %v8730
        %10071 = vmatprep.subr.bf16.mxu0 %v8739
        %10072 = vmatpush1.bf16.msra.mxu0 %v8738
        %10073 = vmatprep.mubr.bf16.mxu0 %v6389
        %10074 = vmatmul.mubr.bf16.gmra.mrb[0].mxu0 %v6388
        %v10075 = vpop.f32.mrb[0].mxu0
        %v10076 = vadd.f32 %v10035, %v10075
        %v10077 = vpop.f32.mrb[0].mxu0
        %v10078 = vadd.f32 %v10037, %v10077
        %v10079 = vpop.f32.mrb[0].mxu0
        %v10080 = vpop.f32.mrb[0].mxu0
        %10081 = vdwg.mxu0
        %10082 = vmatprep.subr.bf16.mxu0 %v8747
        %10083 = vmatpush1.bf16.msra.mxu0 %v8746
        %10084 = vmatprep.subr.bf16.mxu0 %v8755
        %10085 = vmatpush1.bf16.msra.mxu0 %v8754
        %10086 = vmatprep.subr.bf16.mxu0 %v8763
        %10087 = vmatpush1.bf16.msra.mxu0 %v8762
        %10088 = vmatprep.subr.bf16.mxu0 %v8771
        %10089 = vmatpush1.bf16.msra.mxu0 %v8770
        %10090 = vmatprep.subr.bf16.mxu0 %v8779
        %10091 = vmatpush1.bf16.msra.mxu0 %v8778
        %10092 = vmatprep.subr.bf16.mxu0 %v8787
        %10093 = vmatpush1.bf16.msra.mxu0 %v8786
        %10094 = vmatprep.subr.bf16.mxu0 %v8795
        %10095 = vmatpush1.bf16.msra.mxu0 %v8794
        %10096 = vmatprep.subr.bf16.mxu0 %v8803
        %10097 = vmatpush1.bf16.msra.mxu0 %v8802
        %10098 = vmatprep.subr.bf16.mxu0 %v8811
        %10099 = vmatpush1.bf16.msra.mxu0 %v8810
        %10100 = vmatprep.subr.bf16.mxu0 %v8819
        %10101 = vmatpush1.bf16.msra.mxu0 %v8818
        %10102 = vmatprep.subr.bf16.mxu0 %v8827
        %10103 = vmatpush1.bf16.msra.mxu0 %v8826
        %10104 = vmatprep.subr.bf16.mxu0 %v8835
        %10105 = vmatpush1.bf16.msra.mxu0 %v8834
        %10106 = vmatprep.subr.bf16.mxu0 %v8843
        %10107 = vmatpush1.bf16.msra.mxu0 %v8842
        %10108 = vmatprep.subr.bf16.mxu0 %v8851
        %10109 = vmatpush1.bf16.msra.mxu0 %v8850
        %10110 = vmatprep.subr.bf16.mxu0 %v8859
        %10111 = vmatpush1.bf16.msra.mxu0 %v8858
        %10112 = vmatprep.subr.bf16.mxu0 %v8867
        %10113 = vmatpush1.bf16.msra.mxu0 %v8866
        %10114 = vmatprep.mubr.bf16.mxu0 %v6391
        %10115 = vmatmul.mubr.bf16.gmra.mrb[0].mxu0 %v6390
        %v10116 = vpop.f32.mrb[0].mxu0
        %v10117 = vadd.f32 %v10076, %v10116
        %v10118 = vpop.f32.mrb[0].mxu0
        %v10119 = vadd.f32 %v10078, %v10118
        %v10120 = vpop.f32.mrb[0].mxu0
        %v10121 = vpop.f32.mrb[0].mxu0
        %10122 = vdwg.mxu0
        %10123 = vmatprep.subr.bf16.mxu0 %v8875
        %10124 = vmatpush1.bf16.msra.mxu0 %v8874
        %10125 = vmatprep.subr.bf16.mxu0 %v8883
        %10126 = vmatpush1.bf16.msra.mxu0 %v8882
        %10127 = vmatprep.subr.bf16.mxu0 %v8891
        %10128 = vmatpush1.bf16.msra.mxu0 %v8890
        %10129 = vmatprep.subr.bf16.mxu0 %v8899
        %10130 = vmatpush1.bf16.msra.mxu0 %v8898
        %10131 = vmatprep.subr.bf16.mxu0 %v8907
        %10132 = vmatpush1.bf16.msra.mxu0 %v8906
        %10133 = vmatprep.subr.bf16.mxu0 %v8915
        %10134 = vmatpush1.bf16.msra.mxu0 %v8914
        %10135 = vmatprep.subr.bf16.mxu0 %v8923
        %10136 = vmatpush1.bf16.msra.mxu0 %v8922
        %10137 = vmatprep.subr.bf16.mxu0 %v8931
        %10138 = vmatpush1.bf16.msra.mxu0 %v8930
        %10139 = vmatprep.subr.bf16.mxu0 %v8939
        %10140 = vmatpush1.bf16.msra.mxu0 %v8938
        %10141 = vmatprep.subr.bf16.mxu0 %v8947
        %10142 = vmatpush1.bf16.msra.mxu0 %v8946
        %10143 = vmatprep.subr.bf16.mxu0 %v8955
        %10144 = vmatpush1.bf16.msra.mxu0 %v8954
        %10145 = vmatprep.subr.bf16.mxu0 %v8963
        %10146 = vmatpush1.bf16.msra.mxu0 %v8962
        %10147 = vmatprep.subr.bf16.mxu0 %v8971
        %10148 = vmatpush1.bf16.msra.mxu0 %v8970
        %10149 = vmatprep.subr.bf16.mxu0 %v8979
        %10150 = vmatpush1.bf16.msra.mxu0 %v8978
        %10151 = vmatprep.subr.bf16.mxu0 %v8987
        %10152 = vmatpush1.bf16.msra.mxu0 %v8986
        %10153 = vmatprep.subr.bf16.mxu0 %v8995
        %10154 = vmatpush1.bf16.msra.mxu0 %v8994
        %10155 = vmatprep.mubr.bf16.mxu0 %v6393
        %10156 = vmatmul.mubr.bf16.gmra.mrb[0].mxu0 %v6392
        %v10157 = vpop.f32.mrb[0].mxu0
        %v10158 = vadd.f32 %v10117, %v10157
        %v10159 = vpop.f32.mrb[0].mxu0
        %v10160 = vadd.f32 %v10119, %v10159
        %v10161 = vpop.f32.mrb[0].mxu0
        %v10162 = vpop.f32.mrb[0].mxu0
        %10163 = vdwg.mxu0
        %vm10164 = vcmp.gt.f32.partialorder %v9666, 0.0
        %vm10165 = vcmp.gt.f32.partialorder %v9668, 0.0
        %vm10166 = vcmp.gt.f32.partialorder %v9830, 0.0
        %vm10167 = vcmp.gt.f32.partialorder %v9832, 0.0
        %vm10168 = vcmp.gt.f32.partialorder %v9994, 0.0
        %vm10169 = vcmp.gt.f32.partialorder %v9996, 0.0
        %vm10170 = vcmp.gt.f32.partialorder %v10158, 0.0
        %vm10171 = vcmp.gt.f32.partialorder %v10160, 0.0
        %v10172 = vmul.f32 %v9666, 0.01
        %v10173 = vmul.f32 %v9668, 0.01
        %v10174 = vmul.f32 %v9830, 0.01
        %v10175 = vmul.f32 %v9832, 0.01
        %v10176 = vmul.f32 %v9994, 0.01
        %v10177 = vmul.f32 %v9996, 0.01
        %v10178 = vmul.f32 %v10158, 0.01
        %v10179 = vmul.f32 %v10160, 0.01
        %v10180 = vsel %vm10164, %v9666, %v10172
        %v10181 = vsel %vm10165, %v9668, %v10173
        %v10182 = vsel %vm10166, %v9830, %v10174
        %v10183 = vsel %vm10167, %v9832, %v10175
        %v10184 = vsel %vm10168, %v9994, %v10176
        %v10185 = vsel %vm10169, %v9996, %v10177
        %v10186 = vsel %vm10170, %v10158, %v10178
        %v10187 = vsel %vm10171, %v10160, %v10179
        %v10188 = vpack.c.bf16 %v10180, %v10180
        %v10189 = vpack.c.bf16 %v10181, %v10181
        %v10190 = vpack.c.bf16 %v10182, %v10182
        %v10191 = vpack.c.bf16 %v10183, %v10183
        %v10192 = vpack.c.bf16 %v10184, %v10184
        %v10193 = vpack.c.bf16 %v10185, %v10185
        %v10194 = vpack.c.bf16 %v10186, %v10186
        %v10195 = vpack.c.bf16 %v10187, %v10187
        %v10196 = vld [vmem:[%s567] sm:$0xff]
        %v10197 = vld [vmem:[%s567 + $0x8] sm:$0xff]
        %v10198 = vld [vmem:[%s567 + $0x10] sm:$0xff]
        %v10199 = vld [vmem:[%s567 + $0x18] sm:$0xff]
        %v10200 = vld [vmem:[%s567 + $0x20] sm:$0xff]
        %v10201 = vld [vmem:[%s567 + $0x28] sm:$0xff]
        %v10202 = vld [vmem:[%s567 + $0x30] sm:$0xff]
        %v10203 = vld [vmem:[%s567 + $0x38] sm:$0xff]
        %v10204 = vld [vmem:[%s567 + $0x40] sm:$0xff]
        %v10205 = vld [vmem:[%s567 + $0x48] sm:$0xff]
        %v10206 = vld [vmem:[%s567 + $0x50] sm:$0xff]
        %v10207 = vld [vmem:[%s567 + $0x58] sm:$0xff]
        %v10208 = vld [vmem:[%s567 + $0x60] sm:$0xff]
        %v10209 = vld [vmem:[%s567 + $0x68] sm:$0xff]
        %v10210 = vld [vmem:[%s567 + $0x70] sm:$0xff]
        %v10211 = vld [vmem:[%s567 + $0x78] sm:$0xff]
        %v10212 = vld [vmem:[%s567 + $0x80] sm:$0xff]
        %v10213 = vld [vmem:[%s567 + $0x88] sm:$0xff]
        %v10214 = vld [vmem:[%s567 + $0x90] sm:$0xff]
        %v10215 = vld [vmem:[%s567 + $0x98] sm:$0xff]
        %v10216 = vld [vmem:[%s567 + $0xa0] sm:$0xff]
        %v10217 = vld [vmem:[%s567 + $0xa8] sm:$0xff]
        %v10218 = vld [vmem:[%s567 + $0xb0] sm:$0xff]
        %v10219 = vld [vmem:[%s567 + $0xb8] sm:$0xff]
        %v10220 = vld [vmem:[%s567 + $0xc0] sm:$0xff]
        %v10221 = vld [vmem:[%s567 + $0xc8] sm:$0xff]
        %v10222 = vld [vmem:[%s567 + $0xd0] sm:$0xff]
        %v10223 = vld [vmem:[%s567 + $0xd8] sm:$0xff]
        %v10224 = vld [vmem:[%s567 + $0xe0] sm:$0xff]
        %v10225 = vld [vmem:[%s567 + $0xe8] sm:$0xff]
        %v10226 = vld [vmem:[%s567 + $0xf0] sm:$0xff]
        %v10227 = vld [vmem:[%s567 + $0xf8] sm:$0xff]
        %v10228 = vld [vmem:[%s567 + $0x100] sm:$0xff]
        %v10229 = vld [vmem:[%s567 + $0x108] sm:$0xff]
        %v10230 = vld [vmem:[%s567 + $0x110] sm:$0xff]
        %v10231 = vld [vmem:[%s567 + $0x118] sm:$0xff]
        %v10232 = vld [vmem:[%s567 + $0x120] sm:$0xff]
        %v10233 = vld [vmem:[%s567 + $0x128] sm:$0xff]
        %v10234 = vld [vmem:[%s567 + $0x130] sm:$0xff]
        %v10235 = vld [vmem:[%s567 + $0x138] sm:$0xff]
        %v10236 = vld [vmem:[%s567 + $0x140] sm:$0xff]
        %v10237 = vld [vmem:[%s567 + $0x148] sm:$0xff]
        %v10238 = vld [vmem:[%s567 + $0x150] sm:$0xff]
        %v10239 = vld [vmem:[%s567 + $0x158] sm:$0xff]
        %v10240 = vld [vmem:[%s567 + $0x160] sm:$0xff]
        %v10241 = vld [vmem:[%s567 + $0x168] sm:$0xff]
        %v10242 = vld [vmem:[%s567 + $0x170] sm:$0xff]
        %v10243 = vld [vmem:[%s567 + $0x178] sm:$0xff]
        %v10244 = vld [vmem:[%s567 + $0x180] sm:$0xff]
        %v10245 = vld [vmem:[%s567 + $0x188] sm:$0xff]
        %v10246 = vld [vmem:[%s567 + $0x190] sm:$0xff]
        %v10247 = vld [vmem:[%s567 + $0x198] sm:$0xff]
        %v10248 = vld [vmem:[%s567 + $0x1a0] sm:$0xff]
        %v10249 = vld [vmem:[%s567 + $0x1a8] sm:$0xff]
        %v10250 = vld [vmem:[%s567 + $0x1b0] sm:$0xff]
        %v10251 = vld [vmem:[%s567 + $0x1b8] sm:$0xff]
        %v10252 = vld [vmem:[%s567 + $0x1c0] sm:$0xff]
        %v10253 = vld [vmem:[%s567 + $0x1c8] sm:$0xff]
        %v10254 = vld [vmem:[%s567 + $0x1d0] sm:$0xff]
        %v10255 = vld [vmem:[%s567 + $0x1d8] sm:$0xff]
        %v10256 = vld [vmem:[%s567 + $0x1e0] sm:$0xff]
        %v10257 = vld [vmem:[%s567 + $0x1e8] sm:$0xff]
        %v10258 = vld [vmem:[%s567 + $0x1f0] sm:$0xff]
        %v10259 = vld [vmem:[%s567 + $0x1f8] sm:$0xff]
        %v10260 = vld [vmem:[%s567 + $0x200] sm:$0xff]
        %v10261 = vld [vmem:[%s567 + $0x208] sm:$0xff]
        %v10262 = vld [vmem:[%s567 + $0x210] sm:$0xff]
        %v10263 = vld [vmem:[%s567 + $0x218] sm:$0xff]
        %v10264 = vld [vmem:[%s567 + $0x220] sm:$0xff]
        %v10265 = vld [vmem:[%s567 + $0x228] sm:$0xff]
        %v10266 = vld [vmem:[%s567 + $0x230] sm:$0xff]
        %v10267 = vld [vmem:[%s567 + $0x238] sm:$0xff]
        %v10268 = vld [vmem:[%s567 + $0x240] sm:$0xff]
        %v10269 = vld [vmem:[%s567 + $0x248] sm:$0xff]
        %v10270 = vld [vmem:[%s567 + $0x250] sm:$0xff]
        %v10271 = vld [vmem:[%s567 + $0x258] sm:$0xff]
        %v10272 = vld [vmem:[%s567 + $0x260] sm:$0xff]
        %v10273 = vld [vmem:[%s567 + $0x268] sm:$0xff]
        %v10274 = vld [vmem:[%s567 + $0x270] sm:$0xff]
        %v10275 = vld [vmem:[%s567 + $0x278] sm:$0xff]
        %v10276 = vld [vmem:[%s567 + $0x280] sm:$0xff]
        %v10277 = vld [vmem:[%s567 + $0x288] sm:$0xff]
        %v10278 = vld [vmem:[%s567 + $0x290] sm:$0xff]
        %v10279 = vld [vmem:[%s567 + $0x298] sm:$0xff]
        %v10280 = vld [vmem:[%s567 + $0x2a0] sm:$0xff]
        %v10281 = vld [vmem:[%s567 + $0x2a8] sm:$0xff]
        %v10282 = vld [vmem:[%s567 + $0x2b0] sm:$0xff]
        %v10283 = vld [vmem:[%s567 + $0x2b8] sm:$0xff]
        %v10284 = vld [vmem:[%s567 + $0x2c0] sm:$0xff]
        %v10285 = vld [vmem:[%s567 + $0x2c8] sm:$0xff]
        %v10286 = vld [vmem:[%s567 + $0x2d0] sm:$0xff]
        %v10287 = vld [vmem:[%s567 + $0x2d8] sm:$0xff]
        %v10288 = vld [vmem:[%s567 + $0x2e0] sm:$0xff]
        %v10289 = vld [vmem:[%s567 + $0x2e8] sm:$0xff]
        %v10290 = vld [vmem:[%s567 + $0x2f0] sm:$0xff]
        %v10291 = vld [vmem:[%s567 + $0x2f8] sm:$0xff]
        %v10292 = vld [vmem:[%s567 + $0x300] sm:$0xff]
        %v10293 = vld [vmem:[%s567 + $0x308] sm:$0xff]
        %v10294 = vld [vmem:[%s567 + $0x310] sm:$0xff]
        %v10295 = vld [vmem:[%s567 + $0x318] sm:$0xff]
        %v10296 = vld [vmem:[%s567 + $0x320] sm:$0xff]
        %v10297 = vld [vmem:[%s567 + $0x328] sm:$0xff]
        %v10298 = vld [vmem:[%s567 + $0x330] sm:$0xff]
        %v10299 = vld [vmem:[%s567 + $0x338] sm:$0xff]
        %v10300 = vld [vmem:[%s567 + $0x340] sm:$0xff]
        %v10301 = vld [vmem:[%s567 + $0x348] sm:$0xff]
        %v10302 = vld [vmem:[%s567 + $0x350] sm:$0xff]
        %v10303 = vld [vmem:[%s567 + $0x358] sm:$0xff]
        %v10304 = vld [vmem:[%s567 + $0x360] sm:$0xff]
        %v10305 = vld [vmem:[%s567 + $0x368] sm:$0xff]
        %v10306 = vld [vmem:[%s567 + $0x370] sm:$0xff]
        %v10307 = vld [vmem:[%s567 + $0x378] sm:$0xff]
        %v10308 = vld [vmem:[%s567 + $0x380] sm:$0xff]
        %v10309 = vld [vmem:[%s567 + $0x388] sm:$0xff]
        %v10310 = vld [vmem:[%s567 + $0x390] sm:$0xff]
        %v10311 = vld [vmem:[%s567 + $0x398] sm:$0xff]
        %v10312 = vld [vmem:[%s567 + $0x3a0] sm:$0xff]
        %v10313 = vld [vmem:[%s567 + $0x3a8] sm:$0xff]
        %v10314 = vld [vmem:[%s567 + $0x3b0] sm:$0xff]
        %v10315 = vld [vmem:[%s567 + $0x3b8] sm:$0xff]
        %v10316 = vld [vmem:[%s567 + $0x3c0] sm:$0xff]
        %v10317 = vld [vmem:[%s567 + $0x3c8] sm:$0xff]
        %v10318 = vld [vmem:[%s567 + $0x3d0] sm:$0xff]
        %v10319 = vld [vmem:[%s567 + $0x3d8] sm:$0xff]
        %v10320 = vld [vmem:[%s567 + $0x3e0] sm:$0xff]
        %v10321 = vld [vmem:[%s567 + $0x3e8] sm:$0xff]
        %v10322 = vld [vmem:[%s567 + $0x3f0] sm:$0xff]
        %v10323 = vld [vmem:[%s567 + $0x3f8] sm:$0xff]
        %v10324 = vld [vmem:[%s567 + $0x400] sm:$0xff]
        %v10325 = vld [vmem:[%s567 + $0x408] sm:$0xff]
        %v10326 = vld [vmem:[%s567 + $0x410] sm:$0xff]
        %v10327 = vld [vmem:[%s567 + $0x418] sm:$0xff]
        %v10328 = vld [vmem:[%s567 + $0x420] sm:$0xff]
        %v10329 = vld [vmem:[%s567 + $0x428] sm:$0xff]
        %v10330 = vld [vmem:[%s567 + $0x430] sm:$0xff]
        %v10331 = vld [vmem:[%s567 + $0x438] sm:$0xff]
        %v10332 = vld [vmem:[%s567 + $0x440] sm:$0xff]
        %v10333 = vld [vmem:[%s567 + $0x448] sm:$0xff]
        %v10334 = vld [vmem:[%s567 + $0x450] sm:$0xff]
        %v10335 = vld [vmem:[%s567 + $0x458] sm:$0xff]
        %v10336 = vld [vmem:[%s567 + $0x460] sm:$0xff]
        %v10337 = vld [vmem:[%s567 + $0x468] sm:$0xff]
        %v10338 = vld [vmem:[%s567 + $0x470] sm:$0xff]
        %v10339 = vld [vmem:[%s567 + $0x478] sm:$0xff]
        %v10340 = vld [vmem:[%s567 + $0x480] sm:$0xff]
        %v10341 = vld [vmem:[%s567 + $0x488] sm:$0xff]
        %v10342 = vld [vmem:[%s567 + $0x490] sm:$0xff]
        %v10343 = vld [vmem:[%s567 + $0x498] sm:$0xff]
        %v10344 = vld [vmem:[%s567 + $0x4a0] sm:$0xff]
        %v10345 = vld [vmem:[%s567 + $0x4a8] sm:$0xff]
        %v10346 = vld [vmem:[%s567 + $0x4b0] sm:$0xff]
        %v10347 = vld [vmem:[%s567 + $0x4b8] sm:$0xff]
        %v10348 = vld [vmem:[%s567 + $0x4c0] sm:$0xff]
        %v10349 = vld [vmem:[%s567 + $0x4c8] sm:$0xff]
        %v10350 = vld [vmem:[%s567 + $0x4d0] sm:$0xff]
        %v10351 = vld [vmem:[%s567 + $0x4d8] sm:$0xff]
        %v10352 = vld [vmem:[%s567 + $0x4e0] sm:$0xff]
        %v10353 = vld [vmem:[%s567 + $0x4e8] sm:$0xff]
        %v10354 = vld [vmem:[%s567 + $0x4f0] sm:$0xff]
        %v10355 = vld [vmem:[%s567 + $0x4f8] sm:$0xff]
        %v10356 = vld [vmem:[%s567 + $0x500] sm:$0xff]
        %v10357 = vld [vmem:[%s567 + $0x508] sm:$0xff]
        %v10358 = vld [vmem:[%s567 + $0x510] sm:$0xff]
        %v10359 = vld [vmem:[%s567 + $0x518] sm:$0xff]
        %v10360 = vld [vmem:[%s567 + $0x520] sm:$0xff]
        %v10361 = vld [vmem:[%s567 + $0x528] sm:$0xff]
        %v10362 = vld [vmem:[%s567 + $0x530] sm:$0xff]
        %v10363 = vld [vmem:[%s567 + $0x538] sm:$0xff]
        %v10364 = vld [vmem:[%s567 + $0x540] sm:$0xff]
        %v10365 = vld [vmem:[%s567 + $0x548] sm:$0xff]
        %v10366 = vld [vmem:[%s567 + $0x550] sm:$0xff]
        %v10367 = vld [vmem:[%s567 + $0x558] sm:$0xff]
        %v10368 = vld [vmem:[%s567 + $0x560] sm:$0xff]
        %v10369 = vld [vmem:[%s567 + $0x568] sm:$0xff]
        %v10370 = vld [vmem:[%s567 + $0x570] sm:$0xff]
        %v10371 = vld [vmem:[%s567 + $0x578] sm:$0xff]
        %v10372 = vld [vmem:[%s567 + $0x580] sm:$0xff]
        %v10373 = vld [vmem:[%s567 + $0x588] sm:$0xff]
        %v10374 = vld [vmem:[%s567 + $0x590] sm:$0xff]
        %v10375 = vld [vmem:[%s567 + $0x598] sm:$0xff]
        %v10376 = vld [vmem:[%s567 + $0x5a0] sm:$0xff]
        %v10377 = vld [vmem:[%s567 + $0x5a8] sm:$0xff]
        %v10378 = vld [vmem:[%s567 + $0x5b0] sm:$0xff]
        %v10379 = vld [vmem:[%s567 + $0x5b8] sm:$0xff]
        %v10380 = vld [vmem:[%s567 + $0x5c0] sm:$0xff]
        %v10381 = vld [vmem:[%s567 + $0x5c8] sm:$0xff]
        %v10382 = vld [vmem:[%s567 + $0x5d0] sm:$0xff]
        %v10383 = vld [vmem:[%s567 + $0x5d8] sm:$0xff]
        %v10384 = vld [vmem:[%s567 + $0x5e0] sm:$0xff]
        %v10385 = vld [vmem:[%s567 + $0x5e8] sm:$0xff]
        %v10386 = vld [vmem:[%s567 + $0x5f0] sm:$0xff]
        %v10387 = vld [vmem:[%s567 + $0x5f8] sm:$0xff]
        %v10388 = vld [vmem:[%s567 + $0x600] sm:$0xff]
        %v10389 = vld [vmem:[%s567 + $0x608] sm:$0xff]
        %v10390 = vld [vmem:[%s567 + $0x610] sm:$0xff]
        %v10391 = vld [vmem:[%s567 + $0x618] sm:$0xff]
        %v10392 = vld [vmem:[%s567 + $0x620] sm:$0xff]
        %v10393 = vld [vmem:[%s567 + $0x628] sm:$0xff]
        %v10394 = vld [vmem:[%s567 + $0x630] sm:$0xff]
        %v10395 = vld [vmem:[%s567 + $0x638] sm:$0xff]
        %v10396 = vld [vmem:[%s567 + $0x640] sm:$0xff]
        %v10397 = vld [vmem:[%s567 + $0x648] sm:$0xff]
        %v10398 = vld [vmem:[%s567 + $0x650] sm:$0xff]
        %v10399 = vld [vmem:[%s567 + $0x658] sm:$0xff]
        %v10400 = vld [vmem:[%s567 + $0x660] sm:$0xff]
        %v10401 = vld [vmem:[%s567 + $0x668] sm:$0xff]
        %v10402 = vld [vmem:[%s567 + $0x670] sm:$0xff]
        %v10403 = vld [vmem:[%s567 + $0x678] sm:$0xff]
        %v10404 = vld [vmem:[%s567 + $0x680] sm:$0xff]
        %v10405 = vld [vmem:[%s567 + $0x688] sm:$0xff]
        %v10406 = vld [vmem:[%s567 + $0x690] sm:$0xff]
        %v10407 = vld [vmem:[%s567 + $0x698] sm:$0xff]
        %v10408 = vld [vmem:[%s567 + $0x6a0] sm:$0xff]
        %v10409 = vld [vmem:[%s567 + $0x6a8] sm:$0xff]
        %v10410 = vld [vmem:[%s567 + $0x6b0] sm:$0xff]
        %v10411 = vld [vmem:[%s567 + $0x6b8] sm:$0xff]
        %v10412 = vld [vmem:[%s567 + $0x6c0] sm:$0xff]
        %v10413 = vld [vmem:[%s567 + $0x6c8] sm:$0xff]
        %v10414 = vld [vmem:[%s567 + $0x6d0] sm:$0xff]
        %v10415 = vld [vmem:[%s567 + $0x6d8] sm:$0xff]
        %v10416 = vld [vmem:[%s567 + $0x6e0] sm:$0xff]
        %v10417 = vld [vmem:[%s567 + $0x6e8] sm:$0xff]
        %v10418 = vld [vmem:[%s567 + $0x6f0] sm:$0xff]
        %v10419 = vld [vmem:[%s567 + $0x6f8] sm:$0xff]
        %v10420 = vld [vmem:[%s567 + $0x700] sm:$0xff]
        %v10421 = vld [vmem:[%s567 + $0x708] sm:$0xff]
        %v10422 = vld [vmem:[%s567 + $0x710] sm:$0xff]
        %v10423 = vld [vmem:[%s567 + $0x718] sm:$0xff]
        %v10424 = vld [vmem:[%s567 + $0x720] sm:$0xff]
        %v10425 = vld [vmem:[%s567 + $0x728] sm:$0xff]
        %v10426 = vld [vmem:[%s567 + $0x730] sm:$0xff]
        %v10427 = vld [vmem:[%s567 + $0x738] sm:$0xff]
        %v10428 = vld [vmem:[%s567 + $0x740] sm:$0xff]
        %v10429 = vld [vmem:[%s567 + $0x748] sm:$0xff]
        %v10430 = vld [vmem:[%s567 + $0x750] sm:$0xff]
        %v10431 = vld [vmem:[%s567 + $0x758] sm:$0xff]
        %v10432 = vld [vmem:[%s567 + $0x760] sm:$0xff]
        %v10433 = vld [vmem:[%s567 + $0x768] sm:$0xff]
        %v10434 = vld [vmem:[%s567 + $0x770] sm:$0xff]
        %v10435 = vld [vmem:[%s567 + $0x778] sm:$0xff]
        %v10436 = vld [vmem:[%s567 + $0x780] sm:$0xff]
        %v10437 = vld [vmem:[%s567 + $0x788] sm:$0xff]
        %v10438 = vld [vmem:[%s567 + $0x790] sm:$0xff]
        %v10439 = vld [vmem:[%s567 + $0x798] sm:$0xff]
        %v10440 = vld [vmem:[%s567 + $0x7a0] sm:$0xff]
        %v10441 = vld [vmem:[%s567 + $0x7a8] sm:$0xff]
        %v10442 = vld [vmem:[%s567 + $0x7b0] sm:$0xff]
        %v10443 = vld [vmem:[%s567 + $0x7b8] sm:$0xff]
        %v10444 = vld [vmem:[%s567 + $0x7c0] sm:$0xff]
        %v10445 = vld [vmem:[%s567 + $0x7c8] sm:$0xff]
        %v10446 = vld [vmem:[%s567 + $0x7d0] sm:$0xff]
        %v10447 = vld [vmem:[%s567 + $0x7d8] sm:$0xff]
        %v10448 = vld [vmem:[%s567 + $0x7e0] sm:$0xff]
        %v10449 = vld [vmem:[%s567 + $0x7e8] sm:$0xff]
        %v10450 = vld [vmem:[%s567 + $0x7f0] sm:$0xff]
        %v10451 = vld [vmem:[%s567 + $0x7f8] sm:$0xff]
        %v10452 = vld [vmem:[%s576] sm:$0xf]
        %v10454 = vlaneseq
        %v10455 = vshrl.u32 %v10454, 7
        %v10456 = vsub.s32 0, %v10455
        %v10457 = vrot.slane %v10452, %v10456
        %v10458 = vlaneseq
        %v10459 = vshrl.u32 %v10458, 7
        %v10460 = vsub.s32 1, %v10459
        %v10461 = vrot.slane %v10452, %v10460
        %v10462 = vlaneseq
        %v10463 = vshrl.u32 %v10462, 7
        %v10464 = vsub.s32 2, %v10463
        %v10465 = vrot.slane %v10452, %v10464
        %v10466 = vlaneseq
        %v10467 = vshrl.u32 %v10466, 7
        %v10468 = vsub.s32 3, %v10467
        %v10469 = vrot.slane %v10452, %v10468
        %v10730 = vunpack.c.l.b16 %v10196
        %v10731 = vunpack.c.h.b16 %v10196
        %v10732 = vunpack.c.l.b16 %v10197
        %v10733 = vunpack.c.h.b16 %v10197
        %v10734 = vunpack.c.l.b16 %v10198
        %v10735 = vunpack.c.h.b16 %v10198
        %v10736 = vunpack.c.l.b16 %v10199
        %v10737 = vunpack.c.h.b16 %v10199
        %v10738 = vunpack.c.l.b16 %v10200
        %v10739 = vunpack.c.h.b16 %v10200
        %v10740 = vunpack.c.l.b16 %v10201
        %v10741 = vunpack.c.h.b16 %v10201
        %v10742 = vunpack.c.l.b16 %v10202
        %v10743 = vunpack.c.h.b16 %v10202
        %v10744 = vunpack.c.l.b16 %v10203
        %v10745 = vunpack.c.h.b16 %v10203
        %v10746 = vunpack.c.l.b16 %v10204
        %v10747 = vunpack.c.h.b16 %v10204
        %v10748 = vunpack.c.l.b16 %v10205
        %v10749 = vunpack.c.h.b16 %v10205
        %v10750 = vunpack.c.l.b16 %v10206
        %v10751 = vunpack.c.h.b16 %v10206
        %v10752 = vunpack.c.l.b16 %v10207
        %v10753 = vunpack.c.h.b16 %v10207
        %v10754 = vunpack.c.l.b16 %v10208
        %v10755 = vunpack.c.h.b16 %v10208
        %v10756 = vunpack.c.l.b16 %v10209
        %v10757 = vunpack.c.h.b16 %v10209
        %v10758 = vunpack.c.l.b16 %v10210
        %v10759 = vunpack.c.h.b16 %v10210
        %v10760 = vunpack.c.l.b16 %v10211
        %v10761 = vunpack.c.h.b16 %v10211
        %v10762 = vunpack.c.l.b16 %v10212
        %v10763 = vunpack.c.h.b16 %v10212
        %v10764 = vunpack.c.l.b16 %v10213
        %v10765 = vunpack.c.h.b16 %v10213
        %v10766 = vunpack.c.l.b16 %v10214
        %v10767 = vunpack.c.h.b16 %v10214
        %v10768 = vunpack.c.l.b16 %v10215
        %v10769 = vunpack.c.h.b16 %v10215
        %v10770 = vunpack.c.l.b16 %v10216
        %v10771 = vunpack.c.h.b16 %v10216
        %v10772 = vunpack.c.l.b16 %v10217
        %v10773 = vunpack.c.h.b16 %v10217
        %v10774 = vunpack.c.l.b16 %v10218
        %v10775 = vunpack.c.h.b16 %v10218
        %v10776 = vunpack.c.l.b16 %v10219
        %v10777 = vunpack.c.h.b16 %v10219
        %v10778 = vunpack.c.l.b16 %v10220
        %v10779 = vunpack.c.h.b16 %v10220
        %v10780 = vunpack.c.l.b16 %v10221
        %v10781 = vunpack.c.h.b16 %v10221
        %v10782 = vunpack.c.l.b16 %v10222
        %v10783 = vunpack.c.h.b16 %v10222
        %v10784 = vunpack.c.l.b16 %v10223
        %v10785 = vunpack.c.h.b16 %v10223
        %v10786 = vunpack.c.l.b16 %v10224
        %v10787 = vunpack.c.h.b16 %v10224
        %v10788 = vunpack.c.l.b16 %v10225
        %v10789 = vunpack.c.h.b16 %v10225
        %v10790 = vunpack.c.l.b16 %v10226
        %v10791 = vunpack.c.h.b16 %v10226
        %v10792 = vunpack.c.l.b16 %v10227
        %v10793 = vunpack.c.h.b16 %v10227
        %v10794 = vunpack.c.l.b16 %v10228
        %v10795 = vunpack.c.h.b16 %v10228
        %v10796 = vunpack.c.l.b16 %v10229
        %v10797 = vunpack.c.h.b16 %v10229
        %v10798 = vunpack.c.l.b16 %v10230
        %v10799 = vunpack.c.h.b16 %v10230
        %v10800 = vunpack.c.l.b16 %v10231
        %v10801 = vunpack.c.h.b16 %v10231
        %v10802 = vunpack.c.l.b16 %v10232
        %v10803 = vunpack.c.h.b16 %v10232
        %v10804 = vunpack.c.l.b16 %v10233
        %v10805 = vunpack.c.h.b16 %v10233
        %v10806 = vunpack.c.l.b16 %v10234
        %v10807 = vunpack.c.h.b16 %v10234
        %v10808 = vunpack.c.l.b16 %v10235
        %v10809 = vunpack.c.h.b16 %v10235
        %v10810 = vunpack.c.l.b16 %v10236
        %v10811 = vunpack.c.h.b16 %v10236
        %v10812 = vunpack.c.l.b16 %v10237
        %v10813 = vunpack.c.h.b16 %v10237
        %v10814 = vunpack.c.l.b16 %v10238
        %v10815 = vunpack.c.h.b16 %v10238
        %v10816 = vunpack.c.l.b16 %v10239
        %v10817 = vunpack.c.h.b16 %v10239
        %v10818 = vunpack.c.l.b16 %v10240
        %v10819 = vunpack.c.h.b16 %v10240
        %v10820 = vunpack.c.l.b16 %v10241
        %v10821 = vunpack.c.h.b16 %v10241
        %v10822 = vunpack.c.l.b16 %v10242
        %v10823 = vunpack.c.h.b16 %v10242
        %v10824 = vunpack.c.l.b16 %v10243
        %v10825 = vunpack.c.h.b16 %v10243
        %v10826 = vunpack.c.l.b16 %v10244
        %v10827 = vunpack.c.h.b16 %v10244
        %v10828 = vunpack.c.l.b16 %v10245
        %v10829 = vunpack.c.h.b16 %v10245
        %v10830 = vunpack.c.l.b16 %v10246
        %v10831 = vunpack.c.h.b16 %v10246
        %v10832 = vunpack.c.l.b16 %v10247
        %v10833 = vunpack.c.h.b16 %v10247
        %v10834 = vunpack.c.l.b16 %v10248
        %v10835 = vunpack.c.h.b16 %v10248
        %v10836 = vunpack.c.l.b16 %v10249
        %v10837 = vunpack.c.h.b16 %v10249
        %v10838 = vunpack.c.l.b16 %v10250
        %v10839 = vunpack.c.h.b16 %v10250
        %v10840 = vunpack.c.l.b16 %v10251
        %v10841 = vunpack.c.h.b16 %v10251
        %v10842 = vunpack.c.l.b16 %v10252
        %v10843 = vunpack.c.h.b16 %v10252
        %v10844 = vunpack.c.l.b16 %v10253
        %v10845 = vunpack.c.h.b16 %v10253
        %v10846 = vunpack.c.l.b16 %v10254
        %v10847 = vunpack.c.h.b16 %v10254
        %v10848 = vunpack.c.l.b16 %v10255
        %v10849 = vunpack.c.h.b16 %v10255
        %v10850 = vunpack.c.l.b16 %v10256
        %v10851 = vunpack.c.h.b16 %v10256
        %v10852 = vunpack.c.l.b16 %v10257
        %v10853 = vunpack.c.h.b16 %v10257
        %v10854 = vunpack.c.l.b16 %v10258
        %v10855 = vunpack.c.h.b16 %v10258
        %v10856 = vunpack.c.l.b16 %v10259
        %v10857 = vunpack.c.h.b16 %v10259
        %v10858 = vunpack.c.l.b16 %v10260
        %v10859 = vunpack.c.h.b16 %v10260
        %v10860 = vunpack.c.l.b16 %v10261
        %v10861 = vunpack.c.h.b16 %v10261
        %v10862 = vunpack.c.l.b16 %v10262
        %v10863 = vunpack.c.h.b16 %v10262
        %v10864 = vunpack.c.l.b16 %v10263
        %v10865 = vunpack.c.h.b16 %v10263
        %v10866 = vunpack.c.l.b16 %v10264
        %v10867 = vunpack.c.h.b16 %v10264
        %v10868 = vunpack.c.l.b16 %v10265
        %v10869 = vunpack.c.h.b16 %v10265
        %v10870 = vunpack.c.l.b16 %v10266
        %v10871 = vunpack.c.h.b16 %v10266
        %v10872 = vunpack.c.l.b16 %v10267
        %v10873 = vunpack.c.h.b16 %v10267
        %v10874 = vunpack.c.l.b16 %v10268
        %v10875 = vunpack.c.h.b16 %v10268
        %v10876 = vunpack.c.l.b16 %v10269
        %v10877 = vunpack.c.h.b16 %v10269
        %v10878 = vunpack.c.l.b16 %v10270
        %v10879 = vunpack.c.h.b16 %v10270
        %v10880 = vunpack.c.l.b16 %v10271
        %v10881 = vunpack.c.h.b16 %v10271
        %v10882 = vunpack.c.l.b16 %v10272
        %v10883 = vunpack.c.h.b16 %v10272
        %v10884 = vunpack.c.l.b16 %v10273
        %v10885 = vunpack.c.h.b16 %v10273
        %v10886 = vunpack.c.l.b16 %v10274
        %v10887 = vunpack.c.h.b16 %v10274
        %v10888 = vunpack.c.l.b16 %v10275
        %v10889 = vunpack.c.h.b16 %v10275
        %v10890 = vunpack.c.l.b16 %v10276
        %v10891 = vunpack.c.h.b16 %v10276
        %v10892 = vunpack.c.l.b16 %v10277
        %v10893 = vunpack.c.h.b16 %v10277
        %v10894 = vunpack.c.l.b16 %v10278
        %v10895 = vunpack.c.h.b16 %v10278
        %v10896 = vunpack.c.l.b16 %v10279
        %v10897 = vunpack.c.h.b16 %v10279
        %v10898 = vunpack.c.l.b16 %v10280
        %v10899 = vunpack.c.h.b16 %v10280
        %v10900 = vunpack.c.l.b16 %v10281
        %v10901 = vunpack.c.h.b16 %v10281
        %v10902 = vunpack.c.l.b16 %v10282
        %v10903 = vunpack.c.h.b16 %v10282
        %v10904 = vunpack.c.l.b16 %v10283
        %v10905 = vunpack.c.h.b16 %v10283
        %v10906 = vunpack.c.l.b16 %v10284
        %v10907 = vunpack.c.h.b16 %v10284
        %v10908 = vunpack.c.l.b16 %v10285
        %v10909 = vunpack.c.h.b16 %v10285
        %v10910 = vunpack.c.l.b16 %v10286
        %v10911 = vunpack.c.h.b16 %v10286
        %v10912 = vunpack.c.l.b16 %v10287
        %v10913 = vunpack.c.h.b16 %v10287
        %v10914 = vunpack.c.l.b16 %v10288
        %v10915 = vunpack.c.h.b16 %v10288
        %v10916 = vunpack.c.l.b16 %v10289
        %v10917 = vunpack.c.h.b16 %v10289
        %v10918 = vunpack.c.l.b16 %v10290
        %v10919 = vunpack.c.h.b16 %v10290
        %v10920 = vunpack.c.l.b16 %v10291
        %v10921 = vunpack.c.h.b16 %v10291
        %v10922 = vunpack.c.l.b16 %v10292
        %v10923 = vunpack.c.h.b16 %v10292
        %v10924 = vunpack.c.l.b16 %v10293
        %v10925 = vunpack.c.h.b16 %v10293
        %v10926 = vunpack.c.l.b16 %v10294
        %v10927 = vunpack.c.h.b16 %v10294
        %v10928 = vunpack.c.l.b16 %v10295
        %v10929 = vunpack.c.h.b16 %v10295
        %v10930 = vunpack.c.l.b16 %v10296
        %v10931 = vunpack.c.h.b16 %v10296
        %v10932 = vunpack.c.l.b16 %v10297
        %v10933 = vunpack.c.h.b16 %v10297
        %v10934 = vunpack.c.l.b16 %v10298
        %v10935 = vunpack.c.h.b16 %v10298
        %v10936 = vunpack.c.l.b16 %v10299
        %v10937 = vunpack.c.h.b16 %v10299
        %v10938 = vunpack.c.l.b16 %v10300
        %v10939 = vunpack.c.h.b16 %v10300
        %v10940 = vunpack.c.l.b16 %v10301
        %v10941 = vunpack.c.h.b16 %v10301
        %v10942 = vunpack.c.l.b16 %v10302
        %v10943 = vunpack.c.h.b16 %v10302
        %v10944 = vunpack.c.l.b16 %v10303
        %v10945 = vunpack.c.h.b16 %v10303
        %v10946 = vunpack.c.l.b16 %v10304
        %v10947 = vunpack.c.h.b16 %v10304
        %v10948 = vunpack.c.l.b16 %v10305
        %v10949 = vunpack.c.h.b16 %v10305
        %v10950 = vunpack.c.l.b16 %v10306
        %v10951 = vunpack.c.h.b16 %v10306
        %v10952 = vunpack.c.l.b16 %v10307
        %v10953 = vunpack.c.h.b16 %v10307
        %v10954 = vunpack.c.l.b16 %v10308
        %v10955 = vunpack.c.h.b16 %v10308
        %v10956 = vunpack.c.l.b16 %v10309
        %v10957 = vunpack.c.h.b16 %v10309
        %v10958 = vunpack.c.l.b16 %v10310
        %v10959 = vunpack.c.h.b16 %v10310
        %v10960 = vunpack.c.l.b16 %v10311
        %v10961 = vunpack.c.h.b16 %v10311
        %v10962 = vunpack.c.l.b16 %v10312
        %v10963 = vunpack.c.h.b16 %v10312
        %v10964 = vunpack.c.l.b16 %v10313
        %v10965 = vunpack.c.h.b16 %v10313
        %v10966 = vunpack.c.l.b16 %v10314
        %v10967 = vunpack.c.h.b16 %v10314
        %v10968 = vunpack.c.l.b16 %v10315
        %v10969 = vunpack.c.h.b16 %v10315
        %v10970 = vunpack.c.l.b16 %v10316
        %v10971 = vunpack.c.h.b16 %v10316
        %v10972 = vunpack.c.l.b16 %v10317
        %v10973 = vunpack.c.h.b16 %v10317
        %v10974 = vunpack.c.l.b16 %v10318
        %v10975 = vunpack.c.h.b16 %v10318
        %v10976 = vunpack.c.l.b16 %v10319
        %v10977 = vunpack.c.h.b16 %v10319
        %v10978 = vunpack.c.l.b16 %v10320
        %v10979 = vunpack.c.h.b16 %v10320
        %v10980 = vunpack.c.l.b16 %v10321
        %v10981 = vunpack.c.h.b16 %v10321
        %v10982 = vunpack.c.l.b16 %v10322
        %v10983 = vunpack.c.h.b16 %v10322
        %v10984 = vunpack.c.l.b16 %v10323
        %v10985 = vunpack.c.h.b16 %v10323
        %v10986 = vunpack.c.l.b16 %v10324
        %v10987 = vunpack.c.h.b16 %v10324
        %v10988 = vunpack.c.l.b16 %v10325
        %v10989 = vunpack.c.h.b16 %v10325
        %v10990 = vunpack.c.l.b16 %v10326
        %v10991 = vunpack.c.h.b16 %v10326
        %v10992 = vunpack.c.l.b16 %v10327
        %v10993 = vunpack.c.h.b16 %v10327
        %v10994 = vunpack.c.l.b16 %v10328
        %v10995 = vunpack.c.h.b16 %v10328
        %v10996 = vunpack.c.l.b16 %v10329
        %v10997 = vunpack.c.h.b16 %v10329
        %v10998 = vunpack.c.l.b16 %v10330
        %v10999 = vunpack.c.h.b16 %v10330
        %v11000 = vunpack.c.l.b16 %v10331
        %v11001 = vunpack.c.h.b16 %v10331
        %v11002 = vunpack.c.l.b16 %v10332
        %v11003 = vunpack.c.h.b16 %v10332
        %v11004 = vunpack.c.l.b16 %v10333
        %v11005 = vunpack.c.h.b16 %v10333
        %v11006 = vunpack.c.l.b16 %v10334
        %v11007 = vunpack.c.h.b16 %v10334
        %v11008 = vunpack.c.l.b16 %v10335
        %v11009 = vunpack.c.h.b16 %v10335
        %v11010 = vunpack.c.l.b16 %v10336
        %v11011 = vunpack.c.h.b16 %v10336
        %v11012 = vunpack.c.l.b16 %v10337
        %v11013 = vunpack.c.h.b16 %v10337
        %v11014 = vunpack.c.l.b16 %v10338
        %v11015 = vunpack.c.h.b16 %v10338
        %v11016 = vunpack.c.l.b16 %v10339
        %v11017 = vunpack.c.h.b16 %v10339
        %v11018 = vunpack.c.l.b16 %v10340
        %v11019 = vunpack.c.h.b16 %v10340
        %v11020 = vunpack.c.l.b16 %v10341
        %v11021 = vunpack.c.h.b16 %v10341
        %v11022 = vunpack.c.l.b16 %v10342
        %v11023 = vunpack.c.h.b16 %v10342
        %v11024 = vunpack.c.l.b16 %v10343
        %v11025 = vunpack.c.h.b16 %v10343
        %v11026 = vunpack.c.l.b16 %v10344
        %v11027 = vunpack.c.h.b16 %v10344
        %v11028 = vunpack.c.l.b16 %v10345
        %v11029 = vunpack.c.h.b16 %v10345
        %v11030 = vunpack.c.l.b16 %v10346
        %v11031 = vunpack.c.h.b16 %v10346
        %v11032 = vunpack.c.l.b16 %v10347
        %v11033 = vunpack.c.h.b16 %v10347
        %v11034 = vunpack.c.l.b16 %v10348
        %v11035 = vunpack.c.h.b16 %v10348
        %v11036 = vunpack.c.l.b16 %v10349
        %v11037 = vunpack.c.h.b16 %v10349
        %v11038 = vunpack.c.l.b16 %v10350
        %v11039 = vunpack.c.h.b16 %v10350
        %v11040 = vunpack.c.l.b16 %v10351
        %v11041 = vunpack.c.h.b16 %v10351
        %v11042 = vunpack.c.l.b16 %v10352
        %v11043 = vunpack.c.h.b16 %v10352
        %v11044 = vunpack.c.l.b16 %v10353
        %v11045 = vunpack.c.h.b16 %v10353
        %v11046 = vunpack.c.l.b16 %v10354
        %v11047 = vunpack.c.h.b16 %v10354
        %v11048 = vunpack.c.l.b16 %v10355
        %v11049 = vunpack.c.h.b16 %v10355
        %v11050 = vunpack.c.l.b16 %v10356
        %v11051 = vunpack.c.h.b16 %v10356
        %v11052 = vunpack.c.l.b16 %v10357
        %v11053 = vunpack.c.h.b16 %v10357
        %v11054 = vunpack.c.l.b16 %v10358
        %v11055 = vunpack.c.h.b16 %v10358
        %v11056 = vunpack.c.l.b16 %v10359
        %v11057 = vunpack.c.h.b16 %v10359
        %v11058 = vunpack.c.l.b16 %v10360
        %v11059 = vunpack.c.h.b16 %v10360
        %v11060 = vunpack.c.l.b16 %v10361
        %v11061 = vunpack.c.h.b16 %v10361
        %v11062 = vunpack.c.l.b16 %v10362
        %v11063 = vunpack.c.h.b16 %v10362
        %v11064 = vunpack.c.l.b16 %v10363
        %v11065 = vunpack.c.h.b16 %v10363
        %v11066 = vunpack.c.l.b16 %v10364
        %v11067 = vunpack.c.h.b16 %v10364
        %v11068 = vunpack.c.l.b16 %v10365
        %v11069 = vunpack.c.h.b16 %v10365
        %v11070 = vunpack.c.l.b16 %v10366
        %v11071 = vunpack.c.h.b16 %v10366
        %v11072 = vunpack.c.l.b16 %v10367
        %v11073 = vunpack.c.h.b16 %v10367
        %v11074 = vunpack.c.l.b16 %v10368
        %v11075 = vunpack.c.h.b16 %v10368
        %v11076 = vunpack.c.l.b16 %v10369
        %v11077 = vunpack.c.h.b16 %v10369
        %v11078 = vunpack.c.l.b16 %v10370
        %v11079 = vunpack.c.h.b16 %v10370
        %v11080 = vunpack.c.l.b16 %v10371
        %v11081 = vunpack.c.h.b16 %v10371
        %v11082 = vunpack.c.l.b16 %v10372
        %v11083 = vunpack.c.h.b16 %v10372
        %v11084 = vunpack.c.l.b16 %v10373
        %v11085 = vunpack.c.h.b16 %v10373
        %v11086 = vunpack.c.l.b16 %v10374
        %v11087 = vunpack.c.h.b16 %v10374
        %v11088 = vunpack.c.l.b16 %v10375
        %v11089 = vunpack.c.h.b16 %v10375
        %v11090 = vunpack.c.l.b16 %v10376
        %v11091 = vunpack.c.h.b16 %v10376
        %v11092 = vunpack.c.l.b16 %v10377
        %v11093 = vunpack.c.h.b16 %v10377
        %v11094 = vunpack.c.l.b16 %v10378
        %v11095 = vunpack.c.h.b16 %v10378
        %v11096 = vunpack.c.l.b16 %v10379
        %v11097 = vunpack.c.h.b16 %v10379
        %v11098 = vunpack.c.l.b16 %v10380
        %v11099 = vunpack.c.h.b16 %v10380
        %v11100 = vunpack.c.l.b16 %v10381
        %v11101 = vunpack.c.h.b16 %v10381
        %v11102 = vunpack.c.l.b16 %v10382
        %v11103 = vunpack.c.h.b16 %v10382
        %v11104 = vunpack.c.l.b16 %v10383
        %v11105 = vunpack.c.h.b16 %v10383
        %v11106 = vunpack.c.l.b16 %v10384
        %v11107 = vunpack.c.h.b16 %v10384
        %v11108 = vunpack.c.l.b16 %v10385
        %v11109 = vunpack.c.h.b16 %v10385
        %v11110 = vunpack.c.l.b16 %v10386
        %v11111 = vunpack.c.h.b16 %v10386
        %v11112 = vunpack.c.l.b16 %v10387
        %v11113 = vunpack.c.h.b16 %v10387
        %v11114 = vunpack.c.l.b16 %v10388
        %v11115 = vunpack.c.h.b16 %v10388
        %v11116 = vunpack.c.l.b16 %v10389
        %v11117 = vunpack.c.h.b16 %v10389
        %v11118 = vunpack.c.l.b16 %v10390
        %v11119 = vunpack.c.h.b16 %v10390
        %v11120 = vunpack.c.l.b16 %v10391
        %v11121 = vunpack.c.h.b16 %v10391
        %v11122 = vunpack.c.l.b16 %v10392
        %v11123 = vunpack.c.h.b16 %v10392
        %v11124 = vunpack.c.l.b16 %v10393
        %v11125 = vunpack.c.h.b16 %v10393
        %v11126 = vunpack.c.l.b16 %v10394
        %v11127 = vunpack.c.h.b16 %v10394
        %v11128 = vunpack.c.l.b16 %v10395
        %v11129 = vunpack.c.h.b16 %v10395
        %v11130 = vunpack.c.l.b16 %v10396
        %v11131 = vunpack.c.h.b16 %v10396
        %v11132 = vunpack.c.l.b16 %v10397
        %v11133 = vunpack.c.h.b16 %v10397
        %v11134 = vunpack.c.l.b16 %v10398
        %v11135 = vunpack.c.h.b16 %v10398
        %v11136 = vunpack.c.l.b16 %v10399
        %v11137 = vunpack.c.h.b16 %v10399
        %v11138 = vunpack.c.l.b16 %v10400
        %v11139 = vunpack.c.h.b16 %v10400
        %v11140 = vunpack.c.l.b16 %v10401
        %v11141 = vunpack.c.h.b16 %v10401
        %v11142 = vunpack.c.l.b16 %v10402
        %v11143 = vunpack.c.h.b16 %v10402
        %v11144 = vunpack.c.l.b16 %v10403
        %v11145 = vunpack.c.h.b16 %v10403
        %v11146 = vunpack.c.l.b16 %v10404
        %v11147 = vunpack.c.h.b16 %v10404
        %v11148 = vunpack.c.l.b16 %v10405
        %v11149 = vunpack.c.h.b16 %v10405
        %v11150 = vunpack.c.l.b16 %v10406
        %v11151 = vunpack.c.h.b16 %v10406
        %v11152 = vunpack.c.l.b16 %v10407
        %v11153 = vunpack.c.h.b16 %v10407
        %v11154 = vunpack.c.l.b16 %v10408
        %v11155 = vunpack.c.h.b16 %v10408
        %v11156 = vunpack.c.l.b16 %v10409
        %v11157 = vunpack.c.h.b16 %v10409
        %v11158 = vunpack.c.l.b16 %v10410
        %v11159 = vunpack.c.h.b16 %v10410
        %v11160 = vunpack.c.l.b16 %v10411
        %v11161 = vunpack.c.h.b16 %v10411
        %v11162 = vunpack.c.l.b16 %v10412
        %v11163 = vunpack.c.h.b16 %v10412
        %v11164 = vunpack.c.l.b16 %v10413
        %v11165 = vunpack.c.h.b16 %v10413
        %v11166 = vunpack.c.l.b16 %v10414
        %v11167 = vunpack.c.h.b16 %v10414
        %v11168 = vunpack.c.l.b16 %v10415
        %v11169 = vunpack.c.h.b16 %v10415
        %v11170 = vunpack.c.l.b16 %v10416
        %v11171 = vunpack.c.h.b16 %v10416
        %v11172 = vunpack.c.l.b16 %v10417
        %v11173 = vunpack.c.h.b16 %v10417
        %v11174 = vunpack.c.l.b16 %v10418
        %v11175 = vunpack.c.h.b16 %v10418
        %v11176 = vunpack.c.l.b16 %v10419
        %v11177 = vunpack.c.h.b16 %v10419
        %v11178 = vunpack.c.l.b16 %v10420
        %v11179 = vunpack.c.h.b16 %v10420
        %v11180 = vunpack.c.l.b16 %v10421
        %v11181 = vunpack.c.h.b16 %v10421
        %v11182 = vunpack.c.l.b16 %v10422
        %v11183 = vunpack.c.h.b16 %v10422
        %v11184 = vunpack.c.l.b16 %v10423
        %v11185 = vunpack.c.h.b16 %v10423
        %v11186 = vunpack.c.l.b16 %v10424
        %v11187 = vunpack.c.h.b16 %v10424
        %v11188 = vunpack.c.l.b16 %v10425
        %v11189 = vunpack.c.h.b16 %v10425
        %v11190 = vunpack.c.l.b16 %v10426
        %v11191 = vunpack.c.h.b16 %v10426
        %v11192 = vunpack.c.l.b16 %v10427
        %v11193 = vunpack.c.h.b16 %v10427
        %v11194 = vunpack.c.l.b16 %v10428
        %v11195 = vunpack.c.h.b16 %v10428
        %v11196 = vunpack.c.l.b16 %v10429
        %v11197 = vunpack.c.h.b16 %v10429
        %v11198 = vunpack.c.l.b16 %v10430
        %v11199 = vunpack.c.h.b16 %v10430
        %v11200 = vunpack.c.l.b16 %v10431
        %v11201 = vunpack.c.h.b16 %v10431
        %v11202 = vunpack.c.l.b16 %v10432
        %v11203 = vunpack.c.h.b16 %v10432
        %v11204 = vunpack.c.l.b16 %v10433
        %v11205 = vunpack.c.h.b16 %v10433
        %v11206 = vunpack.c.l.b16 %v10434
        %v11207 = vunpack.c.h.b16 %v10434
        %v11208 = vunpack.c.l.b16 %v10435
        %v11209 = vunpack.c.h.b16 %v10435
        %v11210 = vunpack.c.l.b16 %v10436
        %v11211 = vunpack.c.h.b16 %v10436
        %v11212 = vunpack.c.l.b16 %v10437
        %v11213 = vunpack.c.h.b16 %v10437
        %v11214 = vunpack.c.l.b16 %v10438
        %v11215 = vunpack.c.h.b16 %v10438
        %v11216 = vunpack.c.l.b16 %v10439
        %v11217 = vunpack.c.h.b16 %v10439
        %v11218 = vunpack.c.l.b16 %v10440
        %v11219 = vunpack.c.h.b16 %v10440
        %v11220 = vunpack.c.l.b16 %v10441
        %v11221 = vunpack.c.h.b16 %v10441
        %v11222 = vunpack.c.l.b16 %v10442
        %v11223 = vunpack.c.h.b16 %v10442
        %v11224 = vunpack.c.l.b16 %v10443
        %v11225 = vunpack.c.h.b16 %v10443
        %v11226 = vunpack.c.l.b16 %v10444
        %v11227 = vunpack.c.h.b16 %v10444
        %v11228 = vunpack.c.l.b16 %v10445
        %v11229 = vunpack.c.h.b16 %v10445
        %v11230 = vunpack.c.l.b16 %v10446
        %v11231 = vunpack.c.h.b16 %v10446
        %v11232 = vunpack.c.l.b16 %v10447
        %v11233 = vunpack.c.h.b16 %v10447
        %v11234 = vunpack.c.l.b16 %v10448
        %v11235 = vunpack.c.h.b16 %v10448
        %v11236 = vunpack.c.l.b16 %v10449
        %v11237 = vunpack.c.h.b16 %v10449
        %v11238 = vunpack.c.l.b16 %v10450
        %v11239 = vunpack.c.h.b16 %v10450
        %v11240 = vunpack.c.l.b16 %v10451
        %v11241 = vunpack.c.h.b16 %v10451
        %v11242 = vpack.c.b16 %v10734, %v10730
        %v11243 = vpack.c.b16 %v10735, %v10731
        %v11244 = vpack.c.b16 %v10736, %v10732
        %v11245 = vpack.c.b16 %v10737, %v10733
        %v11246 = vpack.c.b16 %v10742, %v10738
        %v11247 = vpack.c.b16 %v10743, %v10739
        %v11248 = vpack.c.b16 %v10744, %v10740
        %v11249 = vpack.c.b16 %v10745, %v10741
        %v11250 = vpack.c.b16 %v10750, %v10746
        %v11251 = vpack.c.b16 %v10751, %v10747
        %v11252 = vpack.c.b16 %v10752, %v10748
        %v11253 = vpack.c.b16 %v10753, %v10749
        %v11254 = vpack.c.b16 %v10758, %v10754
        %v11255 = vpack.c.b16 %v10759, %v10755
        %v11256 = vpack.c.b16 %v10760, %v10756
        %v11257 = vpack.c.b16 %v10761, %v10757
        %v11258 = vpack.c.b16 %v10766, %v10762
        %v11259 = vpack.c.b16 %v10767, %v10763
        %v11260 = vpack.c.b16 %v10768, %v10764
        %v11261 = vpack.c.b16 %v10769, %v10765
        %v11262 = vpack.c.b16 %v10774, %v10770
        %v11263 = vpack.c.b16 %v10775, %v10771
        %v11264 = vpack.c.b16 %v10776, %v10772
        %v11265 = vpack.c.b16 %v10777, %v10773
        %v11266 = vpack.c.b16 %v10782, %v10778
        %v11267 = vpack.c.b16 %v10783, %v10779
        %v11268 = vpack.c.b16 %v10784, %v10780
        %v11269 = vpack.c.b16 %v10785, %v10781
        %v11270 = vpack.c.b16 %v10790, %v10786
        %v11271 = vpack.c.b16 %v10791, %v10787
        %v11272 = vpack.c.b16 %v10792, %v10788
        %v11273 = vpack.c.b16 %v10793, %v10789
        %v11274 = vpack.c.b16 %v10798, %v10794
        %v11275 = vpack.c.b16 %v10799, %v10795
        %v11276 = vpack.c.b16 %v10800, %v10796
        %v11277 = vpack.c.b16 %v10801, %v10797
        %v11278 = vpack.c.b16 %v10806, %v10802
        %v11279 = vpack.c.b16 %v10807, %v10803
        %v11280 = vpack.c.b16 %v10808, %v10804
        %v11281 = vpack.c.b16 %v10809, %v10805
        %v11282 = vpack.c.b16 %v10814, %v10810
        %v11283 = vpack.c.b16 %v10815, %v10811
        %v11284 = vpack.c.b16 %v10816, %v10812
        %v11285 = vpack.c.b16 %v10817, %v10813
        %v11286 = vpack.c.b16 %v10822, %v10818
        %v11287 = vpack.c.b16 %v10823, %v10819
        %v11288 = vpack.c.b16 %v10824, %v10820
        %v11289 = vpack.c.b16 %v10825, %v10821
        %v11290 = vpack.c.b16 %v10830, %v10826
        %v11291 = vpack.c.b16 %v10831, %v10827
        %v11292 = vpack.c.b16 %v10832, %v10828
        %v11293 = vpack.c.b16 %v10833, %v10829
        %v11294 = vpack.c.b16 %v10838, %v10834
        %v11295 = vpack.c.b16 %v10839, %v10835
        %v11296 = vpack.c.b16 %v10840, %v10836
        %v11297 = vpack.c.b16 %v10841, %v10837
        %v11298 = vpack.c.b16 %v10846, %v10842
        %v11299 = vpack.c.b16 %v10847, %v10843
        %v11300 = vpack.c.b16 %v10848, %v10844
        %v11301 = vpack.c.b16 %v10849, %v10845
        %v11302 = vpack.c.b16 %v10854, %v10850
        %v11303 = vpack.c.b16 %v10855, %v10851
        %v11304 = vpack.c.b16 %v10856, %v10852
        %v11305 = vpack.c.b16 %v10857, %v10853
        %v11306 = vpack.c.b16 %v10862, %v10858
        %v11307 = vpack.c.b16 %v10863, %v10859
        %v11308 = vpack.c.b16 %v10864, %v10860
        %v11309 = vpack.c.b16 %v10865, %v10861
        %v11310 = vpack.c.b16 %v10870, %v10866
        %v11311 = vpack.c.b16 %v10871, %v10867
        %v11312 = vpack.c.b16 %v10872, %v10868
        %v11313 = vpack.c.b16 %v10873, %v10869
        %v11314 = vpack.c.b16 %v10878, %v10874
        %v11315 = vpack.c.b16 %v10879, %v10875
        %v11316 = vpack.c.b16 %v10880, %v10876
        %v11317 = vpack.c.b16 %v10881, %v10877
        %v11318 = vpack.c.b16 %v10886, %v10882
        %v11319 = vpack.c.b16 %v10887, %v10883
        %v11320 = vpack.c.b16 %v10888, %v10884
        %v11321 = vpack.c.b16 %v10889, %v10885
        %v11322 = vpack.c.b16 %v10894, %v10890
        %v11323 = vpack.c.b16 %v10895, %v10891
        %v11324 = vpack.c.b16 %v10896, %v10892
        %v11325 = vpack.c.b16 %v10897, %v10893
        %v11326 = vpack.c.b16 %v10902, %v10898
        %v11327 = vpack.c.b16 %v10903, %v10899
        %v11328 = vpack.c.b16 %v10904, %v10900
        %v11329 = vpack.c.b16 %v10905, %v10901
        %v11330 = vpack.c.b16 %v10910, %v10906
        %v11331 = vpack.c.b16 %v10911, %v10907
        %v11332 = vpack.c.b16 %v10912, %v10908
        %v11333 = vpack.c.b16 %v10913, %v10909
        %v11334 = vpack.c.b16 %v10918, %v10914
        %v11335 = vpack.c.b16 %v10919, %v10915
        %v11336 = vpack.c.b16 %v10920, %v10916
        %v11337 = vpack.c.b16 %v10921, %v10917
        %v11338 = vpack.c.b16 %v10926, %v10922
        %v11339 = vpack.c.b16 %v10927, %v10923
        %v11340 = vpack.c.b16 %v10928, %v10924
        %v11341 = vpack.c.b16 %v10929, %v10925
        %v11342 = vpack.c.b16 %v10934, %v10930
        %v11343 = vpack.c.b16 %v10935, %v10931
        %v11344 = vpack.c.b16 %v10936, %v10932
        %v11345 = vpack.c.b16 %v10937, %v10933
        %v11346 = vpack.c.b16 %v10942, %v10938
        %v11347 = vpack.c.b16 %v10943, %v10939
        %v11348 = vpack.c.b16 %v10944, %v10940
        %v11349 = vpack.c.b16 %v10945, %v10941
        %v11350 = vpack.c.b16 %v10950, %v10946
        %v11351 = vpack.c.b16 %v10951, %v10947
        %v11352 = vpack.c.b16 %v10952, %v10948
        %v11353 = vpack.c.b16 %v10953, %v10949
        %v11354 = vpack.c.b16 %v10958, %v10954
        %v11355 = vpack.c.b16 %v10959, %v10955
        %v11356 = vpack.c.b16 %v10960, %v10956
        %v11357 = vpack.c.b16 %v10961, %v10957
        %v11358 = vpack.c.b16 %v10966, %v10962
        %v11359 = vpack.c.b16 %v10967, %v10963
        %v11360 = vpack.c.b16 %v10968, %v10964
        %v11361 = vpack.c.b16 %v10969, %v10965
        %v11362 = vpack.c.b16 %v10974, %v10970
        %v11363 = vpack.c.b16 %v10975, %v10971
        %v11364 = vpack.c.b16 %v10976, %v10972
        %v11365 = vpack.c.b16 %v10977, %v10973
        %v11366 = vpack.c.b16 %v10982, %v10978
        %v11367 = vpack.c.b16 %v10983, %v10979
        %v11368 = vpack.c.b16 %v10984, %v10980
        %v11369 = vpack.c.b16 %v10985, %v10981
        %v11370 = vpack.c.b16 %v10990, %v10986
        %v11371 = vpack.c.b16 %v10991, %v10987
        %v11372 = vpack.c.b16 %v10992, %v10988
        %v11373 = vpack.c.b16 %v10993, %v10989
        %v11374 = vpack.c.b16 %v10998, %v10994
        %v11375 = vpack.c.b16 %v10999, %v10995
        %v11376 = vpack.c.b16 %v11000, %v10996
        %v11377 = vpack.c.b16 %v11001, %v10997
        %v11378 = vpack.c.b16 %v11006, %v11002
        %v11379 = vpack.c.b16 %v11007, %v11003
        %v11380 = vpack.c.b16 %v11008, %v11004
        %v11381 = vpack.c.b16 %v11009, %v11005
        %v11382 = vpack.c.b16 %v11014, %v11010
        %v11383 = vpack.c.b16 %v11015, %v11011
        %v11384 = vpack.c.b16 %v11016, %v11012
        %v11385 = vpack.c.b16 %v11017, %v11013
        %v11386 = vpack.c.b16 %v11022, %v11018
        %v11387 = vpack.c.b16 %v11023, %v11019
        %v11388 = vpack.c.b16 %v11024, %v11020
        %v11389 = vpack.c.b16 %v11025, %v11021
        %v11390 = vpack.c.b16 %v11030, %v11026
        %v11391 = vpack.c.b16 %v11031, %v11027
        %v11392 = vpack.c.b16 %v11032, %v11028
        %v11393 = vpack.c.b16 %v11033, %v11029
        %v11394 = vpack.c.b16 %v11038, %v11034
        %v11395 = vpack.c.b16 %v11039, %v11035
        %v11396 = vpack.c.b16 %v11040, %v11036
        %v11397 = vpack.c.b16 %v11041, %v11037
        %v11398 = vpack.c.b16 %v11046, %v11042
        %v11399 = vpack.c.b16 %v11047, %v11043
        %v11400 = vpack.c.b16 %v11048, %v11044
        %v11401 = vpack.c.b16 %v11049, %v11045
        %v11402 = vpack.c.b16 %v11054, %v11050
        %v11403 = vpack.c.b16 %v11055, %v11051
        %v11404 = vpack.c.b16 %v11056, %v11052
        %v11405 = vpack.c.b16 %v11057, %v11053
        %v11406 = vpack.c.b16 %v11062, %v11058
        %v11407 = vpack.c.b16 %v11063, %v11059
        %v11408 = vpack.c.b16 %v11064, %v11060
        %v11409 = vpack.c.b16 %v11065, %v11061
        %v11410 = vpack.c.b16 %v11070, %v11066
        %v11411 = vpack.c.b16 %v11071, %v11067
        %v11412 = vpack.c.b16 %v11072, %v11068
        %v11413 = vpack.c.b16 %v11073, %v11069
        %v11414 = vpack.c.b16 %v11078, %v11074
        %v11415 = vpack.c.b16 %v11079, %v11075
        %v11416 = vpack.c.b16 %v11080, %v11076
        %v11417 = vpack.c.b16 %v11081, %v11077
        %v11418 = vpack.c.b16 %v11086, %v11082
        %v11419 = vpack.c.b16 %v11087, %v11083
        %v11420 = vpack.c.b16 %v11088, %v11084
        %v11421 = vpack.c.b16 %v11089, %v11085
        %v11422 = vpack.c.b16 %v11094, %v11090
        %v11423 = vpack.c.b16 %v11095, %v11091
        %v11424 = vpack.c.b16 %v11096, %v11092
        %v11425 = vpack.c.b16 %v11097, %v11093
        %v11426 = vpack.c.b16 %v11102, %v11098
        %v11427 = vpack.c.b16 %v11103, %v11099
        %v11428 = vpack.c.b16 %v11104, %v11100
        %v11429 = vpack.c.b16 %v11105, %v11101
        %v11430 = vpack.c.b16 %v11110, %v11106
        %v11431 = vpack.c.b16 %v11111, %v11107
        %v11432 = vpack.c.b16 %v11112, %v11108
        %v11433 = vpack.c.b16 %v11113, %v11109
        %v11434 = vpack.c.b16 %v11118, %v11114
        %v11435 = vpack.c.b16 %v11119, %v11115
        %v11436 = vpack.c.b16 %v11120, %v11116
        %v11437 = vpack.c.b16 %v11121, %v11117
        %v11438 = vpack.c.b16 %v11126, %v11122
        %v11439 = vpack.c.b16 %v11127, %v11123
        %v11440 = vpack.c.b16 %v11128, %v11124
        %v11441 = vpack.c.b16 %v11129, %v11125
        %v11442 = vpack.c.b16 %v11134, %v11130
        %v11443 = vpack.c.b16 %v11135, %v11131
        %v11444 = vpack.c.b16 %v11136, %v11132
        %v11445 = vpack.c.b16 %v11137, %v11133
        %v11446 = vpack.c.b16 %v11142, %v11138
        %v11447 = vpack.c.b16 %v11143, %v11139
        %v11448 = vpack.c.b16 %v11144, %v11140
        %v11449 = vpack.c.b16 %v11145, %v11141
        %v11450 = vpack.c.b16 %v11150, %v11146
        %v11451 = vpack.c.b16 %v11151, %v11147
        %v11452 = vpack.c.b16 %v11152, %v11148
        %v11453 = vpack.c.b16 %v11153, %v11149
        %v11454 = vpack.c.b16 %v11158, %v11154
        %v11455 = vpack.c.b16 %v11159, %v11155
        %v11456 = vpack.c.b16 %v11160, %v11156
        %v11457 = vpack.c.b16 %v11161, %v11157
        %v11458 = vpack.c.b16 %v11166, %v11162
        %v11459 = vpack.c.b16 %v11167, %v11163
        %v11460 = vpack.c.b16 %v11168, %v11164
        %v11461 = vpack.c.b16 %v11169, %v11165
        %v11462 = vpack.c.b16 %v11174, %v11170
        %v11463 = vpack.c.b16 %v11175, %v11171
        %v11464 = vpack.c.b16 %v11176, %v11172
        %v11465 = vpack.c.b16 %v11177, %v11173
        %v11466 = vpack.c.b16 %v11182, %v11178
        %v11467 = vpack.c.b16 %v11183, %v11179
        %v11468 = vpack.c.b16 %v11184, %v11180
        %v11469 = vpack.c.b16 %v11185, %v11181
        %v11470 = vpack.c.b16 %v11190, %v11186
        %v11471 = vpack.c.b16 %v11191, %v11187
        %v11472 = vpack.c.b16 %v11192, %v11188
        %v11473 = vpack.c.b16 %v11193, %v11189
        %v11474 = vpack.c.b16 %v11198, %v11194
        %v11475 = vpack.c.b16 %v11199, %v11195
        %v11476 = vpack.c.b16 %v11200, %v11196
        %v11477 = vpack.c.b16 %v11201, %v11197
        %v11478 = vpack.c.b16 %v11206, %v11202
        %v11479 = vpack.c.b16 %v11207, %v11203
        %v11480 = vpack.c.b16 %v11208, %v11204
        %v11481 = vpack.c.b16 %v11209, %v11205
        %v11482 = vpack.c.b16 %v11214, %v11210
        %v11483 = vpack.c.b16 %v11215, %v11211
        %v11484 = vpack.c.b16 %v11216, %v11212
        %v11485 = vpack.c.b16 %v11217, %v11213
        %v11486 = vpack.c.b16 %v11222, %v11218
        %v11487 = vpack.c.b16 %v11223, %v11219
        %v11488 = vpack.c.b16 %v11224, %v11220
        %v11489 = vpack.c.b16 %v11225, %v11221
        %v11490 = vpack.c.b16 %v11230, %v11226
        %v11491 = vpack.c.b16 %v11231, %v11227
        %v11492 = vpack.c.b16 %v11232, %v11228
        %v11493 = vpack.c.b16 %v11233, %v11229
        %v11494 = vpack.c.b16 %v11238, %v11234
        %v11495 = vpack.c.b16 %v11239, %v11235
        %v11496 = vpack.c.b16 %v11240, %v11236
        %v11497 = vpack.c.b16 %v11241, %v11237
        %11754 = vmatprep.subr.bf16.mxu0 %v11243
        %11755 = vmatpush1.bf16.msra.mxu0 %v11242
        %11756 = vmatprep.subr.bf16.mxu0 %v11247
        %11757 = vmatpush1.bf16.msra.mxu0 %v11246
        %11758 = vmatprep.subr.bf16.mxu0 %v11251
        %11759 = vmatpush1.bf16.msra.mxu0 %v11250
        %11760 = vmatprep.subr.bf16.mxu0 %v11255
        %11761 = vmatpush1.bf16.msra.mxu0 %v11254
        %11762 = vmatprep.subr.bf16.mxu0 %v11259
        %11763 = vmatpush1.bf16.msra.mxu0 %v11258
        %11764 = vmatprep.subr.bf16.mxu0 %v11263
        %11765 = vmatpush1.bf16.msra.mxu0 %v11262
        %11766 = vmatprep.subr.bf16.mxu0 %v11267
        %11767 = vmatpush1.bf16.msra.mxu0 %v11266
        %11768 = vmatprep.subr.bf16.mxu0 %v11271
        %11769 = vmatpush1.bf16.msra.mxu0 %v11270
        %11770 = vmatprep.subr.bf16.mxu0 %v11275
        %11771 = vmatpush1.bf16.msra.mxu0 %v11274
        %11772 = vmatprep.subr.bf16.mxu0 %v11279
        %11773 = vmatpush1.bf16.msra.mxu0 %v11278
        %11774 = vmatprep.subr.bf16.mxu0 %v11283
        %11775 = vmatpush1.bf16.msra.mxu0 %v11282
        %11776 = vmatprep.subr.bf16.mxu0 %v11287
        %11777 = vmatpush1.bf16.msra.mxu0 %v11286
        %11778 = vmatprep.subr.bf16.mxu0 %v11291
        %11779 = vmatpush1.bf16.msra.mxu0 %v11290
        %11780 = vmatprep.subr.bf16.mxu0 %v11295
        %11781 = vmatpush1.bf16.msra.mxu0 %v11294
        %11782 = vmatprep.subr.bf16.mxu0 %v11299
        %11783 = vmatpush1.bf16.msra.mxu0 %v11298
        %11784 = vmatprep.subr.bf16.mxu0 %v11303
        %11785 = vmatpush1.bf16.msra.mxu0 %v11302
        %11786 = vmatprep.mubr.bf16.mxu0 %v10189
        %11787 = vmatmul.mubr.bf16.gmra.mrb[0].mxu0 %v10188
        %v11788 = vpop.f32.mrb[0].mxu0
        %v11789 = vadd.f32 %v10457, %v11788
        %v11790 = vpop.f32.mrb[0].mxu0
        %v11791 = vadd.f32 %v10461, %v11790
        %v11792 = vpop.f32.mrb[0].mxu0
        %v11793 = vpop.f32.mrb[0].mxu0
        %11794 = vdwg.mxu0
        %11795 = vmatprep.subr.bf16.mxu0 %v11307
        %11796 = vmatpush1.bf16.msra.mxu0 %v11306
        %11797 = vmatprep.subr.bf16.mxu0 %v11311
        %11798 = vmatpush1.bf16.msra.mxu0 %v11310
        %11799 = vmatprep.subr.bf16.mxu0 %v11315
        %11800 = vmatpush1.bf16.msra.mxu0 %v11314
        %11801 = vmatprep.subr.bf16.mxu0 %v11319
        %11802 = vmatpush1.bf16.msra.mxu0 %v11318
        %11803 = vmatprep.subr.bf16.mxu0 %v11323
        %11804 = vmatpush1.bf16.msra.mxu0 %v11322
        %11805 = vmatprep.subr.bf16.mxu0 %v11327
        %11806 = vmatpush1.bf16.msra.mxu0 %v11326
        %11807 = vmatprep.subr.bf16.mxu0 %v11331
        %11808 = vmatpush1.bf16.msra.mxu0 %v11330
        %11809 = vmatprep.subr.bf16.mxu0 %v11335
        %11810 = vmatpush1.bf16.msra.mxu0 %v11334
        %11811 = vmatprep.subr.bf16.mxu0 %v11339
        %11812 = vmatpush1.bf16.msra.mxu0 %v11338
        %11813 = vmatprep.subr.bf16.mxu0 %v11343
        %11814 = vmatpush1.bf16.msra.mxu0 %v11342
        %11815 = vmatprep.subr.bf16.mxu0 %v11347
        %11816 = vmatpush1.bf16.msra.mxu0 %v11346
        %11817 = vmatprep.subr.bf16.mxu0 %v11351
        %11818 = vmatpush1.bf16.msra.mxu0 %v11350
        %11819 = vmatprep.subr.bf16.mxu0 %v11355
        %11820 = vmatpush1.bf16.msra.mxu0 %v11354
        %11821 = vmatprep.subr.bf16.mxu0 %v11359
        %11822 = vmatpush1.bf16.msra.mxu0 %v11358
        %11823 = vmatprep.subr.bf16.mxu0 %v11363
        %11824 = vmatpush1.bf16.msra.mxu0 %v11362
        %11825 = vmatprep.subr.bf16.mxu0 %v11367
        %11826 = vmatpush1.bf16.msra.mxu0 %v11366
        %11827 = vmatprep.mubr.bf16.mxu0 %v10191
        %11828 = vmatmul.mubr.bf16.gmra.mrb[0].mxu0 %v10190
        %v11829 = vpop.f32.mrb[0].mxu0
        %v11830 = vadd.f32 %v11789, %v11829
        %v11831 = vpop.f32.mrb[0].mxu0
        %v11832 = vadd.f32 %v11791, %v11831
        %v11833 = vpop.f32.mrb[0].mxu0
        %v11834 = vpop.f32.mrb[0].mxu0
        %11835 = vdwg.mxu0
        %11836 = vmatprep.subr.bf16.mxu0 %v11371
        %11837 = vmatpush1.bf16.msra.mxu0 %v11370
        %11838 = vmatprep.subr.bf16.mxu0 %v11375
        %11839 = vmatpush1.bf16.msra.mxu0 %v11374
        %11840 = vmatprep.subr.bf16.mxu0 %v11379
        %11841 = vmatpush1.bf16.msra.mxu0 %v11378
        %11842 = vmatprep.subr.bf16.mxu0 %v11383
        %11843 = vmatpush1.bf16.msra.mxu0 %v11382
        %11844 = vmatprep.subr.bf16.mxu0 %v11387
        %11845 = vmatpush1.bf16.msra.mxu0 %v11386
        %11846 = vmatprep.subr.bf16.mxu0 %v11391
        %11847 = vmatpush1.bf16.msra.mxu0 %v11390
        %11848 = vmatprep.subr.bf16.mxu0 %v11395
        %11849 = vmatpush1.bf16.msra.mxu0 %v11394
        %11850 = vmatprep.subr.bf16.mxu0 %v11399
        %11851 = vmatpush1.bf16.msra.mxu0 %v11398
        %11852 = vmatprep.subr.bf16.mxu0 %v11403
        %11853 = vmatpush1.bf16.msra.mxu0 %v11402
        %11854 = vmatprep.subr.bf16.mxu0 %v11407
        %11855 = vmatpush1.bf16.msra.mxu0 %v11406
        %11856 = vmatprep.subr.bf16.mxu0 %v11411
        %11857 = vmatpush1.bf16.msra.mxu0 %v11410
        %11858 = vmatprep.subr.bf16.mxu0 %v11415
        %11859 = vmatpush1.bf16.msra.mxu0 %v11414
        %11860 = vmatprep.subr.bf16.mxu0 %v11419
        %11861 = vmatpush1.bf16.msra.mxu0 %v11418
        %11862 = vmatprep.subr.bf16.mxu0 %v11423
        %11863 = vmatpush1.bf16.msra.mxu0 %v11422
        %11864 = vmatprep.subr.bf16.mxu0 %v11427
        %11865 = vmatpush1.bf16.msra.mxu0 %v11426
        %11866 = vmatprep.subr.bf16.mxu0 %v11431
        %11867 = vmatpush1.bf16.msra.mxu0 %v11430
        %11868 = vmatprep.mubr.bf16.mxu0 %v10193
        %11869 = vmatmul.mubr.bf16.gmra.mrb[0].mxu0 %v10192
        %v11870 = vpop.f32.mrb[0].mxu0
        %v11871 = vadd.f32 %v11830, %v11870
        %v11872 = vpop.f32.mrb[0].mxu0
        %v11873 = vadd.f32 %v11832, %v11872
        %v11874 = vpop.f32.mrb[0].mxu0
        %v11875 = vpop.f32.mrb[0].mxu0
        %11876 = vdwg.mxu0
        %11877 = vmatprep.subr.bf16.mxu0 %v11435
        %11878 = vmatpush1.bf16.msra.mxu0 %v11434
        %11879 = vmatprep.subr.bf16.mxu0 %v11439
        %11880 = vmatpush1.bf16.msra.mxu0 %v11438
        %11881 = vmatprep.subr.bf16.mxu0 %v11443
        %11882 = vmatpush1.bf16.msra.mxu0 %v11442
        %11883 = vmatprep.subr.bf16.mxu0 %v11447
        %11884 = vmatpush1.bf16.msra.mxu0 %v11446
        %11885 = vmatprep.subr.bf16.mxu0 %v11451
        %11886 = vmatpush1.bf16.msra.mxu0 %v11450
        %11887 = vmatprep.subr.bf16.mxu0 %v11455
        %11888 = vmatpush1.bf16.msra.mxu0 %v11454
        %11889 = vmatprep.subr.bf16.mxu0 %v11459
        %11890 = vmatpush1.bf16.msra.mxu0 %v11458
        %11891 = vmatprep.subr.bf16.mxu0 %v11463
        %11892 = vmatpush1.bf16.msra.mxu0 %v11462
        %11893 = vmatprep.subr.bf16.mxu0 %v11467
        %11894 = vmatpush1.bf16.msra.mxu0 %v11466
        %11895 = vmatprep.subr.bf16.mxu0 %v11471
        %11896 = vmatpush1.bf16.msra.mxu0 %v11470
        %11897 = vmatprep.subr.bf16.mxu0 %v11475
        %11898 = vmatpush1.bf16.msra.mxu0 %v11474
        %11899 = vmatprep.subr.bf16.mxu0 %v11479
        %11900 = vmatpush1.bf16.msra.mxu0 %v11478
        %11901 = vmatprep.subr.bf16.mxu0 %v11483
        %11902 = vmatpush1.bf16.msra.mxu0 %v11482
        %11903 = vmatprep.subr.bf16.mxu0 %v11487
        %11904 = vmatpush1.bf16.msra.mxu0 %v11486
        %11905 = vmatprep.subr.bf16.mxu0 %v11491
        %11906 = vmatpush1.bf16.msra.mxu0 %v11490
        %11907 = vmatprep.subr.bf16.mxu0 %v11495
        %11908 = vmatpush1.bf16.msra.mxu0 %v11494
        %11909 = vmatprep.mubr.bf16.mxu0 %v10195
        %11910 = vmatmul.mubr.bf16.gmra.mrb[0].mxu0 %v10194
        %v11911 = vpop.f32.mrb[0].mxu0
        %v11912 = vadd.f32 %v11871, %v11911
        %v11913 = vpop.f32.mrb[0].mxu0
        %v11914 = vadd.f32 %v11873, %v11913
        %v11915 = vpop.f32.mrb[0].mxu0
        %v11916 = vpop.f32.mrb[0].mxu0
        %11917 = vdwg.mxu0
        %11918 = vmatprep.subr.bf16.mxu0 %v11245
        %11919 = vmatpush1.bf16.msra.mxu0 %v11244
        %11920 = vmatprep.subr.bf16.mxu0 %v11249
        %11921 = vmatpush1.bf16.msra.mxu0 %v11248
        %11922 = vmatprep.subr.bf16.mxu0 %v11253
        %11923 = vmatpush1.bf16.msra.mxu0 %v11252
        %11924 = vmatprep.subr.bf16.mxu0 %v11257
        %11925 = vmatpush1.bf16.msra.mxu0 %v11256
        %11926 = vmatprep.subr.bf16.mxu0 %v11261
        %11927 = vmatpush1.bf16.msra.mxu0 %v11260
        %11928 = vmatprep.subr.bf16.mxu0 %v11265
        %11929 = vmatpush1.bf16.msra.mxu0 %v11264
        %11930 = vmatprep.subr.bf16.mxu0 %v11269
        %11931 = vmatpush1.bf16.msra.mxu0 %v11268
        %11932 = vmatprep.subr.bf16.mxu0 %v11273
        %11933 = vmatpush1.bf16.msra.mxu0 %v11272
        %11934 = vmatprep.subr.bf16.mxu0 %v11277
        %11935 = vmatpush1.bf16.msra.mxu0 %v11276
        %11936 = vmatprep.subr.bf16.mxu0 %v11281
        %11937 = vmatpush1.bf16.msra.mxu0 %v11280
        %11938 = vmatprep.subr.bf16.mxu0 %v11285
        %11939 = vmatpush1.bf16.msra.mxu0 %v11284
        %11940 = vmatprep.subr.bf16.mxu0 %v11289
        %11941 = vmatpush1.bf16.msra.mxu0 %v11288
        %11942 = vmatprep.subr.bf16.mxu0 %v11293
        %11943 = vmatpush1.bf16.msra.mxu0 %v11292
        %11944 = vmatprep.subr.bf16.mxu0 %v11297
        %11945 = vmatpush1.bf16.msra.mxu0 %v11296
        %11946 = vmatprep.subr.bf16.mxu0 %v11301
        %11947 = vmatpush1.bf16.msra.mxu0 %v11300
        %11948 = vmatprep.subr.bf16.mxu0 %v11305
        %11949 = vmatpush1.bf16.msra.mxu0 %v11304
        %11950 = vmatprep.mubr.bf16.mxu0 %v10189
        %11951 = vmatmul.mubr.bf16.gmra.mrb[0].mxu0 %v10188
        %v11952 = vpop.f32.mrb[0].mxu0
        %v11953 = vadd.f32 %v10465, %v11952
        %v11954 = vpop.f32.mrb[0].mxu0
        %v11955 = vadd.f32 %v10469, %v11954
        %v11956 = vpop.f32.mrb[0].mxu0
        %v11957 = vpop.f32.mrb[0].mxu0
        %11958 = vdwg.mxu0
        %11959 = vmatprep.subr.bf16.mxu0 %v11309
        %11960 = vmatpush1.bf16.msra.mxu0 %v11308
        %11961 = vmatprep.subr.bf16.mxu0 %v11313
        %11962 = vmatpush1.bf16.msra.mxu0 %v11312
        %11963 = vmatprep.subr.bf16.mxu0 %v11317
        %11964 = vmatpush1.bf16.msra.mxu0 %v11316
        %11965 = vmatprep.subr.bf16.mxu0 %v11321
        %11966 = vmatpush1.bf16.msra.mxu0 %v11320
        %11967 = vmatprep.subr.bf16.mxu0 %v11325
        %11968 = vmatpush1.bf16.msra.mxu0 %v11324
        %11969 = vmatprep.subr.bf16.mxu0 %v11329
        %11970 = vmatpush1.bf16.msra.mxu0 %v11328
        %11971 = vmatprep.subr.bf16.mxu0 %v11333
        %11972 = vmatpush1.bf16.msra.mxu0 %v11332
        %11973 = vmatprep.subr.bf16.mxu0 %v11337
        %11974 = vmatpush1.bf16.msra.mxu0 %v11336
        %11975 = vmatprep.subr.bf16.mxu0 %v11341
        %11976 = vmatpush1.bf16.msra.mxu0 %v11340
        %11977 = vmatprep.subr.bf16.mxu0 %v11345
        %11978 = vmatpush1.bf16.msra.mxu0 %v11344
        %11979 = vmatprep.subr.bf16.mxu0 %v11349
        %11980 = vmatpush1.bf16.msra.mxu0 %v11348
        %11981 = vmatprep.subr.bf16.mxu0 %v11353
        %11982 = vmatpush1.bf16.msra.mxu0 %v11352
        %11983 = vmatprep.subr.bf16.mxu0 %v11357
        %11984 = vmatpush1.bf16.msra.mxu0 %v11356
        %11985 = vmatprep.subr.bf16.mxu0 %v11361
        %11986 = vmatpush1.bf16.msra.mxu0 %v11360
        %11987 = vmatprep.subr.bf16.mxu0 %v11365
        %11988 = vmatpush1.bf16.msra.mxu0 %v11364
        %11989 = vmatprep.subr.bf16.mxu0 %v11369
        %11990 = vmatpush1.bf16.msra.mxu0 %v11368
        %11991 = vmatprep.mubr.bf16.mxu0 %v10191
        %11992 = vmatmul.mubr.bf16.gmra.mrb[0].mxu0 %v10190
        %v11993 = vpop.f32.mrb[0].mxu0
        %v11994 = vadd.f32 %v11953, %v11993
        %v11995 = vpop.f32.mrb[0].mxu0
        %v11996 = vadd.f32 %v11955, %v11995
        %v11997 = vpop.f32.mrb[0].mxu0
        %v11998 = vpop.f32.mrb[0].mxu0
        %11999 = vdwg.mxu0
        %12000 = vmatprep.subr.bf16.mxu0 %v11373
        %12001 = vmatpush1.bf16.msra.mxu0 %v11372
        %12002 = vmatprep.subr.bf16.mxu0 %v11377
        %12003 = vmatpush1.bf16.msra.mxu0 %v11376
        %12004 = vmatprep.subr.bf16.mxu0 %v11381
        %12005 = vmatpush1.bf16.msra.mxu0 %v11380
        %12006 = vmatprep.subr.bf16.mxu0 %v11385
        %12007 = vmatpush1.bf16.msra.mxu0 %v11384
        %12008 = vmatprep.subr.bf16.mxu0 %v11389
        %12009 = vmatpush1.bf16.msra.mxu0 %v11388
        %12010 = vmatprep.subr.bf16.mxu0 %v11393
        %12011 = vmatpush1.bf16.msra.mxu0 %v11392
        %12012 = vmatprep.subr.bf16.mxu0 %v11397
        %12013 = vmatpush1.bf16.msra.mxu0 %v11396
        %12014 = vmatprep.subr.bf16.mxu0 %v11401
        %12015 = vmatpush1.bf16.msra.mxu0 %v11400
        %12016 = vmatprep.subr.bf16.mxu0 %v11405
        %12017 = vmatpush1.bf16.msra.mxu0 %v11404
        %12018 = vmatprep.subr.bf16.mxu0 %v11409
        %12019 = vmatpush1.bf16.msra.mxu0 %v11408
        %12020 = vmatprep.subr.bf16.mxu0 %v11413
        %12021 = vmatpush1.bf16.msra.mxu0 %v11412
        %12022 = vmatprep.subr.bf16.mxu0 %v11417
        %12023 = vmatpush1.bf16.msra.mxu0 %v11416
        %12024 = vmatprep.subr.bf16.mxu0 %v11421
        %12025 = vmatpush1.bf16.msra.mxu0 %v11420
        %12026 = vmatprep.subr.bf16.mxu0 %v11425
        %12027 = vmatpush1.bf16.msra.mxu0 %v11424
        %12028 = vmatprep.subr.bf16.mxu0 %v11429
        %12029 = vmatpush1.bf16.msra.mxu0 %v11428
        %12030 = vmatprep.subr.bf16.mxu0 %v11433
        %12031 = vmatpush1.bf16.msra.mxu0 %v11432
        %12032 = vmatprep.mubr.bf16.mxu0 %v10193
        %12033 = vmatmul.mubr.bf16.gmra.mrb[0].mxu0 %v10192
        %v12034 = vpop.f32.mrb[0].mxu0
        %v12035 = vadd.f32 %v11994, %v12034
        %v12036 = vpop.f32.mrb[0].mxu0
        %v12037 = vadd.f32 %v11996, %v12036
        %v12038 = vpop.f32.mrb[0].mxu0
        %v12039 = vpop.f32.mrb[0].mxu0
        %12040 = vdwg.mxu0
        %12041 = vmatprep.subr.bf16.mxu0 %v11437
        %12042 = vmatpush1.bf16.msra.mxu0 %v11436
        %12043 = vmatprep.subr.bf16.mxu0 %v11441
        %12044 = vmatpush1.bf16.msra.mxu0 %v11440
        %12045 = vmatprep.subr.bf16.mxu0 %v11445
        %12046 = vmatpush1.bf16.msra.mxu0 %v11444
        %12047 = vmatprep.subr.bf16.mxu0 %v11449
        %12048 = vmatpush1.bf16.msra.mxu0 %v11448
        %12049 = vmatprep.subr.bf16.mxu0 %v11453
        %12050 = vmatpush1.bf16.msra.mxu0 %v11452
        %12051 = vmatprep.subr.bf16.mxu0 %v11457
        %12052 = vmatpush1.bf16.msra.mxu0 %v11456
        %12053 = vmatprep.subr.bf16.mxu0 %v11461
        %12054 = vmatpush1.bf16.msra.mxu0 %v11460
        %12055 = vmatprep.subr.bf16.mxu0 %v11465
        %12056 = vmatpush1.bf16.msra.mxu0 %v11464
        %12057 = vmatprep.subr.bf16.mxu0 %v11469
        %12058 = vmatpush1.bf16.msra.mxu0 %v11468
        %12059 = vmatprep.subr.bf16.mxu0 %v11473
        %12060 = vmatpush1.bf16.msra.mxu0 %v11472
        %12061 = vmatprep.subr.bf16.mxu0 %v11477
        %12062 = vmatpush1.bf16.msra.mxu0 %v11476
        %12063 = vmatprep.subr.bf16.mxu0 %v11481
        %12064 = vmatpush1.bf16.msra.mxu0 %v11480
        %12065 = vmatprep.subr.bf16.mxu0 %v11485
        %12066 = vmatpush1.bf16.msra.mxu0 %v11484
        %12067 = vmatprep.subr.bf16.mxu0 %v11489
        %12068 = vmatpush1.bf16.msra.mxu0 %v11488
        %12069 = vmatprep.subr.bf16.mxu0 %v11493
        %12070 = vmatpush1.bf16.msra.mxu0 %v11492
        %12071 = vmatprep.subr.bf16.mxu0 %v11497
        %12072 = vmatpush1.bf16.msra.mxu0 %v11496
        %12073 = vmatprep.mubr.bf16.mxu0 %v10195
        %12074 = vmatmul.mubr.bf16.gmra.mrb[0].mxu0 %v10194
        %v12075 = vpop.f32.mrb[0].mxu0
        %v12076 = vadd.f32 %v12035, %v12075
        %v12077 = vpop.f32.mrb[0].mxu0
        %v12078 = vadd.f32 %v12037, %v12077
        %v12079 = vpop.f32.mrb[0].mxu0
        %v12080 = vpop.f32.mrb[0].mxu0
        %12081 = vdwg.mxu0
        %12082 = vst [vmem:[%s645] sm:$0xff] %v11912
        %12083 = vst [vmem:[%s645 + $0x8] sm:$0xff] %v11914
        %12084 = vst [vmem:[%s645 + $0x10] sm:$0xff] %v12076
        %12085 = vst [vmem:[%s645 + $0x18] sm:$0xff] %v12078
        %s12086 = sand.u32 %s292, 1
        %s12087 = scalar_lea.sflag [#allocation4], %s12086
        %s12088 = sand.u32 %s292, 1
        %s12089 = smul.addr %s12088, 32
        %s12090 = scalar_lea.vmem [#allocation17], %s12089
        // Predicated region
        $region93: #{tpu_custom_call.1} parent=55 // pred_check
          %p12091 = pneg %p302
        $region94: #{tpu_custom_call.1} parent=55 // pred_check_branch
          %12093 = sbr.rel (%p12091) target = $region96
        $region95: #{tpu_custom_call.1} parent=55 // pred_region
          %s12095 = ssub.s32 512, 512
          %12096 = vsyncadd %s12087, %s12095
          %s12097 = smul.addr %s41, 4
          %s12098 = smul.addr %s40, 4
          %s12099 = sadd.s32 %s12097, %s12098
          %s12100 = smul.addr %s12099, 128
          %s12101 = scalar_lea.hbm %s9, %s12100
          %s12103 = sshll.u32 %s12090, 4
          %s12104 = int_to_ptr.vmem [resolvable:$true] %s12103
          %12106 = dma.vmem_to_hbm [thread:$0]  %s12104, 512, %s12101, %s12087
        $region96: #{tpu_custom_call.1} parent=55 // pred_fallthru
          _
      $region56: #{tpu_custom_call.1} parent=5 // pred_fallthru
        _
      %p12107 = scmp.le.s32.totalorder 2, %s31
      // Predicated region
      $region97: #{tpu_custom_call.1} parent=5 // pred_check
        %p12108 = pneg %p12107
      $region98: #{tpu_custom_call.1} parent=5 // pred_check_branch
        %12110 = sbr.rel (%p12108) target = $region100
      $region99: #{tpu_custom_call.1} parent=5 // pred_region
        %s12111 = ssub.s32 %s31, 2
        // Predicated region
        $region101: #{tpu_custom_call.1} parent=99 // pred_check
          %p12112 = pneg %p308
        $region102: #{tpu_custom_call.1} parent=99 // pred_check_branch
          %12114 = sbr.rel (%p12112) target = $region104
        $region103: #{tpu_custom_call.1} parent=99 // pred_region
          %s12115 = sand.u32 %s293, 1
          %s12116 = scalar_lea.sflag [#allocation4], %s12115
          %s12117 = sand.u32 %s293, 1
          %s12118 = smul.addr %s12117, 32
          %s12119 = scalar_lea.vmem [#allocation17], %s12118
          %12120 = dma.done %s12116, 512
        $region104: #{tpu_custom_call.1} parent=99 // pred_fallthru
          _
      $region100: #{tpu_custom_call.1} parent=5 // pred_fallthru
        _
    $region6: #{tpu_custom_call.1} parent=1 // loop_footer
      %s35 = sadd.s32 1, %s31
    $region7: #{tpu_custom_call.1} parent=1 // loop_footer_branch
      %30 = sbr.rel target = $region3
    $region8: #{tpu_custom_call.1} parent=1 // loop_exit
      _
    %12121 = vsyncpa [#allocation3], 1
    %s12122 = scalar_lea.sflag [#allocation3], 1
    %12123 = vsyncpa %s12122, 1
    %12124 = vsyncpa [#allocation6], 1
    %s12125 = scalar_lea.sflag [#allocation6], 1
    %12126 = vsyncpa %s12125, 1
    %12127 = vsyncpa [#allocation9], 1
    %s12128 = scalar_lea.sflag [#allocation9], 1
    %12129 = vsyncpa %s12128, 1
    %12130 = vsyncpa [#allocation12], 1
    %s12131 = scalar_lea.sflag [#allocation12], 1
    %12132 = vsyncpa %s12131, 1
    %12133 = vsyncpa [#allocation15], 1
    %s12134 = scalar_lea.sflag [#allocation15], 1
    %12135 = vsyncpa %s12134, 1
    %12136 = vsyncpa [#allocation4], 1
    %s12137 = scalar_lea.sflag [#allocation4], 1
    %12138 = vsyncpa %s12137, 1

</llo_original>
